<compile_context>
chip_gen: v7x
topology: tpu7x:2x2x1
jax: 0.10.0
libtpu: 0.0.40
codegen_flags: <defaults>
</compile_context>

<pallas_src>
import functools

import jax
import jax.numpy as jnp
from jax import lax
from jax.experimental import pallas as pl
from jax.experimental.pallas import tpu as pltpu

PAD = 9
OUT = 2 * PAD + 1                  # correlation output is 19x19
_VMEM_LIMIT = 32 * 1024 * 1024     # explicit budget: blocks total < 7 MiB with
                                   # double buffering -> safe on v5e/v6e (128 MiB)
                                   # and v7x (64 MiB physical / 32 MiB default).


# ----------------------------------------------------------------------------
# Pallas kernel 1: depthwise cross-correlation (+ fused ReLU), nonzero window only
#   out19[b, i, j, c] = relu( sum_{h,w} pad9(fm1)[b, i+h, j+w, c] * fm2[b, h, w, c] )
#   is zero outside i,j in [PAD-(H-1), PAD+(H-1)]; we compute only that window.
# ----------------------------------------------------------------------------
def _dw_corr_kernel(fm1s_ref, fm2_ref, out_ref, *, H, W):
    # fm1s_ref: (1, W, 3H-2, 2W-1, C) f32  pre-shifted, (H-1,W-1)-padded net1 map:
    #           fm1s[0, w, y, q, :] == pad_{H-1,W-1}(fm1)[y, q + w, :]
    # fm2_ref:  (1, H*W, C) f32            net2 features (depthwise filter)
    # out_ref:  (1, 2H-1, 2W-1, C) bf16    lane-dense (C = 256 on lanes)
    win_h = 2 * H - 1
    win_w = 2 * W - 1
    C = out_ref.shape[-1]
    for p in range(win_h):                               # one output row at a time
        acc = jnp.zeros((win_w, C), jnp.float32)         # (7, 256) f32 ~ 2 vregs
        for h in range(H):                               # static unroll (H*W = 16)
            for w in range(W):
                # leading-axis index (w, p+h) only: no sublane realignment
                patch = fm1s_ref[0, w, p + h, :, :]          # (win_w, C)
                frow = fm2_ref[0, pl.ds(h * W + w, 1), :]    # (1, C) per-tap row
                acc = acc + patch * frow                     # sublane-broadcast FMA
        out_ref[0, p] = jnp.maximum(acc, 0.0).astype(out_ref.dtype)  # fused ReLU


def depthwise_cross_correlation(fm1, fm2):
    """Equivalent of
         relu(F.conv2d(fm1.view(1,B*C,H,W), fm2.view(B*C,1,H,W),
                       padding=9, groups=B*C).view(B, C, 19, 19))
       returned channels-last: (B, 19, 19, C) bfloat16."""
    B, C, H, W = fm1.shape
    win_h, win_w = 2 * H - 1, 2 * W - 1
    assert win_h <= OUT and win_w <= OUT, "nonzero-window exploit needs H,W <= PAD+1"

    fm1_cl = jnp.transpose(fm1, (0, 2, 3, 1))                          # (B, H, W, C)
    fm2_cl = jnp.transpose(fm2, (0, 2, 3, 1))                          # (B, H, W, C)
    # Small (H-1, W-1) halo pad (10x10x256) + W-pre-shift (4x of ~100 KiB/batch)
    # so every in-kernel slice is on a leading axis.
    fm1p = jnp.pad(fm1_cl, ((0, 0), (H - 1, H - 1), (W - 1, W - 1), (0, 0)))
    fm1s = jnp.stack([fm1p[:, :, w:w + win_w, :] for w in range(W)], axis=1)
    fm2r = fm2_cl.reshape(B, H * W, C)

    win = pl.pallas_call(
        functools.partial(_dw_corr_kernel, H=H, W=W),
        out_shape=jax.ShapeDtypeStruct((B, win_h, win_w, C), jnp.bfloat16),
        grid=(B,),
        in_specs=[
            pl.BlockSpec((1, W, 3 * H - 2, win_w, C), lambda b: (b, 0, 0, 0, 0)),
            pl.BlockSpec((1, H * W, C), lambda b: (b, 0, 0)),
        ],
        out_specs=pl.BlockSpec((1, win_h, win_w, C), lambda b: (b, 0, 0, 0)),
        compiler_params=pltpu.CompilerParams(
            dimension_semantics=("parallel",),
            vmem_limit_bytes=_VMEM_LIMIT),
    )(fm1s, fm2r)

    # Re-embed the 7x7 window into the 19x19 map (structural zeros; ReLU(0)=0).
    ph, pw = PAD - (H - 1), PAD - (W - 1)
    return jnp.pad(win, ((0, 0),
                         (ph, OUT - win_h - ph),
                         (pw, OUT - win_w - pw),
                         (0, 0)))


# ----------------------------------------------------------------------------
# Pallas kernel 2: 3x3 convolution (conv_combo_{1,2}) as an MXU im2col matmul
#                  with BN-statistics epilogue (per-batch per-channel sum, sumsq)
# ----------------------------------------------------------------------------
def _conv_mm_kernel(p_ref, w_ref, b_ref, y_ref, s_ref, q_ref):
    # p_ref: (1, P, K) bf16 im2col patches for one batch element
    # w_ref: (K, Cout) bf16 — resident across the grid (constant index_map)
    # b_ref: (1, Cout) f32
    # y_ref: (1, P, Cout) f32 — lane-dense conv+bias output
    # s_ref, q_ref: (1, 1, Cout) f32 — per-batch sum / sum-of-squares over P rows
    y = jnp.dot(p_ref[0], w_ref[...], preferred_element_type=jnp.float32) + b_ref[...]
    y_ref[0] = y
    s_ref[0] = jnp.sum(y, axis=0, keepdims=True)          # XLU reduce, free filler
    q_ref[0] = jnp.sum(y * y, axis=0, keepdims=True)


def conv3x3_pallas(x_nhwc, w_oihw, bias):
    """3x3 conv, stride 1, padding 1, + bias.  x: (B, S, S, Cin) -> y (B, S*S, Cout)
       f32 plus per-batch channel sums / sums-of-squares (for BatchNorm).
       Per-batch im2col matmul on the MXU, bf16 inputs, f32 accumulation
       (K = 9*Cin = 2304 and Cout = 256 are MXU-friendly on all generations)."""
    B, S, _, Cin = x_nhwc.shape
    Cout = w_oihw.shape[0]
    K = 9 * Cin
    P = S * S
    xb = x_nhwc.astype(jnp.bfloat16)
    xp = jnp.pad(xb, ((0, 0), (1, 1), (1, 1), (0, 0)))
    cols = [xp[:, kh:kh + S, kw:kw + S, :] for kh in range(3) for kw in range(3)]
    patches = jnp.concatenate(cols, axis=-1).reshape(B, P, K)           # bf16
    # PyTorch conv weight is (Cout, Cin, kh, kw) -> (kh, kw, Cin, Cout) -> (K, Cout)
    w_mat = jnp.transpose(w_oihw, (2, 3, 1, 0)).reshape(K, Cout).astype(jnp.bfloat16)
    b_row = bias.reshape(1, Cout).astype(jnp.float32)

    y, s, q = pl.pallas_call(
        _conv_mm_kernel,
        out_shape=(jax.ShapeDtypeStruct((B, P, Cout), jnp.float32),
                   jax.ShapeDtypeStruct((B, 1, Cout), jnp.float32),
                   jax.ShapeDtypeStruct((B, 1, Cout), jnp.float32)),
        grid=(B,),
        in_specs=[
            pl.BlockSpec((1, P, K), lambda b: (b, 0, 0)),
            pl.BlockSpec((K, Cout), lambda b: (0, 0)),        # weight-resident
            pl.BlockSpec((1, Cout), lambda b: (0, 0)),        # bias-resident
        ],
        out_specs=(pl.BlockSpec((1, P, Cout), lambda b: (b, 0, 0)),
                   pl.BlockSpec((1, 1, Cout), lambda b: (b, 0, 0)),
                   pl.BlockSpec((1, 1, Cout), lambda b: (b, 0, 0))),
        compiler_params=pltpu.CompilerParams(
            dimension_semantics=("parallel",),
            vmem_limit_bytes=_VMEM_LIMIT),
    )(patches, w_mat, b_row)
    return y, s, q


def conv_combo(x_nhwc, params, eps=1e-5):
    """nn.Sequential(Conv2d(3x3, pad=1) -> BatchNorm2d (training stats) -> ReLU),
       channels-last.  BN statistics come from the kernel's epilogue sums; only the
       cheap normalize+ReLU+bf16-cast runs as plain JAX."""
    B, S = x_nhwc.shape[0], x_nhwc.shape[1]
    gamma, beta = params['bn']
    y, s, q = conv3x3_pallas(x_nhwc, params['w'], params['b'])   # y: (B, S*S, Cout)
    n = y.shape[0] * y.shape[1]                                  # N * H * W
    mean = jnp.sum(s, axis=(0, 1)) / n                           # (Cout,)
    var = jnp.maximum(jnp.sum(q, axis=(0, 1)) / n - mean * mean, 0.0)  # biased var
    inv = gamma * lax.rsqrt(var + eps)
    out = jnp.maximum((y - mean) * inv + beta, 0.0)
    return out.astype(jnp.bfloat16).reshape(B, S, S, -1)


# ----------------------------------------------------------------------------
# ResNet-18 backbone (plain JAX glue, NCHW) — conv1..layer3.  layer4 output
# (fm10) is computed by the original module but unused by the head, so skipped.
# ----------------------------------------------------------------------------
def conv2d(x, w, stride=1, padding=0):
    return lax.conv_general_dilated(
        x, w, window_strides=(stride, stride),
        padding=[(padding, padding), (padding, padding)],
        dimension_numbers=('NCHW', 'OIHW', 'NCHW'))


def batchnorm_nchw(x, gamma, beta, eps=1e-5):
    # nn.BatchNorm2d in training mode (batch statistics over N, H, W).
    mean = jnp.mean(x, axis=(0, 2, 3), keepdims=True)
    var = jnp.var(x, axis=(0, 2, 3), keepdims=True)
    g = gamma.reshape(1, -1, 1, 1)
    b = beta.reshape(1, -1, 1, 1)
    return g * (x - mean) / jnp.sqrt(var + eps) + b


def maxpool(x):
    return lax.reduce_window(
        x, -jnp.inf, lax.max,
        window_dimensions=(1, 1, 3, 3),
        window_strides=(1, 1, 2, 2),
        padding=[(0, 0), (0, 0), (1, 1), (1, 1)])


def basic_block(x, blk):
    out = conv2d(x, blk['conv1'], stride=blk['stride'], padding=1)
    out = batchnorm_nchw(out, *blk['bn1'])
    out = jnp.maximum(out, 0.0)
    out = conv2d(out, blk['conv2'], stride=1, padding=1)
    out = batchnorm_nchw(out, *blk['bn2'])
    if blk['downsample'] is not None:
        ds = blk['downsample']
        residual = batchnorm_nchw(
            conv2d(x, ds['conv'], stride=blk['stride'], padding=0), *ds['bn'])
    else:
        residual = x
    return jnp.maximum(out + residual, 0.0)


def resnet_forward(x, p):
    x = conv2d(x, p['conv1'], stride=2, padding=3)
    x = batchnorm_nchw(x, *p['bn1'])
    x = jnp.maximum(x, 0.0)
    x = maxpool(x)
    for blk in p['layer1']:
        x = basic_block(x, blk)
    for blk in p['layer2']:
        x = basic_block(x, blk)
    for blk in p['layer3']:
        x = basic_block(x, blk)
    return x  # fm19 (layer3 output, 256 channels for resnet18)


def _conv_init(key, out_c, in_c, kh, kw):
    fan_in = in_c * kh * kw
    std = (2.0 / fan_in) ** 0.5
    return std * jax.random.normal(key, (out_c, in_c, kh, kw), jnp.float32)


def init_resnet18(key):
    keys = iter(jax.random.split(key, 64))
    p = {'conv1': _conv_init(next(keys), 64, 3, 7, 7),
         'bn1': (jnp.ones(64, jnp.float32), jnp.zeros(64, jnp.float32))}

    def make_block(in_c, out_c, stride):
        blk = {
            'conv1': _conv_init(next(keys), out_c, in_c, 3, 3),
            'bn1': (jnp.ones(out_c, jnp.float32), jnp.zeros(out_c, jnp.float32)),
            'conv2': _conv_init(next(keys), out_c, out_c, 3, 3),
            'bn2': (jnp.ones(out_c, jnp.float32), jnp.zeros(out_c, jnp.float32)),
            'stride': stride,
            'downsample': None,
        }
        if stride != 1 or in_c != out_c:
            blk['downsample'] = {
                'conv': _conv_init(next(keys), out_c, in_c, 1, 1),
                'bn': (jnp.ones(out_c, jnp.float32), jnp.zeros(out_c, jnp.float32)),
            }
        return blk

    p['layer1'] = [make_block(64, 64, 1), make_block(64, 64, 1)]
    p['layer2'] = [make_block(64, 128, 2), make_block(128, 128, 1)]
    p['layer3'] = [make_block(128, 256, 2), make_block(256, 256, 1)]
    return p


def init_combo(key, cin, cout):
    k1, k2 = jax.random.split(key)
    std = (2.0 / (cin * 9)) ** 0.5
    return {'w': std * jax.random.normal(k1, (cout, cin, 3, 3), jnp.float32),
            'b': 0.01 * jax.random.normal(k2, (cout,), jnp.float32),
            'bn': (jnp.ones(cout, jnp.float32), jnp.zeros(cout, jnp.float32))}


# ----------------------------------------------------------------------------
if __name__ == "__main__":
    key = jax.random.PRNGKey(0)
    k_img1, k_img2, k_net1, k_net2, k_c1, k_c2, k_fc = jax.random.split(key, 7)

    # SMALL shapes: batch=2, RGB, 64x64 images -> layer3 features (2, 256, 4, 4)
    B, Cin, Himg, Wimg = 2, 3, 64, 64
    NCH = 256         # resnet18 layer3 channels
    NFILTERS = 256    # module default nfilters (nconvs=2, kernel_size=3)

    img1 = jax.random.normal(k_img1, (B, Cin, Himg, Wimg), jnp.float32)
    img2 = jax.random.normal(k_img2, (B, Cin, Himg, Wimg), jnp.float32)

    net1_params = init_resnet18(k_net1)
    net2_params = init_resnet18(k_net2)
    combo1 = init_combo(k_c1, NCH, NFILTERS)
    combo2 = init_combo(k_c2, NFILTERS, NFILTERS)
    kfw, kfb = jax.random.split(k_fc)
    # PyTorch Linear weight is (out_features, in_features)
    fc_w = 0.05 * jax.random.normal(kfw, (2, NFILTERS), jnp.float32)
    fc_b = 0.05 * jax.random.normal(kfb, (2,), jnp.float32)

    @jax.jit
    def forward(img1, img2):
        fm1 = resnet_forward(img1, net1_params)          # (B, 256, 4, 4)
        fm2 = resnet_forward(img2, net2_params)          # (B, 256, 4, 4)
        # depthwise (groups = B*C) cross-correlation + fused ReLU  [Pallas, VPU]
        out = depthwise_cross_correlation(fm1, fm2)      # (B, 19, 19, 256) bf16
        # conv_combo_1 / conv_combo_2: 3x3 conv [Pallas, MXU] + BN + ReLU
        out = conv_combo(out, combo1)                    # (B, 19, 19, 256) bf16
        out = conv_combo(out, combo2)                    # (B, 19, 19, 256) bf16
        pooled = jnp.mean(out.astype(jnp.float32), axis=(1, 2))  # adaptive_avg_pool2d
        return pooled @ fc_w.T + fc_b                    # Linear(256, 2) -> (B, 2)

    out = forward(img1, img2)
    jax.block_until_ready(out)
    assert out.shape == (B, 2) and out.dtype == jnp.float32
    print("KERNEL_OK")
</pallas_src>

<mosaic_0001>
module attributes {stable_mosaic.version = 11 : i64} {
  func.func @_dw_corr_kernel(%arg0: i32, %arg1: memref<1x4x10x7x256xf32, #tpu.memory_space<vmem>>, %arg2: memref<1x16x256xf32, #tpu.memory_space<vmem>>, %arg3: memref<1x7x7x256xbf16, #tpu.memory_space<vmem>>) attributes {dimension_semantics = [#tpu.dimension_semantics<parallel>], iteration_bounds = array<i64: 2>, scalar_prefetch = 0 : i64, scratch_operands = 0 : i64, tpu.core_type = #tpu.core_type<tc>, window_params = [{transform_indices = @transform_0, window_bounds = array<i64: 1, 4, 10, 7, 256>}, {transform_indices = @transform_1, window_bounds = array<i64: 1, 16, 256>}, {transform_indices = @transform_2, window_bounds = array<i64: 1, 7, 7, 256>}]} {
    %cst = arith.constant 0.000000e+00 : f32
    %0 = vector.broadcast %cst : f32 to vector<7x256xf32>
    %c0 = arith.constant 0 : index
    %c0_0 = arith.constant 0 : index
    %c0_1 = arith.constant 0 : index
    %c0_2 = arith.constant 0 : index
    %c0_3 = arith.constant 0 : index
    %1 = vector.load %arg1[%c0, %c0_0, %c0_1, %c0_2, %c0_3] : memref<1x4x10x7x256xf32, #tpu.memory_space<vmem>>, vector<1x1x1x7x256xf32>
    %2 = vector.shape_cast %1 : vector<1x1x1x7x256xf32> to vector<7x256xf32>
    %c0_4 = arith.constant 0 : index
    %c0_5 = arith.constant 0 : index
    %c0_6 = arith.constant 0 : index
    %3 = vector.load %arg2[%c0_4, %c0_5, %c0_6] : memref<1x16x256xf32, #tpu.memory_space<vmem>>, vector<1x1x256xf32>
    %4 = vector.shape_cast %3 : vector<1x1x256xf32> to vector<1x256xf32>
    %5 = vector.broadcast %4 : vector<1x256xf32> to vector<7x256xf32>
    %6 = arith.mulf %2, %5 : vector<7x256xf32>
    %7 = arith.addf %0, %6 : vector<7x256xf32>
    %c0_7 = arith.constant 0 : index
    %c1 = arith.constant 1 : index
    %c0_8 = arith.constant 0 : index
    %c0_9 = arith.constant 0 : index
    %c0_10 = arith.constant 0 : index
    %8 = vector.load %arg1[%c0_7, %c1, %c0_8, %c0_9, %c0_10] : memref<1x4x10x7x256xf32, #tpu.memory_space<vmem>>, vector<1x1x1x7x256xf32>
    %9 = vector.shape_cast %8 : vector<1x1x1x7x256xf32> to vector<7x256xf32>
    %c0_11 = arith.constant 0 : index
    %c1_12 = arith.constant 1 : index
    %c0_13 = arith.constant 0 : index
    %10 = vector.load %arg2[%c0_11, %c1_12, %c0_13] : memref<1x16x256xf32, #tpu.memory_space<vmem>>, vector<1x1x256xf32>
    %11 = vector.shape_cast %10 : vector<1x1x256xf32> to vector<1x256xf32>
    %12 = vector.broadcast %11 : vector<1x256xf32> to vector<7x256xf32>
    %13 = arith.mulf %9, %12 : vector<7x256xf32>
    %14 = arith.addf %7, %13 : vector<7x256xf32>
    %c0_14 = arith.constant 0 : index
    %c2 = arith.constant 2 : index
    %c0_15 = arith.constant 0 : index
    %c0_16 = arith.constant 0 : index
    %c0_17 = arith.constant 0 : index
    %15 = vector.load %arg1[%c0_14, %c2, %c0_15, %c0_16, %c0_17] : memref<1x4x10x7x256xf32, #tpu.memory_space<vmem>>, vector<1x1x1x7x256xf32>
    %16 = vector.shape_cast %15 : vector<1x1x1x7x256xf32> to vector<7x256xf32>
    %c0_18 = arith.constant 0 : index
    %c2_19 = arith.constant 2 : index
    %c0_20 = arith.constant 0 : index
    %17 = vector.load %arg2[%c0_18, %c2_19, %c0_20] : memref<1x16x256xf32, #tpu.memory_space<vmem>>, vector<1x1x256xf32>
    %18 = vector.shape_cast %17 : vector<1x1x256xf32> to vector<1x256xf32>
    %19 = vector.broadcast %18 : vector<1x256xf32> to vector<7x256xf32>
    %20 = arith.mulf %16, %19 : vector<7x256xf32>
    %21 = arith.addf %14, %20 : vector<7x256xf32>
    %c0_21 = arith.constant 0 : index
    %c3 = arith.constant 3 : index
    %c0_22 = arith.constant 0 : index
    %c0_23 = arith.constant 0 : index
    %c0_24 = arith.constant 0 : index
    %22 = vector.load %arg1[%c0_21, %c3, %c0_22, %c0_23, %c0_24] : memref<1x4x10x7x256xf32, #tpu.memory_space<vmem>>, vector<1x1x1x7x256xf32>
    %23 = vector.shape_cast %22 : vector<1x1x1x7x256xf32> to vector<7x256xf32>
    %c0_25 = arith.constant 0 : index
    %c3_26 = arith.constant 3 : index
    %c0_27 = arith.constant 0 : index
    %24 = vector.load %arg2[%c0_25, %c3_26, %c0_27] : memref<1x16x256xf32, #tpu.memory_space<vmem>>, vector<1x1x256xf32>
    %25 = vector.shape_cast %24 : vector<1x1x256xf32> to vector<1x256xf32>
    %26 = vector.broadcast %25 : vector<1x256xf32> to vector<7x256xf32>
    %27 = arith.mulf %23, %26 : vector<7x256xf32>
    %28 = arith.addf %21, %27 : vector<7x256xf32>
    %c0_28 = arith.constant 0 : index
    %c0_29 = arith.constant 0 : index
    %c1_30 = arith.constant 1 : index
    %c0_31 = arith.constant 0 : index
    %c0_32 = arith.constant 0 : index
    %29 = vector.load %arg1[%c0_28, %c0_29, %c1_30, %c0_31, %c0_32] : memref<1x4x10x7x256xf32, #tpu.memory_space<vmem>>, vector<1x1x1x7x256xf32>
    %30 = vector.shape_cast %29 : vector<1x1x1x7x256xf32> to vector<7x256xf32>
    %c0_33 = arith.constant 0 : index
    %c4 = arith.constant 4 : index
    %c0_34 = arith.constant 0 : index
    %31 = vector.load %arg2[%c0_33, %c4, %c0_34] : memref<1x16x256xf32, #tpu.memory_space<vmem>>, vector<1x1x256xf32>
    %32 = vector.shape_cast %31 : vector<1x1x256xf32> to vector<1x256xf32>
    %33 = vector.broadcast %32 : vector<1x256xf32> to vector<7x256xf32>
    %34 = arith.mulf %30, %33 : vector<7x256xf32>
    %35 = arith.addf %28, %34 : vector<7x256xf32>
    %c0_35 = arith.constant 0 : index
    %c1_36 = arith.constant 1 : index
    %c1_37 = arith.constant 1 : index
    %c0_38 = arith.constant 0 : index
    %c0_39 = arith.constant 0 : index
    %36 = vector.load %arg1[%c0_35, %c1_36, %c1_37, %c0_38, %c0_39] : memref<1x4x10x7x256xf32, #tpu.memory_space<vmem>>, vector<1x1x1x7x256xf32>
    %37 = vector.shape_cast %36 : vector<1x1x1x7x256xf32> to vector<7x256xf32>
    %c0_40 = arith.constant 0 : index
    %c5 = arith.constant 5 : index
    %c0_41 = arith.constant 0 : index
    %38 = vector.load %arg2[%c0_40, %c5, %c0_41] : memref<1x16x256xf32, #tpu.memory_space<vmem>>, vector<1x1x256xf32>
    %39 = vector.shape_cast %38 : vector<1x1x256xf32> to vector<1x256xf32>
    %40 = vector.broadcast %39 : vector<1x256xf32> to vector<7x256xf32>
    %41 = arith.mulf %37, %40 : vector<7x256xf32>
    %42 = arith.addf %35, %41 : vector<7x256xf32>
    %c0_42 = arith.constant 0 : index
    %c2_43 = arith.constant 2 : index
    %c1_44 = arith.constant 1 : index
    %c0_45 = arith.constant 0 : index
    %c0_46 = arith.constant 0 : index
    %43 = vector.load %arg1[%c0_42, %c2_43, %c1_44, %c0_45, %c0_46] : memref<1x4x10x7x256xf32, #tpu.memory_space<vmem>>, vector<1x1x1x7x256xf32>
    %44 = vector.shape_cast %43 : vector<1x1x1x7x256xf32> to vector<7x256xf32>
    %c0_47 = arith.constant 0 : index
    %c6 = arith.constant 6 : index
    %c0_48 = arith.constant 0 : index
    %45 = vector.load %arg2[%c0_47, %c6, %c0_48] : memref<1x16x256xf32, #tpu.memory_space<vmem>>, vector<1x1x256xf32>
    %46 = vector.shape_cast %45 : vector<1x1x256xf32> to vector<1x256xf32>
    %47 = vector.broadcast %46 : vector<1x256xf32> to vector<7x256xf32>
    %48 = arith.mulf %44, %47 : vector<7x256xf32>
    %49 = arith.addf %42, %48 : vector<7x256xf32>
    %c0_49 = arith.constant 0 : index
    %c3_50 = arith.constant 3 : index
    %c1_51 = arith.constant 1 : index
    %c0_52 = arith.constant 0 : index
    %c0_53 = arith.constant 0 : index
    %50 = vector.load %arg1[%c0_49, %c3_50, %c1_51, %c0_52, %c0_53] : memref<1x4x10x7x256xf32, #tpu.memory_space<vmem>>, vector<1x1x1x7x256xf32>
    %51 = vector.shape_cast %50 : vector<1x1x1x7x256xf32> to vector<7x256xf32>
    %c0_54 = arith.constant 0 : index
    %c7 = arith.constant 7 : index
    %c0_55 = arith.constant 0 : index
    %52 = vector.load %arg2[%c0_54, %c7, %c0_55] : memref<1x16x256xf32, #tpu.memory_space<vmem>>, vector<1x1x256xf32>
    %53 = vector.shape_cast %52 : vector<1x1x256xf32> to vector<1x256xf32>
    %54 = vector.broadcast %53 : vector<1x256xf32> to vector<7x256xf32>
    %55 = arith.mulf %51, %54 : vector<7x256xf32>
    %56 = arith.addf %49, %55 : vector<7x256xf32>
    %c0_56 = arith.constant 0 : index
    %c0_57 = arith.constant 0 : index
    %c2_58 = arith.constant 2 : index
    %c0_59 = arith.constant 0 : index
    %c0_60 = arith.constant 0 : index
    %57 = vector.load %arg1[%c0_56, %c0_57, %c2_58, %c0_59, %c0_60] : memref<1x4x10x7x256xf32, #tpu.memory_space<vmem>>, vector<1x1x1x7x256xf32>
    %58 = vector.shape_cast %57 : vector<1x1x1x7x256xf32> to vector<7x256xf32>
    %c0_61 = arith.constant 0 : index
    %c8 = arith.constant 8 : index
    %c0_62 = arith.constant 0 : index
    %59 = vector.load %arg2[%c0_61, %c8, %c0_62] : memref<1x16x256xf32, #tpu.memory_space<vmem>>, vector<1x1x256xf32>
    %60 = vector.shape_cast %59 : vector<1x1x256xf32> to vector<1x256xf32>
    %61 = vector.broadcast %60 : vector<1x256xf32> to vector<7x256xf32>
    %62 = arith.mulf %58, %61 : vector<7x256xf32>
    %63 = arith.addf %56, %62 : vector<7x256xf32>
    %c0_63 = arith.constant 0 : index
    %c1_64 = arith.constant 1 : index
    %c2_65 = arith.constant 2 : index
    %c0_66 = arith.constant 0 : index
    %c0_67 = arith.constant 0 : index
    %64 = vector.load %arg1[%c0_63, %c1_64, %c2_65, %c0_66, %c0_67] : memref<1x4x10x7x256xf32, #tpu.memory_space<vmem>>, vector<1x1x1x7x256xf32>
    %65 = vector.shape_cast %64 : vector<1x1x1x7x256xf32> to vector<7x256xf32>
    %c0_68 = arith.constant 0 : index
    %c9 = arith.constant 9 : index
    %c0_69 = arith.constant 0 : index
    %66 = vector.load %arg2[%c0_68, %c9, %c0_69] : memref<1x16x256xf32, #tpu.memory_space<vmem>>, vector<1x1x256xf32>
    %67 = vector.shape_cast %66 : vector<1x1x256xf32> to vector<1x256xf32>
    %68 = vector.broadcast %67 : vector<1x256xf32> to vector<7x256xf32>
    %69 = arith.mulf %65, %68 : vector<7x256xf32>
    %70 = arith.addf %63, %69 : vector<7x256xf32>
    %c0_70 = arith.constant 0 : index
    %c2_71 = arith.constant 2 : index
    %c2_72 = arith.constant 2 : index
    %c0_73 = arith.constant 0 : index
    %c0_74 = arith.constant 0 : index
    %71 = vector.load %arg1[%c0_70, %c2_71, %c2_72, %c0_73, %c0_74] : memref<1x4x10x7x256xf32, #tpu.memory_space<vmem>>, vector<1x1x1x7x256xf32>
    %72 = vector.shape_cast %71 : vector<1x1x1x7x256xf32> to vector<7x256xf32>
    %c0_75 = arith.constant 0 : index
    %c10 = arith.constant 10 : index
    %c0_76 = arith.constant 0 : index
    %73 = vector.load %arg2[%c0_75, %c10, %c0_76] : memref<1x16x256xf32, #tpu.memory_space<vmem>>, vector<1x1x256xf32>
    %74 = vector.shape_cast %73 : vector<1x1x256xf32> to vector<1x256xf32>
    %75 = vector.broadcast %74 : vector<1x256xf32> to vector<7x256xf32>
    %76 = arith.mulf %72, %75 : vector<7x256xf32>
    %77 = arith.addf %70, %76 : vector<7x256xf32>
    %c0_77 = arith.constant 0 : index
    %c3_78 = arith.constant 3 : index
    %c2_79 = arith.constant 2 : index
    %c0_80 = arith.constant 0 : index
    %c0_81 = arith.constant 0 : index
    %78 = vector.load %arg1[%c0_77, %c3_78, %c2_79, %c0_80, %c0_81] : memref<1x4x10x7x256xf32, #tpu.memory_space<vmem>>, vector<1x1x1x7x256xf32>
    %79 = vector.shape_cast %78 : vector<1x1x1x7x256xf32> to vector<7x256xf32>
    %c0_82 = arith.constant 0 : index
    %c11 = arith.constant 11 : index
    %c0_83 = arith.constant 0 : index
    %80 = vector.load %arg2[%c0_82, %c11, %c0_83] : memref<1x16x256xf32, #tpu.memory_space<vmem>>, vector<1x1x256xf32>
    %81 = vector.shape_cast %80 : vector<1x1x256xf32> to vector<1x256xf32>
    %82 = vector.broadcast %81 : vector<1x256xf32> to vector<7x256xf32>
    %83 = arith.mulf %79, %82 : vector<7x256xf32>
    %84 = arith.addf %77, %83 : vector<7x256xf32>
    %c0_84 = arith.constant 0 : index
    %c0_85 = arith.constant 0 : index
    %c3_86 = arith.constant 3 : index
    %c0_87 = arith.constant 0 : index
    %c0_88 = arith.constant 0 : index
    %85 = vector.load %arg1[%c0_84, %c0_85, %c3_86, %c0_87, %c0_88] : memref<1x4x10x7x256xf32, #tpu.memory_space<vmem>>, vector<1x1x1x7x256xf32>
    %86 = vector.shape_cast %85 : vector<1x1x1x7x256xf32> to vector<7x256xf32>
    %c0_89 = arith.constant 0 : index
    %c12 = arith.constant 12 : index
    %c0_90 = arith.constant 0 : index
    %87 = vector.load %arg2[%c0_89, %c12, %c0_90] : memref<1x16x256xf32, #tpu.memory_space<vmem>>, vector<1x1x256xf32>
    %88 = vector.shape_cast %87 : vector<1x1x256xf32> to vector<1x256xf32>
    %89 = vector.broadcast %88 : vector<1x256xf32> to vector<7x256xf32>
    %90 = arith.mulf %86, %89 : vector<7x256xf32>
    %91 = arith.addf %84, %90 : vector<7x256xf32>
    %c0_91 = arith.constant 0 : index
    %c1_92 = arith.constant 1 : index
    %c3_93 = arith.constant 3 : index
    %c0_94 = arith.constant 0 : index
    %c0_95 = arith.constant 0 : index
    %92 = vector.load %arg1[%c0_91, %c1_92, %c3_93, %c0_94, %c0_95] : memref<1x4x10x7x256xf32, #tpu.memory_space<vmem>>, vector<1x1x1x7x256xf32>
    %93 = vector.shape_cast %92 : vector<1x1x1x7x256xf32> to vector<7x256xf32>
    %c0_96 = arith.constant 0 : index
    %c13 = arith.constant 13 : index
    %c0_97 = arith.constant 0 : index
    %94 = vector.load %arg2[%c0_96, %c13, %c0_97] : memref<1x16x256xf32, #tpu.memory_space<vmem>>, vector<1x1x256xf32>
    %95 = vector.shape_cast %94 : vector<1x1x256xf32> to vector<1x256xf32>
    %96 = vector.broadcast %95 : vector<1x256xf32> to vector<7x256xf32>
    %97 = arith.mulf %93, %96 : vector<7x256xf32>
    %98 = arith.addf %91, %97 : vector<7x256xf32>
    %c0_98 = arith.constant 0 : index
    %c2_99 = arith.constant 2 : index
    %c3_100 = arith.constant 3 : index
    %c0_101 = arith.constant 0 : index
    %c0_102 = arith.constant 0 : index
    %99 = vector.load %arg1[%c0_98, %c2_99, %c3_100, %c0_101, %c0_102] : memref<1x4x10x7x256xf32, #tpu.memory_space<vmem>>, vector<1x1x1x7x256xf32>
    %100 = vector.shape_cast %99 : vector<1x1x1x7x256xf32> to vector<7x256xf32>
    %c0_103 = arith.constant 0 : index
    %c14 = arith.constant 14 : index
    %c0_104 = arith.constant 0 : index
    %101 = vector.load %arg2[%c0_103, %c14, %c0_104] : memref<1x16x256xf32, #tpu.memory_space<vmem>>, vector<1x1x256xf32>
    %102 = vector.shape_cast %101 : vector<1x1x256xf32> to vector<1x256xf32>
    %103 = vector.broadcast %102 : vector<1x256xf32> to vector<7x256xf32>
    %104 = arith.mulf %100, %103 : vector<7x256xf32>
    %105 = arith.addf %98, %104 : vector<7x256xf32>
    %c0_105 = arith.constant 0 : index
    %c3_106 = arith.constant 3 : index
    %c3_107 = arith.constant 3 : index
    %c0_108 = arith.constant 0 : index
    %c0_109 = arith.constant 0 : index
    %106 = vector.load %arg1[%c0_105, %c3_106, %c3_107, %c0_108, %c0_109] : memref<1x4x10x7x256xf32, #tpu.memory_space<vmem>>, vector<1x1x1x7x256xf32>
    %107 = vector.shape_cast %106 : vector<1x1x1x7x256xf32> to vector<7x256xf32>
    %c0_110 = arith.constant 0 : index
    %c15 = arith.constant 15 : index
    %c0_111 = arith.constant 0 : index
    %108 = vector.load %arg2[%c0_110, %c15, %c0_111] : memref<1x16x256xf32, #tpu.memory_space<vmem>>, vector<1x1x256xf32>
    %109 = vector.shape_cast %108 : vector<1x1x256xf32> to vector<1x256xf32>
    %110 = vector.broadcast %109 : vector<1x256xf32> to vector<7x256xf32>
    %111 = arith.mulf %107, %110 : vector<7x256xf32>
    %112 = arith.addf %105, %111 : vector<7x256xf32>
    %cst_112 = arith.constant 0.000000e+00 : f32
    %113 = vector.broadcast %cst_112 : f32 to vector<7x256xf32>
    %114 = arith.maximumf %112, %113 : vector<7x256xf32>
    %115 = arith.truncf %114 : vector<7x256xf32> to vector<7x256xbf16>
    %c0_113 = arith.constant 0 : index
    %c0_114 = arith.constant 0 : index
    %c0_115 = arith.constant 0 : index
    %c0_116 = arith.constant 0 : index
    %116 = vector.load %arg3[%c0_113, %c0_114, %c0_115, %c0_116] : memref<1x7x7x256xbf16, #tpu.memory_space<vmem>>, vector<1x1x7x256xbf16>
    %117 = vector.shape_cast %116 : vector<1x1x7x256xbf16> to vector<7x256xbf16>
    %118 = vector.shape_cast %115 : vector<7x256xbf16> to vector<1x1x7x256xbf16>
    tpu.vector_store %arg3[%c0_113, %c0_114, %c0_115, %c0_116], %118 {strides = array<i32>} : memref<1x7x7x256xbf16, #tpu.memory_space<vmem>>, vector<1x1x7x256xbf16>,
    %cst_117 = arith.constant 0.000000e+00 : f32
    %119 = vector.broadcast %cst_117 : f32 to vector<7x256xf32>
    %c0_118 = arith.constant 0 : index
    %c0_119 = arith.constant 0 : index
    %c1_120 = arith.constant 1 : index
    %c0_121 = arith.constant 0 : index
    %c0_122 = arith.constant 0 : index
    %120 = vector.load %arg1[%c0_118, %c0_119, %c1_120, %c0_121, %c0_122] : memref<1x4x10x7x256xf32, #tpu.memory_space<vmem>>, vector<1x1x1x7x256xf32>
    %121 = vector.shape_cast %120 : vector<1x1x1x7x256xf32> to vector<7x256xf32>
    %c0_123 = arith.constant 0 : index
    %c0_124 = arith.constant 0 : index
    %c0_125 = arith.constant 0 : index
    %122 = vector.load %arg2[%c0_123, %c0_124, %c0_125] : memref<1x16x256xf32, #tpu.memory_space<vmem>>, vector<1x1x256xf32>
    %123 = vector.shape_cast %122 : vector<1x1x256xf32> to vector<1x256xf32>
    %124 = vector.broadcast %123 : vector<1x256xf32> to vector<7x256xf32>
    %125 = arith.mulf %121, %124 : vector<7x256xf32>
    %126 = arith.addf %119, %125 : vector<7x256xf32>
    %c0_126 = arith.constant 0 : index
    %c1_127 = arith.constant 1 : index
    %c1_128 = arith.constant 1 : index
    %c0_129 = arith.constant 0 : index
    %c0_130 = arith.constant 0 : index
    %127 = vector.load %arg1[%c0_126, %c1_127, %c1_128, %c0_129, %c0_130] : memref<1x4x10x7x256xf32, #tpu.memory_space<vmem>>, vector<1x1x1x7x256xf32>
    %128 = vector.shape_cast %127 : vector<1x1x1x7x256xf32> to vector<7x256xf32>
    %c0_131 = arith.constant 0 : index
    %c1_132 = arith.constant 1 : index
    %c0_133 = arith.constant 0 : index
    %129 = vector.load %arg2[%c0_131, %c1_132, %c0_133] : memref<1x16x256xf32, #tpu.memory_space<vmem>>, vector<1x1x256xf32>
    %130 = vector.shape_cast %129 : vector<1x1x256xf32> to vector<1x256xf32>
    %131 = vector.broadcast %130 : vector<1x256xf32> to vector<7x256xf32>
    %132 = arith.mulf %128, %131 : vector<7x256xf32>
    %133 = arith.addf %126, %132 : vector<7x256xf32>
    %c0_134 = arith.constant 0 : index
    %c2_135 = arith.constant 2 : index
    %c1_136 = arith.constant 1 : index
    %c0_137 = arith.constant 0 : index
    %c0_138 = arith.constant 0 : index
    %134 = vector.load %arg1[%c0_134, %c2_135, %c1_136, %c0_137, %c0_138] : memref<1x4x10x7x256xf32, #tpu.memory_space<vmem>>, vector<1x1x1x7x256xf32>
    %135 = vector.shape_cast %134 : vector<1x1x1x7x256xf32> to vector<7x256xf32>
    %c0_139 = arith.constant 0 : index
    %c2_140 = arith.constant 2 : index
    %c0_141 = arith.constant 0 : index
    %136 = vector.load %arg2[%c0_139, %c2_140, %c0_141] : memref<1x16x256xf32, #tpu.memory_space<vmem>>, vector<1x1x256xf32>
    %137 = vector.shape_cast %136 : vector<1x1x256xf32> to vector<1x256xf32>
    %138 = vector.broadcast %137 : vector<1x256xf32> to vector<7x256xf32>
    %139 = arith.mulf %135, %138 : vector<7x256xf32>
    %140 = arith.addf %133, %139 : vector<7x256xf32>
    %c0_142 = arith.constant 0 : index
    %c3_143 = arith.constant 3 : index
    %c1_144 = arith.constant 1 : index
    %c0_145 = arith.constant 0 : index
    %c0_146 = arith.constant 0 : index
    %141 = vector.load %arg1[%c0_142, %c3_143, %c1_144, %c0_145, %c0_146] : memref<1x4x10x7x256xf32, #tpu.memory_space<vmem>>, vector<1x1x1x7x256xf32>
    %142 = vector.shape_cast %141 : vector<1x1x1x7x256xf32> to vector<7x256xf32>
    %c0_147 = arith.constant 0 : index
    %c3_148 = arith.constant 3 : index
    %c0_149 = arith.constant 0 : index
    %143 = vector.load %arg2[%c0_147, %c3_148, %c0_149] : memref<1x16x256xf32, #tpu.memory_space<vmem>>, vector<1x1x256xf32>
    %144 = vector.shape_cast %143 : vector<1x1x256xf32> to vector<1x256xf32>
    %145 = vector.broadcast %144 : vector<1x256xf32> to vector<7x256xf32>
    %146 = arith.mulf %142, %145 : vector<7x256xf32>
    %147 = arith.addf %140, %146 : vector<7x256xf32>
    %c0_150 = arith.constant 0 : index
    %c0_151 = arith.constant 0 : index
    %c2_152 = arith.constant 2 : index
    %c0_153 = arith.constant 0 : index
    %c0_154 = arith.constant 0 : index
    %148 = vector.load %arg1[%c0_150, %c0_151, %c2_152, %c0_153, %c0_154] : memref<1x4x10x7x256xf32, #tpu.memory_space<vmem>>, vector<1x1x1x7x256xf32>
    %149 = vector.shape_cast %148 : vector<1x1x1x7x256xf32> to vector<7x256xf32>
    %c0_155 = arith.constant 0 : index
    %c4_156 = arith.constant 4 : index
    %c0_157 = arith.constant 0 : index
    %150 = vector.load %arg2[%c0_155, %c4_156, %c0_157] : memref<1x16x256xf32, #tpu.memory_space<vmem>>, vector<1x1x256xf32>
    %151 = vector.shape_cast %150 : vector<1x1x256xf32> to vector<1x256xf32>
    %152 = vector.broadcast %151 : vector<1x256xf32> to vector<7x256xf32>
    %153 = arith.mulf %149, %152 : vector<7x256xf32>
    %154 = arith.addf %147, %153 : vector<7x256xf32>
    %c0_158 = arith.constant 0 : index
    %c1_159 = arith.constant 1 : index
    %c2_160 = arith.constant 2 : index
    %c0_161 = arith.constant 0 : index
    %c0_162 = arith.constant 0 : index
    %155 = vector.load %arg1[%c0_158, %c1_159, %c2_160, %c0_161, %c0_162] : memref<1x4x10x7x256xf32, #tpu.memory_space<vmem>>, vector<1x1x1x7x256xf32>
    %156 = vector.shape_cast %155 : vector<1x1x1x7x256xf32> to vector<7x256xf32>
    %c0_163 = arith.constant 0 : index
    %c5_164 = arith.constant 5 : index
    %c0_165 = arith.constant 0 : index
    %157 = vector.load %arg2[%c0_163, %c5_164, %c0_165] : memref<1x16x256xf32, #tpu.memory_space<vmem>>, vector<1x1x256xf32>
    %158 = vector.shape_cast %157 : vector<1x1x256xf32> to vector<1x256xf32>
    %159 = vector.broadcast %158 : vector<1x256xf32> to vector<7x256xf32>
    %160 = arith.mulf %156, %159 : vector<7x256xf32>
    %161 = arith.addf %154, %160 : vector<7x256xf32>
    %c0_166 = arith.constant 0 : index
    %c2_167 = arith.constant 2 : index
    %c2_168 = arith.constant 2 : index
    %c0_169 = arith.constant 0 : index
    %c0_170 = arith.constant 0 : index
    %162 = vector.load %arg1[%c0_166, %c2_167, %c2_168, %c0_169, %c0_170] : memref<1x4x10x7x256xf32, #tpu.memory_space<vmem>>, vector<1x1x1x7x256xf32>
    %163 = vector.shape_cast %162 : vector<1x1x1x7x256xf32> to vector<7x256xf32>
    %c0_171 = arith.constant 0 : index
    %c6_172 = arith.constant 6 : index
    %c0_173 = arith.constant 0 : index
    %164 = vector.load %arg2[%c0_171, %c6_172, %c0_173] : memref<1x16x256xf32, #tpu.memory_space<vmem>>, vector<1x1x256xf32>
    %165 = vector.shape_cast %164 : vector<1x1x256xf32> to vector<1x256xf32>
    %166 = vector.broadcast %165 : vector<1x256xf32> to vector<7x256xf32>
    %167 = arith.mulf %163, %166 : vector<7x256xf32>
    %168 = arith.addf %161, %167 : vector<7x256xf32>
    %c0_174 = arith.constant 0 : index
    %c3_175 = arith.constant 3 : index
    %c2_176 = arith.constant 2 : index
    %c0_177 = arith.constant 0 : index
    %c0_178 = arith.constant 0 : index
    %169 = vector.load %arg1[%c0_174, %c3_175, %c2_176, %c0_177, %c0_178] : memref<1x4x10x7x256xf32, #tpu.memory_space<vmem>>, vector<1x1x1x7x256xf32>
    %170 = vector.shape_cast %169 : vector<1x1x1x7x256xf32> to vector<7x256xf32>
    %c0_179 = arith.constant 0 : index
    %c7_180 = arith.constant 7 : index
    %c0_181 = arith.constant 0 : index
    %171 = vector.load %arg2[%c0_179, %c7_180, %c0_181] : memref<1x16x256xf32, #tpu.memory_space<vmem>>, vector<1x1x256xf32>
    %172 = vector.shape_cast %171 : vector<1x1x256xf32> to vector<1x256xf32>
    %173 = vector.broadcast %172 : vector<1x256xf32> to vector<7x256xf32>
    %174 = arith.mulf %170, %173 : vector<7x256xf32>
    %175 = arith.addf %168, %174 : vector<7x256xf32>
    %c0_182 = arith.constant 0 : index
    %c0_183 = arith.constant 0 : index
    %c3_184 = arith.constant 3 : index
    %c0_185 = arith.constant 0 : index
    %c0_186 = arith.constant 0 : index
    %176 = vector.load %arg1[%c0_182, %c0_183, %c3_184, %c0_185, %c0_186] : memref<1x4x10x7x256xf32, #tpu.memory_space<vmem>>, vector<1x1x1x7x256xf32>
    %177 = vector.shape_cast %176 : vector<1x1x1x7x256xf32> to vector<7x256xf32>
    %c0_187 = arith.constant 0 : index
    %c8_188 = arith.constant 8 : index
    %c0_189 = arith.constant 0 : index
    %178 = vector.load %arg2[%c0_187, %c8_188, %c0_189] : memref<1x16x256xf32, #tpu.memory_space<vmem>>, vector<1x1x256xf32>
    %179 = vector.shape_cast %178 : vector<1x1x256xf32> to vector<1x256xf32>
    %180 = vector.broadcast %179 : vector<1x256xf32> to vector<7x256xf32>
    %181 = arith.mulf %177, %180 : vector<7x256xf32>
    %182 = arith.addf %175, %181 : vector<7x256xf32>
    %c0_190 = arith.constant 0 : index
    %c1_191 = arith.constant 1 : index
    %c3_192 = arith.constant 3 : index
    %c0_193 = arith.constant 0 : index
    %c0_194 = arith.constant 0 : index
    %183 = vector.load %arg1[%c0_190, %c1_191, %c3_192, %c0_193, %c0_194] : memref<1x4x10x7x256xf32, #tpu.memory_space<vmem>>, vector<1x1x1x7x256xf32>
    %184 = vector.shape_cast %183 : vector<1x1x1x7x256xf32> to vector<7x256xf32>
    %c0_195 = arith.constant 0 : index
    %c9_196 = arith.constant 9 : index
    %c0_197 = arith.constant 0 : index
    %185 = vector.load %arg2[%c0_195, %c9_196, %c0_197] : memref<1x16x256xf32, #tpu.memory_space<vmem>>, vector<1x1x256xf32>
    %186 = vector.shape_cast %185 : vector<1x1x256xf32> to vector<1x256xf32>
    %187 = vector.broadcast %186 : vector<1x256xf32> to vector<7x256xf32>
    %188 = arith.mulf %184, %187 : vector<7x256xf32>
    %189 = arith.addf %182, %188 : vector<7x256xf32>
    %c0_198 = arith.constant 0 : index
    %c2_199 = arith.constant 2 : index
    %c3_200 = arith.constant 3 : index
    %c0_201 = arith.constant 0 : index
    %c0_202 = arith.constant 0 : index
    %190 = vector.load %arg1[%c0_198, %c2_199, %c3_200, %c0_201, %c0_202] : memref<1x4x10x7x256xf32, #tpu.memory_space<vmem>>, vector<1x1x1x7x256xf32>
    %191 = vector.shape_cast %190 : vector<1x1x1x7x256xf32> to vector<7x256xf32>
    %c0_203 = arith.constant 0 : index
    %c10_204 = arith.constant 10 : index
    %c0_205 = arith.constant 0 : index
    %192 = vector.load %arg2[%c0_203, %c10_204, %c0_205] : memref<1x16x256xf32, #tpu.memory_space<vmem>>, vector<1x1x256xf32>
    %193 = vector.shape_cast %192 : vector<1x1x256xf32> to vector<1x256xf32>
    %194 = vector.broadcast %193 : vector<1x256xf32> to vector<7x256xf32>
    %195 = arith.mulf %191, %194 : vector<7x256xf32>
    %196 = arith.addf %189, %195 : vector<7x256xf32>
    %c0_206 = arith.constant 0 : index
    %c3_207 = arith.constant 3 : index
    %c3_208 = arith.constant 3 : index
    %c0_209 = arith.constant 0 : index
    %c0_210 = arith.constant 0 : index
    %197 = vector.load %arg1[%c0_206, %c3_207, %c3_208, %c0_209, %c0_210] : memref<1x4x10x7x256xf32, #tpu.memory_space<vmem>>, vector<1x1x1x7x256xf32>
    %198 = vector.shape_cast %197 : vector<1x1x1x7x256xf32> to vector<7x256xf32>
    %c0_211 = arith.constant 0 : index
    %c11_212 = arith.constant 11 : index
    %c0_213 = arith.constant 0 : index
    %199 = vector.load %arg2[%c0_211, %c11_212, %c0_213] : memref<1x16x256xf32, #tpu.memory_space<vmem>>, vector<1x1x256xf32>
    %200 = vector.shape_cast %199 : vector<1x1x256xf32> to vector<1x256xf32>
    %201 = vector.broadcast %200 : vector<1x256xf32> to vector<7x256xf32>
    %202 = arith.mulf %198, %201 : vector<7x256xf32>
    %203 = arith.addf %196, %202 : vector<7x256xf32>
    %c0_214 = arith.constant 0 : index
    %c0_215 = arith.constant 0 : index
    %c4_216 = arith.constant 4 : index
    %c0_217 = arith.constant 0 : index
    %c0_218 = arith.constant 0 : index
    %204 = vector.load %arg1[%c0_214, %c0_215, %c4_216, %c0_217, %c0_218] : memref<1x4x10x7x256xf32, #tpu.memory_space<vmem>>, vector<1x1x1x7x256xf32>
    %205 = vector.shape_cast %204 : vector<1x1x1x7x256xf32> to vector<7x256xf32>
    %c0_219 = arith.constant 0 : index
    %c12_220 = arith.constant 12 : index
    %c0_221 = arith.constant 0 : index
    %206 = vector.load %arg2[%c0_219, %c12_220, %c0_221] : memref<1x16x256xf32, #tpu.memory_space<vmem>>, vector<1x1x256xf32>
    %207 = vector.shape_cast %206 : vector<1x1x256xf32> to vector<1x256xf32>
    %208 = vector.broadcast %207 : vector<1x256xf32> to vector<7x256xf32>
    %209 = arith.mulf %205, %208 : vector<7x256xf32>
    %210 = arith.addf %203, %209 : vector<7x256xf32>
    %c0_222 = arith.constant 0 : index
    %c1_223 = arith.constant 1 : index
    %c4_224 = arith.constant 4 : index
    %c0_225 = arith.constant 0 : index
    %c0_226 = arith.constant 0 : index
    %211 = vector.load %arg1[%c0_222, %c1_223, %c4_224, %c0_225, %c0_226] : memref<1x4x10x7x256xf32, #tpu.memory_space<vmem>>, vector<1x1x1x7x256xf32>
    %212 = vector.shape_cast %211 : vector<1x1x1x7x256xf32> to vector<7x256xf32>
    %c0_227 = arith.constant 0 : index
    %c13_228 = arith.constant 13 : index
    %c0_229 = arith.constant 0 : index
    %213 = vector.load %arg2[%c0_227, %c13_228, %c0_229] : memref<1x16x256xf32, #tpu.memory_space<vmem>>, vector<1x1x256xf32>
    %214 = vector.shape_cast %213 : vector<1x1x256xf32> to vector<1x256xf32>
    %215 = vector.broadcast %214 : vector<1x256xf32> to vector<7x256xf32>
    %216 = arith.mulf %212, %215 : vector<7x256xf32>
    %217 = arith.addf %210, %216 : vector<7x256xf32>
    %c0_230 = arith.constant 0 : index
    %c2_231 = arith.constant 2 : index
    %c4_232 = arith.constant 4 : index
    %c0_233 = arith.constant 0 : index
    %c0_234 = arith.constant 0 : index
    %218 = vector.load %arg1[%c0_230, %c2_231, %c4_232, %c0_233, %c0_234] : memref<1x4x10x7x256xf32, #tpu.memory_space<vmem>>, vector<1x1x1x7x256xf32>
    %219 = vector.shape_cast %218 : vector<1x1x1x7x256xf32> to vector<7x256xf32>
    %c0_235 = arith.constant 0 : index
    %c14_236 = arith.constant 14 : index
    %c0_237 = arith.constant 0 : index
    %220 = vector.load %arg2[%c0_235, %c14_236, %c0_237] : memref<1x16x256xf32, #tpu.memory_space<vmem>>, vector<1x1x256xf32>
    %221 = vector.shape_cast %220 : vector<1x1x256xf32> to vector<1x256xf32>
    %222 = vector.broadcast %221 : vector<1x256xf32> to vector<7x256xf32>
    %223 = arith.mulf %219, %222 : vector<7x256xf32>
    %224 = arith.addf %217, %223 : vector<7x256xf32>
    %c0_238 = arith.constant 0 : index
    %c3_239 = arith.constant 3 : index
    %c4_240 = arith.constant 4 : index
    %c0_241 = arith.constant 0 : index
    %c0_242 = arith.constant 0 : index
    %225 = vector.load %arg1[%c0_238, %c3_239, %c4_240, %c0_241, %c0_242] : memref<1x4x10x7x256xf32, #tpu.memory_space<vmem>>, vector<1x1x1x7x256xf32>
    %226 = vector.shape_cast %225 : vector<1x1x1x7x256xf32> to vector<7x256xf32>
    %c0_243 = arith.constant 0 : index
    %c15_244 = arith.constant 15 : index
    %c0_245 = arith.constant 0 : index
    %227 = vector.load %arg2[%c0_243, %c15_244, %c0_245] : memref<1x16x256xf32, #tpu.memory_space<vmem>>, vector<1x1x256xf32>
    %228 = vector.shape_cast %227 : vector<1x1x256xf32> to vector<1x256xf32>
    %229 = vector.broadcast %228 : vector<1x256xf32> to vector<7x256xf32>
    %230 = arith.mulf %226, %229 : vector<7x256xf32>
    %231 = arith.addf %224, %230 : vector<7x256xf32>
    %cst_246 = arith.constant 0.000000e+00 : f32
    %232 = vector.broadcast %cst_246 : f32 to vector<7x256xf32>
    %233 = arith.maximumf %231, %232 : vector<7x256xf32>
    %234 = arith.truncf %233 : vector<7x256xf32> to vector<7x256xbf16>
    %c0_247 = arith.constant 0 : index
    %c1_248 = arith.constant 1 : index
    %c0_249 = arith.constant 0 : index
    %c0_250 = arith.constant 0 : index
    %235 = vector.load %arg3[%c0_247, %c1_248, %c0_249, %c0_250] : memref<1x7x7x256xbf16, #tpu.memory_space<vmem>>, vector<1x1x7x256xbf16>
    %236 = vector.shape_cast %235 : vector<1x1x7x256xbf16> to vector<7x256xbf16>
    %237 = vector.shape_cast %234 : vector<7x256xbf16> to vector<1x1x7x256xbf16>
    tpu.vector_store %arg3[%c0_247, %c1_248, %c0_249, %c0_250], %237 {strides = array<i32>} : memref<1x7x7x256xbf16, #tpu.memory_space<vmem>>, vector<1x1x7x256xbf16>,
    %cst_251 = arith.constant 0.000000e+00 : f32
    %238 = vector.broadcast %cst_251 : f32 to vector<7x256xf32>
    %c0_252 = arith.constant 0 : index
    %c0_253 = arith.constant 0 : index
    %c2_254 = arith.constant 2 : index
    %c0_255 = arith.constant 0 : index
    %c0_256 = arith.constant 0 : index
    %239 = vector.load %arg1[%c0_252, %c0_253, %c2_254, %c0_255, %c0_256] : memref<1x4x10x7x256xf32, #tpu.memory_space<vmem>>, vector<1x1x1x7x256xf32>
    %240 = vector.shape_cast %239 : vector<1x1x1x7x256xf32> to vector<7x256xf32>
    %c0_257 = arith.constant 0 : index
    %c0_258 = arith.constant 0 : index
    %c0_259 = arith.constant 0 : index
    %241 = vector.load %arg2[%c0_257, %c0_258, %c0_259] : memref<1x16x256xf32, #tpu.memory_space<vmem>>, vector<1x1x256xf32>
    %242 = vector.shape_cast %241 : vector<1x1x256xf32> to vector<1x256xf32>
    %243 = vector.broadcast %242 : vector<1x256xf32> to vector<7x256xf32>
    %244 = arith.mulf %240, %243 : vector<7x256xf32>
    %245 = arith.addf %238, %244 : vector<7x256xf32>
    %c0_260 = arith.constant 0 : index
    %c1_261 = arith.constant 1 : index
    %c2_262 = arith.constant 2 : index
    %c0_263 = arith.constant 0 : index
    %c0_264 = arith.constant 0 : index
    %246 = vector.load %arg1[%c0_260, %c1_261, %c2_262, %c0_263, %c0_264] : memref<1x4x10x7x256xf32, #tpu.memory_space<vmem>>, vector<1x1x1x7x256xf32>
    %247 = vector.shape_cast %246 : vector<1x1x1x7x256xf32> to vector<7x256xf32>
    %c0_265 = arith.constant 0 : index
    %c1_266 = arith.constant 1 : index
    %c0_267 = arith.constant 0 : index
    %248 = vector.load %arg2[%c0_265, %c1_266, %c0_267] : memref<1x16x256xf32, #tpu.memory_space<vmem>>, vector<1x1x256xf32>
    %249 = vector.shape_cast %248 : vector<1x1x256xf32> to vector<1x256xf32>
    %250 = vector.broadcast %249 : vector<1x256xf32> to vector<7x256xf32>
    %251 = arith.mulf %247, %250 : vector<7x256xf32>
    %252 = arith.addf %245, %251 : vector<7x256xf32>
    %c0_268 = arith.constant 0 : index
    %c2_269 = arith.constant 2 : index
    %c2_270 = arith.constant 2 : index
    %c0_271 = arith.constant 0 : index
    %c0_272 = arith.constant 0 : index
    %253 = vector.load %arg1[%c0_268, %c2_269, %c2_270, %c0_271, %c0_272] : memref<1x4x10x7x256xf32, #tpu.memory_space<vmem>>, vector<1x1x1x7x256xf32>
    %254 = vector.shape_cast %253 : vector<1x1x1x7x256xf32> to vector<7x256xf32>
    %c0_273 = arith.constant 0 : index
    %c2_274 = arith.constant 2 : index
    %c0_275 = arith.constant 0 : index
    %255 = vector.load %arg2[%c0_273, %c2_274, %c0_275] : memref<1x16x256xf32, #tpu.memory_space<vmem>>, vector<1x1x256xf32>
    %256 = vector.shape_cast %255 : vector<1x1x256xf32> to vector<1x256xf32>
    %257 = vector.broadcast %256 : vector<1x256xf32> to vector<7x256xf32>
    %258 = arith.mulf %254, %257 : vector<7x256xf32>
    %259 = arith.addf %252, %258 : vector<7x256xf32>
    %c0_276 = arith.constant 0 : index
    %c3_277 = arith.constant 3 : index
    %c2_278 = arith.constant 2 : index
    %c0_279 = arith.constant 0 : index
    %c0_280 = arith.constant 0 : index
    %260 = vector.load %arg1[%c0_276, %c3_277, %c2_278, %c0_279, %c0_280] : memref<1x4x10x7x256xf32, #tpu.memory_space<vmem>>, vector<1x1x1x7x256xf32>
    %261 = vector.shape_cast %260 : vector<1x1x1x7x256xf32> to vector<7x256xf32>
    %c0_281 = arith.constant 0 : index
    %c3_282 = arith.constant 3 : index
    %c0_283 = arith.constant 0 : index
    %262 = vector.load %arg2[%c0_281, %c3_282, %c0_283] : memref<1x16x256xf32, #tpu.memory_space<vmem>>, vector<1x1x256xf32>
    %263 = vector.shape_cast %262 : vector<1x1x256xf32> to vector<1x256xf32>
    %264 = vector.broadcast %263 : vector<1x256xf32> to vector<7x256xf32>
    %265 = arith.mulf %261, %264 : vector<7x256xf32>
    %266 = arith.addf %259, %265 : vector<7x256xf32>
    %c0_284 = arith.constant 0 : index
    %c0_285 = arith.constant 0 : index
    %c3_286 = arith.constant 3 : index
    %c0_287 = arith.constant 0 : index
    %c0_288 = arith.constant 0 : index
    %267 = vector.load %arg1[%c0_284, %c0_285, %c3_286, %c0_287, %c0_288] : memref<1x4x10x7x256xf32, #tpu.memory_space<vmem>>, vector<1x1x1x7x256xf32>
    %268 = vector.shape_cast %267 : vector<1x1x1x7x256xf32> to vector<7x256xf32>
    %c0_289 = arith.constant 0 : index
    %c4_290 = arith.constant 4 : index
    %c0_291 = arith.constant 0 : index
    %269 = vector.load %arg2[%c0_289, %c4_290, %c0_291] : memref<1x16x256xf32, #tpu.memory_space<vmem>>, vector<1x1x256xf32>
    %270 = vector.shape_cast %269 : vector<1x1x256xf32> to vector<1x256xf32>
    %271 = vector.broadcast %270 : vector<1x256xf32> to vector<7x256xf32>
    %272 = arith.mulf %268, %271 : vector<7x256xf32>
    %273 = arith.addf %266, %272 : vector<7x256xf32>
    %c0_292 = arith.constant 0 : index
    %c1_293 = arith.constant 1 : index
    %c3_294 = arith.constant 3 : index
    %c0_295 = arith.constant 0 : index
    %c0_296 = arith.constant 0 : index
    %274 = vector.load %arg1[%c0_292, %c1_293, %c3_294, %c0_295, %c0_296] : memref<1x4x10x7x256xf32, #tpu.memory_space<vmem>>, vector<1x1x1x7x256xf32>
    %275 = vector.shape_cast %274 : vector<1x1x1x7x256xf32> to vector<7x256xf32>
    %c0_297 = arith.constant 0 : index
    %c5_298 = arith.constant 5 : index
    %c0_299 = arith.constant 0 : index
    %276 = vector.load %arg2[%c0_297, %c5_298, %c0_299] : memref<1x16x256xf32, #tpu.memory_space<vmem>>, vector<1x1x256xf32>
    %277 = vector.shape_cast %276 : vector<1x1x256xf32> to vector<1x256xf32>
    %278 = vector.broadcast %277 : vector<1x256xf32> to vector<7x256xf32>
    %279 = arith.mulf %275, %278 : vector<7x256xf32>
    %280 = arith.addf %273, %279 : vector<7x256xf32>
    %c0_300 = arith.constant 0 : index
    %c2_301 = arith.constant 2 : index
    %c3_302 = arith.constant 3 : index
    %c0_303 = arith.constant 0 : index
    %c0_304 = arith.constant 0 : index
    %281 = vector.load %arg1[%c0_300, %c2_301, %c3_302, %c0_303, %c0_304] : memref<1x4x10x7x256xf32, #tpu.memory_space<vmem>>, vector<1x1x1x7x256xf32>
    %282 = vector.shape_cast %281 : vector<1x1x1x7x256xf32> to vector<7x256xf32>
    %c0_305 = arith.constant 0 : index
    %c6_306 = arith.constant 6 : index
    %c0_307 = arith.constant 0 : index
    %283 = vector.load %arg2[%c0_305, %c6_306, %c0_307] : memref<1x16x256xf32, #tpu.memory_space<vmem>>, vector<1x1x256xf32>
    %284 = vector.shape_cast %283 : vector<1x1x256xf32> to vector<1x256xf32>
    %285 = vector.broadcast %284 : vector<1x256xf32> to vector<7x256xf32>
    %286 = arith.mulf %282, %285 : vector<7x256xf32>
    %287 = arith.addf %280, %286 : vector<7x256xf32>
    %c0_308 = arith.constant 0 : index
    %c3_309 = arith.constant 3 : index
    %c3_310 = arith.constant 3 : index
    %c0_311 = arith.constant 0 : index
    %c0_312 = arith.constant 0 : index
    %288 = vector.load %arg1[%c0_308, %c3_309, %c3_310, %c0_311, %c0_312] : memref<1x4x10x7x256xf32, #tpu.memory_space<vmem>>, vector<1x1x1x7x256xf32>
    %289 = vector.shape_cast %288 : vector<1x1x1x7x256xf32> to vector<7x256xf32>
    %c0_313 = arith.constant 0 : index
    %c7_314 = arith.constant 7 : index
    %c0_315 = arith.constant 0 : index
    %290 = vector.load %arg2[%c0_313, %c7_314, %c0_315] : memref<1x16x256xf32, #tpu.memory_space<vmem>>, vector<1x1x256xf32>
    %291 = vector.shape_cast %290 : vector<1x1x256xf32> to vector<1x256xf32>
    %292 = vector.broadcast %291 : vector<1x256xf32> to vector<7x256xf32>
    %293 = arith.mulf %289, %292 : vector<7x256xf32>
    %294 = arith.addf %287, %293 : vector<7x256xf32>
    %c0_316 = arith.constant 0 : index
    %c0_317 = arith.constant 0 : index
    %c4_318 = arith.constant 4 : index
    %c0_319 = arith.constant 0 : index
    %c0_320 = arith.constant 0 : index
    %295 = vector.load %arg1[%c0_316, %c0_317, %c4_318, %c0_319, %c0_320] : memref<1x4x10x7x256xf32, #tpu.memory_space<vmem>>, vector<1x1x1x7x256xf32>
    %296 = vector.shape_cast %295 : vector<1x1x1x7x256xf32> to vector<7x256xf32>
    %c0_321 = arith.constant 0 : index
    %c8_322 = arith.constant 8 : index
    %c0_323 = arith.constant 0 : index
    %297 = vector.load %arg2[%c0_321, %c8_322, %c0_323] : memref<1x16x256xf32, #tpu.memory_space<vmem>>, vector<1x1x256xf32>
    %298 = vector.shape_cast %297 : vector<1x1x256xf32> to vector<1x256xf32>
    %299 = vector.broadcast %298 : vector<1x256xf32> to vector<7x256xf32>
    %300 = arith.mulf %296, %299 : vector<7x256xf32>
    %301 = arith.addf %294, %300 : vector<7x256xf32>
    %c0_324 = arith.constant 0 : index
    %c1_325 = arith.constant 1 : index
    %c4_326 = arith.constant 4 : index
    %c0_327 = arith.constant 0 : index
    %c0_328 = arith.constant 0 : index
    %302 = vector.load %arg1[%c0_324, %c1_325, %c4_326, %c0_327, %c0_328] : memref<1x4x10x7x256xf32, #tpu.memory_space<vmem>>, vector<1x1x1x7x256xf32>
    %303 = vector.shape_cast %302 : vector<1x1x1x7x256xf32> to vector<7x256xf32>
    %c0_329 = arith.constant 0 : index
    %c9_330 = arith.constant 9 : index
    %c0_331 = arith.constant 0 : index
    %304 = vector.load %arg2[%c0_329, %c9_330, %c0_331] : memref<1x16x256xf32, #tpu.memory_space<vmem>>, vector<1x1x256xf32>
    %305 = vector.shape_cast %304 : vector<1x1x256xf32> to vector<1x256xf32>
    %306 = vector.broadcast %305 : vector<1x256xf32> to vector<7x256xf32>
    %307 = arith.mulf %303, %306 : vector<7x256xf32>
    %308 = arith.addf %301, %307 : vector<7x256xf32>
    %c0_332 = arith.constant 0 : index
    %c2_333 = arith.constant 2 : index
    %c4_334 = arith.constant 4 : index
    %c0_335 = arith.constant 0 : index
    %c0_336 = arith.constant 0 : index
    %309 = vector.load %arg1[%c0_332, %c2_333, %c4_334, %c0_335, %c0_336] : memref<1x4x10x7x256xf32, #tpu.memory_space<vmem>>, vector<1x1x1x7x256xf32>
    %310 = vector.shape_cast %309 : vector<1x1x1x7x256xf32> to vector<7x256xf32>
    %c0_337 = arith.constant 0 : index
    %c10_338 = arith.constant 10 : index
    %c0_339 = arith.constant 0 : index
    %311 = vector.load %arg2[%c0_337, %c10_338, %c0_339] : memref<1x16x256xf32, #tpu.memory_space<vmem>>, vector<1x1x256xf32>
    %312 = vector.shape_cast %311 : vector<1x1x256xf32> to vector<1x256xf32>
    %313 = vector.broadcast %312 : vector<1x256xf32> to vector<7x256xf32>
    %314 = arith.mulf %310, %313 : vector<7x256xf32>
    %315 = arith.addf %308, %314 : vector<7x256xf32>
    %c0_340 = arith.constant 0 : index
    %c3_341 = arith.constant 3 : index
    %c4_342 = arith.constant 4 : index
    %c0_343 = arith.constant 0 : index
    %c0_344 = arith.constant 0 : index
    %316 = vector.load %arg1[%c0_340, %c3_341, %c4_342, %c0_343, %c0_344] : memref<1x4x10x7x256xf32, #tpu.memory_space<vmem>>, vector<1x1x1x7x256xf32>
    %317 = vector.shape_cast %316 : vector<1x1x1x7x256xf32> to vector<7x256xf32>
    %c0_345 = arith.constant 0 : index
    %c11_346 = arith.constant 11 : index
    %c0_347 = arith.constant 0 : index
    %318 = vector.load %arg2[%c0_345, %c11_346, %c0_347] : memref<1x16x256xf32, #tpu.memory_space<vmem>>, vector<1x1x256xf32>
    %319 = vector.shape_cast %318 : vector<1x1x256xf32> to vector<1x256xf32>
    %320 = vector.broadcast %319 : vector<1x256xf32> to vector<7x256xf32>
    %321 = arith.mulf %317, %320 : vector<7x256xf32>
    %322 = arith.addf %315, %321 : vector<7x256xf32>
    %c0_348 = arith.constant 0 : index
    %c0_349 = arith.constant 0 : index
    %c5_350 = arith.constant 5 : index
    %c0_351 = arith.constant 0 : index
    %c0_352 = arith.constant 0 : index
    %323 = vector.load %arg1[%c0_348, %c0_349, %c5_350, %c0_351, %c0_352] : memref<1x4x10x7x256xf32, #tpu.memory_space<vmem>>, vector<1x1x1x7x256xf32>
    %324 = vector.shape_cast %323 : vector<1x1x1x7x256xf32> to vector<7x256xf32>
    %c0_353 = arith.constant 0 : index
    %c12_354 = arith.constant 12 : index
    %c0_355 = arith.constant 0 : index
    %325 = vector.load %arg2[%c0_353, %c12_354, %c0_355] : memref<1x16x256xf32, #tpu.memory_space<vmem>>, vector<1x1x256xf32>
    %326 = vector.shape_cast %325 : vector<1x1x256xf32> to vector<1x256xf32>
    %327 = vector.broadcast %326 : vector<1x256xf32> to vector<7x256xf32>
    %328 = arith.mulf %324, %327 : vector<7x256xf32>
    %329 = arith.addf %322, %328 : vector<7x256xf32>
    %c0_356 = arith.constant 0 : index
    %c1_357 = arith.constant 1 : index
    %c5_358 = arith.constant 5 : index
    %c0_359 = arith.constant 0 : index
    %c0_360 = arith.constant 0 : index
    %330 = vector.load %arg1[%c0_356, %c1_357, %c5_358, %c0_359, %c0_360] : memref<1x4x10x7x256xf32, #tpu.memory_space<vmem>>, vector<1x1x1x7x256xf32>
    %331 = vector.shape_cast %330 : vector<1x1x1x7x256xf32> to vector<7x256xf32>
    %c0_361 = arith.constant 0 : index
    %c13_362 = arith.constant 13 : index
    %c0_363 = arith.constant 0 : index
    %332 = vector.load %arg2[%c0_361, %c13_362, %c0_363] : memref<1x16x256xf32, #tpu.memory_space<vmem>>, vector<1x1x256xf32>
    %333 = vector.shape_cast %332 : vector<1x1x256xf32> to vector<1x256xf32>
    %334 = vector.broadcast %333 : vector<1x256xf32> to vector<7x256xf32>
    %335 = arith.mulf %331, %334 : vector<7x256xf32>
    %336 = arith.addf %329, %335 : vector<7x256xf32>
    %c0_364 = arith.constant 0 : index
    %c2_365 = arith.constant 2 : index
    %c5_366 = arith.constant 5 : index
    %c0_367 = arith.constant 0 : index
    %c0_368 = arith.constant 0 : index
    %337 = vector.load %arg1[%c0_364, %c2_365, %c5_366, %c0_367, %c0_368] : memref<1x4x10x7x256xf32, #tpu.memory_space<vmem>>, vector<1x1x1x7x256xf32>
    %338 = vector.shape_cast %337 : vector<1x1x1x7x256xf32> to vector<7x256xf32>
    %c0_369 = arith.constant 0 : index
    %c14_370 = arith.constant 14 : index
    %c0_371 = arith.constant 0 : index
    %339 = vector.load %arg2[%c0_369, %c14_370, %c0_371] : memref<1x16x256xf32, #tpu.memory_space<vmem>>, vector<1x1x256xf32>
    %340 = vector.shape_cast %339 : vector<1x1x256xf32> to vector<1x256xf32>
    %341 = vector.broadcast %340 : vector<1x256xf32> to vector<7x256xf32>
    %342 = arith.mulf %338, %341 : vector<7x256xf32>
    %343 = arith.addf %336, %342 : vector<7x256xf32>
    %c0_372 = arith.constant 0 : index
    %c3_373 = arith.constant 3 : index
    %c5_374 = arith.constant 5 : index
    %c0_375 = arith.constant 0 : index
    %c0_376 = arith.constant 0 : index
    %344 = vector.load %arg1[%c0_372, %c3_373, %c5_374, %c0_375, %c0_376] : memref<1x4x10x7x256xf32, #tpu.memory_space<vmem>>, vector<1x1x1x7x256xf32>
    %345 = vector.shape_cast %344 : vector<1x1x1x7x256xf32> to vector<7x256xf32>
    %c0_377 = arith.constant 0 : index
    %c15_378 = arith.constant 15 : index
    %c0_379 = arith.constant 0 : index
    %346 = vector.load %arg2[%c0_377, %c15_378, %c0_379] : memref<1x16x256xf32, #tpu.memory_space<vmem>>, vector<1x1x256xf32>
    %347 = vector.shape_cast %346 : vector<1x1x256xf32> to vector<1x256xf32>
    %348 = vector.broadcast %347 : vector<1x256xf32> to vector<7x256xf32>
    %349 = arith.mulf %345, %348 : vector<7x256xf32>
    %350 = arith.addf %343, %349 : vector<7x256xf32>
    %cst_380 = arith.constant 0.000000e+00 : f32
    %351 = vector.broadcast %cst_380 : f32 to vector<7x256xf32>
    %352 = arith.maximumf %350, %351 : vector<7x256xf32>
    %353 = arith.truncf %352 : vector<7x256xf32> to vector<7x256xbf16>
    %c0_381 = arith.constant 0 : index
    %c2_382 = arith.constant 2 : index
    %c0_383 = arith.constant 0 : index
    %c0_384 = arith.constant 0 : index
    %354 = vector.load %arg3[%c0_381, %c2_382, %c0_383, %c0_384] : memref<1x7x7x256xbf16, #tpu.memory_space<vmem>>, vector<1x1x7x256xbf16>
    %355 = vector.shape_cast %354 : vector<1x1x7x256xbf16> to vector<7x256xbf16>
    %356 = vector.shape_cast %353 : vector<7x256xbf16> to vector<1x1x7x256xbf16>
    tpu.vector_store %arg3[%c0_381, %c2_382, %c0_383, %c0_384], %356 {strides = array<i32>} : memref<1x7x7x256xbf16, #tpu.memory_space<vmem>>, vector<1x1x7x256xbf16>,
    %cst_385 = arith.constant 0.000000e+00 : f32
    %357 = vector.broadcast %cst_385 : f32 to vector<7x256xf32>
    %c0_386 = arith.constant 0 : index
    %c0_387 = arith.constant 0 : index
    %c3_388 = arith.constant 3 : index
    %c0_389 = arith.constant 0 : index
    %c0_390 = arith.constant 0 : index
    %358 = vector.load %arg1[%c0_386, %c0_387, %c3_388, %c0_389, %c0_390] : memref<1x4x10x7x256xf32, #tpu.memory_space<vmem>>, vector<1x1x1x7x256xf32>
    %359 = vector.shape_cast %358 : vector<1x1x1x7x256xf32> to vector<7x256xf32>
    %c0_391 = arith.constant 0 : index
    %c0_392 = arith.constant 0 : index
    %c0_393 = arith.constant 0 : index
    %360 = vector.load %arg2[%c0_391, %c0_392, %c0_393] : memref<1x16x256xf32, #tpu.memory_space<vmem>>, vector<1x1x256xf32>
    %361 = vector.shape_cast %360 : vector<1x1x256xf32> to vector<1x256xf32>
    %362 = vector.broadcast %361 : vector<1x256xf32> to vector<7x256xf32>
    %363 = arith.mulf %359, %362 : vector<7x256xf32>
    %364 = arith.addf %357, %363 : vector<7x256xf32>
    %c0_394 = arith.constant 0 : index
    %c1_395 = arith.constant 1 : index
    %c3_396 = arith.constant 3 : index
    %c0_397 = arith.constant 0 : index
    %c0_398 = arith.constant 0 : index
    %365 = vector.load %arg1[%c0_394, %c1_395, %c3_396, %c0_397, %c0_398] : memref<1x4x10x7x256xf32, #tpu.memory_space<vmem>>, vector<1x1x1x7x256xf32>
    %366 = vector.shape_cast %365 : vector<1x1x1x7x256xf32> to vector<7x256xf32>
    %c0_399 = arith.constant 0 : index
    %c1_400 = arith.constant 1 : index
    %c0_401 = arith.constant 0 : index
    %367 = vector.load %arg2[%c0_399, %c1_400, %c0_401] : memref<1x16x256xf32, #tpu.memory_space<vmem>>, vector<1x1x256xf32>
    %368 = vector.shape_cast %367 : vector<1x1x256xf32> to vector<1x256xf32>
    %369 = vector.broadcast %368 : vector<1x256xf32> to vector<7x256xf32>
    %370 = arith.mulf %366, %369 : vector<7x256xf32>
    %371 = arith.addf %364, %370 : vector<7x256xf32>
    %c0_402 = arith.constant 0 : index
    %c2_403 = arith.constant 2 : index
    %c3_404 = arith.constant 3 : index
    %c0_405 = arith.constant 0 : index
    %c0_406 = arith.constant 0 : index
    %372 = vector.load %arg1[%c0_402, %c2_403, %c3_404, %c0_405, %c0_406] : memref<1x4x10x7x256xf32, #tpu.memory_space<vmem>>, vector<1x1x1x7x256xf32>
    %373 = vector.shape_cast %372 : vector<1x1x1x7x256xf32> to vector<7x256xf32>
    %c0_407 = arith.constant 0 : index
    %c2_408 = arith.constant 2 : index
    %c0_409 = arith.constant 0 : index
    %374 = vector.load %arg2[%c0_407, %c2_408, %c0_409] : memref<1x16x256xf32, #tpu.memory_space<vmem>>, vector<1x1x256xf32>
    %375 = vector.shape_cast %374 : vector<1x1x256xf32> to vector<1x256xf32>
    %376 = vector.broadcast %375 : vector<1x256xf32> to vector<7x256xf32>
    %377 = arith.mulf %373, %376 : vector<7x256xf32>
    %378 = arith.addf %371, %377 : vector<7x256xf32>
    %c0_410 = arith.constant 0 : index
    %c3_411 = arith.constant 3 : index
    %c3_412 = arith.constant 3 : index
    %c0_413 = arith.constant 0 : index
    %c0_414 = arith.constant 0 : index
    %379 = vector.load %arg1[%c0_410, %c3_411, %c3_412, %c0_413, %c0_414] : memref<1x4x10x7x256xf32, #tpu.memory_space<vmem>>, vector<1x1x1x7x256xf32>
    %380 = vector.shape_cast %379 : vector<1x1x1x7x256xf32> to vector<7x256xf32>
    %c0_415 = arith.constant 0 : index
    %c3_416 = arith.constant 3 : index
    %c0_417 = arith.constant 0 : index
    %381 = vector.load %arg2[%c0_415, %c3_416, %c0_417] : memref<1x16x256xf32, #tpu.memory_space<vmem>>, vector<1x1x256xf32>
    %382 = vector.shape_cast %381 : vector<1x1x256xf32> to vector<1x256xf32>
    %383 = vector.broadcast %382 : vector<1x256xf32> to vector<7x256xf32>
    %384 = arith.mulf %380, %383 : vector<7x256xf32>
    %385 = arith.addf %378, %384 : vector<7x256xf32>
    %c0_418 = arith.constant 0 : index
    %c0_419 = arith.constant 0 : index
    %c4_420 = arith.constant 4 : index
    %c0_421 = arith.constant 0 : index
    %c0_422 = arith.constant 0 : index
    %386 = vector.load %arg1[%c0_418, %c0_419, %c4_420, %c0_421, %c0_422] : memref<1x4x10x7x256xf32, #tpu.memory_space<vmem>>, vector<1x1x1x7x256xf32>
    %387 = vector.shape_cast %386 : vector<1x1x1x7x256xf32> to vector<7x256xf32>
    %c0_423 = arith.constant 0 : index
    %c4_424 = arith.constant 4 : index
    %c0_425 = arith.constant 0 : index
    %388 = vector.load %arg2[%c0_423, %c4_424, %c0_425] : memref<1x16x256xf32, #tpu.memory_space<vmem>>, vector<1x1x256xf32>
    %389 = vector.shape_cast %388 : vector<1x1x256xf32> to vector<1x256xf32>
    %390 = vector.broadcast %389 : vector<1x256xf32> to vector<7x256xf32>
    %391 = arith.mulf %387, %390 : vector<7x256xf32>
    %392 = arith.addf %385, %391 : vector<7x256xf32>
    %c0_426 = arith.constant 0 : index
    %c1_427 = arith.constant 1 : index
    %c4_428 = arith.constant 4 : index
    %c0_429 = arith.constant 0 : index
    %c0_430 = arith.constant 0 : index
    %393 = vector.load %arg1[%c0_426, %c1_427, %c4_428, %c0_429, %c0_430] : memref<1x4x10x7x256xf32, #tpu.memory_space<vmem>>, vector<1x1x1x7x256xf32>
    %394 = vector.shape_cast %393 : vector<1x1x1x7x256xf32> to vector<7x256xf32>
    %c0_431 = arith.constant 0 : index
    %c5_432 = arith.constant 5 : index
    %c0_433 = arith.constant 0 : index
    %395 = vector.load %arg2[%c0_431, %c5_432, %c0_433] : memref<1x16x256xf32, #tpu.memory_space<vmem>>, vector<1x1x256xf32>
    %396 = vector.shape_cast %395 : vector<1x1x256xf32> to vector<1x256xf32>
    %397 = vector.broadcast %396 : vector<1x256xf32> to vector<7x256xf32>
    %398 = arith.mulf %394, %397 : vector<7x256xf32>
    %399 = arith.addf %392, %398 : vector<7x256xf32>
    %c0_434 = arith.constant 0 : index
    %c2_435 = arith.constant 2 : index
    %c4_436 = arith.constant 4 : index
    %c0_437 = arith.constant 0 : index
    %c0_438 = arith.constant 0 : index
    %400 = vector.load %arg1[%c0_434, %c2_435, %c4_436, %c0_437, %c0_438] : memref<1x4x10x7x256xf32, #tpu.memory_space<vmem>>, vector<1x1x1x7x256xf32>
    %401 = vector.shape_cast %400 : vector<1x1x1x7x256xf32> to vector<7x256xf32>
    %c0_439 = arith.constant 0 : index
    %c6_440 = arith.constant 6 : index
    %c0_441 = arith.constant 0 : index
    %402 = vector.load %arg2[%c0_439, %c6_440, %c0_441] : memref<1x16x256xf32, #tpu.memory_space<vmem>>, vector<1x1x256xf32>
    %403 = vector.shape_cast %402 : vector<1x1x256xf32> to vector<1x256xf32>
    %404 = vector.broadcast %403 : vector<1x256xf32> to vector<7x256xf32>
    %405 = arith.mulf %401, %404 : vector<7x256xf32>
    %406 = arith.addf %399, %405 : vector<7x256xf32>
    %c0_442 = arith.constant 0 : index
    %c3_443 = arith.constant 3 : index
    %c4_444 = arith.constant 4 : index
    %c0_445 = arith.constant 0 : index
    %c0_446 = arith.constant 0 : index
    %407 = vector.load %arg1[%c0_442, %c3_443, %c4_444, %c0_445, %c0_446] : memref<1x4x10x7x256xf32, #tpu.memory_space<vmem>>, vector<1x1x1x7x256xf32>
    %408 = vector.shape_cast %407 : vector<1x1x1x7x256xf32> to vector<7x256xf32>
    %c0_447 = arith.constant 0 : index
    %c7_448 = arith.constant 7 : index
    %c0_449 = arith.constant 0 : index
    %409 = vector.load %arg2[%c0_447, %c7_448, %c0_449] : memref<1x16x256xf32, #tpu.memory_space<vmem>>, vector<1x1x256xf32>
    %410 = vector.shape_cast %409 : vector<1x1x256xf32> to vector<1x256xf32>
    %411 = vector.broadcast %410 : vector<1x256xf32> to vector<7x256xf32>
    %412 = arith.mulf %408, %411 : vector<7x256xf32>
    %413 = arith.addf %406, %412 : vector<7x256xf32>
    %c0_450 = arith.constant 0 : index
    %c0_451 = arith.constant 0 : index
    %c5_452 = arith.constant 5 : index
    %c0_453 = arith.constant 0 : index
    %c0_454 = arith.constant 0 : index
    %414 = vector.load %arg1[%c0_450, %c0_451, %c5_452, %c0_453, %c0_454] : memref<1x4x10x7x256xf32, #tpu.memory_space<vmem>>, vector<1x1x1x7x256xf32>
    %415 = vector.shape_cast %414 : vector<1x1x1x7x256xf32> to vector<7x256xf32>
    %c0_455 = arith.constant 0 : index
    %c8_456 = arith.constant 8 : index
    %c0_457 = arith.constant 0 : index
    %416 = vector.load %arg2[%c0_455, %c8_456, %c0_457] : memref<1x16x256xf32, #tpu.memory_space<vmem>>, vector<1x1x256xf32>
    %417 = vector.shape_cast %416 : vector<1x1x256xf32> to vector<1x256xf32>
    %418 = vector.broadcast %417 : vector<1x256xf32> to vector<7x256xf32>
    %419 = arith.mulf %415, %418 : vector<7x256xf32>
    %420 = arith.addf %413, %419 : vector<7x256xf32>
    %c0_458 = arith.constant 0 : index
    %c1_459 = arith.constant 1 : index
    %c5_460 = arith.constant 5 : index
    %c0_461 = arith.constant 0 : index
    %c0_462 = arith.constant 0 : index
    %421 = vector.load %arg1[%c0_458, %c1_459, %c5_460, %c0_461, %c0_462] : memref<1x4x10x7x256xf32, #tpu.memory_space<vmem>>, vector<1x1x1x7x256xf32>
    %422 = vector.shape_cast %421 : vector<1x1x1x7x256xf32> to vector<7x256xf32>
    %c0_463 = arith.constant 0 : index
    %c9_464 = arith.constant 9 : index
    %c0_465 = arith.constant 0 : index
    %423 = vector.load %arg2[%c0_463, %c9_464, %c0_465] : memref<1x16x256xf32, #tpu.memory_space<vmem>>, vector<1x1x256xf32>
    %424 = vector.shape_cast %423 : vector<1x1x256xf32> to vector<1x256xf32>
    %425 = vector.broadcast %424 : vector<1x256xf32> to vector<7x256xf32>
    %426 = arith.mulf %422, %425 : vector<7x256xf32>
    %427 = arith.addf %420, %426 : vector<7x256xf32>
    %c0_466 = arith.constant 0 : index
    %c2_467 = arith.constant 2 : index
    %c5_468 = arith.constant 5 : index
    %c0_469 = arith.constant 0 : index
    %c0_470 = arith.constant 0 : index
    %428 = vector.load %arg1[%c0_466, %c2_467, %c5_468, %c0_469, %c0_470] : memref<1x4x10x7x256xf32, #tpu.memory_space<vmem>>, vector<1x1x1x7x256xf32>
    %429 = vector.shape_cast %428 : vector<1x1x1x7x256xf32> to vector<7x256xf32>
    %c0_471 = arith.constant 0 : index
    %c10_472 = arith.constant 10 : index
    %c0_473 = arith.constant 0 : index
    %430 = vector.load %arg2[%c0_471, %c10_472, %c0_473] : memref<1x16x256xf32, #tpu.memory_space<vmem>>, vector<1x1x256xf32>
    %431 = vector.shape_cast %430 : vector<1x1x256xf32> to vector<1x256xf32>
    %432 = vector.broadcast %431 : vector<1x256xf32> to vector<7x256xf32>
    %433 = arith.mulf %429, %432 : vector<7x256xf32>
    %434 = arith.addf %427, %433 : vector<7x256xf32>
    %c0_474 = arith.constant 0 : index
    %c3_475 = arith.constant 3 : index
    %c5_476 = arith.constant 5 : index
    %c0_477 = arith.constant 0 : index
    %c0_478 = arith.constant 0 : index
    %435 = vector.load %arg1[%c0_474, %c3_475, %c5_476, %c0_477, %c0_478] : memref<1x4x10x7x256xf32, #tpu.memory_space<vmem>>, vector<1x1x1x7x256xf32>
    %436 = vector.shape_cast %435 : vector<1x1x1x7x256xf32> to vector<7x256xf32>
    %c0_479 = arith.constant 0 : index
    %c11_480 = arith.constant 11 : index
    %c0_481 = arith.constant 0 : index
    %437 = vector.load %arg2[%c0_479, %c11_480, %c0_481] : memref<1x16x256xf32, #tpu.memory_space<vmem>>, vector<1x1x256xf32>
    %438 = vector.shape_cast %437 : vector<1x1x256xf32> to vector<1x256xf32>
    %439 = vector.broadcast %438 : vector<1x256xf32> to vector<7x256xf32>
    %440 = arith.mulf %436, %439 : vector<7x256xf32>
    %441 = arith.addf %434, %440 : vector<7x256xf32>
    %c0_482 = arith.constant 0 : index
    %c0_483 = arith.constant 0 : index
    %c6_484 = arith.constant 6 : index
    %c0_485 = arith.constant 0 : index
    %c0_486 = arith.constant 0 : index
    %442 = vector.load %arg1[%c0_482, %c0_483, %c6_484, %c0_485, %c0_486] : memref<1x4x10x7x256xf32, #tpu.memory_space<vmem>>, vector<1x1x1x7x256xf32>
    %443 = vector.shape_cast %442 : vector<1x1x1x7x256xf32> to vector<7x256xf32>
    %c0_487 = arith.constant 0 : index
    %c12_488 = arith.constant 12 : index
    %c0_489 = arith.constant 0 : index
    %444 = vector.load %arg2[%c0_487, %c12_488, %c0_489] : memref<1x16x256xf32, #tpu.memory_space<vmem>>, vector<1x1x256xf32>
    %445 = vector.shape_cast %444 : vector<1x1x256xf32> to vector<1x256xf32>
    %446 = vector.broadcast %445 : vector<1x256xf32> to vector<7x256xf32>
    %447 = arith.mulf %443, %446 : vector<7x256xf32>
    %448 = arith.addf %441, %447 : vector<7x256xf32>
    %c0_490 = arith.constant 0 : index
    %c1_491 = arith.constant 1 : index
    %c6_492 = arith.constant 6 : index
    %c0_493 = arith.constant 0 : index
    %c0_494 = arith.constant 0 : index
    %449 = vector.load %arg1[%c0_490, %c1_491, %c6_492, %c0_493, %c0_494] : memref<1x4x10x7x256xf32, #tpu.memory_space<vmem>>, vector<1x1x1x7x256xf32>
    %450 = vector.shape_cast %449 : vector<1x1x1x7x256xf32> to vector<7x256xf32>
    %c0_495 = arith.constant 0 : index
    %c13_496 = arith.constant 13 : index
    %c0_497 = arith.constant 0 : index
    %451 = vector.load %arg2[%c0_495, %c13_496, %c0_497] : memref<1x16x256xf32, #tpu.memory_space<vmem>>, vector<1x1x256xf32>
    %452 = vector.shape_cast %451 : vector<1x1x256xf32> to vector<1x256xf32>
    %453 = vector.broadcast %452 : vector<1x256xf32> to vector<7x256xf32>
    %454 = arith.mulf %450, %453 : vector<7x256xf32>
    %455 = arith.addf %448, %454 : vector<7x256xf32>
    %c0_498 = arith.constant 0 : index
    %c2_499 = arith.constant 2 : index
    %c6_500 = arith.constant 6 : index
    %c0_501 = arith.constant 0 : index
    %c0_502 = arith.constant 0 : index
    %456 = vector.load %arg1[%c0_498, %c2_499, %c6_500, %c0_501, %c0_502] : memref<1x4x10x7x256xf32, #tpu.memory_space<vmem>>, vector<1x1x1x7x256xf32>
    %457 = vector.shape_cast %456 : vector<1x1x1x7x256xf32> to vector<7x256xf32>
    %c0_503 = arith.constant 0 : index
    %c14_504 = arith.constant 14 : index
    %c0_505 = arith.constant 0 : index
    %458 = vector.load %arg2[%c0_503, %c14_504, %c0_505] : memref<1x16x256xf32, #tpu.memory_space<vmem>>, vector<1x1x256xf32>
    %459 = vector.shape_cast %458 : vector<1x1x256xf32> to vector<1x256xf32>
    %460 = vector.broadcast %459 : vector<1x256xf32> to vector<7x256xf32>
    %461 = arith.mulf %457, %460 : vector<7x256xf32>
    %462 = arith.addf %455, %461 : vector<7x256xf32>
    %c0_506 = arith.constant 0 : index
    %c3_507 = arith.constant 3 : index
    %c6_508 = arith.constant 6 : index
    %c0_509 = arith.constant 0 : index
    %c0_510 = arith.constant 0 : index
    %463 = vector.load %arg1[%c0_506, %c3_507, %c6_508, %c0_509, %c0_510] : memref<1x4x10x7x256xf32, #tpu.memory_space<vmem>>, vector<1x1x1x7x256xf32>
    %464 = vector.shape_cast %463 : vector<1x1x1x7x256xf32> to vector<7x256xf32>
    %c0_511 = arith.constant 0 : index
    %c15_512 = arith.constant 15 : index
    %c0_513 = arith.constant 0 : index
    %465 = vector.load %arg2[%c0_511, %c15_512, %c0_513] : memref<1x16x256xf32, #tpu.memory_space<vmem>>, vector<1x1x256xf32>
    %466 = vector.shape_cast %465 : vector<1x1x256xf32> to vector<1x256xf32>
    %467 = vector.broadcast %466 : vector<1x256xf32> to vector<7x256xf32>
    %468 = arith.mulf %464, %467 : vector<7x256xf32>
    %469 = arith.addf %462, %468 : vector<7x256xf32>
    %cst_514 = arith.constant 0.000000e+00 : f32
    %470 = vector.broadcast %cst_514 : f32 to vector<7x256xf32>
    %471 = arith.maximumf %469, %470 : vector<7x256xf32>
    %472 = arith.truncf %471 : vector<7x256xf32> to vector<7x256xbf16>
    %c0_515 = arith.constant 0 : index
    %c3_516 = arith.constant 3 : index
    %c0_517 = arith.constant 0 : index
    %c0_518 = arith.constant 0 : index
    %473 = vector.load %arg3[%c0_515, %c3_516, %c0_517, %c0_518] : memref<1x7x7x256xbf16, #tpu.memory_space<vmem>>, vector<1x1x7x256xbf16>
    %474 = vector.shape_cast %473 : vector<1x1x7x256xbf16> to vector<7x256xbf16>
    %475 = vector.shape_cast %472 : vector<7x256xbf16> to vector<1x1x7x256xbf16>
    tpu.vector_store %arg3[%c0_515, %c3_516, %c0_517, %c0_518], %475 {strides = array<i32>} : memref<1x7x7x256xbf16, #tpu.memory_space<vmem>>, vector<1x1x7x256xbf16>,
    %cst_519 = arith.constant 0.000000e+00 : f32
    %476 = vector.broadcast %cst_519 : f32 to vector<7x256xf32>
    %c0_520 = arith.constant 0 : index
    %c0_521 = arith.constant 0 : index
    %c4_522 = arith.constant 4 : index
    %c0_523 = arith.constant 0 : index
    %c0_524 = arith.constant 0 : index
    %477 = vector.load %arg1[%c0_520, %c0_521, %c4_522, %c0_523, %c0_524] : memref<1x4x10x7x256xf32, #tpu.memory_space<vmem>>, vector<1x1x1x7x256xf32>
    %478 = vector.shape_cast %477 : vector<1x1x1x7x256xf32> to vector<7x256xf32>
    %c0_525 = arith.constant 0 : index
    %c0_526 = arith.constant 0 : index
    %c0_527 = arith.constant 0 : index
    %479 = vector.load %arg2[%c0_525, %c0_526, %c0_527] : memref<1x16x256xf32, #tpu.memory_space<vmem>>, vector<1x1x256xf32>
    %480 = vector.shape_cast %479 : vector<1x1x256xf32> to vector<1x256xf32>
    %481 = vector.broadcast %480 : vector<1x256xf32> to vector<7x256xf32>
    %482 = arith.mulf %478, %481 : vector<7x256xf32>
    %483 = arith.addf %476, %482 : vector<7x256xf32>
    %c0_528 = arith.constant 0 : index
    %c1_529 = arith.constant 1 : index
    %c4_530 = arith.constant 4 : index
    %c0_531 = arith.constant 0 : index
    %c0_532 = arith.constant 0 : index
    %484 = vector.load %arg1[%c0_528, %c1_529, %c4_530, %c0_531, %c0_532] : memref<1x4x10x7x256xf32, #tpu.memory_space<vmem>>, vector<1x1x1x7x256xf32>
    %485 = vector.shape_cast %484 : vector<1x1x1x7x256xf32> to vector<7x256xf32>
    %c0_533 = arith.constant 0 : index
    %c1_534 = arith.constant 1 : index
    %c0_535 = arith.constant 0 : index
    %486 = vector.load %arg2[%c0_533, %c1_534, %c0_535] : memref<1x16x256xf32, #tpu.memory_space<vmem>>, vector<1x1x256xf32>
    %487 = vector.shape_cast %486 : vector<1x1x256xf32> to vector<1x256xf32>
    %488 = vector.broadcast %487 : vector<1x256xf32> to vector<7x256xf32>
    %489 = arith.mulf %485, %488 : vector<7x256xf32>
    %490 = arith.addf %483, %489 : vector<7x256xf32>
    %c0_536 = arith.constant 0 : index
    %c2_537 = arith.constant 2 : index
    %c4_538 = arith.constant 4 : index
    %c0_539 = arith.constant 0 : index
    %c0_540 = arith.constant 0 : index
    %491 = vector.load %arg1[%c0_536, %c2_537, %c4_538, %c0_539, %c0_540] : memref<1x4x10x7x256xf32, #tpu.memory_space<vmem>>, vector<1x1x1x7x256xf32>
    %492 = vector.shape_cast %491 : vector<1x1x1x7x256xf32> to vector<7x256xf32>
    %c0_541 = arith.constant 0 : index
    %c2_542 = arith.constant 2 : index
    %c0_543 = arith.constant 0 : index
    %493 = vector.load %arg2[%c0_541, %c2_542, %c0_543] : memref<1x16x256xf32, #tpu.memory_space<vmem>>, vector<1x1x256xf32>
    %494 = vector.shape_cast %493 : vector<1x1x256xf32> to vector<1x256xf32>
    %495 = vector.broadcast %494 : vector<1x256xf32> to vector<7x256xf32>
    %496 = arith.mulf %492, %495 : vector<7x256xf32>
    %497 = arith.addf %490, %496 : vector<7x256xf32>
    %c0_544 = arith.constant 0 : index
    %c3_545 = arith.constant 3 : index
    %c4_546 = arith.constant 4 : index
    %c0_547 = arith.constant 0 : index
    %c0_548 = arith.constant 0 : index
    %498 = vector.load %arg1[%c0_544, %c3_545, %c4_546, %c0_547, %c0_548] : memref<1x4x10x7x256xf32, #tpu.memory_space<vmem>>, vector<1x1x1x7x256xf32>
    %499 = vector.shape_cast %498 : vector<1x1x1x7x256xf32> to vector<7x256xf32>
    %c0_549 = arith.constant 0 : index
    %c3_550 = arith.constant 3 : index
    %c0_551 = arith.constant 0 : index
    %500 = vector.load %arg2[%c0_549, %c3_550, %c0_551] : memref<1x16x256xf32, #tpu.memory_space<vmem>>, vector<1x1x256xf32>
    %501 = vector.shape_cast %500 : vector<1x1x256xf32> to vector<1x256xf32>
    %502 = vector.broadcast %501 : vector<1x256xf32> to vector<7x256xf32>
    %503 = arith.mulf %499, %502 : vector<7x256xf32>
    %504 = arith.addf %497, %503 : vector<7x256xf32>
    %c0_552 = arith.constant 0 : index
    %c0_553 = arith.constant 0 : index
    %c5_554 = arith.constant 5 : index
    %c0_555 = arith.constant 0 : index
    %c0_556 = arith.constant 0 : index
    %505 = vector.load %arg1[%c0_552, %c0_553, %c5_554, %c0_555, %c0_556] : memref<1x4x10x7x256xf32, #tpu.memory_space<vmem>>, vector<1x1x1x7x256xf32>
    %506 = vector.shape_cast %505 : vector<1x1x1x7x256xf32> to vector<7x256xf32>
    %c0_557 = arith.constant 0 : index
    %c4_558 = arith.constant 4 : index
    %c0_559 = arith.constant 0 : index
    %507 = vector.load %arg2[%c0_557, %c4_558, %c0_559] : memref<1x16x256xf32, #tpu.memory_space<vmem>>, vector<1x1x256xf32>
    %508 = vector.shape_cast %507 : vector<1x1x256xf32> to vector<1x256xf32>
    %509 = vector.broadcast %508 : vector<1x256xf32> to vector<7x256xf32>
    %510 = arith.mulf %506, %509 : vector<7x256xf32>
    %511 = arith.addf %504, %510 : vector<7x256xf32>
    %c0_560 = arith.constant 0 : index
    %c1_561 = arith.constant 1 : index
    %c5_562 = arith.constant 5 : index
    %c0_563 = arith.constant 0 : index
    %c0_564 = arith.constant 0 : index
    %512 = vector.load %arg1[%c0_560, %c1_561, %c5_562, %c0_563, %c0_564] : memref<1x4x10x7x256xf32, #tpu.memory_space<vmem>>, vector<1x1x1x7x256xf32>
    %513 = vector.shape_cast %512 : vector<1x1x1x7x256xf32> to vector<7x256xf32>
    %c0_565 = arith.constant 0 : index
    %c5_566 = arith.constant 5 : index
    %c0_567 = arith.constant 0 : index
    %514 = vector.load %arg2[%c0_565, %c5_566, %c0_567] : memref<1x16x256xf32, #tpu.memory_space<vmem>>, vector<1x1x256xf32>
    %515 = vector.shape_cast %514 : vector<1x1x256xf32> to vector<1x256xf32>
    %516 = vector.broadcast %515 : vector<1x256xf32> to vector<7x256xf32>
    %517 = arith.mulf %513, %516 : vector<7x256xf32>
    %518 = arith.addf %511, %517 : vector<7x256xf32>
    %c0_568 = arith.constant 0 : index
    %c2_569 = arith.constant 2 : index
    %c5_570 = arith.constant 5 : index
    %c0_571 = arith.constant 0 : index
    %c0_572 = arith.constant 0 : index
    %519 = vector.load %arg1[%c0_568, %c2_569, %c5_570, %c0_571, %c0_572] : memref<1x4x10x7x256xf32, #tpu.memory_space<vmem>>, vector<1x1x1x7x256xf32>
    %520 = vector.shape_cast %519 : vector<1x1x1x7x256xf32> to vector<7x256xf32>
    %c0_573 = arith.constant 0 : index
    %c6_574 = arith.constant 6 : index
    %c0_575 = arith.constant 0 : index
    %521 = vector.load %arg2[%c0_573, %c6_574, %c0_575] : memref<1x16x256xf32, #tpu.memory_space<vmem>>, vector<1x1x256xf32>
    %522 = vector.shape_cast %521 : vector<1x1x256xf32> to vector<1x256xf32>
    %523 = vector.broadcast %522 : vector<1x256xf32> to vector<7x256xf32>
    %524 = arith.mulf %520, %523 : vector<7x256xf32>
    %525 = arith.addf %518, %524 : vector<7x256xf32>
    %c0_576 = arith.constant 0 : index
    %c3_577 = arith.constant 3 : index
    %c5_578 = arith.constant 5 : index
    %c0_579 = arith.constant 0 : index
    %c0_580 = arith.constant 0 : index
    %526 = vector.load %arg1[%c0_576, %c3_577, %c5_578, %c0_579, %c0_580] : memref<1x4x10x7x256xf32, #tpu.memory_space<vmem>>, vector<1x1x1x7x256xf32>
    %527 = vector.shape_cast %526 : vector<1x1x1x7x256xf32> to vector<7x256xf32>
    %c0_581 = arith.constant 0 : index
    %c7_582 = arith.constant 7 : index
    %c0_583 = arith.constant 0 : index
    %528 = vector.load %arg2[%c0_581, %c7_582, %c0_583] : memref<1x16x256xf32, #tpu.memory_space<vmem>>, vector<1x1x256xf32>
    %529 = vector.shape_cast %528 : vector<1x1x256xf32> to vector<1x256xf32>
    %530 = vector.broadcast %529 : vector<1x256xf32> to vector<7x256xf32>
    %531 = arith.mulf %527, %530 : vector<7x256xf32>
    %532 = arith.addf %525, %531 : vector<7x256xf32>
    %c0_584 = arith.constant 0 : index
    %c0_585 = arith.constant 0 : index
    %c6_586 = arith.constant 6 : index
    %c0_587 = arith.constant 0 : index
    %c0_588 = arith.constant 0 : index
    %533 = vector.load %arg1[%c0_584, %c0_585, %c6_586, %c0_587, %c0_588] : memref<1x4x10x7x256xf32, #tpu.memory_space<vmem>>, vector<1x1x1x7x256xf32>
    %534 = vector.shape_cast %533 : vector<1x1x1x7x256xf32> to vector<7x256xf32>
    %c0_589 = arith.constant 0 : index
    %c8_590 = arith.constant 8 : index
    %c0_591 = arith.constant 0 : index
    %535 = vector.load %arg2[%c0_589, %c8_590, %c0_591] : memref<1x16x256xf32, #tpu.memory_space<vmem>>, vector<1x1x256xf32>
    %536 = vector.shape_cast %535 : vector<1x1x256xf32> to vector<1x256xf32>
    %537 = vector.broadcast %536 : vector<1x256xf32> to vector<7x256xf32>
    %538 = arith.mulf %534, %537 : vector<7x256xf32>
    %539 = arith.addf %532, %538 : vector<7x256xf32>
    %c0_592 = arith.constant 0 : index
    %c1_593 = arith.constant 1 : index
    %c6_594 = arith.constant 6 : index
    %c0_595 = arith.constant 0 : index
    %c0_596 = arith.constant 0 : index
    %540 = vector.load %arg1[%c0_592, %c1_593, %c6_594, %c0_595, %c0_596] : memref<1x4x10x7x256xf32, #tpu.memory_space<vmem>>, vector<1x1x1x7x256xf32>
    %541 = vector.shape_cast %540 : vector<1x1x1x7x256xf32> to vector<7x256xf32>
    %c0_597 = arith.constant 0 : index
    %c9_598 = arith.constant 9 : index
    %c0_599 = arith.constant 0 : index
    %542 = vector.load %arg2[%c0_597, %c9_598, %c0_599] : memref<1x16x256xf32, #tpu.memory_space<vmem>>, vector<1x1x256xf32>
    %543 = vector.shape_cast %542 : vector<1x1x256xf32> to vector<1x256xf32>
    %544 = vector.broadcast %543 : vector<1x256xf32> to vector<7x256xf32>
    %545 = arith.mulf %541, %544 : vector<7x256xf32>
    %546 = arith.addf %539, %545 : vector<7x256xf32>
    %c0_600 = arith.constant 0 : index
    %c2_601 = arith.constant 2 : index
    %c6_602 = arith.constant 6 : index
    %c0_603 = arith.constant 0 : index
    %c0_604 = arith.constant 0 : index
    %547 = vector.load %arg1[%c0_600, %c2_601, %c6_602, %c0_603, %c0_604] : memref<1x4x10x7x256xf32, #tpu.memory_space<vmem>>, vector<1x1x1x7x256xf32>
    %548 = vector.shape_cast %547 : vector<1x1x1x7x256xf32> to vector<7x256xf32>
    %c0_605 = arith.constant 0 : index
    %c10_606 = arith.constant 10 : index
    %c0_607 = arith.constant 0 : index
    %549 = vector.load %arg2[%c0_605, %c10_606, %c0_607] : memref<1x16x256xf32, #tpu.memory_space<vmem>>, vector<1x1x256xf32>
    %550 = vector.shape_cast %549 : vector<1x1x256xf32> to vector<1x256xf32>
    %551 = vector.broadcast %550 : vector<1x256xf32> to vector<7x256xf32>
    %552 = arith.mulf %548, %551 : vector<7x256xf32>
    %553 = arith.addf %546, %552 : vector<7x256xf32>
    %c0_608 = arith.constant 0 : index
    %c3_609 = arith.constant 3 : index
    %c6_610 = arith.constant 6 : index
    %c0_611 = arith.constant 0 : index
    %c0_612 = arith.constant 0 : index
    %554 = vector.load %arg1[%c0_608, %c3_609, %c6_610, %c0_611, %c0_612] : memref<1x4x10x7x256xf32, #tpu.memory_space<vmem>>, vector<1x1x1x7x256xf32>
    %555 = vector.shape_cast %554 : vector<1x1x1x7x256xf32> to vector<7x256xf32>
    %c0_613 = arith.constant 0 : index
    %c11_614 = arith.constant 11 : index
    %c0_615 = arith.constant 0 : index
    %556 = vector.load %arg2[%c0_613, %c11_614, %c0_615] : memref<1x16x256xf32, #tpu.memory_space<vmem>>, vector<1x1x256xf32>
    %557 = vector.shape_cast %556 : vector<1x1x256xf32> to vector<1x256xf32>
    %558 = vector.broadcast %557 : vector<1x256xf32> to vector<7x256xf32>
    %559 = arith.mulf %555, %558 : vector<7x256xf32>
    %560 = arith.addf %553, %559 : vector<7x256xf32>
    %c0_616 = arith.constant 0 : index
    %c0_617 = arith.constant 0 : index
    %c7_618 = arith.constant 7 : index
    %c0_619 = arith.constant 0 : index
    %c0_620 = arith.constant 0 : index
    %561 = vector.load %arg1[%c0_616, %c0_617, %c7_618, %c0_619, %c0_620] : memref<1x4x10x7x256xf32, #tpu.memory_space<vmem>>, vector<1x1x1x7x256xf32>
    %562 = vector.shape_cast %561 : vector<1x1x1x7x256xf32> to vector<7x256xf32>
    %c0_621 = arith.constant 0 : index
    %c12_622 = arith.constant 12 : index
    %c0_623 = arith.constant 0 : index
    %563 = vector.load %arg2[%c0_621, %c12_622, %c0_623] : memref<1x16x256xf32, #tpu.memory_space<vmem>>, vector<1x1x256xf32>
    %564 = vector.shape_cast %563 : vector<1x1x256xf32> to vector<1x256xf32>
    %565 = vector.broadcast %564 : vector<1x256xf32> to vector<7x256xf32>
    %566 = arith.mulf %562, %565 : vector<7x256xf32>
    %567 = arith.addf %560, %566 : vector<7x256xf32>
    %c0_624 = arith.constant 0 : index
    %c1_625 = arith.constant 1 : index
    %c7_626 = arith.constant 7 : index
    %c0_627 = arith.constant 0 : index
    %c0_628 = arith.constant 0 : index
    %568 = vector.load %arg1[%c0_624, %c1_625, %c7_626, %c0_627, %c0_628] : memref<1x4x10x7x256xf32, #tpu.memory_space<vmem>>, vector<1x1x1x7x256xf32>
    %569 = vector.shape_cast %568 : vector<1x1x1x7x256xf32> to vector<7x256xf32>
    %c0_629 = arith.constant 0 : index
    %c13_630 = arith.constant 13 : index
    %c0_631 = arith.constant 0 : index
    %570 = vector.load %arg2[%c0_629, %c13_630, %c0_631] : memref<1x16x256xf32, #tpu.memory_space<vmem>>, vector<1x1x256xf32>
    %571 = vector.shape_cast %570 : vector<1x1x256xf32> to vector<1x256xf32>
    %572 = vector.broadcast %571 : vector<1x256xf32> to vector<7x256xf32>
    %573 = arith.mulf %569, %572 : vector<7x256xf32>
    %574 = arith.addf %567, %573 : vector<7x256xf32>
    %c0_632 = arith.constant 0 : index
    %c2_633 = arith.constant 2 : index
    %c7_634 = arith.constant 7 : index
    %c0_635 = arith.constant 0 : index
    %c0_636 = arith.constant 0 : index
    %575 = vector.load %arg1[%c0_632, %c2_633, %c7_634, %c0_635, %c0_636] : memref<1x4x10x7x256xf32, #tpu.memory_space<vmem>>, vector<1x1x1x7x256xf32>
    %576 = vector.shape_cast %575 : vector<1x1x1x7x256xf32> to vector<7x256xf32>
    %c0_637 = arith.constant 0 : index
    %c14_638 = arith.constant 14 : index
    %c0_639 = arith.constant 0 : index
    %577 = vector.load %arg2[%c0_637, %c14_638, %c0_639] : memref<1x16x256xf32, #tpu.memory_space<vmem>>, vector<1x1x256xf32>
    %578 = vector.shape_cast %577 : vector<1x1x256xf32> to vector<1x256xf32>
    %579 = vector.broadcast %578 : vector<1x256xf32> to vector<7x256xf32>
    %580 = arith.mulf %576, %579 : vector<7x256xf32>
    %581 = arith.addf %574, %580 : vector<7x256xf32>
    %c0_640 = arith.constant 0 : index
    %c3_641 = arith.constant 3 : index
    %c7_642 = arith.constant 7 : index
    %c0_643 = arith.constant 0 : index
    %c0_644 = arith.constant 0 : index
    %582 = vector.load %arg1[%c0_640, %c3_641, %c7_642, %c0_643, %c0_644] : memref<1x4x10x7x256xf32, #tpu.memory_space<vmem>>, vector<1x1x1x7x256xf32>
    %583 = vector.shape_cast %582 : vector<1x1x1x7x256xf32> to vector<7x256xf32>
    %c0_645 = arith.constant 0 : index
    %c15_646 = arith.constant 15 : index
    %c0_647 = arith.constant 0 : index
    %584 = vector.load %arg2[%c0_645, %c15_646, %c0_647] : memref<1x16x256xf32, #tpu.memory_space<vmem>>, vector<1x1x256xf32>
    %585 = vector.shape_cast %584 : vector<1x1x256xf32> to vector<1x256xf32>
    %586 = vector.broadcast %585 : vector<1x256xf32> to vector<7x256xf32>
    %587 = arith.mulf %583, %586 : vector<7x256xf32>
    %588 = arith.addf %581, %587 : vector<7x256xf32>
    %cst_648 = arith.constant 0.000000e+00 : f32
    %589 = vector.broadcast %cst_648 : f32 to vector<7x256xf32>
    %590 = arith.maximumf %588, %589 : vector<7x256xf32>
    %591 = arith.truncf %590 : vector<7x256xf32> to vector<7x256xbf16>
    %c0_649 = arith.constant 0 : index
    %c4_650 = arith.constant 4 : index
    %c0_651 = arith.constant 0 : index
    %c0_652 = arith.constant 0 : index
    %592 = vector.load %arg3[%c0_649, %c4_650, %c0_651, %c0_652] : memref<1x7x7x256xbf16, #tpu.memory_space<vmem>>, vector<1x1x7x256xbf16>
    %593 = vector.shape_cast %592 : vector<1x1x7x256xbf16> to vector<7x256xbf16>
    %594 = vector.shape_cast %591 : vector<7x256xbf16> to vector<1x1x7x256xbf16>
    tpu.vector_store %arg3[%c0_649, %c4_650, %c0_651, %c0_652], %594 {strides = array<i32>} : memref<1x7x7x256xbf16, #tpu.memory_space<vmem>>, vector<1x1x7x256xbf16>,
    %cst_653 = arith.constant 0.000000e+00 : f32
    %595 = vector.broadcast %cst_653 : f32 to vector<7x256xf32>
    %c0_654 = arith.constant 0 : index
    %c0_655 = arith.constant 0 : index
    %c5_656 = arith.constant 5 : index
    %c0_657 = arith.constant 0 : index
    %c0_658 = arith.constant 0 : index
    %596 = vector.load %arg1[%c0_654, %c0_655, %c5_656, %c0_657, %c0_658] : memref<1x4x10x7x256xf32, #tpu.memory_space<vmem>>, vector<1x1x1x7x256xf32>
    %597 = vector.shape_cast %596 : vector<1x1x1x7x256xf32> to vector<7x256xf32>
    %c0_659 = arith.constant 0 : index
    %c0_660 = arith.constant 0 : index
    %c0_661 = arith.constant 0 : index
    %598 = vector.load %arg2[%c0_659, %c0_660, %c0_661] : memref<1x16x256xf32, #tpu.memory_space<vmem>>, vector<1x1x256xf32>
    %599 = vector.shape_cast %598 : vector<1x1x256xf32> to vector<1x256xf32>
    %600 = vector.broadcast %599 : vector<1x256xf32> to vector<7x256xf32>
    %601 = arith.mulf %597, %600 : vector<7x256xf32>
    %602 = arith.addf %595, %601 : vector<7x256xf32>
    %c0_662 = arith.constant 0 : index
    %c1_663 = arith.constant 1 : index
    %c5_664 = arith.constant 5 : index
    %c0_665 = arith.constant 0 : index
    %c0_666 = arith.constant 0 : index
    %603 = vector.load %arg1[%c0_662, %c1_663, %c5_664, %c0_665, %c0_666] : memref<1x4x10x7x256xf32, #tpu.memory_space<vmem>>, vector<1x1x1x7x256xf32>
    %604 = vector.shape_cast %603 : vector<1x1x1x7x256xf32> to vector<7x256xf32>
    %c0_667 = arith.constant 0 : index
    %c1_668 = arith.constant 1 : index
    %c0_669 = arith.constant 0 : index
    %605 = vector.load %arg2[%c0_667, %c1_668, %c0_669] : memref<1x16x256xf32, #tpu.memory_space<vmem>>, vector<1x1x256xf32>
    %606 = vector.shape_cast %605 : vector<1x1x256xf32> to vector<1x256xf32>
    %607 = vector.broadcast %606 : vector<1x256xf32> to vector<7x256xf32>
    %608 = arith.mulf %604, %607 : vector<7x256xf32>
    %609 = arith.addf %602, %608 : vector<7x256xf32>
    %c0_670 = arith.constant 0 : index
    %c2_671 = arith.constant 2 : index
    %c5_672 = arith.constant 5 : index
    %c0_673 = arith.constant 0 : index
    %c0_674 = arith.constant 0 : index
    %610 = vector.load %arg1[%c0_670, %c2_671, %c5_672, %c0_673, %c0_674] : memref<1x4x10x7x256xf32, #tpu.memory_space<vmem>>, vector<1x1x1x7x256xf32>
    %611 = vector.shape_cast %610 : vector<1x1x1x7x256xf32> to vector<7x256xf32>
    %c0_675 = arith.constant 0 : index
    %c2_676 = arith.constant 2 : index
    %c0_677 = arith.constant 0 : index
    %612 = vector.load %arg2[%c0_675, %c2_676, %c0_677] : memref<1x16x256xf32, #tpu.memory_space<vmem>>, vector<1x1x256xf32>
    %613 = vector.shape_cast %612 : vector<1x1x256xf32> to vector<1x256xf32>
    %614 = vector.broadcast %613 : vector<1x256xf32> to vector<7x256xf32>
    %615 = arith.mulf %611, %614 : vector<7x256xf32>
    %616 = arith.addf %609, %615 : vector<7x256xf32>
    %c0_678 = arith.constant 0 : index
    %c3_679 = arith.constant 3 : index
    %c5_680 = arith.constant 5 : index
    %c0_681 = arith.constant 0 : index
    %c0_682 = arith.constant 0 : index
    %617 = vector.load %arg1[%c0_678, %c3_679, %c5_680, %c0_681, %c0_682] : memref<1x4x10x7x256xf32, #tpu.memory_space<vmem>>, vector<1x1x1x7x256xf32>
    %618 = vector.shape_cast %617 : vector<1x1x1x7x256xf32> to vector<7x256xf32>
    %c0_683 = arith.constant 0 : index
    %c3_684 = arith.constant 3 : index
    %c0_685 = arith.constant 0 : index
    %619 = vector.load %arg2[%c0_683, %c3_684, %c0_685] : memref<1x16x256xf32, #tpu.memory_space<vmem>>, vector<1x1x256xf32>
    %620 = vector.shape_cast %619 : vector<1x1x256xf32> to vector<1x256xf32>
    %621 = vector.broadcast %620 : vector<1x256xf32> to vector<7x256xf32>
    %622 = arith.mulf %618, %621 : vector<7x256xf32>
    %623 = arith.addf %616, %622 : vector<7x256xf32>
    %c0_686 = arith.constant 0 : index
    %c0_687 = arith.constant 0 : index
    %c6_688 = arith.constant 6 : index
    %c0_689 = arith.constant 0 : index
    %c0_690 = arith.constant 0 : index
    %624 = vector.load %arg1[%c0_686, %c0_687, %c6_688, %c0_689, %c0_690] : memref<1x4x10x7x256xf32, #tpu.memory_space<vmem>>, vector<1x1x1x7x256xf32>
    %625 = vector.shape_cast %624 : vector<1x1x1x7x256xf32> to vector<7x256xf32>
    %c0_691 = arith.constant 0 : index
    %c4_692 = arith.constant 4 : index
    %c0_693 = arith.constant 0 : index
    %626 = vector.load %arg2[%c0_691, %c4_692, %c0_693] : memref<1x16x256xf32, #tpu.memory_space<vmem>>, vector<1x1x256xf32>
    %627 = vector.shape_cast %626 : vector<1x1x256xf32> to vector<1x256xf32>
    %628 = vector.broadcast %627 : vector<1x256xf32> to vector<7x256xf32>
    %629 = arith.mulf %625, %628 : vector<7x256xf32>
    %630 = arith.addf %623, %629 : vector<7x256xf32>
    %c0_694 = arith.constant 0 : index
    %c1_695 = arith.constant 1 : index
    %c6_696 = arith.constant 6 : index
    %c0_697 = arith.constant 0 : index
    %c0_698 = arith.constant 0 : index
    %631 = vector.load %arg1[%c0_694, %c1_695, %c6_696, %c0_697, %c0_698] : memref<1x4x10x7x256xf32, #tpu.memory_space<vmem>>, vector<1x1x1x7x256xf32>
    %632 = vector.shape_cast %631 : vector<1x1x1x7x256xf32> to vector<7x256xf32>
    %c0_699 = arith.constant 0 : index
    %c5_700 = arith.constant 5 : index
    %c0_701 = arith.constant 0 : index
    %633 = vector.load %arg2[%c0_699, %c5_700, %c0_701] : memref<1x16x256xf32, #tpu.memory_space<vmem>>, vector<1x1x256xf32>
    %634 = vector.shape_cast %633 : vector<1x1x256xf32> to vector<1x256xf32>
    %635 = vector.broadcast %634 : vector<1x256xf32> to vector<7x256xf32>
    %636 = arith.mulf %632, %635 : vector<7x256xf32>
    %637 = arith.addf %630, %636 : vector<7x256xf32>
    %c0_702 = arith.constant 0 : index
    %c2_703 = arith.constant 2 : index
    %c6_704 = arith.constant 6 : index
    %c0_705 = arith.constant 0 : index
    %c0_706 = arith.constant 0 : index
    %638 = vector.load %arg1[%c0_702, %c2_703, %c6_704, %c0_705, %c0_706] : memref<1x4x10x7x256xf32, #tpu.memory_space<vmem>>, vector<1x1x1x7x256xf32>
    %639 = vector.shape_cast %638 : vector<1x1x1x7x256xf32> to vector<7x256xf32>
    %c0_707 = arith.constant 0 : index
    %c6_708 = arith.constant 6 : index
    %c0_709 = arith.constant 0 : index
    %640 = vector.load %arg2[%c0_707, %c6_708, %c0_709] : memref<1x16x256xf32, #tpu.memory_space<vmem>>, vector<1x1x256xf32>
    %641 = vector.shape_cast %640 : vector<1x1x256xf32> to vector<1x256xf32>
    %642 = vector.broadcast %641 : vector<1x256xf32> to vector<7x256xf32>
    %643 = arith.mulf %639, %642 : vector<7x256xf32>
    %644 = arith.addf %637, %643 : vector<7x256xf32>
    %c0_710 = arith.constant 0 : index
    %c3_711 = arith.constant 3 : index
    %c6_712 = arith.constant 6 : index
    %c0_713 = arith.constant 0 : index
    %c0_714 = arith.constant 0 : index
    %645 = vector.load %arg1[%c0_710, %c3_711, %c6_712, %c0_713, %c0_714] : memref<1x4x10x7x256xf32, #tpu.memory_space<vmem>>, vector<1x1x1x7x256xf32>
    %646 = vector.shape_cast %645 : vector<1x1x1x7x256xf32> to vector<7x256xf32>
    %c0_715 = arith.constant 0 : index
    %c7_716 = arith.constant 7 : index
    %c0_717 = arith.constant 0 : index
    %647 = vector.load %arg2[%c0_715, %c7_716, %c0_717] : memref<1x16x256xf32, #tpu.memory_space<vmem>>, vector<1x1x256xf32>
    %648 = vector.shape_cast %647 : vector<1x1x256xf32> to vector<1x256xf32>
    %649 = vector.broadcast %648 : vector<1x256xf32> to vector<7x256xf32>
    %650 = arith.mulf %646, %649 : vector<7x256xf32>
    %651 = arith.addf %644, %650 : vector<7x256xf32>
    %c0_718 = arith.constant 0 : index
    %c0_719 = arith.constant 0 : index
    %c7_720 = arith.constant 7 : index
    %c0_721 = arith.constant 0 : index
    %c0_722 = arith.constant 0 : index
    %652 = vector.load %arg1[%c0_718, %c0_719, %c7_720, %c0_721, %c0_722] : memref<1x4x10x7x256xf32, #tpu.memory_space<vmem>>, vector<1x1x1x7x256xf32>
    %653 = vector.shape_cast %652 : vector<1x1x1x7x256xf32> to vector<7x256xf32>
    %c0_723 = arith.constant 0 : index
    %c8_724 = arith.constant 8 : index
    %c0_725 = arith.constant 0 : index
    %654 = vector.load %arg2[%c0_723, %c8_724, %c0_725] : memref<1x16x256xf32, #tpu.memory_space<vmem>>, vector<1x1x256xf32>
    %655 = vector.shape_cast %654 : vector<1x1x256xf32> to vector<1x256xf32>
    %656 = vector.broadcast %655 : vector<1x256xf32> to vector<7x256xf32>
    %657 = arith.mulf %653, %656 : vector<7x256xf32>
    %658 = arith.addf %651, %657 : vector<7x256xf32>
    %c0_726 = arith.constant 0 : index
    %c1_727 = arith.constant 1 : index
    %c7_728 = arith.constant 7 : index
    %c0_729 = arith.constant 0 : index
    %c0_730 = arith.constant 0 : index
    %659 = vector.load %arg1[%c0_726, %c1_727, %c7_728, %c0_729, %c0_730] : memref<1x4x10x7x256xf32, #tpu.memory_space<vmem>>, vector<1x1x1x7x256xf32>
    %660 = vector.shape_cast %659 : vector<1x1x1x7x256xf32> to vector<7x256xf32>
    %c0_731 = arith.constant 0 : index
    %c9_732 = arith.constant 9 : index
    %c0_733 = arith.constant 0 : index
    %661 = vector.load %arg2[%c0_731, %c9_732, %c0_733] : memref<1x16x256xf32, #tpu.memory_space<vmem>>, vector<1x1x256xf32>
    %662 = vector.shape_cast %661 : vector<1x1x256xf32> to vector<1x256xf32>
    %663 = vector.broadcast %662 : vector<1x256xf32> to vector<7x256xf32>
    %664 = arith.mulf %660, %663 : vector<7x256xf32>
    %665 = arith.addf %658, %664 : vector<7x256xf32>
    %c0_734 = arith.constant 0 : index
    %c2_735 = arith.constant 2 : index
    %c7_736 = arith.constant 7 : index
    %c0_737 = arith.constant 0 : index
    %c0_738 = arith.constant 0 : index
    %666 = vector.load %arg1[%c0_734, %c2_735, %c7_736, %c0_737, %c0_738] : memref<1x4x10x7x256xf32, #tpu.memory_space<vmem>>, vector<1x1x1x7x256xf32>
    %667 = vector.shape_cast %666 : vector<1x1x1x7x256xf32> to vector<7x256xf32>
    %c0_739 = arith.constant 0 : index
    %c10_740 = arith.constant 10 : index
    %c0_741 = arith.constant 0 : index
    %668 = vector.load %arg2[%c0_739, %c10_740, %c0_741] : memref<1x16x256xf32, #tpu.memory_space<vmem>>, vector<1x1x256xf32>
    %669 = vector.shape_cast %668 : vector<1x1x256xf32> to vector<1x256xf32>
    %670 = vector.broadcast %669 : vector<1x256xf32> to vector<7x256xf32>
    %671 = arith.mulf %667, %670 : vector<7x256xf32>
    %672 = arith.addf %665, %671 : vector<7x256xf32>
    %c0_742 = arith.constant 0 : index
    %c3_743 = arith.constant 3 : index
    %c7_744 = arith.constant 7 : index
    %c0_745 = arith.constant 0 : index
    %c0_746 = arith.constant 0 : index
    %673 = vector.load %arg1[%c0_742, %c3_743, %c7_744, %c0_745, %c0_746] : memref<1x4x10x7x256xf32, #tpu.memory_space<vmem>>, vector<1x1x1x7x256xf32>
    %674 = vector.shape_cast %673 : vector<1x1x1x7x256xf32> to vector<7x256xf32>
    %c0_747 = arith.constant 0 : index
    %c11_748 = arith.constant 11 : index
    %c0_749 = arith.constant 0 : index
    %675 = vector.load %arg2[%c0_747, %c11_748, %c0_749] : memref<1x16x256xf32, #tpu.memory_space<vmem>>, vector<1x1x256xf32>
    %676 = vector.shape_cast %675 : vector<1x1x256xf32> to vector<1x256xf32>
    %677 = vector.broadcast %676 : vector<1x256xf32> to vector<7x256xf32>
    %678 = arith.mulf %674, %677 : vector<7x256xf32>
    %679 = arith.addf %672, %678 : vector<7x256xf32>
    %c0_750 = arith.constant 0 : index
    %c0_751 = arith.constant 0 : index
    %c8_752 = arith.constant 8 : index
    %c0_753 = arith.constant 0 : index
    %c0_754 = arith.constant 0 : index
    %680 = vector.load %arg1[%c0_750, %c0_751, %c8_752, %c0_753, %c0_754] : memref<1x4x10x7x256xf32, #tpu.memory_space<vmem>>, vector<1x1x1x7x256xf32>
    %681 = vector.shape_cast %680 : vector<1x1x1x7x256xf32> to vector<7x256xf32>
    %c0_755 = arith.constant 0 : index
    %c12_756 = arith.constant 12 : index
    %c0_757 = arith.constant 0 : index
    %682 = vector.load %arg2[%c0_755, %c12_756, %c0_757] : memref<1x16x256xf32, #tpu.memory_space<vmem>>, vector<1x1x256xf32>
    %683 = vector.shape_cast %682 : vector<1x1x256xf32> to vector<1x256xf32>
    %684 = vector.broadcast %683 : vector<1x256xf32> to vector<7x256xf32>
    %685 = arith.mulf %681, %684 : vector<7x256xf32>
    %686 = arith.addf %679, %685 : vector<7x256xf32>
    %c0_758 = arith.constant 0 : index
    %c1_759 = arith.constant 1 : index
    %c8_760 = arith.constant 8 : index
    %c0_761 = arith.constant 0 : index
    %c0_762 = arith.constant 0 : index
    %687 = vector.load %arg1[%c0_758, %c1_759, %c8_760, %c0_761, %c0_762] : memref<1x4x10x7x256xf32, #tpu.memory_space<vmem>>, vector<1x1x1x7x256xf32>
    %688 = vector.shape_cast %687 : vector<1x1x1x7x256xf32> to vector<7x256xf32>
    %c0_763 = arith.constant 0 : index
    %c13_764 = arith.constant 13 : index
    %c0_765 = arith.constant 0 : index
    %689 = vector.load %arg2[%c0_763, %c13_764, %c0_765] : memref<1x16x256xf32, #tpu.memory_space<vmem>>, vector<1x1x256xf32>
    %690 = vector.shape_cast %689 : vector<1x1x256xf32> to vector<1x256xf32>
    %691 = vector.broadcast %690 : vector<1x256xf32> to vector<7x256xf32>
    %692 = arith.mulf %688, %691 : vector<7x256xf32>
    %693 = arith.addf %686, %692 : vector<7x256xf32>
    %c0_766 = arith.constant 0 : index
    %c2_767 = arith.constant 2 : index
    %c8_768 = arith.constant 8 : index
    %c0_769 = arith.constant 0 : index
    %c0_770 = arith.constant 0 : index
    %694 = vector.load %arg1[%c0_766, %c2_767, %c8_768, %c0_769, %c0_770] : memref<1x4x10x7x256xf32, #tpu.memory_space<vmem>>, vector<1x1x1x7x256xf32>
    %695 = vector.shape_cast %694 : vector<1x1x1x7x256xf32> to vector<7x256xf32>
    %c0_771 = arith.constant 0 : index
    %c14_772 = arith.constant 14 : index
    %c0_773 = arith.constant 0 : index
    %696 = vector.load %arg2[%c0_771, %c14_772, %c0_773] : memref<1x16x256xf32, #tpu.memory_space<vmem>>, vector<1x1x256xf32>
    %697 = vector.shape_cast %696 : vector<1x1x256xf32> to vector<1x256xf32>
    %698 = vector.broadcast %697 : vector<1x256xf32> to vector<7x256xf32>
    %699 = arith.mulf %695, %698 : vector<7x256xf32>
    %700 = arith.addf %693, %699 : vector<7x256xf32>
    %c0_774 = arith.constant 0 : index
    %c3_775 = arith.constant 3 : index
    %c8_776 = arith.constant 8 : index
    %c0_777 = arith.constant 0 : index
    %c0_778 = arith.constant 0 : index
    %701 = vector.load %arg1[%c0_774, %c3_775, %c8_776, %c0_777, %c0_778] : memref<1x4x10x7x256xf32, #tpu.memory_space<vmem>>, vector<1x1x1x7x256xf32>
    %702 = vector.shape_cast %701 : vector<1x1x1x7x256xf32> to vector<7x256xf32>
    %c0_779 = arith.constant 0 : index
    %c15_780 = arith.constant 15 : index
    %c0_781 = arith.constant 0 : index
    %703 = vector.load %arg2[%c0_779, %c15_780, %c0_781] : memref<1x16x256xf32, #tpu.memory_space<vmem>>, vector<1x1x256xf32>
    %704 = vector.shape_cast %703 : vector<1x1x256xf32> to vector<1x256xf32>
    %705 = vector.broadcast %704 : vector<1x256xf32> to vector<7x256xf32>
    %706 = arith.mulf %702, %705 : vector<7x256xf32>
    %707 = arith.addf %700, %706 : vector<7x256xf32>
    %cst_782 = arith.constant 0.000000e+00 : f32
    %708 = vector.broadcast %cst_782 : f32 to vector<7x256xf32>
    %709 = arith.maximumf %707, %708 : vector<7x256xf32>
    %710 = arith.truncf %709 : vector<7x256xf32> to vector<7x256xbf16>
    %c0_783 = arith.constant 0 : index
    %c5_784 = arith.constant 5 : index
    %c0_785 = arith.constant 0 : index
    %c0_786 = arith.constant 0 : index
    %711 = vector.load %arg3[%c0_783, %c5_784, %c0_785, %c0_786] : memref<1x7x7x256xbf16, #tpu.memory_space<vmem>>, vector<1x1x7x256xbf16>
    %712 = vector.shape_cast %711 : vector<1x1x7x256xbf16> to vector<7x256xbf16>
    %713 = vector.shape_cast %710 : vector<7x256xbf16> to vector<1x1x7x256xbf16>
    tpu.vector_store %arg3[%c0_783, %c5_784, %c0_785, %c0_786], %713 {strides = array<i32>} : memref<1x7x7x256xbf16, #tpu.memory_space<vmem>>, vector<1x1x7x256xbf16>,
    %cst_787 = arith.constant 0.000000e+00 : f32
    %714 = vector.broadcast %cst_787 : f32 to vector<7x256xf32>
    %c0_788 = arith.constant 0 : index
    %c0_789 = arith.constant 0 : index
    %c6_790 = arith.constant 6 : index
    %c0_791 = arith.constant 0 : index
    %c0_792 = arith.constant 0 : index
    %715 = vector.load %arg1[%c0_788, %c0_789, %c6_790, %c0_791, %c0_792] : memref<1x4x10x7x256xf32, #tpu.memory_space<vmem>>, vector<1x1x1x7x256xf32>
    %716 = vector.shape_cast %715 : vector<1x1x1x7x256xf32> to vector<7x256xf32>
    %c0_793 = arith.constant 0 : index
    %c0_794 = arith.constant 0 : index
    %c0_795 = arith.constant 0 : index
    %717 = vector.load %arg2[%c0_793, %c0_794, %c0_795] : memref<1x16x256xf32, #tpu.memory_space<vmem>>, vector<1x1x256xf32>
    %718 = vector.shape_cast %717 : vector<1x1x256xf32> to vector<1x256xf32>
    %719 = vector.broadcast %718 : vector<1x256xf32> to vector<7x256xf32>
    %720 = arith.mulf %716, %719 : vector<7x256xf32>
    %721 = arith.addf %714, %720 : vector<7x256xf32>
    %c0_796 = arith.constant 0 : index
    %c1_797 = arith.constant 1 : index
    %c6_798 = arith.constant 6 : index
    %c0_799 = arith.constant 0 : index
    %c0_800 = arith.constant 0 : index
    %722 = vector.load %arg1[%c0_796, %c1_797, %c6_798, %c0_799, %c0_800] : memref<1x4x10x7x256xf32, #tpu.memory_space<vmem>>, vector<1x1x1x7x256xf32>
    %723 = vector.shape_cast %722 : vector<1x1x1x7x256xf32> to vector<7x256xf32>
    %c0_801 = arith.constant 0 : index
    %c1_802 = arith.constant 1 : index
    %c0_803 = arith.constant 0 : index
    %724 = vector.load %arg2[%c0_801, %c1_802, %c0_803] : memref<1x16x256xf32, #tpu.memory_space<vmem>>, vector<1x1x256xf32>
    %725 = vector.shape_cast %724 : vector<1x1x256xf32> to vector<1x256xf32>
    %726 = vector.broadcast %725 : vector<1x256xf32> to vector<7x256xf32>
    %727 = arith.mulf %723, %726 : vector<7x256xf32>
    %728 = arith.addf %721, %727 : vector<7x256xf32>
    %c0_804 = arith.constant 0 : index
    %c2_805 = arith.constant 2 : index
    %c6_806 = arith.constant 6 : index
    %c0_807 = arith.constant 0 : index
    %c0_808 = arith.constant 0 : index
    %729 = vector.load %arg1[%c0_804, %c2_805, %c6_806, %c0_807, %c0_808] : memref<1x4x10x7x256xf32, #tpu.memory_space<vmem>>, vector<1x1x1x7x256xf32>
    %730 = vector.shape_cast %729 : vector<1x1x1x7x256xf32> to vector<7x256xf32>
    %c0_809 = arith.constant 0 : index
    %c2_810 = arith.constant 2 : index
    %c0_811 = arith.constant 0 : index
    %731 = vector.load %arg2[%c0_809, %c2_810, %c0_811] : memref<1x16x256xf32, #tpu.memory_space<vmem>>, vector<1x1x256xf32>
    %732 = vector.shape_cast %731 : vector<1x1x256xf32> to vector<1x256xf32>
    %733 = vector.broadcast %732 : vector<1x256xf32> to vector<7x256xf32>
    %734 = arith.mulf %730, %733 : vector<7x256xf32>
    %735 = arith.addf %728, %734 : vector<7x256xf32>
    %c0_812 = arith.constant 0 : index
    %c3_813 = arith.constant 3 : index
    %c6_814 = arith.constant 6 : index
    %c0_815 = arith.constant 0 : index
    %c0_816 = arith.constant 0 : index
    %736 = vector.load %arg1[%c0_812, %c3_813, %c6_814, %c0_815, %c0_816] : memref<1x4x10x7x256xf32, #tpu.memory_space<vmem>>, vector<1x1x1x7x256xf32>
    %737 = vector.shape_cast %736 : vector<1x1x1x7x256xf32> to vector<7x256xf32>
    %c0_817 = arith.constant 0 : index
    %c3_818 = arith.constant 3 : index
    %c0_819 = arith.constant 0 : index
    %738 = vector.load %arg2[%c0_817, %c3_818, %c0_819] : memref<1x16x256xf32, #tpu.memory_space<vmem>>, vector<1x1x256xf32>
    %739 = vector.shape_cast %738 : vector<1x1x256xf32> to vector<1x256xf32>
    %740 = vector.broadcast %739 : vector<1x256xf32> to vector<7x256xf32>
    %741 = arith.mulf %737, %740 : vector<7x256xf32>
    %742 = arith.addf %735, %741 : vector<7x256xf32>
    %c0_820 = arith.constant 0 : index
    %c0_821 = arith.constant 0 : index
    %c7_822 = arith.constant 7 : index
    %c0_823 = arith.constant 0 : index
    %c0_824 = arith.constant 0 : index
    %743 = vector.load %arg1[%c0_820, %c0_821, %c7_822, %c0_823, %c0_824] : memref<1x4x10x7x256xf32, #tpu.memory_space<vmem>>, vector<1x1x1x7x256xf32>
    %744 = vector.shape_cast %743 : vector<1x1x1x7x256xf32> to vector<7x256xf32>
    %c0_825 = arith.constant 0 : index
    %c4_826 = arith.constant 4 : index
    %c0_827 = arith.constant 0 : index
    %745 = vector.load %arg2[%c0_825, %c4_826, %c0_827] : memref<1x16x256xf32, #tpu.memory_space<vmem>>, vector<1x1x256xf32>
    %746 = vector.shape_cast %745 : vector<1x1x256xf32> to vector<1x256xf32>
    %747 = vector.broadcast %746 : vector<1x256xf32> to vector<7x256xf32>
    %748 = arith.mulf %744, %747 : vector<7x256xf32>
    %749 = arith.addf %742, %748 : vector<7x256xf32>
    %c0_828 = arith.constant 0 : index
    %c1_829 = arith.constant 1 : index
    %c7_830 = arith.constant 7 : index
    %c0_831 = arith.constant 0 : index
    %c0_832 = arith.constant 0 : index
    %750 = vector.load %arg1[%c0_828, %c1_829, %c7_830, %c0_831, %c0_832] : memref<1x4x10x7x256xf32, #tpu.memory_space<vmem>>, vector<1x1x1x7x256xf32>
    %751 = vector.shape_cast %750 : vector<1x1x1x7x256xf32> to vector<7x256xf32>
    %c0_833 = arith.constant 0 : index
    %c5_834 = arith.constant 5 : index
    %c0_835 = arith.constant 0 : index
    %752 = vector.load %arg2[%c0_833, %c5_834, %c0_835] : memref<1x16x256xf32, #tpu.memory_space<vmem>>, vector<1x1x256xf32>
    %753 = vector.shape_cast %752 : vector<1x1x256xf32> to vector<1x256xf32>
    %754 = vector.broadcast %753 : vector<1x256xf32> to vector<7x256xf32>
    %755 = arith.mulf %751, %754 : vector<7x256xf32>
    %756 = arith.addf %749, %755 : vector<7x256xf32>
    %c0_836 = arith.constant 0 : index
    %c2_837 = arith.constant 2 : index
    %c7_838 = arith.constant 7 : index
    %c0_839 = arith.constant 0 : index
    %c0_840 = arith.constant 0 : index
    %757 = vector.load %arg1[%c0_836, %c2_837, %c7_838, %c0_839, %c0_840] : memref<1x4x10x7x256xf32, #tpu.memory_space<vmem>>, vector<1x1x1x7x256xf32>
    %758 = vector.shape_cast %757 : vector<1x1x1x7x256xf32> to vector<7x256xf32>
    %c0_841 = arith.constant 0 : index
    %c6_842 = arith.constant 6 : index
    %c0_843 = arith.constant 0 : index
    %759 = vector.load %arg2[%c0_841, %c6_842, %c0_843] : memref<1x16x256xf32, #tpu.memory_space<vmem>>, vector<1x1x256xf32>
    %760 = vector.shape_cast %759 : vector<1x1x256xf32> to vector<1x256xf32>
    %761 = vector.broadcast %760 : vector<1x256xf32> to vector<7x256xf32>
    %762 = arith.mulf %758, %761 : vector<7x256xf32>
    %763 = arith.addf %756, %762 : vector<7x256xf32>
    %c0_844 = arith.constant 0 : index
    %c3_845 = arith.constant 3 : index
    %c7_846 = arith.constant 7 : index
    %c0_847 = arith.constant 0 : index
    %c0_848 = arith.constant 0 : index
    %764 = vector.load %arg1[%c0_844, %c3_845, %c7_846, %c0_847, %c0_848] : memref<1x4x10x7x256xf32, #tpu.memory_space<vmem>>, vector<1x1x1x7x256xf32>
    %765 = vector.shape_cast %764 : vector<1x1x1x7x256xf32> to vector<7x256xf32>
    %c0_849 = arith.constant 0 : index
    %c7_850 = arith.constant 7 : index
    %c0_851 = arith.constant 0 : index
    %766 = vector.load %arg2[%c0_849, %c7_850, %c0_851] : memref<1x16x256xf32, #tpu.memory_space<vmem>>, vector<1x1x256xf32>
    %767 = vector.shape_cast %766 : vector<1x1x256xf32> to vector<1x256xf32>
    %768 = vector.broadcast %767 : vector<1x256xf32> to vector<7x256xf32>
    %769 = arith.mulf %765, %768 : vector<7x256xf32>
    %770 = arith.addf %763, %769 : vector<7x256xf32>
    %c0_852 = arith.constant 0 : index
    %c0_853 = arith.constant 0 : index
    %c8_854 = arith.constant 8 : index
    %c0_855 = arith.constant 0 : index
    %c0_856 = arith.constant 0 : index
    %771 = vector.load %arg1[%c0_852, %c0_853, %c8_854, %c0_855, %c0_856] : memref<1x4x10x7x256xf32, #tpu.memory_space<vmem>>, vector<1x1x1x7x256xf32>
    %772 = vector.shape_cast %771 : vector<1x1x1x7x256xf32> to vector<7x256xf32>
    %c0_857 = arith.constant 0 : index
    %c8_858 = arith.constant 8 : index
    %c0_859 = arith.constant 0 : index
    %773 = vector.load %arg2[%c0_857, %c8_858, %c0_859] : memref<1x16x256xf32, #tpu.memory_space<vmem>>, vector<1x1x256xf32>
    %774 = vector.shape_cast %773 : vector<1x1x256xf32> to vector<1x256xf32>
    %775 = vector.broadcast %774 : vector<1x256xf32> to vector<7x256xf32>
    %776 = arith.mulf %772, %775 : vector<7x256xf32>
    %777 = arith.addf %770, %776 : vector<7x256xf32>
    %c0_860 = arith.constant 0 : index
    %c1_861 = arith.constant 1 : index
    %c8_862 = arith.constant 8 : index
    %c0_863 = arith.constant 0 : index
    %c0_864 = arith.constant 0 : index
    %778 = vector.load %arg1[%c0_860, %c1_861, %c8_862, %c0_863, %c0_864] : memref<1x4x10x7x256xf32, #tpu.memory_space<vmem>>, vector<1x1x1x7x256xf32>
    %779 = vector.shape_cast %778 : vector<1x1x1x7x256xf32> to vector<7x256xf32>
    %c0_865 = arith.constant 0 : index
    %c9_866 = arith.constant 9 : index
    %c0_867 = arith.constant 0 : index
    %780 = vector.load %arg2[%c0_865, %c9_866, %c0_867] : memref<1x16x256xf32, #tpu.memory_space<vmem>>, vector<1x1x256xf32>
    %781 = vector.shape_cast %780 : vector<1x1x256xf32> to vector<1x256xf32>
    %782 = vector.broadcast %781 : vector<1x256xf32> to vector<7x256xf32>
    %783 = arith.mulf %779, %782 : vector<7x256xf32>
    %784 = arith.addf %777, %783 : vector<7x256xf32>
    %c0_868 = arith.constant 0 : index
    %c2_869 = arith.constant 2 : index
    %c8_870 = arith.constant 8 : index
    %c0_871 = arith.constant 0 : index
    %c0_872 = arith.constant 0 : index
    %785 = vector.load %arg1[%c0_868, %c2_869, %c8_870, %c0_871, %c0_872] : memref<1x4x10x7x256xf32, #tpu.memory_space<vmem>>, vector<1x1x1x7x256xf32>
    %786 = vector.shape_cast %785 : vector<1x1x1x7x256xf32> to vector<7x256xf32>
    %c0_873 = arith.constant 0 : index
    %c10_874 = arith.constant 10 : index
    %c0_875 = arith.constant 0 : index
    %787 = vector.load %arg2[%c0_873, %c10_874, %c0_875] : memref<1x16x256xf32, #tpu.memory_space<vmem>>, vector<1x1x256xf32>
    %788 = vector.shape_cast %787 : vector<1x1x256xf32> to vector<1x256xf32>
    %789 = vector.broadcast %788 : vector<1x256xf32> to vector<7x256xf32>
    %790 = arith.mulf %786, %789 : vector<7x256xf32>
    %791 = arith.addf %784, %790 : vector<7x256xf32>
    %c0_876 = arith.constant 0 : index
    %c3_877 = arith.constant 3 : index
    %c8_878 = arith.constant 8 : index
    %c0_879 = arith.constant 0 : index
    %c0_880 = arith.constant 0 : index
    %792 = vector.load %arg1[%c0_876, %c3_877, %c8_878, %c0_879, %c0_880] : memref<1x4x10x7x256xf32, #tpu.memory_space<vmem>>, vector<1x1x1x7x256xf32>
    %793 = vector.shape_cast %792 : vector<1x1x1x7x256xf32> to vector<7x256xf32>
    %c0_881 = arith.constant 0 : index
    %c11_882 = arith.constant 11 : index
    %c0_883 = arith.constant 0 : index
    %794 = vector.load %arg2[%c0_881, %c11_882, %c0_883] : memref<1x16x256xf32, #tpu.memory_space<vmem>>, vector<1x1x256xf32>
    %795 = vector.shape_cast %794 : vector<1x1x256xf32> to vector<1x256xf32>
    %796 = vector.broadcast %795 : vector<1x256xf32> to vector<7x256xf32>
    %797 = arith.mulf %793, %796 : vector<7x256xf32>
    %798 = arith.addf %791, %797 : vector<7x256xf32>
    %c0_884 = arith.constant 0 : index
    %c0_885 = arith.constant 0 : index
    %c9_886 = arith.constant 9 : index
    %c0_887 = arith.constant 0 : index
    %c0_888 = arith.constant 0 : index
    %799 = vector.load %arg1[%c0_884, %c0_885, %c9_886, %c0_887, %c0_888] : memref<1x4x10x7x256xf32, #tpu.memory_space<vmem>>, vector<1x1x1x7x256xf32>
    %800 = vector.shape_cast %799 : vector<1x1x1x7x256xf32> to vector<7x256xf32>
    %c0_889 = arith.constant 0 : index
    %c12_890 = arith.constant 12 : index
    %c0_891 = arith.constant 0 : index
    %801 = vector.load %arg2[%c0_889, %c12_890, %c0_891] : memref<1x16x256xf32, #tpu.memory_space<vmem>>, vector<1x1x256xf32>
    %802 = vector.shape_cast %801 : vector<1x1x256xf32> to vector<1x256xf32>
    %803 = vector.broadcast %802 : vector<1x256xf32> to vector<7x256xf32>
    %804 = arith.mulf %800, %803 : vector<7x256xf32>
    %805 = arith.addf %798, %804 : vector<7x256xf32>
    %c0_892 = arith.constant 0 : index
    %c1_893 = arith.constant 1 : index
    %c9_894 = arith.constant 9 : index
    %c0_895 = arith.constant 0 : index
    %c0_896 = arith.constant 0 : index
    %806 = vector.load %arg1[%c0_892, %c1_893, %c9_894, %c0_895, %c0_896] : memref<1x4x10x7x256xf32, #tpu.memory_space<vmem>>, vector<1x1x1x7x256xf32>
    %807 = vector.shape_cast %806 : vector<1x1x1x7x256xf32> to vector<7x256xf32>
    %c0_897 = arith.constant 0 : index
    %c13_898 = arith.constant 13 : index
    %c0_899 = arith.constant 0 : index
    %808 = vector.load %arg2[%c0_897, %c13_898, %c0_899] : memref<1x16x256xf32, #tpu.memory_space<vmem>>, vector<1x1x256xf32>
    %809 = vector.shape_cast %808 : vector<1x1x256xf32> to vector<1x256xf32>
    %810 = vector.broadcast %809 : vector<1x256xf32> to vector<7x256xf32>
    %811 = arith.mulf %807, %810 : vector<7x256xf32>
    %812 = arith.addf %805, %811 : vector<7x256xf32>
    %c0_900 = arith.constant 0 : index
    %c2_901 = arith.constant 2 : index
    %c9_902 = arith.constant 9 : index
    %c0_903 = arith.constant 0 : index
    %c0_904 = arith.constant 0 : index
    %813 = vector.load %arg1[%c0_900, %c2_901, %c9_902, %c0_903, %c0_904] : memref<1x4x10x7x256xf32, #tpu.memory_space<vmem>>, vector<1x1x1x7x256xf32>
    %814 = vector.shape_cast %813 : vector<1x1x1x7x256xf32> to vector<7x256xf32>
    %c0_905 = arith.constant 0 : index
    %c14_906 = arith.constant 14 : index
    %c0_907 = arith.constant 0 : index
    %815 = vector.load %arg2[%c0_905, %c14_906, %c0_907] : memref<1x16x256xf32, #tpu.memory_space<vmem>>, vector<1x1x256xf32>
    %816 = vector.shape_cast %815 : vector<1x1x256xf32> to vector<1x256xf32>
    %817 = vector.broadcast %816 : vector<1x256xf32> to vector<7x256xf32>
    %818 = arith.mulf %814, %817 : vector<7x256xf32>
    %819 = arith.addf %812, %818 : vector<7x256xf32>
    %c0_908 = arith.constant 0 : index
    %c3_909 = arith.constant 3 : index
    %c9_910 = arith.constant 9 : index
    %c0_911 = arith.constant 0 : index
    %c0_912 = arith.constant 0 : index
    %820 = vector.load %arg1[%c0_908, %c3_909, %c9_910, %c0_911, %c0_912] : memref<1x4x10x7x256xf32, #tpu.memory_space<vmem>>, vector<1x1x1x7x256xf32>
    %821 = vector.shape_cast %820 : vector<1x1x1x7x256xf32> to vector<7x256xf32>
    %c0_913 = arith.constant 0 : index
    %c15_914 = arith.constant 15 : index
    %c0_915 = arith.constant 0 : index
    %822 = vector.load %arg2[%c0_913, %c15_914, %c0_915] : memref<1x16x256xf32, #tpu.memory_space<vmem>>, vector<1x1x256xf32>
    %823 = vector.shape_cast %822 : vector<1x1x256xf32> to vector<1x256xf32>
    %824 = vector.broadcast %823 : vector<1x256xf32> to vector<7x256xf32>
    %825 = arith.mulf %821, %824 : vector<7x256xf32>
    %826 = arith.addf %819, %825 : vector<7x256xf32>
    %cst_916 = arith.constant 0.000000e+00 : f32
    %827 = vector.broadcast %cst_916 : f32 to vector<7x256xf32>
    %828 = arith.maximumf %826, %827 : vector<7x256xf32>
    %829 = arith.truncf %828 : vector<7x256xf32> to vector<7x256xbf16>
    %c0_917 = arith.constant 0 : index
    %c6_918 = arith.constant 6 : index
    %c0_919 = arith.constant 0 : index
    %c0_920 = arith.constant 0 : index
    %830 = vector.load %arg3[%c0_917, %c6_918, %c0_919, %c0_920] : memref<1x7x7x256xbf16, #tpu.memory_space<vmem>>, vector<1x1x7x256xbf16>
    %831 = vector.shape_cast %830 : vector<1x1x7x256xbf16> to vector<7x256xbf16>
    %832 = vector.shape_cast %829 : vector<7x256xbf16> to vector<1x1x7x256xbf16>
    tpu.vector_store %arg3[%c0_917, %c6_918, %c0_919, %c0_920], %832 {strides = array<i32>} : memref<1x7x7x256xbf16, #tpu.memory_space<vmem>>, vector<1x1x7x256xbf16>,
    return
  }
  func.func @transform_0(%arg0: i32) -> (i32, i32, i32, i32, i32) {
    %c0_i32 = arith.constant 0 : i32
    %c0_i32_0 = arith.constant 0 : i32
    %c0_i32_1 = arith.constant 0 : i32
    %c0_i32_2 = arith.constant 0 : i32
    %c0_i32_3 = arith.constant 0 : i32
    return %arg0, %c0_i32, %c0_i32_0, %c0_i32_1, %c0_i32_2 : i32, i32, i32, i32, i32
  }
  func.func @transform_1(%arg0: i32) -> (i32, i32, i32) {
    %c0_i32 = arith.constant 0 : i32
    %c0_i32_0 = arith.constant 0 : i32
    %c0_i32_1 = arith.constant 0 : i32
    return %arg0, %c0_i32, %c0_i32_0 : i32, i32, i32
  }
  func.func @transform_2(%arg0: i32) -> (i32, i32, i32, i32) {
    %c0_i32 = arith.constant 0 : i32
    %c0_i32_0 = arith.constant 0 : i32
    %c0_i32_1 = arith.constant 0 : i32
    %c0_i32_2 = arith.constant 0 : i32
    return %arg0, %c0_i32, %c0_i32_0, %c0_i32_1 : i32, i32, i32, i32
  }
}

module attributes {stable_mosaic.version = 11 : i64} {
  func.func @_conv_mm_kernel(%arg0: i32, %arg1: memref<1x361x2304xbf16, #tpu.memory_space<vmem>>, %arg2: memref<2304x256xbf16, #tpu.memory_space<vmem>>, %arg3: memref<1x256xf32, #tpu.memory_space<vmem>>, %arg4: memref<1x361x256xf32, #tpu.memory_space<vmem>>, %arg5: memref<1x1x256xf32, #tpu.memory_space<vmem>>, %arg6: memref<1x1x256xf32, #tpu.memory_space<vmem>>) attributes {dimension_semantics = [#tpu.dimension_semantics<parallel>], iteration_bounds = array<i64: 2>, scalar_prefetch = 0 : i64, scratch_operands = 0 : i64, tpu.core_type = #tpu.core_type<tc>, window_params = [{transform_indices = @transform_0, window_bounds = array<i64: 1, 361, 2304>}, {pipeline_mode = #tpu.pipeline_mode<synchronous>, transform_indices = @transform_1, window_bounds = array<i64: 2304, 256>}, {pipeline_mode = #tpu.pipeline_mode<synchronous>, transform_indices = @transform_2, window_bounds = array<i64: 1, 256>}, {transform_indices = @transform_3, window_bounds = array<i64: 1, 361, 256>}, {transform_indices = @transform_4, window_bounds = array<i64: 1, 1, 256>}, {transform_indices = @transform_5, window_bounds = array<i64: 1, 1, 256>}]} {
    %c0 = arith.constant 0 : index
    %c0_0 = arith.constant 0 : index
    %c0_1 = arith.constant 0 : index
    %0 = vector.load %arg1[%c0, %c0_0, %c0_1] : memref<1x361x2304xbf16, #tpu.memory_space<vmem>>, vector<1x361x2304xbf16>
    %1 = vector.shape_cast %0 : vector<1x361x2304xbf16> to vector<361x2304xbf16>
    %c0_2 = arith.constant 0 : index
    %c0_3 = arith.constant 0 : index
    %2 = vector.load %arg2[%c0_2, %c0_3] : memref<2304x256xbf16, #tpu.memory_space<vmem>>, vector<2304x256xbf16>
    %cst = arith.constant dense<0.000000e+00> : vector<361x256xf32>
    %3 = tpu.matmul %1, %2, %cst {dimension_numbers = #tpu.dot_dimension_numbers<[1], [0], [0], [1], [0, 0, 1, 1], [], []>} : vector<361x2304xbf16>, vector<2304x256xbf16>, vector<361x256xf32> -> vector<361x256xf32>
    %c0_4 = arith.constant 0 : index
    %c0_5 = arith.constant 0 : index
    %4 = vector.load %arg3[%c0_4, %c0_5] : memref<1x256xf32, #tpu.memory_space<vmem>>, vector<1x256xf32>
    %5 = vector.broadcast %4 : vector<1x256xf32> to vector<361x256xf32>
    %6 = arith.addf %3, %5 : vector<361x256xf32>
    %c0_6 = arith.constant 0 : index
    %c0_7 = arith.constant 0 : index
    %c0_8 = arith.constant 0 : index
    %7 = vector.load %arg4[%c0_6, %c0_7, %c0_8] : memref<1x361x256xf32, #tpu.memory_space<vmem>>, vector<1x361x256xf32>
    %8 = vector.shape_cast %7 : vector<1x361x256xf32> to vector<361x256xf32>
    %9 = vector.shape_cast %6 : vector<361x256xf32> to vector<1x361x256xf32>
    tpu.vector_store %arg4[%c0_6, %c0_7, %c0_8], %9 {strides = array<i32>} : memref<1x361x256xf32, #tpu.memory_space<vmem>>, vector<1x361x256xf32>,
    %cst_9 = arith.constant dense<0.000000e+00> : vector<256xf32>
    %10 = vector.multi_reduction <add>, %6, %cst_9 [0] : vector<361x256xf32> to vector<256xf32>
    %11 = vector.shape_cast %10 : vector<256xf32> to vector<1x256xf32>
    %c0_10 = arith.constant 0 : index
    %c0_11 = arith.constant 0 : index
    %c0_12 = arith.constant 0 : index
    %12 = vector.load %arg5[%c0_10, %c0_11, %c0_12] : memref<1x1x256xf32, #tpu.memory_space<vmem>>, vector<1x1x256xf32>
    %13 = vector.shape_cast %12 : vector<1x1x256xf32> to vector<1x256xf32>
    %14 = vector.shape_cast %11 : vector<1x256xf32> to vector<1x1x256xf32>
    tpu.vector_store %arg5[%c0_10, %c0_11, %c0_12], %14 {strides = array<i32>} : memref<1x1x256xf32, #tpu.memory_space<vmem>>, vector<1x1x256xf32>,
    %15 = arith.mulf %6, %6 : vector<361x256xf32>
    %cst_13 = arith.constant dense<0.000000e+00> : vector<256xf32>
    %16 = vector.multi_reduction <add>, %15, %cst_13 [0] : vector<361x256xf32> to vector<256xf32>
    %17 = vector.shape_cast %16 : vector<256xf32> to vector<1x256xf32>
    %c0_14 = arith.constant 0 : index
    %c0_15 = arith.constant 0 : index
    %c0_16 = arith.constant 0 : index
    %18 = vector.load %arg6[%c0_14, %c0_15, %c0_16] : memref<1x1x256xf32, #tpu.memory_space<vmem>>, vector<1x1x256xf32>
    %19 = vector.shape_cast %18 : vector<1x1x256xf32> to vector<1x256xf32>
    %20 = vector.shape_cast %17 : vector<1x256xf32> to vector<1x1x256xf32>
    tpu.vector_store %arg6[%c0_14, %c0_15, %c0_16], %20 {strides = array<i32>} : memref<1x1x256xf32, #tpu.memory_space<vmem>>, vector<1x1x256xf32>,
    return
  }
  func.func @transform_0(%arg0: i32) -> (i32, i32, i32) {
    %c0_i32 = arith.constant 0 : i32
    %c0_i32_0 = arith.constant 0 : i32
    %c0_i32_1 = arith.constant 0 : i32
    return %arg0, %c0_i32, %c0_i32_0 : i32, i32, i32
  }
  func.func @transform_1(%arg0: i32) -> (i32, i32) {
    %c0_i32 = arith.constant 0 : i32
    %c0_i32_0 = arith.constant 0 : i32
    %c0_i32_1 = arith.constant 0 : i32
    return %c0_i32, %c0_i32_0 : i32, i32
  }
  func.func @transform_2(%arg0: i32) -> (i32, i32) {
    %c0_i32 = arith.constant 0 : i32
    %c0_i32_0 = arith.constant 0 : i32
    %c0_i32_1 = arith.constant 0 : i32
    return %c0_i32, %c0_i32_0 : i32, i32
  }
  func.func @transform_3(%arg0: i32) -> (i32, i32, i32) {
    %c0_i32 = arith.constant 0 : i32
    %c0_i32_0 = arith.constant 0 : i32
    %c0_i32_1 = arith.constant 0 : i32
    return %arg0, %c0_i32, %c0_i32_0 : i32, i32, i32
  }
  func.func @transform_4(%arg0: i32) -> (i32, i32, i32) {
    %c0_i32 = arith.constant 0 : i32
    %c0_i32_0 = arith.constant 0 : i32
    %c0_i32_1 = arith.constant 0 : i32
    return %arg0, %c0_i32, %c0_i32_0 : i32, i32, i32
  }
  func.func @transform_5(%arg0: i32) -> (i32, i32, i32) {
    %c0_i32 = arith.constant 0 : i32
    %c0_i32_0 = arith.constant 0 : i32
    %c0_i32_1 = arith.constant 0 : i32
    return %arg0, %c0_i32, %c0_i32_0 : i32, i32, i32
  }
}

</mosaic_0001>

<llo_original>
// kernel: forward.3
$region0: #{forward.3}
  #allocation0 [shape = 'u32[]', space=smem, size = 0x4, offset = 0x4, fixed_abs, tag = 'smem constant byte address 0x4 - core index']
  #allocation1 [shape = 'u32[144,128]{1,0:T(1,128)}', space=vmem, size = 0x12000, scoped, tag = 'internal scratch']
  %s0 = inlined_call_operand.vmem [shape: f32[2,4,10,7,256], index: 0, kind: input, shape index: {}]
  %s1 = inlined_call_operand.vmem [shape: f32[2,16,256], index: 1, kind: input, shape index: {}]
  %s2 = inlined_call_operand.vmem [shape: bf16[2,7,7,256], index: 2, kind: output, shape index: {}]
  %s3 = sld [smem:[#allocation0]]
  $region41: #{forward.3} parent=0
    _
  %s5 = ssub.s32 1, %s3
  %s6 = scalar_select 0, %s5, %s3
  loop: start=0, step=1, limit=4
  $region2: #{forward.3} parent=0 // loop_pre_header
    _
  $region3: #{forward.3} parent=0 // loop_header
    %s8 = sphi 0, %s12
    %p9 = scmp.ge.s32.totalorder %s8, 4
    %s18 = sphi 0, %s20
    %s21 = sphi 0, %s18
    %s22 = sphi 0, %s21
    %s38 = sphi 0, %s22
    %s44 = sphi 0, %s46
    %s47 = sphi 0, %s44
    %s48 = sphi 0, %s47
    %s64 = sphi 0, %s48
    %s70 = sphi 0, %s72
    %s73 = sphi 0, %s70
    %s74 = sphi 0, %s73
    %s90 = sphi 0, %s74
  $region4: #{forward.3} parent=0 // loop_header_branch
    %11 = sbr.rel (%p9) target = $region8
  $region5: #{forward.3} parent=0 // loop_body
    %s13 = ssub.s32 %s8, 1
    %s14 = ssub.s32 %s8, 2
    %s15 = sadd.s32 %s8, 1
    %s16 = ssub.s32 %s8, %s15
    %p17 = scmp.eq.s32.totalorder %s16, 0
    %s19 = sadd.s32 %s18, 1
    %s20 = scalar_select %p17, %s18, %s19
    %p23 = pneg %p17
    %p24 = scmp.eq.s32.totalorder %s8, 1
    %p25 = por %p23, %p24
    %p26 = scmp.ne.s32.totalorder %s18, %s21
    %p27 = scmp.eq.s32.totalorder %s8, 0
    %p28 = por %p26, %p27
    %p29 = scmp.ne.s32.totalorder %s18, %s21
    %p30 = scmp.eq.s32.totalorder %s13, 1
    %p31 = por %p29, %p30
    %p32 = scmp.ne.s32.totalorder %s21, %s22
    %p33 = scmp.eq.s32.totalorder %s13, 0
    %p34 = por %p32, %p33
    %p35 = scmp.ne.s32.totalorder %s21, %s22
    %p36 = scmp.eq.s32.totalorder %s14, 1
    %p37 = por %p35, %p36
    %p39 = scmp.ne.s32.totalorder %s22, %s38
    %p40 = scmp.eq.s32.totalorder %s14, 0
    %p41 = por %p39, %p40
    %s42 = ssub.s32 %s8, %s15
    %p43 = scmp.eq.s32.totalorder %s42, 0
    %s45 = sadd.s32 %s44, 1
    %s46 = scalar_select %p43, %s44, %s45
    %p49 = pneg %p43
    %p50 = scmp.eq.s32.totalorder %s8, 1
    %p51 = por %p49, %p50
    %p52 = scmp.ne.s32.totalorder %s44, %s47
    %p53 = scmp.eq.s32.totalorder %s8, 0
    %p54 = por %p52, %p53
    %p55 = scmp.ne.s32.totalorder %s44, %s47
    %p56 = scmp.eq.s32.totalorder %s13, 1
    %p57 = por %p55, %p56
    %p58 = scmp.ne.s32.totalorder %s47, %s48
    %p59 = scmp.eq.s32.totalorder %s13, 0
    %p60 = por %p58, %p59
    %p61 = scmp.ne.s32.totalorder %s47, %s48
    %p62 = scmp.eq.s32.totalorder %s14, 1
    %p63 = por %p61, %p62
    %p65 = scmp.ne.s32.totalorder %s48, %s64
    %p66 = scmp.eq.s32.totalorder %s14, 0
    %p67 = por %p65, %p66
    %s68 = ssub.s32 %s8, %s15
    %p69 = scmp.eq.s32.totalorder %s68, 0
    %s71 = sadd.s32 %s70, 1
    %s72 = scalar_select %p69, %s70, %s71
    %p75 = pneg %p69
    %p76 = scmp.eq.s32.totalorder %s8, 1
    %p77 = por %p75, %p76
    %p78 = scmp.ne.s32.totalorder %s70, %s73
    %p79 = scmp.eq.s32.totalorder %s8, 0
    %p80 = por %p78, %p79
    %p81 = scmp.ne.s32.totalorder %s70, %s73
    %p82 = scmp.eq.s32.totalorder %s13, 1
    %p83 = por %p81, %p82
    %p84 = scmp.ne.s32.totalorder %s73, %s74
    %p85 = scmp.eq.s32.totalorder %s13, 0
    %p86 = por %p84, %p85
    %p87 = scmp.ne.s32.totalorder %s73, %s74
    %p88 = scmp.eq.s32.totalorder %s14, 1
    %p89 = por %p87, %p88
    %p91 = scmp.ne.s32.totalorder %s74, %s90
    %p92 = scmp.eq.s32.totalorder %s14, 0
    %p93 = por %p91, %p92
    %p94 = scmp.le.s32.totalorder 1, %s8
    %p95 = scmp.lt.s32.totalorder %s8, 3
    %p96 = pnand %p94, %p95
    %p97 = pneg %p96
    // Predicated region
    $region9: #{forward.3} parent=5 // pred_check
      _
    $region10: #{forward.3} parent=5 // pred_check_branch
      %99 = sbr.rel (%p96) target = $region12
    $region11: #{forward.3} parent=5 // pred_region
      %s100 = ssub.s32 %s8, 1
    $region12: #{forward.3} parent=5 // pred_fallthru
      _
    %p101 = scmp.lt.s32.totalorder %s8, 2
    // Predicated region
    $region13: #{forward.3} parent=5 // pred_check
      %p102 = pneg %p101
    $region14: #{forward.3} parent=5 // pred_check_branch
      %104 = sbr.rel (%p102) target = $region16
    $region15: #{forward.3} parent=5 // pred_region
      // Predicated region
      $region17: #{forward.3} parent=15 // pred_check
        %p105 = pneg %p28
      $region18: #{forward.3} parent=15 // pred_check_branch
        %107 = sbr.rel (%p105) target = $region20
      $region19: #{forward.3} parent=15 // pred_region
        %p108 = scmp.lt.s32.totalorder %s8, 1
        %s109 = scalar_select %p108, %s8, 1
        %s110 = smul.addr %s109, 80
        %s111 = smul.addr %s110, 8
        %s112 = scalar_lea.vmem %s0, %s111
      $region20: #{forward.3} parent=15 // pred_fallthru
        _
      // Predicated region
      $region21: #{forward.3} parent=15 // pred_check
        %p113 = pneg %p54
      $region22: #{forward.3} parent=15 // pred_check_branch
        %115 = sbr.rel (%p113) target = $region24
      $region23: #{forward.3} parent=15 // pred_region
        %p116 = scmp.lt.s32.totalorder %s8, 1
        %s117 = scalar_select %p116, %s8, 1
        %s118 = smul.addr %s117, 4
        %s119 = smul.addr %s118, 8
        %s120 = scalar_lea.vmem %s1, %s119
      $region24: #{forward.3} parent=15 // pred_fallthru
        _
    $region16: #{forward.3} parent=5 // pred_fallthru
      _
    %p121 = scmp.le.s32.totalorder 1, %s8
    %p122 = scmp.lt.s32.totalorder %s8, 3
    %p123 = pnand %p121, %p122
    %p124 = pneg %p123
    // Predicated region
    $region25: #{forward.3} parent=5 // pred_check
      _
    $region26: #{forward.3} parent=5 // pred_check_branch
      %126 = sbr.rel (%p123) target = $region28
    $region27: #{forward.3} parent=5 // pred_region
      %s127 = ssub.s32 %s8, 1
      %p128 = scmp.lt.s32.totalorder %s13, 1
      %s129 = scalar_select %p128, %s13, 1
      %s130 = smul.addr %s129, 80
      %s131 = smul.addr %s130, 8
      %s132 = scalar_lea.vmem %s0, %s131
      %p133 = pneg %p34
      %p134 = pneg %p31
      %p135 = scmp.lt.s32.totalorder %s13, 1
      %s136 = scalar_select %p135, %s13, 1
      %s137 = smul.addr %s136, 4
      %s138 = smul.addr %s137, 8
      %s139 = scalar_lea.vmem %s1, %s138
      %p140 = pneg %p60
      %p141 = pneg %p57
      %p142 = pneg %p86
      %p143 = pneg %p83
      %p144 = scmp.lt.s32.totalorder %s13, 1
      %s145 = scalar_select %p144, %s13, 1
      %s146 = smul.addr %s145, 14
      %s147 = smul.addr %s146, 4
      %s148 = scalar_lea.vmem %s2, %s147
      %p149 = scmp.lt.s32.totalorder %s13, 1
      %s150 = scalar_select %p149, %s13, 1
      %s151 = smul.addr %s150, 80
      %s152 = smul.addr %s151, 8
      %s153 = scalar_lea.vmem %s0, %s152
      %p154 = scmp.lt.s32.totalorder %s13, 1
      %s155 = scalar_select %p154, %s13, 1
      %s156 = smul.addr %s155, 4
      %s157 = smul.addr %s156, 8
      %s158 = scalar_lea.vmem %s1, %s157
      %p159 = scmp.lt.s32.totalorder %s13, 1
      %s160 = scalar_select %p159, %s13, 1
      %s161 = smul.addr %s160, 14
      %s162 = smul.addr %s161, 4
      %s163 = scalar_lea.vmem %s2, %s162
      %v164 = vld [vmem:[%s153] sm:$0x7f]
      %v165 = vld [vmem:[%s153 + $0x8] sm:$0x7f]
      %v166 = vld [vmem:[%s158] ss:$8 sm:$0x3]
      %v168 = vlaneseq
      %v169 = vshrl.u32 %v168, 7
      %v170 = vsub.s32 0, %v169
      %v171 = vrot.slane %v166, %v170
      %v172 = vlaneseq
      %v173 = vshrl.u32 %v172, 7
      %v174 = vsub.s32 1, %v173
      %v175 = vrot.slane %v166, %v174
      %v178 = vmul.f32 %v164, %v171
      %v179 = vmul.f32 %v165, %v175
      %v180 = vadd.f32 %v178, 0.0
      %v181 = vadd.f32 %v179, 0.0
      %s182 = scalar_lea.vmem %s153, 160
      %v183 = vld [vmem:[%s182] sm:$0x7f]
      %v184 = vld [vmem:[%s182 + $0x8] sm:$0x7f]
      %s185 = scalar_lea.vmem %s158, 1
      %v186 = vld [vmem:[%s185] ss:$8 sm:$0x3]
      %v188 = vlaneseq
      %v189 = vshrl.u32 %v188, 7
      %v190 = vsub.s32 0, %v189
      %v191 = vrot.slane %v186, %v190
      %v192 = vlaneseq
      %v193 = vshrl.u32 %v192, 7
      %v194 = vsub.s32 1, %v193
      %v195 = vrot.slane %v186, %v194
      %v198 = vmul.f32 %v183, %v191
      %v199 = vmul.f32 %v184, %v195
      %v200 = vadd.f32 %v180, %v198
      %v201 = vadd.f32 %v181, %v199
      %s202 = scalar_lea.vmem %s153, 320
      %v203 = vld [vmem:[%s202] sm:$0x7f]
      %v204 = vld [vmem:[%s202 + $0x8] sm:$0x7f]
      %s205 = scalar_lea.vmem %s158, 2
      %v206 = vld [vmem:[%s205] ss:$8 sm:$0x3]
      %v208 = vlaneseq
      %v209 = vshrl.u32 %v208, 7
      %v210 = vsub.s32 0, %v209
      %v211 = vrot.slane %v206, %v210
      %v212 = vlaneseq
      %v213 = vshrl.u32 %v212, 7
      %v214 = vsub.s32 1, %v213
      %v215 = vrot.slane %v206, %v214
      %v218 = vmul.f32 %v203, %v211
      %v219 = vmul.f32 %v204, %v215
      %v220 = vadd.f32 %v200, %v218
      %v221 = vadd.f32 %v201, %v219
      %s222 = scalar_lea.vmem %s153, 480
      %v223 = vld [vmem:[%s222] sm:$0x7f]
      %v224 = vld [vmem:[%s222 + $0x8] sm:$0x7f]
      %s225 = scalar_lea.vmem %s158, 3
      %v226 = vld [vmem:[%s225] ss:$8 sm:$0x3]
      %v228 = vlaneseq
      %v229 = vshrl.u32 %v228, 7
      %v230 = vsub.s32 0, %v229
      %v231 = vrot.slane %v226, %v230
      %v232 = vlaneseq
      %v233 = vshrl.u32 %v232, 7
      %v234 = vsub.s32 1, %v233
      %v235 = vrot.slane %v226, %v234
      %v238 = vmul.f32 %v223, %v231
      %v239 = vmul.f32 %v224, %v235
      %v240 = vadd.f32 %v220, %v238
      %v241 = vadd.f32 %v221, %v239
      %s242 = scalar_lea.vmem %s153, 16
      %v243 = vld [vmem:[%s242] sm:$0x7f]
      %v244 = vld [vmem:[%s242 + $0x8] sm:$0x7f]
      %s245 = scalar_lea.vmem %s158, 4
      %v246 = vld [vmem:[%s245] ss:$8 sm:$0x3]
      %v248 = vlaneseq
      %v249 = vshrl.u32 %v248, 7
      %v250 = vsub.s32 0, %v249
      %v251 = vrot.slane %v246, %v250
      %v252 = vlaneseq
      %v253 = vshrl.u32 %v252, 7
      %v254 = vsub.s32 1, %v253
      %v255 = vrot.slane %v246, %v254
      %v258 = vmul.f32 %v243, %v251
      %v259 = vmul.f32 %v244, %v255
      %v260 = vadd.f32 %v240, %v258
      %v261 = vadd.f32 %v241, %v259
      %s262 = scalar_lea.vmem %s153, 176
      %v263 = vld [vmem:[%s262] sm:$0x7f]
      %v264 = vld [vmem:[%s262 + $0x8] sm:$0x7f]
      %s265 = scalar_lea.vmem %s158, 5
      %v266 = vld [vmem:[%s265] ss:$8 sm:$0x3]
      %v268 = vlaneseq
      %v269 = vshrl.u32 %v268, 7
      %v270 = vsub.s32 0, %v269
      %v271 = vrot.slane %v266, %v270
      %v272 = vlaneseq
      %v273 = vshrl.u32 %v272, 7
      %v274 = vsub.s32 1, %v273
      %v275 = vrot.slane %v266, %v274
      %v278 = vmul.f32 %v263, %v271
      %v279 = vmul.f32 %v264, %v275
      %v280 = vadd.f32 %v260, %v278
      %v281 = vadd.f32 %v261, %v279
      %s282 = scalar_lea.vmem %s153, 336
      %v283 = vld [vmem:[%s282] sm:$0x7f]
      %v284 = vld [vmem:[%s282 + $0x8] sm:$0x7f]
      %s285 = scalar_lea.vmem %s158, 6
      %v286 = vld [vmem:[%s285] ss:$8 sm:$0x3]
      %v288 = vlaneseq
      %v289 = vshrl.u32 %v288, 7
      %v290 = vsub.s32 0, %v289
      %v291 = vrot.slane %v286, %v290
      %v292 = vlaneseq
      %v293 = vshrl.u32 %v292, 7
      %v294 = vsub.s32 1, %v293
      %v295 = vrot.slane %v286, %v294
      %v298 = vmul.f32 %v283, %v291
      %v299 = vmul.f32 %v284, %v295
      %v300 = vadd.f32 %v280, %v298
      %v301 = vadd.f32 %v281, %v299
      %s302 = scalar_lea.vmem %s153, 496
      %v303 = vld [vmem:[%s302] sm:$0x7f]
      %v304 = vld [vmem:[%s302 + $0x8] sm:$0x7f]
      %s305 = scalar_lea.vmem %s158, 7
      %v306 = vld [vmem:[%s305] ss:$8 sm:$0x3]
      %v308 = vlaneseq
      %v309 = vshrl.u32 %v308, 7
      %v310 = vsub.s32 0, %v309
      %v311 = vrot.slane %v306, %v310
      %v312 = vlaneseq
      %v313 = vshrl.u32 %v312, 7
      %v314 = vsub.s32 1, %v313
      %v315 = vrot.slane %v306, %v314
      %v318 = vmul.f32 %v303, %v311
      %v319 = vmul.f32 %v304, %v315
      %v320 = vadd.f32 %v300, %v318
      %v321 = vadd.f32 %v301, %v319
      %s322 = scalar_lea.vmem %s153, 32
      %v323 = vld [vmem:[%s322] sm:$0x7f]
      %v324 = vld [vmem:[%s322 + $0x8] sm:$0x7f]
      %s325 = scalar_lea.vmem %s158, 16
      %v326 = vld [vmem:[%s325] ss:$8 sm:$0x3]
      %v328 = vlaneseq
      %v329 = vshrl.u32 %v328, 7
      %v330 = vsub.s32 0, %v329
      %v331 = vrot.slane %v326, %v330
      %v332 = vlaneseq
      %v333 = vshrl.u32 %v332, 7
      %v334 = vsub.s32 1, %v333
      %v335 = vrot.slane %v326, %v334
      %v338 = vmul.f32 %v323, %v331
      %v339 = vmul.f32 %v324, %v335
      %v340 = vadd.f32 %v320, %v338
      %v341 = vadd.f32 %v321, %v339
      %s342 = scalar_lea.vmem %s153, 192
      %v343 = vld [vmem:[%s342] sm:$0x7f]
      %v344 = vld [vmem:[%s342 + $0x8] sm:$0x7f]
      %s345 = scalar_lea.vmem %s158, 17
      %v346 = vld [vmem:[%s345] ss:$8 sm:$0x3]
      %v348 = vlaneseq
      %v349 = vshrl.u32 %v348, 7
      %v350 = vsub.s32 0, %v349
      %v351 = vrot.slane %v346, %v350
      %v352 = vlaneseq
      %v353 = vshrl.u32 %v352, 7
      %v354 = vsub.s32 1, %v353
      %v355 = vrot.slane %v346, %v354
      %v358 = vmul.f32 %v343, %v351
      %v359 = vmul.f32 %v344, %v355
      %v360 = vadd.f32 %v340, %v358
      %v361 = vadd.f32 %v341, %v359
      %s362 = scalar_lea.vmem %s153, 352
      %v363 = vld [vmem:[%s362] sm:$0x7f]
      %v364 = vld [vmem:[%s362 + $0x8] sm:$0x7f]
      %s365 = scalar_lea.vmem %s158, 18
      %v366 = vld [vmem:[%s365] ss:$8 sm:$0x3]
      %v368 = vlaneseq
      %v369 = vshrl.u32 %v368, 7
      %v370 = vsub.s32 0, %v369
      %v371 = vrot.slane %v366, %v370
      %v372 = vlaneseq
      %v373 = vshrl.u32 %v372, 7
      %v374 = vsub.s32 1, %v373
      %v375 = vrot.slane %v366, %v374
      %v378 = vmul.f32 %v363, %v371
      %v379 = vmul.f32 %v364, %v375
      %v380 = vadd.f32 %v360, %v378
      %v381 = vadd.f32 %v361, %v379
      %s382 = scalar_lea.vmem %s153, 512
      %v383 = vld [vmem:[%s382] sm:$0x7f]
      %v384 = vld [vmem:[%s382 + $0x8] sm:$0x7f]
      %s385 = scalar_lea.vmem %s158, 19
      %v386 = vld [vmem:[%s385] ss:$8 sm:$0x3]
      %v388 = vlaneseq
      %v389 = vshrl.u32 %v388, 7
      %v390 = vsub.s32 0, %v389
      %v391 = vrot.slane %v386, %v390
      %v392 = vlaneseq
      %v393 = vshrl.u32 %v392, 7
      %v394 = vsub.s32 1, %v393
      %v395 = vrot.slane %v386, %v394
      %v398 = vmul.f32 %v383, %v391
      %v399 = vmul.f32 %v384, %v395
      %v400 = vadd.f32 %v380, %v398
      %v401 = vadd.f32 %v381, %v399
      %s402 = scalar_lea.vmem %s153, 48
      %v403 = vld [vmem:[%s402] sm:$0x7f]
      %v404 = vld [vmem:[%s402 + $0x8] sm:$0x7f]
      %s405 = scalar_lea.vmem %s158, 20
      %v406 = vld [vmem:[%s405] ss:$8 sm:$0x3]
      %v408 = vlaneseq
      %v409 = vshrl.u32 %v408, 7
      %v410 = vsub.s32 0, %v409
      %v411 = vrot.slane %v406, %v410
      %v412 = vlaneseq
      %v413 = vshrl.u32 %v412, 7
      %v414 = vsub.s32 1, %v413
      %v415 = vrot.slane %v406, %v414
      %v418 = vmul.f32 %v403, %v411
      %v419 = vmul.f32 %v404, %v415
      %v420 = vadd.f32 %v400, %v418
      %v421 = vadd.f32 %v401, %v419
      %s422 = scalar_lea.vmem %s153, 208
      %v423 = vld [vmem:[%s422] sm:$0x7f]
      %v424 = vld [vmem:[%s422 + $0x8] sm:$0x7f]
      %s425 = scalar_lea.vmem %s158, 21
      %v426 = vld [vmem:[%s425] ss:$8 sm:$0x3]
      %v428 = vlaneseq
      %v429 = vshrl.u32 %v428, 7
      %v430 = vsub.s32 0, %v429
      %v431 = vrot.slane %v426, %v430
      %v432 = vlaneseq
      %v433 = vshrl.u32 %v432, 7
      %v434 = vsub.s32 1, %v433
      %v435 = vrot.slane %v426, %v434
      %v438 = vmul.f32 %v423, %v431
      %v439 = vmul.f32 %v424, %v435
      %v440 = vadd.f32 %v420, %v438
      %v441 = vadd.f32 %v421, %v439
      %s442 = scalar_lea.vmem %s153, 368
      %v443 = vld [vmem:[%s442] sm:$0x7f]
      %v444 = vld [vmem:[%s442 + $0x8] sm:$0x7f]
      %s445 = scalar_lea.vmem %s158, 22
      %v446 = vld [vmem:[%s445] ss:$8 sm:$0x3]
      %v448 = vlaneseq
      %v449 = vshrl.u32 %v448, 7
      %v450 = vsub.s32 0, %v449
      %v451 = vrot.slane %v446, %v450
      %v452 = vlaneseq
      %v453 = vshrl.u32 %v452, 7
      %v454 = vsub.s32 1, %v453
      %v455 = vrot.slane %v446, %v454
      %v458 = vmul.f32 %v443, %v451
      %v459 = vmul.f32 %v444, %v455
      %v460 = vadd.f32 %v440, %v458
      %v461 = vadd.f32 %v441, %v459
      %s462 = scalar_lea.vmem %s153, 528
      %v463 = vld [vmem:[%s462] sm:$0x7f]
      %v464 = vld [vmem:[%s462 + $0x8] sm:$0x7f]
      %s465 = scalar_lea.vmem %s158, 23
      %v466 = vld [vmem:[%s465] ss:$8 sm:$0x3]
      %v468 = vlaneseq
      %v469 = vshrl.u32 %v468, 7
      %v470 = vsub.s32 0, %v469
      %v471 = vrot.slane %v466, %v470
      %v472 = vlaneseq
      %v473 = vshrl.u32 %v472, 7
      %v474 = vsub.s32 1, %v473
      %v475 = vrot.slane %v466, %v474
      %v478 = vmul.f32 %v463, %v471
      %v479 = vmul.f32 %v464, %v475
      %v480 = vadd.f32 %v460, %v478
      %v481 = vadd.f32 %v461, %v479
      %v482 = vmax.f32 %v480, 0.0
      %v483 = vmax.f32 %v481, 0.0
      %v484 = vpack.c.bf16 %v482, %v482
      %v485 = vpack.c.bf16 %v483, %v483
      %v488 = vunpack.c.l.b16 %v484
      %v489 = vunpack.c.l.b16 %v485
      %v490 = vpack.c.b16 %v489, %v488
      %vm492 = vcmask 1043456
      %vm493 = vsmask.f32 3328
      %vm494 = vmand %vm492, %vm493
      %vm495 = vcmask 1047556
      %vm496 = vsmask.f32 7424
      %vm497 = vmand %vm495, %vm496
      %vm498 = vmor %vm497, %vm494
      %v499 = vld [vmem:[%s163] sm:$0xff]
      %v500 = vsel %vm498, %v490, %v499
      %501 = vst [vmem:[%s163] sm:$0xff] %v500
      %v502 = vld [vmem:[%s242] sm:$0x7f]
      %v503 = vld [vmem:[%s242 + $0x8] sm:$0x7f]
      %v504 = vld [vmem:[%s158] ss:$8 sm:$0x3]
      %v506 = vlaneseq
      %v507 = vshrl.u32 %v506, 7
      %v508 = vsub.s32 0, %v507
      %v509 = vrot.slane %v504, %v508
      %v510 = vlaneseq
      %v511 = vshrl.u32 %v510, 7
      %v512 = vsub.s32 1, %v511
      %v513 = vrot.slane %v504, %v512
      %v516 = vmul.f32 %v502, %v509
      %v517 = vmul.f32 %v503, %v513
      %v518 = vadd.f32 %v516, 0.0
      %v519 = vadd.f32 %v517, 0.0
      %v520 = vld [vmem:[%s262] sm:$0x7f]
      %v521 = vld [vmem:[%s262 + $0x8] sm:$0x7f]
      %v522 = vld [vmem:[%s185] ss:$8 sm:$0x3]
      %v524 = vlaneseq
      %v525 = vshrl.u32 %v524, 7
      %v526 = vsub.s32 0, %v525
      %v527 = vrot.slane %v522, %v526
      %v528 = vlaneseq
      %v529 = vshrl.u32 %v528, 7
      %v530 = vsub.s32 1, %v529
      %v531 = vrot.slane %v522, %v530
      %v534 = vmul.f32 %v520, %v527
      %v535 = vmul.f32 %v521, %v531
      %v536 = vadd.f32 %v518, %v534
      %v537 = vadd.f32 %v519, %v535
      %v538 = vld [vmem:[%s282] sm:$0x7f]
      %v539 = vld [vmem:[%s282 + $0x8] sm:$0x7f]
      %v540 = vld [vmem:[%s205] ss:$8 sm:$0x3]
      %v542 = vlaneseq
      %v543 = vshrl.u32 %v542, 7
      %v544 = vsub.s32 0, %v543
      %v545 = vrot.slane %v540, %v544
      %v546 = vlaneseq
      %v547 = vshrl.u32 %v546, 7
      %v548 = vsub.s32 1, %v547
      %v549 = vrot.slane %v540, %v548
      %v552 = vmul.f32 %v538, %v545
      %v553 = vmul.f32 %v539, %v549
      %v554 = vadd.f32 %v536, %v552
      %v555 = vadd.f32 %v537, %v553
      %v556 = vld [vmem:[%s302] sm:$0x7f]
      %v557 = vld [vmem:[%s302 + $0x8] sm:$0x7f]
      %v558 = vld [vmem:[%s225] ss:$8 sm:$0x3]
      %v560 = vlaneseq
      %v561 = vshrl.u32 %v560, 7
      %v562 = vsub.s32 0, %v561
      %v563 = vrot.slane %v558, %v562
      %v564 = vlaneseq
      %v565 = vshrl.u32 %v564, 7
      %v566 = vsub.s32 1, %v565
      %v567 = vrot.slane %v558, %v566
      %v570 = vmul.f32 %v556, %v563
      %v571 = vmul.f32 %v557, %v567
      %v572 = vadd.f32 %v554, %v570
      %v573 = vadd.f32 %v555, %v571
      %v574 = vld [vmem:[%s322] sm:$0x7f]
      %v575 = vld [vmem:[%s322 + $0x8] sm:$0x7f]
      %v576 = vld [vmem:[%s245] ss:$8 sm:$0x3]
      %v578 = vlaneseq
      %v579 = vshrl.u32 %v578, 7
      %v580 = vsub.s32 0, %v579
      %v581 = vrot.slane %v576, %v580
      %v582 = vlaneseq
      %v583 = vshrl.u32 %v582, 7
      %v584 = vsub.s32 1, %v583
      %v585 = vrot.slane %v576, %v584
      %v588 = vmul.f32 %v574, %v581
      %v589 = vmul.f32 %v575, %v585
      %v590 = vadd.f32 %v572, %v588
      %v591 = vadd.f32 %v573, %v589
      %v592 = vld [vmem:[%s342] sm:$0x7f]
      %v593 = vld [vmem:[%s342 + $0x8] sm:$0x7f]
      %v594 = vld [vmem:[%s265] ss:$8 sm:$0x3]
      %v596 = vlaneseq
      %v597 = vshrl.u32 %v596, 7
      %v598 = vsub.s32 0, %v597
      %v599 = vrot.slane %v594, %v598
      %v600 = vlaneseq
      %v601 = vshrl.u32 %v600, 7
      %v602 = vsub.s32 1, %v601
      %v603 = vrot.slane %v594, %v602
      %v606 = vmul.f32 %v592, %v599
      %v607 = vmul.f32 %v593, %v603
      %v608 = vadd.f32 %v590, %v606
      %v609 = vadd.f32 %v591, %v607
      %v610 = vld [vmem:[%s362] sm:$0x7f]
      %v611 = vld [vmem:[%s362 + $0x8] sm:$0x7f]
      %v612 = vld [vmem:[%s285] ss:$8 sm:$0x3]
      %v614 = vlaneseq
      %v615 = vshrl.u32 %v614, 7
      %v616 = vsub.s32 0, %v615
      %v617 = vrot.slane %v612, %v616
      %v618 = vlaneseq
      %v619 = vshrl.u32 %v618, 7
      %v620 = vsub.s32 1, %v619
      %v621 = vrot.slane %v612, %v620
      %v624 = vmul.f32 %v610, %v617
      %v625 = vmul.f32 %v611, %v621
      %v626 = vadd.f32 %v608, %v624
      %v627 = vadd.f32 %v609, %v625
      %v628 = vld [vmem:[%s382] sm:$0x7f]
      %v629 = vld [vmem:[%s382 + $0x8] sm:$0x7f]
      %v630 = vld [vmem:[%s305] ss:$8 sm:$0x3]
      %v632 = vlaneseq
      %v633 = vshrl.u32 %v632, 7
      %v634 = vsub.s32 0, %v633
      %v635 = vrot.slane %v630, %v634
      %v636 = vlaneseq
      %v637 = vshrl.u32 %v636, 7
      %v638 = vsub.s32 1, %v637
      %v639 = vrot.slane %v630, %v638
      %v642 = vmul.f32 %v628, %v635
      %v643 = vmul.f32 %v629, %v639
      %v644 = vadd.f32 %v626, %v642
      %v645 = vadd.f32 %v627, %v643
      %v646 = vld [vmem:[%s402] sm:$0x7f]
      %v647 = vld [vmem:[%s402 + $0x8] sm:$0x7f]
      %v648 = vld [vmem:[%s325] ss:$8 sm:$0x3]
      %v650 = vlaneseq
      %v651 = vshrl.u32 %v650, 7
      %v652 = vsub.s32 0, %v651
      %v653 = vrot.slane %v648, %v652
      %v654 = vlaneseq
      %v655 = vshrl.u32 %v654, 7
      %v656 = vsub.s32 1, %v655
      %v657 = vrot.slane %v648, %v656
      %v660 = vmul.f32 %v646, %v653
      %v661 = vmul.f32 %v647, %v657
      %v662 = vadd.f32 %v644, %v660
      %v663 = vadd.f32 %v645, %v661
      %v664 = vld [vmem:[%s422] sm:$0x7f]
      %v665 = vld [vmem:[%s422 + $0x8] sm:$0x7f]
      %v666 = vld [vmem:[%s345] ss:$8 sm:$0x3]
      %v668 = vlaneseq
      %v669 = vshrl.u32 %v668, 7
      %v670 = vsub.s32 0, %v669
      %v671 = vrot.slane %v666, %v670
      %v672 = vlaneseq
      %v673 = vshrl.u32 %v672, 7
      %v674 = vsub.s32 1, %v673
      %v675 = vrot.slane %v666, %v674
      %v678 = vmul.f32 %v664, %v671
      %v679 = vmul.f32 %v665, %v675
      %v680 = vadd.f32 %v662, %v678
      %v681 = vadd.f32 %v663, %v679
      %v682 = vld [vmem:[%s442] sm:$0x7f]
      %v683 = vld [vmem:[%s442 + $0x8] sm:$0x7f]
      %v684 = vld [vmem:[%s365] ss:$8 sm:$0x3]
      %v686 = vlaneseq
      %v687 = vshrl.u32 %v686, 7
      %v688 = vsub.s32 0, %v687
      %v689 = vrot.slane %v684, %v688
      %v690 = vlaneseq
      %v691 = vshrl.u32 %v690, 7
      %v692 = vsub.s32 1, %v691
      %v693 = vrot.slane %v684, %v692
      %v696 = vmul.f32 %v682, %v689
      %v697 = vmul.f32 %v683, %v693
      %v698 = vadd.f32 %v680, %v696
      %v699 = vadd.f32 %v681, %v697
      %v700 = vld [vmem:[%s462] sm:$0x7f]
      %v701 = vld [vmem:[%s462 + $0x8] sm:$0x7f]
      %v702 = vld [vmem:[%s385] ss:$8 sm:$0x3]
      %v704 = vlaneseq
      %v705 = vshrl.u32 %v704, 7
      %v706 = vsub.s32 0, %v705
      %v707 = vrot.slane %v702, %v706
      %v708 = vlaneseq
      %v709 = vshrl.u32 %v708, 7
      %v710 = vsub.s32 1, %v709
      %v711 = vrot.slane %v702, %v710
      %v714 = vmul.f32 %v700, %v707
      %v715 = vmul.f32 %v701, %v711
      %v716 = vadd.f32 %v698, %v714
      %v717 = vadd.f32 %v699, %v715
      %s718 = scalar_lea.vmem %s153, 64
      %v719 = vld [vmem:[%s718] sm:$0x7f]
      %v720 = vld [vmem:[%s718 + $0x8] sm:$0x7f]
      %v721 = vld [vmem:[%s405] ss:$8 sm:$0x3]
      %v723 = vlaneseq
      %v724 = vshrl.u32 %v723, 7
      %v725 = vsub.s32 0, %v724
      %v726 = vrot.slane %v721, %v725
      %v727 = vlaneseq
      %v728 = vshrl.u32 %v727, 7
      %v729 = vsub.s32 1, %v728
      %v730 = vrot.slane %v721, %v729
      %v733 = vmul.f32 %v719, %v726
      %v734 = vmul.f32 %v720, %v730
      %v735 = vadd.f32 %v716, %v733
      %v736 = vadd.f32 %v717, %v734
      %s737 = scalar_lea.vmem %s153, 224
      %v738 = vld [vmem:[%s737] sm:$0x7f]
      %v739 = vld [vmem:[%s737 + $0x8] sm:$0x7f]
      %v740 = vld [vmem:[%s425] ss:$8 sm:$0x3]
      %v742 = vlaneseq
      %v743 = vshrl.u32 %v742, 7
      %v744 = vsub.s32 0, %v743
      %v745 = vrot.slane %v740, %v744
      %v746 = vlaneseq
      %v747 = vshrl.u32 %v746, 7
      %v748 = vsub.s32 1, %v747
      %v749 = vrot.slane %v740, %v748
      %v752 = vmul.f32 %v738, %v745
      %v753 = vmul.f32 %v739, %v749
      %v754 = vadd.f32 %v735, %v752
      %v755 = vadd.f32 %v736, %v753
      %s756 = scalar_lea.vmem %s153, 384
      %v757 = vld [vmem:[%s756] sm:$0x7f]
      %v758 = vld [vmem:[%s756 + $0x8] sm:$0x7f]
      %v759 = vld [vmem:[%s445] ss:$8 sm:$0x3]
      %v761 = vlaneseq
      %v762 = vshrl.u32 %v761, 7
      %v763 = vsub.s32 0, %v762
      %v764 = vrot.slane %v759, %v763
      %v765 = vlaneseq
      %v766 = vshrl.u32 %v765, 7
      %v767 = vsub.s32 1, %v766
      %v768 = vrot.slane %v759, %v767
      %v771 = vmul.f32 %v757, %v764
      %v772 = vmul.f32 %v758, %v768
      %v773 = vadd.f32 %v754, %v771
      %v774 = vadd.f32 %v755, %v772
      %s775 = scalar_lea.vmem %s153, 544
      %v776 = vld [vmem:[%s775] sm:$0x7f]
      %v777 = vld [vmem:[%s775 + $0x8] sm:$0x7f]
      %v778 = vld [vmem:[%s465] ss:$8 sm:$0x3]
      %v780 = vlaneseq
      %v781 = vshrl.u32 %v780, 7
      %v782 = vsub.s32 0, %v781
      %v783 = vrot.slane %v778, %v782
      %v784 = vlaneseq
      %v785 = vshrl.u32 %v784, 7
      %v786 = vsub.s32 1, %v785
      %v787 = vrot.slane %v778, %v786
      %v790 = vmul.f32 %v776, %v783
      %v791 = vmul.f32 %v777, %v787
      %v792 = vadd.f32 %v773, %v790
      %v793 = vadd.f32 %v774, %v791
      %v794 = vmax.f32 %v792, 0.0
      %v795 = vmax.f32 %v793, 0.0
      %v796 = vpack.c.bf16 %v794, %v794
      %v797 = vpack.c.bf16 %v795, %v795
      %v800 = vunpack.c.l.b16 %v796
      %v801 = vunpack.c.l.b16 %v797
      %v802 = vpack.c.b16 %v801, %v800
      %s804 = scalar_lea.vmem %s163, 8
      %v805 = vld [vmem:[%s804] sm:$0xff]
      %v806 = vsel %vm498, %v802, %v805
      %807 = vst [vmem:[%s804] sm:$0xff] %v806
      %v808 = vld [vmem:[%s322] sm:$0x7f]
      %v809 = vld [vmem:[%s322 + $0x8] sm:$0x7f]
      %v810 = vld [vmem:[%s158] ss:$8 sm:$0x3]
      %v812 = vlaneseq
      %v813 = vshrl.u32 %v812, 7
      %v814 = vsub.s32 0, %v813
      %v815 = vrot.slane %v810, %v814
      %v816 = vlaneseq
      %v817 = vshrl.u32 %v816, 7
      %v818 = vsub.s32 1, %v817
      %v819 = vrot.slane %v810, %v818
      %v822 = vmul.f32 %v808, %v815
      %v823 = vmul.f32 %v809, %v819
      %v824 = vadd.f32 %v822, 0.0
      %v825 = vadd.f32 %v823, 0.0
      %v826 = vld [vmem:[%s342] sm:$0x7f]
      %v827 = vld [vmem:[%s342 + $0x8] sm:$0x7f]
      %v828 = vld [vmem:[%s185] ss:$8 sm:$0x3]
      %v830 = vlaneseq
      %v831 = vshrl.u32 %v830, 7
      %v832 = vsub.s32 0, %v831
      %v833 = vrot.slane %v828, %v832
      %v834 = vlaneseq
      %v835 = vshrl.u32 %v834, 7
      %v836 = vsub.s32 1, %v835
      %v837 = vrot.slane %v828, %v836
      %v840 = vmul.f32 %v826, %v833
      %v841 = vmul.f32 %v827, %v837
      %v842 = vadd.f32 %v824, %v840
      %v843 = vadd.f32 %v825, %v841
      %v844 = vld [vmem:[%s362] sm:$0x7f]
      %v845 = vld [vmem:[%s362 + $0x8] sm:$0x7f]
      %v846 = vld [vmem:[%s205] ss:$8 sm:$0x3]
      %v848 = vlaneseq
      %v849 = vshrl.u32 %v848, 7
      %v850 = vsub.s32 0, %v849
      %v851 = vrot.slane %v846, %v850
      %v852 = vlaneseq
      %v853 = vshrl.u32 %v852, 7
      %v854 = vsub.s32 1, %v853
      %v855 = vrot.slane %v846, %v854
      %v858 = vmul.f32 %v844, %v851
      %v859 = vmul.f32 %v845, %v855
      %v860 = vadd.f32 %v842, %v858
      %v861 = vadd.f32 %v843, %v859
      %v862 = vld [vmem:[%s382] sm:$0x7f]
      %v863 = vld [vmem:[%s382 + $0x8] sm:$0x7f]
      %v864 = vld [vmem:[%s225] ss:$8 sm:$0x3]
      %v866 = vlaneseq
      %v867 = vshrl.u32 %v866, 7
      %v868 = vsub.s32 0, %v867
      %v869 = vrot.slane %v864, %v868
      %v870 = vlaneseq
      %v871 = vshrl.u32 %v870, 7
      %v872 = vsub.s32 1, %v871
      %v873 = vrot.slane %v864, %v872
      %v876 = vmul.f32 %v862, %v869
      %v877 = vmul.f32 %v863, %v873
      %v878 = vadd.f32 %v860, %v876
      %v879 = vadd.f32 %v861, %v877
      %v880 = vld [vmem:[%s402] sm:$0x7f]
      %v881 = vld [vmem:[%s402 + $0x8] sm:$0x7f]
      %v882 = vld [vmem:[%s245] ss:$8 sm:$0x3]
      %v884 = vlaneseq
      %v885 = vshrl.u32 %v884, 7
      %v886 = vsub.s32 0, %v885
      %v887 = vrot.slane %v882, %v886
      %v888 = vlaneseq
      %v889 = vshrl.u32 %v888, 7
      %v890 = vsub.s32 1, %v889
      %v891 = vrot.slane %v882, %v890
      %v894 = vmul.f32 %v880, %v887
      %v895 = vmul.f32 %v881, %v891
      %v896 = vadd.f32 %v878, %v894
      %v897 = vadd.f32 %v879, %v895
      %v898 = vld [vmem:[%s422] sm:$0x7f]
      %v899 = vld [vmem:[%s422 + $0x8] sm:$0x7f]
      %v900 = vld [vmem:[%s265] ss:$8 sm:$0x3]
      %v902 = vlaneseq
      %v903 = vshrl.u32 %v902, 7
      %v904 = vsub.s32 0, %v903
      %v905 = vrot.slane %v900, %v904
      %v906 = vlaneseq
      %v907 = vshrl.u32 %v906, 7
      %v908 = vsub.s32 1, %v907
      %v909 = vrot.slane %v900, %v908
      %v912 = vmul.f32 %v898, %v905
      %v913 = vmul.f32 %v899, %v909
      %v914 = vadd.f32 %v896, %v912
      %v915 = vadd.f32 %v897, %v913
      %v916 = vld [vmem:[%s442] sm:$0x7f]
      %v917 = vld [vmem:[%s442 + $0x8] sm:$0x7f]
      %v918 = vld [vmem:[%s285] ss:$8 sm:$0x3]
      %v920 = vlaneseq
      %v921 = vshrl.u32 %v920, 7
      %v922 = vsub.s32 0, %v921
      %v923 = vrot.slane %v918, %v922
      %v924 = vlaneseq
      %v925 = vshrl.u32 %v924, 7
      %v926 = vsub.s32 1, %v925
      %v927 = vrot.slane %v918, %v926
      %v930 = vmul.f32 %v916, %v923
      %v931 = vmul.f32 %v917, %v927
      %v932 = vadd.f32 %v914, %v930
      %v933 = vadd.f32 %v915, %v931
      %v934 = vld [vmem:[%s462] sm:$0x7f]
      %v935 = vld [vmem:[%s462 + $0x8] sm:$0x7f]
      %v936 = vld [vmem:[%s305] ss:$8 sm:$0x3]
      %v938 = vlaneseq
      %v939 = vshrl.u32 %v938, 7
      %v940 = vsub.s32 0, %v939
      %v941 = vrot.slane %v936, %v940
      %v942 = vlaneseq
      %v943 = vshrl.u32 %v942, 7
      %v944 = vsub.s32 1, %v943
      %v945 = vrot.slane %v936, %v944
      %v948 = vmul.f32 %v934, %v941
      %v949 = vmul.f32 %v935, %v945
      %v950 = vadd.f32 %v932, %v948
      %v951 = vadd.f32 %v933, %v949
      %v952 = vld [vmem:[%s718] sm:$0x7f]
      %v953 = vld [vmem:[%s718 + $0x8] sm:$0x7f]
      %v954 = vld [vmem:[%s325] ss:$8 sm:$0x3]
      %v956 = vlaneseq
      %v957 = vshrl.u32 %v956, 7
      %v958 = vsub.s32 0, %v957
      %v959 = vrot.slane %v954, %v958
      %v960 = vlaneseq
      %v961 = vshrl.u32 %v960, 7
      %v962 = vsub.s32 1, %v961
      %v963 = vrot.slane %v954, %v962
      %v966 = vmul.f32 %v952, %v959
      %v967 = vmul.f32 %v953, %v963
      %v968 = vadd.f32 %v950, %v966
      %v969 = vadd.f32 %v951, %v967
      %v970 = vld [vmem:[%s737] sm:$0x7f]
      %v971 = vld [vmem:[%s737 + $0x8] sm:$0x7f]
      %v972 = vld [vmem:[%s345] ss:$8 sm:$0x3]
      %v974 = vlaneseq
      %v975 = vshrl.u32 %v974, 7
      %v976 = vsub.s32 0, %v975
      %v977 = vrot.slane %v972, %v976
      %v978 = vlaneseq
      %v979 = vshrl.u32 %v978, 7
      %v980 = vsub.s32 1, %v979
      %v981 = vrot.slane %v972, %v980
      %v984 = vmul.f32 %v970, %v977
      %v985 = vmul.f32 %v971, %v981
      %v986 = vadd.f32 %v968, %v984
      %v987 = vadd.f32 %v969, %v985
      %v988 = vld [vmem:[%s756] sm:$0x7f]
      %v989 = vld [vmem:[%s756 + $0x8] sm:$0x7f]
      %v990 = vld [vmem:[%s365] ss:$8 sm:$0x3]
      %v992 = vlaneseq
      %v993 = vshrl.u32 %v992, 7
      %v994 = vsub.s32 0, %v993
      %v995 = vrot.slane %v990, %v994
      %v996 = vlaneseq
      %v997 = vshrl.u32 %v996, 7
      %v998 = vsub.s32 1, %v997
      %v999 = vrot.slane %v990, %v998
      %v1002 = vmul.f32 %v988, %v995
      %v1003 = vmul.f32 %v989, %v999
      %v1004 = vadd.f32 %v986, %v1002
      %v1005 = vadd.f32 %v987, %v1003
      %v1006 = vld [vmem:[%s775] sm:$0x7f]
      %v1007 = vld [vmem:[%s775 + $0x8] sm:$0x7f]
      %v1008 = vld [vmem:[%s385] ss:$8 sm:$0x3]
      %v1010 = vlaneseq
      %v1011 = vshrl.u32 %v1010, 7
      %v1012 = vsub.s32 0, %v1011
      %v1013 = vrot.slane %v1008, %v1012
      %v1014 = vlaneseq
      %v1015 = vshrl.u32 %v1014, 7
      %v1016 = vsub.s32 1, %v1015
      %v1017 = vrot.slane %v1008, %v1016
      %v1020 = vmul.f32 %v1006, %v1013
      %v1021 = vmul.f32 %v1007, %v1017
      %v1022 = vadd.f32 %v1004, %v1020
      %v1023 = vadd.f32 %v1005, %v1021
      %s1024 = scalar_lea.vmem %s153, 80
      %v1025 = vld [vmem:[%s1024] sm:$0x7f]
      %v1026 = vld [vmem:[%s1024 + $0x8] sm:$0x7f]
      %v1027 = vld [vmem:[%s405] ss:$8 sm:$0x3]
      %v1029 = vlaneseq
      %v1030 = vshrl.u32 %v1029, 7
      %v1031 = vsub.s32 0, %v1030
      %v1032 = vrot.slane %v1027, %v1031
      %v1033 = vlaneseq
      %v1034 = vshrl.u32 %v1033, 7
      %v1035 = vsub.s32 1, %v1034
      %v1036 = vrot.slane %v1027, %v1035
      %v1039 = vmul.f32 %v1025, %v1032
      %v1040 = vmul.f32 %v1026, %v1036
      %v1041 = vadd.f32 %v1022, %v1039
      %v1042 = vadd.f32 %v1023, %v1040
      %s1043 = scalar_lea.vmem %s153, 240
      %v1044 = vld [vmem:[%s1043] sm:$0x7f]
      %v1045 = vld [vmem:[%s1043 + $0x8] sm:$0x7f]
      %v1046 = vld [vmem:[%s425] ss:$8 sm:$0x3]
      %v1048 = vlaneseq
      %v1049 = vshrl.u32 %v1048, 7
      %v1050 = vsub.s32 0, %v1049
      %v1051 = vrot.slane %v1046, %v1050
      %v1052 = vlaneseq
      %v1053 = vshrl.u32 %v1052, 7
      %v1054 = vsub.s32 1, %v1053
      %v1055 = vrot.slane %v1046, %v1054
      %v1058 = vmul.f32 %v1044, %v1051
      %v1059 = vmul.f32 %v1045, %v1055
      %v1060 = vadd.f32 %v1041, %v1058
      %v1061 = vadd.f32 %v1042, %v1059
      %s1062 = scalar_lea.vmem %s153, 400
      %v1063 = vld [vmem:[%s1062] sm:$0x7f]
      %v1064 = vld [vmem:[%s1062 + $0x8] sm:$0x7f]
      %v1065 = vld [vmem:[%s445] ss:$8 sm:$0x3]
      %v1067 = vlaneseq
      %v1068 = vshrl.u32 %v1067, 7
      %v1069 = vsub.s32 0, %v1068
      %v1070 = vrot.slane %v1065, %v1069
      %v1071 = vlaneseq
      %v1072 = vshrl.u32 %v1071, 7
      %v1073 = vsub.s32 1, %v1072
      %v1074 = vrot.slane %v1065, %v1073
      %v1077 = vmul.f32 %v1063, %v1070
      %v1078 = vmul.f32 %v1064, %v1074
      %v1079 = vadd.f32 %v1060, %v1077
      %v1080 = vadd.f32 %v1061, %v1078
      %s1081 = scalar_lea.vmem %s153, 560
      %v1082 = vld [vmem:[%s1081] sm:$0x7f]
      %v1083 = vld [vmem:[%s1081 + $0x8] sm:$0x7f]
      %v1084 = vld [vmem:[%s465] ss:$8 sm:$0x3]
      %v1086 = vlaneseq
      %v1087 = vshrl.u32 %v1086, 7
      %v1088 = vsub.s32 0, %v1087
      %v1089 = vrot.slane %v1084, %v1088
      %v1090 = vlaneseq
      %v1091 = vshrl.u32 %v1090, 7
      %v1092 = vsub.s32 1, %v1091
      %v1093 = vrot.slane %v1084, %v1092
      %v1096 = vmul.f32 %v1082, %v1089
      %v1097 = vmul.f32 %v1083, %v1093
      %v1098 = vadd.f32 %v1079, %v1096
      %v1099 = vadd.f32 %v1080, %v1097
      %v1100 = vmax.f32 %v1098, 0.0
      %v1101 = vmax.f32 %v1099, 0.0
      %v1102 = vpack.c.bf16 %v1100, %v1100
      %v1103 = vpack.c.bf16 %v1101, %v1101
      %v1106 = vunpack.c.l.b16 %v1102
      %v1107 = vunpack.c.l.b16 %v1103
      %v1108 = vpack.c.b16 %v1107, %v1106
      %s1110 = scalar_lea.vmem %s163, 16
      %v1111 = vld [vmem:[%s1110] sm:$0xff]
      %v1112 = vsel %vm498, %v1108, %v1111
      %1113 = vst [vmem:[%s1110] sm:$0xff] %v1112
      %v1114 = vld [vmem:[%s402] sm:$0x7f]
      %v1115 = vld [vmem:[%s402 + $0x8] sm:$0x7f]
      %v1116 = vld [vmem:[%s158] ss:$8 sm:$0x3]
      %v1118 = vlaneseq
      %v1119 = vshrl.u32 %v1118, 7
      %v1120 = vsub.s32 0, %v1119
      %v1121 = vrot.slane %v1116, %v1120
      %v1122 = vlaneseq
      %v1123 = vshrl.u32 %v1122, 7
      %v1124 = vsub.s32 1, %v1123
      %v1125 = vrot.slane %v1116, %v1124
      %v1128 = vmul.f32 %v1114, %v1121
      %v1129 = vmul.f32 %v1115, %v1125
      %v1130 = vadd.f32 %v1128, 0.0
      %v1131 = vadd.f32 %v1129, 0.0
      %v1132 = vld [vmem:[%s422] sm:$0x7f]
      %v1133 = vld [vmem:[%s422 + $0x8] sm:$0x7f]
      %v1134 = vld [vmem:[%s185] ss:$8 sm:$0x3]
      %v1136 = vlaneseq
      %v1137 = vshrl.u32 %v1136, 7
      %v1138 = vsub.s32 0, %v1137
      %v1139 = vrot.slane %v1134, %v1138
      %v1140 = vlaneseq
      %v1141 = vshrl.u32 %v1140, 7
      %v1142 = vsub.s32 1, %v1141
      %v1143 = vrot.slane %v1134, %v1142
      %v1146 = vmul.f32 %v1132, %v1139
      %v1147 = vmul.f32 %v1133, %v1143
      %v1148 = vadd.f32 %v1130, %v1146
      %v1149 = vadd.f32 %v1131, %v1147
      %v1150 = vld [vmem:[%s442] sm:$0x7f]
      %v1151 = vld [vmem:[%s442 + $0x8] sm:$0x7f]
      %v1152 = vld [vmem:[%s205] ss:$8 sm:$0x3]
      %v1154 = vlaneseq
      %v1155 = vshrl.u32 %v1154, 7
      %v1156 = vsub.s32 0, %v1155
      %v1157 = vrot.slane %v1152, %v1156
      %v1158 = vlaneseq
      %v1159 = vshrl.u32 %v1158, 7
      %v1160 = vsub.s32 1, %v1159
      %v1161 = vrot.slane %v1152, %v1160
      %v1164 = vmul.f32 %v1150, %v1157
      %v1165 = vmul.f32 %v1151, %v1161
      %v1166 = vadd.f32 %v1148, %v1164
      %v1167 = vadd.f32 %v1149, %v1165
      %v1168 = vld [vmem:[%s462] sm:$0x7f]
      %v1169 = vld [vmem:[%s462 + $0x8] sm:$0x7f]
      %v1170 = vld [vmem:[%s225] ss:$8 sm:$0x3]
      %v1172 = vlaneseq
      %v1173 = vshrl.u32 %v1172, 7
      %v1174 = vsub.s32 0, %v1173
      %v1175 = vrot.slane %v1170, %v1174
      %v1176 = vlaneseq
      %v1177 = vshrl.u32 %v1176, 7
      %v1178 = vsub.s32 1, %v1177
      %v1179 = vrot.slane %v1170, %v1178
      %v1182 = vmul.f32 %v1168, %v1175
      %v1183 = vmul.f32 %v1169, %v1179
      %v1184 = vadd.f32 %v1166, %v1182
      %v1185 = vadd.f32 %v1167, %v1183
      %v1186 = vld [vmem:[%s718] sm:$0x7f]
      %v1187 = vld [vmem:[%s718 + $0x8] sm:$0x7f]
      %v1188 = vld [vmem:[%s245] ss:$8 sm:$0x3]
      %v1190 = vlaneseq
      %v1191 = vshrl.u32 %v1190, 7
      %v1192 = vsub.s32 0, %v1191
      %v1193 = vrot.slane %v1188, %v1192
      %v1194 = vlaneseq
      %v1195 = vshrl.u32 %v1194, 7
      %v1196 = vsub.s32 1, %v1195
      %v1197 = vrot.slane %v1188, %v1196
      %v1200 = vmul.f32 %v1186, %v1193
      %v1201 = vmul.f32 %v1187, %v1197
      %v1202 = vadd.f32 %v1184, %v1200
      %v1203 = vadd.f32 %v1185, %v1201
      %v1204 = vld [vmem:[%s737] sm:$0x7f]
      %v1205 = vld [vmem:[%s737 + $0x8] sm:$0x7f]
      %v1206 = vld [vmem:[%s265] ss:$8 sm:$0x3]
      %v1208 = vlaneseq
      %v1209 = vshrl.u32 %v1208, 7
      %v1210 = vsub.s32 0, %v1209
      %v1211 = vrot.slane %v1206, %v1210
      %v1212 = vlaneseq
      %v1213 = vshrl.u32 %v1212, 7
      %v1214 = vsub.s32 1, %v1213
      %v1215 = vrot.slane %v1206, %v1214
      %v1218 = vmul.f32 %v1204, %v1211
      %v1219 = vmul.f32 %v1205, %v1215
      %v1220 = vadd.f32 %v1202, %v1218
      %v1221 = vadd.f32 %v1203, %v1219
      %v1222 = vld [vmem:[%s756] sm:$0x7f]
      %v1223 = vld [vmem:[%s756 + $0x8] sm:$0x7f]
      %v1224 = vld [vmem:[%s285] ss:$8 sm:$0x3]
      %v1226 = vlaneseq
      %v1227 = vshrl.u32 %v1226, 7
      %v1228 = vsub.s32 0, %v1227
      %v1229 = vrot.slane %v1224, %v1228
      %v1230 = vlaneseq
      %v1231 = vshrl.u32 %v1230, 7
      %v1232 = vsub.s32 1, %v1231
      %v1233 = vrot.slane %v1224, %v1232
      %v1236 = vmul.f32 %v1222, %v1229
      %v1237 = vmul.f32 %v1223, %v1233
      %v1238 = vadd.f32 %v1220, %v1236
      %v1239 = vadd.f32 %v1221, %v1237
      %v1240 = vld [vmem:[%s775] sm:$0x7f]
      %v1241 = vld [vmem:[%s775 + $0x8] sm:$0x7f]
      %v1242 = vld [vmem:[%s305] ss:$8 sm:$0x3]
      %v1244 = vlaneseq
      %v1245 = vshrl.u32 %v1244, 7
      %v1246 = vsub.s32 0, %v1245
      %v1247 = vrot.slane %v1242, %v1246
      %v1248 = vlaneseq
      %v1249 = vshrl.u32 %v1248, 7
      %v1250 = vsub.s32 1, %v1249
      %v1251 = vrot.slane %v1242, %v1250
      %v1254 = vmul.f32 %v1240, %v1247
      %v1255 = vmul.f32 %v1241, %v1251
      %v1256 = vadd.f32 %v1238, %v1254
      %v1257 = vadd.f32 %v1239, %v1255
      %v1258 = vld [vmem:[%s1024] sm:$0x7f]
      %v1259 = vld [vmem:[%s1024 + $0x8] sm:$0x7f]
      %v1260 = vld [vmem:[%s325] ss:$8 sm:$0x3]
      %v1262 = vlaneseq
      %v1263 = vshrl.u32 %v1262, 7
      %v1264 = vsub.s32 0, %v1263
      %v1265 = vrot.slane %v1260, %v1264
      %v1266 = vlaneseq
      %v1267 = vshrl.u32 %v1266, 7
      %v1268 = vsub.s32 1, %v1267
      %v1269 = vrot.slane %v1260, %v1268
      %v1272 = vmul.f32 %v1258, %v1265
      %v1273 = vmul.f32 %v1259, %v1269
      %v1274 = vadd.f32 %v1256, %v1272
      %v1275 = vadd.f32 %v1257, %v1273
      %v1276 = vld [vmem:[%s1043] sm:$0x7f]
      %v1277 = vld [vmem:[%s1043 + $0x8] sm:$0x7f]
      %v1278 = vld [vmem:[%s345] ss:$8 sm:$0x3]
      %v1280 = vlaneseq
      %v1281 = vshrl.u32 %v1280, 7
      %v1282 = vsub.s32 0, %v1281
      %v1283 = vrot.slane %v1278, %v1282
      %v1284 = vlaneseq
      %v1285 = vshrl.u32 %v1284, 7
      %v1286 = vsub.s32 1, %v1285
      %v1287 = vrot.slane %v1278, %v1286
      %v1290 = vmul.f32 %v1276, %v1283
      %v1291 = vmul.f32 %v1277, %v1287
      %v1292 = vadd.f32 %v1274, %v1290
      %v1293 = vadd.f32 %v1275, %v1291
      %v1294 = vld [vmem:[%s1062] sm:$0x7f]
      %v1295 = vld [vmem:[%s1062 + $0x8] sm:$0x7f]
      %v1296 = vld [vmem:[%s365] ss:$8 sm:$0x3]
      %v1298 = vlaneseq
      %v1299 = vshrl.u32 %v1298, 7
      %v1300 = vsub.s32 0, %v1299
      %v1301 = vrot.slane %v1296, %v1300
      %v1302 = vlaneseq
      %v1303 = vshrl.u32 %v1302, 7
      %v1304 = vsub.s32 1, %v1303
      %v1305 = vrot.slane %v1296, %v1304
      %v1308 = vmul.f32 %v1294, %v1301
      %v1309 = vmul.f32 %v1295, %v1305
      %v1310 = vadd.f32 %v1292, %v1308
      %v1311 = vadd.f32 %v1293, %v1309
      %v1312 = vld [vmem:[%s1081] sm:$0x7f]
      %v1313 = vld [vmem:[%s1081 + $0x8] sm:$0x7f]
      %v1314 = vld [vmem:[%s385] ss:$8 sm:$0x3]
      %v1316 = vlaneseq
      %v1317 = vshrl.u32 %v1316, 7
      %v1318 = vsub.s32 0, %v1317
      %v1319 = vrot.slane %v1314, %v1318
      %v1320 = vlaneseq
      %v1321 = vshrl.u32 %v1320, 7
      %v1322 = vsub.s32 1, %v1321
      %v1323 = vrot.slane %v1314, %v1322
      %v1326 = vmul.f32 %v1312, %v1319
      %v1327 = vmul.f32 %v1313, %v1323
      %v1328 = vadd.f32 %v1310, %v1326
      %v1329 = vadd.f32 %v1311, %v1327
      %s1330 = scalar_lea.vmem %s153, 96
      %v1331 = vld [vmem:[%s1330] sm:$0x7f]
      %v1332 = vld [vmem:[%s1330 + $0x8] sm:$0x7f]
      %v1333 = vld [vmem:[%s405] ss:$8 sm:$0x3]
      %v1335 = vlaneseq
      %v1336 = vshrl.u32 %v1335, 7
      %v1337 = vsub.s32 0, %v1336
      %v1338 = vrot.slane %v1333, %v1337
      %v1339 = vlaneseq
      %v1340 = vshrl.u32 %v1339, 7
      %v1341 = vsub.s32 1, %v1340
      %v1342 = vrot.slane %v1333, %v1341
      %v1345 = vmul.f32 %v1331, %v1338
      %v1346 = vmul.f32 %v1332, %v1342
      %v1347 = vadd.f32 %v1328, %v1345
      %v1348 = vadd.f32 %v1329, %v1346
      %s1349 = scalar_lea.vmem %s153, 256
      %v1350 = vld [vmem:[%s1349] sm:$0x7f]
      %v1351 = vld [vmem:[%s1349 + $0x8] sm:$0x7f]
      %v1352 = vld [vmem:[%s425] ss:$8 sm:$0x3]
      %v1354 = vlaneseq
      %v1355 = vshrl.u32 %v1354, 7
      %v1356 = vsub.s32 0, %v1355
      %v1357 = vrot.slane %v1352, %v1356
      %v1358 = vlaneseq
      %v1359 = vshrl.u32 %v1358, 7
      %v1360 = vsub.s32 1, %v1359
      %v1361 = vrot.slane %v1352, %v1360
      %v1364 = vmul.f32 %v1350, %v1357
      %v1365 = vmul.f32 %v1351, %v1361
      %v1366 = vadd.f32 %v1347, %v1364
      %v1367 = vadd.f32 %v1348, %v1365
      %s1368 = scalar_lea.vmem %s153, 416
      %v1369 = vld [vmem:[%s1368] sm:$0x7f]
      %v1370 = vld [vmem:[%s1368 + $0x8] sm:$0x7f]
      %v1371 = vld [vmem:[%s445] ss:$8 sm:$0x3]
      %v1373 = vlaneseq
      %v1374 = vshrl.u32 %v1373, 7
      %v1375 = vsub.s32 0, %v1374
      %v1376 = vrot.slane %v1371, %v1375
      %v1377 = vlaneseq
      %v1378 = vshrl.u32 %v1377, 7
      %v1379 = vsub.s32 1, %v1378
      %v1380 = vrot.slane %v1371, %v1379
      %v1383 = vmul.f32 %v1369, %v1376
      %v1384 = vmul.f32 %v1370, %v1380
      %v1385 = vadd.f32 %v1366, %v1383
      %v1386 = vadd.f32 %v1367, %v1384
      %s1387 = scalar_lea.vmem %s153, 576
      %v1388 = vld [vmem:[%s1387] sm:$0x7f]
      %v1389 = vld [vmem:[%s1387 + $0x8] sm:$0x7f]
      %v1390 = vld [vmem:[%s465] ss:$8 sm:$0x3]
      %v1392 = vlaneseq
      %v1393 = vshrl.u32 %v1392, 7
      %v1394 = vsub.s32 0, %v1393
      %v1395 = vrot.slane %v1390, %v1394
      %v1396 = vlaneseq
      %v1397 = vshrl.u32 %v1396, 7
      %v1398 = vsub.s32 1, %v1397
      %v1399 = vrot.slane %v1390, %v1398
      %v1402 = vmul.f32 %v1388, %v1395
      %v1403 = vmul.f32 %v1389, %v1399
      %v1404 = vadd.f32 %v1385, %v1402
      %v1405 = vadd.f32 %v1386, %v1403
      %v1406 = vmax.f32 %v1404, 0.0
      %v1407 = vmax.f32 %v1405, 0.0
      %v1408 = vpack.c.bf16 %v1406, %v1406
      %v1409 = vpack.c.bf16 %v1407, %v1407
      %v1412 = vunpack.c.l.b16 %v1408
      %v1413 = vunpack.c.l.b16 %v1409
      %v1414 = vpack.c.b16 %v1413, %v1412
      %s1416 = scalar_lea.vmem %s163, 24
      %v1417 = vld [vmem:[%s1416] sm:$0xff]
      %v1418 = vsel %vm498, %v1414, %v1417
      %1419 = vst [vmem:[%s1416] sm:$0xff] %v1418
      %v1420 = vld [vmem:[%s718] sm:$0x7f]
      %v1421 = vld [vmem:[%s718 + $0x8] sm:$0x7f]
      %v1422 = vld [vmem:[%s158] ss:$8 sm:$0x3]
      %v1424 = vlaneseq
      %v1425 = vshrl.u32 %v1424, 7
      %v1426 = vsub.s32 0, %v1425
      %v1427 = vrot.slane %v1422, %v1426
      %v1428 = vlaneseq
      %v1429 = vshrl.u32 %v1428, 7
      %v1430 = vsub.s32 1, %v1429
      %v1431 = vrot.slane %v1422, %v1430
      %v1434 = vmul.f32 %v1420, %v1427
      %v1435 = vmul.f32 %v1421, %v1431
      %v1436 = vadd.f32 %v1434, 0.0
      %v1437 = vadd.f32 %v1435, 0.0
      %v1438 = vld [vmem:[%s737] sm:$0x7f]
      %v1439 = vld [vmem:[%s737 + $0x8] sm:$0x7f]
      %v1440 = vld [vmem:[%s185] ss:$8 sm:$0x3]
      %v1442 = vlaneseq
      %v1443 = vshrl.u32 %v1442, 7
      %v1444 = vsub.s32 0, %v1443
      %v1445 = vrot.slane %v1440, %v1444
      %v1446 = vlaneseq
      %v1447 = vshrl.u32 %v1446, 7
      %v1448 = vsub.s32 1, %v1447
      %v1449 = vrot.slane %v1440, %v1448
      %v1452 = vmul.f32 %v1438, %v1445
      %v1453 = vmul.f32 %v1439, %v1449
      %v1454 = vadd.f32 %v1436, %v1452
      %v1455 = vadd.f32 %v1437, %v1453
      %v1456 = vld [vmem:[%s756] sm:$0x7f]
      %v1457 = vld [vmem:[%s756 + $0x8] sm:$0x7f]
      %v1458 = vld [vmem:[%s205] ss:$8 sm:$0x3]
      %v1460 = vlaneseq
      %v1461 = vshrl.u32 %v1460, 7
      %v1462 = vsub.s32 0, %v1461
      %v1463 = vrot.slane %v1458, %v1462
      %v1464 = vlaneseq
      %v1465 = vshrl.u32 %v1464, 7
      %v1466 = vsub.s32 1, %v1465
      %v1467 = vrot.slane %v1458, %v1466
      %v1470 = vmul.f32 %v1456, %v1463
      %v1471 = vmul.f32 %v1457, %v1467
      %v1472 = vadd.f32 %v1454, %v1470
      %v1473 = vadd.f32 %v1455, %v1471
      %v1474 = vld [vmem:[%s775] sm:$0x7f]
      %v1475 = vld [vmem:[%s775 + $0x8] sm:$0x7f]
      %v1476 = vld [vmem:[%s225] ss:$8 sm:$0x3]
      %v1478 = vlaneseq
      %v1479 = vshrl.u32 %v1478, 7
      %v1480 = vsub.s32 0, %v1479
      %v1481 = vrot.slane %v1476, %v1480
      %v1482 = vlaneseq
      %v1483 = vshrl.u32 %v1482, 7
      %v1484 = vsub.s32 1, %v1483
      %v1485 = vrot.slane %v1476, %v1484
      %v1488 = vmul.f32 %v1474, %v1481
      %v1489 = vmul.f32 %v1475, %v1485
      %v1490 = vadd.f32 %v1472, %v1488
      %v1491 = vadd.f32 %v1473, %v1489
      %v1492 = vld [vmem:[%s1024] sm:$0x7f]
      %v1493 = vld [vmem:[%s1024 + $0x8] sm:$0x7f]
      %v1494 = vld [vmem:[%s245] ss:$8 sm:$0x3]
      %v1496 = vlaneseq
      %v1497 = vshrl.u32 %v1496, 7
      %v1498 = vsub.s32 0, %v1497
      %v1499 = vrot.slane %v1494, %v1498
      %v1500 = vlaneseq
      %v1501 = vshrl.u32 %v1500, 7
      %v1502 = vsub.s32 1, %v1501
      %v1503 = vrot.slane %v1494, %v1502
      %v1506 = vmul.f32 %v1492, %v1499
      %v1507 = vmul.f32 %v1493, %v1503
      %v1508 = vadd.f32 %v1490, %v1506
      %v1509 = vadd.f32 %v1491, %v1507
      %v1510 = vld [vmem:[%s1043] sm:$0x7f]
      %v1511 = vld [vmem:[%s1043 + $0x8] sm:$0x7f]
      %v1512 = vld [vmem:[%s265] ss:$8 sm:$0x3]
      %v1514 = vlaneseq
      %v1515 = vshrl.u32 %v1514, 7
      %v1516 = vsub.s32 0, %v1515
      %v1517 = vrot.slane %v1512, %v1516
      %v1518 = vlaneseq
      %v1519 = vshrl.u32 %v1518, 7
      %v1520 = vsub.s32 1, %v1519
      %v1521 = vrot.slane %v1512, %v1520
      %v1524 = vmul.f32 %v1510, %v1517
      %v1525 = vmul.f32 %v1511, %v1521
      %v1526 = vadd.f32 %v1508, %v1524
      %v1527 = vadd.f32 %v1509, %v1525
      %v1528 = vld [vmem:[%s1062] sm:$0x7f]
      %v1529 = vld [vmem:[%s1062 + $0x8] sm:$0x7f]
      %v1530 = vld [vmem:[%s285] ss:$8 sm:$0x3]
      %v1532 = vlaneseq
      %v1533 = vshrl.u32 %v1532, 7
      %v1534 = vsub.s32 0, %v1533
      %v1535 = vrot.slane %v1530, %v1534
      %v1536 = vlaneseq
      %v1537 = vshrl.u32 %v1536, 7
      %v1538 = vsub.s32 1, %v1537
      %v1539 = vrot.slane %v1530, %v1538
      %v1542 = vmul.f32 %v1528, %v1535
      %v1543 = vmul.f32 %v1529, %v1539
      %v1544 = vadd.f32 %v1526, %v1542
      %v1545 = vadd.f32 %v1527, %v1543
      %v1546 = vld [vmem:[%s1081] sm:$0x7f]
      %v1547 = vld [vmem:[%s1081 + $0x8] sm:$0x7f]
      %v1548 = vld [vmem:[%s305] ss:$8 sm:$0x3]
      %v1550 = vlaneseq
      %v1551 = vshrl.u32 %v1550, 7
      %v1552 = vsub.s32 0, %v1551
      %v1553 = vrot.slane %v1548, %v1552
      %v1554 = vlaneseq
      %v1555 = vshrl.u32 %v1554, 7
      %v1556 = vsub.s32 1, %v1555
      %v1557 = vrot.slane %v1548, %v1556
      %v1560 = vmul.f32 %v1546, %v1553
      %v1561 = vmul.f32 %v1547, %v1557
      %v1562 = vadd.f32 %v1544, %v1560
      %v1563 = vadd.f32 %v1545, %v1561
      %v1564 = vld [vmem:[%s1330] sm:$0x7f]
      %v1565 = vld [vmem:[%s1330 + $0x8] sm:$0x7f]
      %v1566 = vld [vmem:[%s325] ss:$8 sm:$0x3]
      %v1568 = vlaneseq
      %v1569 = vshrl.u32 %v1568, 7
      %v1570 = vsub.s32 0, %v1569
      %v1571 = vrot.slane %v1566, %v1570
      %v1572 = vlaneseq
      %v1573 = vshrl.u32 %v1572, 7
      %v1574 = vsub.s32 1, %v1573
      %v1575 = vrot.slane %v1566, %v1574
      %v1578 = vmul.f32 %v1564, %v1571
      %v1579 = vmul.f32 %v1565, %v1575
      %v1580 = vadd.f32 %v1562, %v1578
      %v1581 = vadd.f32 %v1563, %v1579
      %v1582 = vld [vmem:[%s1349] sm:$0x7f]
      %v1583 = vld [vmem:[%s1349 + $0x8] sm:$0x7f]
      %v1584 = vld [vmem:[%s345] ss:$8 sm:$0x3]
      %v1586 = vlaneseq
      %v1587 = vshrl.u32 %v1586, 7
      %v1588 = vsub.s32 0, %v1587
      %v1589 = vrot.slane %v1584, %v1588
      %v1590 = vlaneseq
      %v1591 = vshrl.u32 %v1590, 7
      %v1592 = vsub.s32 1, %v1591
      %v1593 = vrot.slane %v1584, %v1592
      %v1596 = vmul.f32 %v1582, %v1589
      %v1597 = vmul.f32 %v1583, %v1593
      %v1598 = vadd.f32 %v1580, %v1596
      %v1599 = vadd.f32 %v1581, %v1597
      %v1600 = vld [vmem:[%s1368] sm:$0x7f]
      %v1601 = vld [vmem:[%s1368 + $0x8] sm:$0x7f]
      %v1602 = vld [vmem:[%s365] ss:$8 sm:$0x3]
      %v1604 = vlaneseq
      %v1605 = vshrl.u32 %v1604, 7
      %v1606 = vsub.s32 0, %v1605
      %v1607 = vrot.slane %v1602, %v1606
      %v1608 = vlaneseq
      %v1609 = vshrl.u32 %v1608, 7
      %v1610 = vsub.s32 1, %v1609
      %v1611 = vrot.slane %v1602, %v1610
      %v1614 = vmul.f32 %v1600, %v1607
      %v1615 = vmul.f32 %v1601, %v1611
      %v1616 = vadd.f32 %v1598, %v1614
      %v1617 = vadd.f32 %v1599, %v1615
      %v1618 = vld [vmem:[%s1387] sm:$0x7f]
      %v1619 = vld [vmem:[%s1387 + $0x8] sm:$0x7f]
      %v1620 = vld [vmem:[%s385] ss:$8 sm:$0x3]
      %v1622 = vlaneseq
      %v1623 = vshrl.u32 %v1622, 7
      %v1624 = vsub.s32 0, %v1623
      %v1625 = vrot.slane %v1620, %v1624
      %v1626 = vlaneseq
      %v1627 = vshrl.u32 %v1626, 7
      %v1628 = vsub.s32 1, %v1627
      %v1629 = vrot.slane %v1620, %v1628
      %v1632 = vmul.f32 %v1618, %v1625
      %v1633 = vmul.f32 %v1619, %v1629
      %v1634 = vadd.f32 %v1616, %v1632
      %v1635 = vadd.f32 %v1617, %v1633
      %s1636 = scalar_lea.vmem %s153, 112
      %v1637 = vld [vmem:[%s1636] sm:$0x7f]
      %v1638 = vld [vmem:[%s1636 + $0x8] sm:$0x7f]
      %v1639 = vld [vmem:[%s405] ss:$8 sm:$0x3]
      %v1641 = vlaneseq
      %v1642 = vshrl.u32 %v1641, 7
      %v1643 = vsub.s32 0, %v1642
      %v1644 = vrot.slane %v1639, %v1643
      %v1645 = vlaneseq
      %v1646 = vshrl.u32 %v1645, 7
      %v1647 = vsub.s32 1, %v1646
      %v1648 = vrot.slane %v1639, %v1647
      %v1651 = vmul.f32 %v1637, %v1644
      %v1652 = vmul.f32 %v1638, %v1648
      %v1653 = vadd.f32 %v1634, %v1651
      %v1654 = vadd.f32 %v1635, %v1652
      %s1655 = scalar_lea.vmem %s153, 272
      %v1656 = vld [vmem:[%s1655] sm:$0x7f]
      %v1657 = vld [vmem:[%s1655 + $0x8] sm:$0x7f]
      %v1658 = vld [vmem:[%s425] ss:$8 sm:$0x3]
      %v1660 = vlaneseq
      %v1661 = vshrl.u32 %v1660, 7
      %v1662 = vsub.s32 0, %v1661
      %v1663 = vrot.slane %v1658, %v1662
      %v1664 = vlaneseq
      %v1665 = vshrl.u32 %v1664, 7
      %v1666 = vsub.s32 1, %v1665
      %v1667 = vrot.slane %v1658, %v1666
      %v1670 = vmul.f32 %v1656, %v1663
      %v1671 = vmul.f32 %v1657, %v1667
      %v1672 = vadd.f32 %v1653, %v1670
      %v1673 = vadd.f32 %v1654, %v1671
      %s1674 = scalar_lea.vmem %s153, 432
      %v1675 = vld [vmem:[%s1674] sm:$0x7f]
      %v1676 = vld [vmem:[%s1674 + $0x8] sm:$0x7f]
      %v1677 = vld [vmem:[%s445] ss:$8 sm:$0x3]
      %v1679 = vlaneseq
      %v1680 = vshrl.u32 %v1679, 7
      %v1681 = vsub.s32 0, %v1680
      %v1682 = vrot.slane %v1677, %v1681
      %v1683 = vlaneseq
      %v1684 = vshrl.u32 %v1683, 7
      %v1685 = vsub.s32 1, %v1684
      %v1686 = vrot.slane %v1677, %v1685
      %v1689 = vmul.f32 %v1675, %v1682
      %v1690 = vmul.f32 %v1676, %v1686
      %v1691 = vadd.f32 %v1672, %v1689
      %v1692 = vadd.f32 %v1673, %v1690
      %s1693 = scalar_lea.vmem %s153, 592
      %v1694 = vld [vmem:[%s1693] sm:$0x7f]
      %v1695 = vld [vmem:[%s1693 + $0x8] sm:$0x7f]
      %v1696 = vld [vmem:[%s465] ss:$8 sm:$0x3]
      %v1698 = vlaneseq
      %v1699 = vshrl.u32 %v1698, 7
      %v1700 = vsub.s32 0, %v1699
      %v1701 = vrot.slane %v1696, %v1700
      %v1702 = vlaneseq
      %v1703 = vshrl.u32 %v1702, 7
      %v1704 = vsub.s32 1, %v1703
      %v1705 = vrot.slane %v1696, %v1704
      %v1708 = vmul.f32 %v1694, %v1701
      %v1709 = vmul.f32 %v1695, %v1705
      %v1710 = vadd.f32 %v1691, %v1708
      %v1711 = vadd.f32 %v1692, %v1709
      %v1712 = vmax.f32 %v1710, 0.0
      %v1713 = vmax.f32 %v1711, 0.0
      %v1714 = vpack.c.bf16 %v1712, %v1712
      %v1715 = vpack.c.bf16 %v1713, %v1713
      %v1718 = vunpack.c.l.b16 %v1714
      %v1719 = vunpack.c.l.b16 %v1715
      %v1720 = vpack.c.b16 %v1719, %v1718
      %s1722 = scalar_lea.vmem %s163, 32
      %v1723 = vld [vmem:[%s1722] sm:$0xff]
      %v1724 = vsel %vm498, %v1720, %v1723
      %1725 = vst [vmem:[%s1722] sm:$0xff] %v1724
      %v1726 = vld [vmem:[%s1024] sm:$0x7f]
      %v1727 = vld [vmem:[%s1024 + $0x8] sm:$0x7f]
      %v1728 = vld [vmem:[%s158] ss:$8 sm:$0x3]
      %v1730 = vlaneseq
      %v1731 = vshrl.u32 %v1730, 7
      %v1732 = vsub.s32 0, %v1731
      %v1733 = vrot.slane %v1728, %v1732
      %v1734 = vlaneseq
      %v1735 = vshrl.u32 %v1734, 7
      %v1736 = vsub.s32 1, %v1735
      %v1737 = vrot.slane %v1728, %v1736
      %v1740 = vmul.f32 %v1726, %v1733
      %v1741 = vmul.f32 %v1727, %v1737
      %v1742 = vadd.f32 %v1740, 0.0
      %v1743 = vadd.f32 %v1741, 0.0
      %v1744 = vld [vmem:[%s1043] sm:$0x7f]
      %v1745 = vld [vmem:[%s1043 + $0x8] sm:$0x7f]
      %v1746 = vld [vmem:[%s185] ss:$8 sm:$0x3]
      %v1748 = vlaneseq
      %v1749 = vshrl.u32 %v1748, 7
      %v1750 = vsub.s32 0, %v1749
      %v1751 = vrot.slane %v1746, %v1750
      %v1752 = vlaneseq
      %v1753 = vshrl.u32 %v1752, 7
      %v1754 = vsub.s32 1, %v1753
      %v1755 = vrot.slane %v1746, %v1754
      %v1758 = vmul.f32 %v1744, %v1751
      %v1759 = vmul.f32 %v1745, %v1755
      %v1760 = vadd.f32 %v1742, %v1758
      %v1761 = vadd.f32 %v1743, %v1759
      %v1762 = vld [vmem:[%s1062] sm:$0x7f]
      %v1763 = vld [vmem:[%s1062 + $0x8] sm:$0x7f]
      %v1764 = vld [vmem:[%s205] ss:$8 sm:$0x3]
      %v1766 = vlaneseq
      %v1767 = vshrl.u32 %v1766, 7
      %v1768 = vsub.s32 0, %v1767
      %v1769 = vrot.slane %v1764, %v1768
      %v1770 = vlaneseq
      %v1771 = vshrl.u32 %v1770, 7
      %v1772 = vsub.s32 1, %v1771
      %v1773 = vrot.slane %v1764, %v1772
      %v1776 = vmul.f32 %v1762, %v1769
      %v1777 = vmul.f32 %v1763, %v1773
      %v1778 = vadd.f32 %v1760, %v1776
      %v1779 = vadd.f32 %v1761, %v1777
      %v1780 = vld [vmem:[%s1081] sm:$0x7f]
      %v1781 = vld [vmem:[%s1081 + $0x8] sm:$0x7f]
      %v1782 = vld [vmem:[%s225] ss:$8 sm:$0x3]
      %v1784 = vlaneseq
      %v1785 = vshrl.u32 %v1784, 7
      %v1786 = vsub.s32 0, %v1785
      %v1787 = vrot.slane %v1782, %v1786
      %v1788 = vlaneseq
      %v1789 = vshrl.u32 %v1788, 7
      %v1790 = vsub.s32 1, %v1789
      %v1791 = vrot.slane %v1782, %v1790
      %v1794 = vmul.f32 %v1780, %v1787
      %v1795 = vmul.f32 %v1781, %v1791
      %v1796 = vadd.f32 %v1778, %v1794
      %v1797 = vadd.f32 %v1779, %v1795
      %v1798 = vld [vmem:[%s1330] sm:$0x7f]
      %v1799 = vld [vmem:[%s1330 + $0x8] sm:$0x7f]
      %v1800 = vld [vmem:[%s245] ss:$8 sm:$0x3]
      %v1802 = vlaneseq
      %v1803 = vshrl.u32 %v1802, 7
      %v1804 = vsub.s32 0, %v1803
      %v1805 = vrot.slane %v1800, %v1804
      %v1806 = vlaneseq
      %v1807 = vshrl.u32 %v1806, 7
      %v1808 = vsub.s32 1, %v1807
      %v1809 = vrot.slane %v1800, %v1808
      %v1812 = vmul.f32 %v1798, %v1805
      %v1813 = vmul.f32 %v1799, %v1809
      %v1814 = vadd.f32 %v1796, %v1812
      %v1815 = vadd.f32 %v1797, %v1813
      %v1816 = vld [vmem:[%s1349] sm:$0x7f]
      %v1817 = vld [vmem:[%s1349 + $0x8] sm:$0x7f]
      %v1818 = vld [vmem:[%s265] ss:$8 sm:$0x3]
      %v1820 = vlaneseq
      %v1821 = vshrl.u32 %v1820, 7
      %v1822 = vsub.s32 0, %v1821
      %v1823 = vrot.slane %v1818, %v1822
      %v1824 = vlaneseq
      %v1825 = vshrl.u32 %v1824, 7
      %v1826 = vsub.s32 1, %v1825
      %v1827 = vrot.slane %v1818, %v1826
      %v1830 = vmul.f32 %v1816, %v1823
      %v1831 = vmul.f32 %v1817, %v1827
      %v1832 = vadd.f32 %v1814, %v1830
      %v1833 = vadd.f32 %v1815, %v1831
      %v1834 = vld [vmem:[%s1368] sm:$0x7f]
      %v1835 = vld [vmem:[%s1368 + $0x8] sm:$0x7f]
      %v1836 = vld [vmem:[%s285] ss:$8 sm:$0x3]
      %v1838 = vlaneseq
      %v1839 = vshrl.u32 %v1838, 7
      %v1840 = vsub.s32 0, %v1839
      %v1841 = vrot.slane %v1836, %v1840
      %v1842 = vlaneseq
      %v1843 = vshrl.u32 %v1842, 7
      %v1844 = vsub.s32 1, %v1843
      %v1845 = vrot.slane %v1836, %v1844
      %v1848 = vmul.f32 %v1834, %v1841
      %v1849 = vmul.f32 %v1835, %v1845
      %v1850 = vadd.f32 %v1832, %v1848
      %v1851 = vadd.f32 %v1833, %v1849
      %v1852 = vld [vmem:[%s1387] sm:$0x7f]
      %v1853 = vld [vmem:[%s1387 + $0x8] sm:$0x7f]
      %v1854 = vld [vmem:[%s305] ss:$8 sm:$0x3]
      %v1856 = vlaneseq
      %v1857 = vshrl.u32 %v1856, 7
      %v1858 = vsub.s32 0, %v1857
      %v1859 = vrot.slane %v1854, %v1858
      %v1860 = vlaneseq
      %v1861 = vshrl.u32 %v1860, 7
      %v1862 = vsub.s32 1, %v1861
      %v1863 = vrot.slane %v1854, %v1862
      %v1866 = vmul.f32 %v1852, %v1859
      %v1867 = vmul.f32 %v1853, %v1863
      %v1868 = vadd.f32 %v1850, %v1866
      %v1869 = vadd.f32 %v1851, %v1867
      %v1870 = vld [vmem:[%s1636] sm:$0x7f]
      %v1871 = vld [vmem:[%s1636 + $0x8] sm:$0x7f]
      %v1872 = vld [vmem:[%s325] ss:$8 sm:$0x3]
      %v1874 = vlaneseq
      %v1875 = vshrl.u32 %v1874, 7
      %v1876 = vsub.s32 0, %v1875
      %v1877 = vrot.slane %v1872, %v1876
      %v1878 = vlaneseq
      %v1879 = vshrl.u32 %v1878, 7
      %v1880 = vsub.s32 1, %v1879
      %v1881 = vrot.slane %v1872, %v1880
      %v1884 = vmul.f32 %v1870, %v1877
      %v1885 = vmul.f32 %v1871, %v1881
      %v1886 = vadd.f32 %v1868, %v1884
      %v1887 = vadd.f32 %v1869, %v1885
      %v1888 = vld [vmem:[%s1655] sm:$0x7f]
      %v1889 = vld [vmem:[%s1655 + $0x8] sm:$0x7f]
      %v1890 = vld [vmem:[%s345] ss:$8 sm:$0x3]
      %v1892 = vlaneseq
      %v1893 = vshrl.u32 %v1892, 7
      %v1894 = vsub.s32 0, %v1893
      %v1895 = vrot.slane %v1890, %v1894
      %v1896 = vlaneseq
      %v1897 = vshrl.u32 %v1896, 7
      %v1898 = vsub.s32 1, %v1897
      %v1899 = vrot.slane %v1890, %v1898
      %v1902 = vmul.f32 %v1888, %v1895
      %v1903 = vmul.f32 %v1889, %v1899
      %v1904 = vadd.f32 %v1886, %v1902
      %v1905 = vadd.f32 %v1887, %v1903
      %v1906 = vld [vmem:[%s1674] sm:$0x7f]
      %v1907 = vld [vmem:[%s1674 + $0x8] sm:$0x7f]
      %v1908 = vld [vmem:[%s365] ss:$8 sm:$0x3]
      %v1910 = vlaneseq
      %v1911 = vshrl.u32 %v1910, 7
      %v1912 = vsub.s32 0, %v1911
      %v1913 = vrot.slane %v1908, %v1912
      %v1914 = vlaneseq
      %v1915 = vshrl.u32 %v1914, 7
      %v1916 = vsub.s32 1, %v1915
      %v1917 = vrot.slane %v1908, %v1916
      %v1920 = vmul.f32 %v1906, %v1913
      %v1921 = vmul.f32 %v1907, %v1917
      %v1922 = vadd.f32 %v1904, %v1920
      %v1923 = vadd.f32 %v1905, %v1921
      %v1924 = vld [vmem:[%s1693] sm:$0x7f]
      %v1925 = vld [vmem:[%s1693 + $0x8] sm:$0x7f]
      %v1926 = vld [vmem:[%s385] ss:$8 sm:$0x3]
      %v1928 = vlaneseq
      %v1929 = vshrl.u32 %v1928, 7
      %v1930 = vsub.s32 0, %v1929
      %v1931 = vrot.slane %v1926, %v1930
      %v1932 = vlaneseq
      %v1933 = vshrl.u32 %v1932, 7
      %v1934 = vsub.s32 1, %v1933
      %v1935 = vrot.slane %v1926, %v1934
      %v1938 = vmul.f32 %v1924, %v1931
      %v1939 = vmul.f32 %v1925, %v1935
      %v1940 = vadd.f32 %v1922, %v1938
      %v1941 = vadd.f32 %v1923, %v1939
      %s1942 = scalar_lea.vmem %s153, 128
      %v1943 = vld [vmem:[%s1942] sm:$0x7f]
      %v1944 = vld [vmem:[%s1942 + $0x8] sm:$0x7f]
      %v1945 = vld [vmem:[%s405] ss:$8 sm:$0x3]
      %v1947 = vlaneseq
      %v1948 = vshrl.u32 %v1947, 7
      %v1949 = vsub.s32 0, %v1948
      %v1950 = vrot.slane %v1945, %v1949
      %v1951 = vlaneseq
      %v1952 = vshrl.u32 %v1951, 7
      %v1953 = vsub.s32 1, %v1952
      %v1954 = vrot.slane %v1945, %v1953
      %v1957 = vmul.f32 %v1943, %v1950
      %v1958 = vmul.f32 %v1944, %v1954
      %v1959 = vadd.f32 %v1940, %v1957
      %v1960 = vadd.f32 %v1941, %v1958
      %s1961 = scalar_lea.vmem %s153, 288
      %v1962 = vld [vmem:[%s1961] sm:$0x7f]
      %v1963 = vld [vmem:[%s1961 + $0x8] sm:$0x7f]
      %v1964 = vld [vmem:[%s425] ss:$8 sm:$0x3]
      %v1966 = vlaneseq
      %v1967 = vshrl.u32 %v1966, 7
      %v1968 = vsub.s32 0, %v1967
      %v1969 = vrot.slane %v1964, %v1968
      %v1970 = vlaneseq
      %v1971 = vshrl.u32 %v1970, 7
      %v1972 = vsub.s32 1, %v1971
      %v1973 = vrot.slane %v1964, %v1972
      %v1976 = vmul.f32 %v1962, %v1969
      %v1977 = vmul.f32 %v1963, %v1973
      %v1978 = vadd.f32 %v1959, %v1976
      %v1979 = vadd.f32 %v1960, %v1977
      %s1980 = scalar_lea.vmem %s153, 448
      %v1981 = vld [vmem:[%s1980] sm:$0x7f]
      %v1982 = vld [vmem:[%s1980 + $0x8] sm:$0x7f]
      %v1983 = vld [vmem:[%s445] ss:$8 sm:$0x3]
      %v1985 = vlaneseq
      %v1986 = vshrl.u32 %v1985, 7
      %v1987 = vsub.s32 0, %v1986
      %v1988 = vrot.slane %v1983, %v1987
      %v1989 = vlaneseq
      %v1990 = vshrl.u32 %v1989, 7
      %v1991 = vsub.s32 1, %v1990
      %v1992 = vrot.slane %v1983, %v1991
      %v1995 = vmul.f32 %v1981, %v1988
      %v1996 = vmul.f32 %v1982, %v1992
      %v1997 = vadd.f32 %v1978, %v1995
      %v1998 = vadd.f32 %v1979, %v1996
      %s1999 = scalar_lea.vmem %s153, 608
      %v2000 = vld [vmem:[%s1999] sm:$0x7f]
      %v2001 = vld [vmem:[%s1999 + $0x8] sm:$0x7f]
      %v2002 = vld [vmem:[%s465] ss:$8 sm:$0x3]
      %v2004 = vlaneseq
      %v2005 = vshrl.u32 %v2004, 7
      %v2006 = vsub.s32 0, %v2005
      %v2007 = vrot.slane %v2002, %v2006
      %v2008 = vlaneseq
      %v2009 = vshrl.u32 %v2008, 7
      %v2010 = vsub.s32 1, %v2009
      %v2011 = vrot.slane %v2002, %v2010
      %v2014 = vmul.f32 %v2000, %v2007
      %v2015 = vmul.f32 %v2001, %v2011
      %v2016 = vadd.f32 %v1997, %v2014
      %v2017 = vadd.f32 %v1998, %v2015
      %v2018 = vmax.f32 %v2016, 0.0
      %v2019 = vmax.f32 %v2017, 0.0
      %v2020 = vpack.c.bf16 %v2018, %v2018
      %v2021 = vpack.c.bf16 %v2019, %v2019
      %v2024 = vunpack.c.l.b16 %v2020
      %v2025 = vunpack.c.l.b16 %v2021
      %v2026 = vpack.c.b16 %v2025, %v2024
      %s2028 = scalar_lea.vmem %s163, 40
      %v2029 = vld [vmem:[%s2028] sm:$0xff]
      %v2030 = vsel %vm498, %v2026, %v2029
      %2031 = vst [vmem:[%s2028] sm:$0xff] %v2030
      %v2032 = vld [vmem:[%s1330] sm:$0x7f]
      %v2033 = vld [vmem:[%s1330 + $0x8] sm:$0x7f]
      %v2034 = vld [vmem:[%s158] ss:$8 sm:$0x3]
      %v2036 = vlaneseq
      %v2037 = vshrl.u32 %v2036, 7
      %v2038 = vsub.s32 0, %v2037
      %v2039 = vrot.slane %v2034, %v2038
      %v2040 = vlaneseq
      %v2041 = vshrl.u32 %v2040, 7
      %v2042 = vsub.s32 1, %v2041
      %v2043 = vrot.slane %v2034, %v2042
      %v2046 = vmul.f32 %v2032, %v2039
      %v2047 = vmul.f32 %v2033, %v2043
      %v2048 = vadd.f32 %v2046, 0.0
      %v2049 = vadd.f32 %v2047, 0.0
      %v2050 = vld [vmem:[%s1349] sm:$0x7f]
      %v2051 = vld [vmem:[%s1349 + $0x8] sm:$0x7f]
      %v2052 = vld [vmem:[%s185] ss:$8 sm:$0x3]
      %v2054 = vlaneseq
      %v2055 = vshrl.u32 %v2054, 7
      %v2056 = vsub.s32 0, %v2055
      %v2057 = vrot.slane %v2052, %v2056
      %v2058 = vlaneseq
      %v2059 = vshrl.u32 %v2058, 7
      %v2060 = vsub.s32 1, %v2059
      %v2061 = vrot.slane %v2052, %v2060
      %v2064 = vmul.f32 %v2050, %v2057
      %v2065 = vmul.f32 %v2051, %v2061
      %v2066 = vadd.f32 %v2048, %v2064
      %v2067 = vadd.f32 %v2049, %v2065
      %v2068 = vld [vmem:[%s1368] sm:$0x7f]
      %v2069 = vld [vmem:[%s1368 + $0x8] sm:$0x7f]
      %v2070 = vld [vmem:[%s205] ss:$8 sm:$0x3]
      %v2072 = vlaneseq
      %v2073 = vshrl.u32 %v2072, 7
      %v2074 = vsub.s32 0, %v2073
      %v2075 = vrot.slane %v2070, %v2074
      %v2076 = vlaneseq
      %v2077 = vshrl.u32 %v2076, 7
      %v2078 = vsub.s32 1, %v2077
      %v2079 = vrot.slane %v2070, %v2078
      %v2082 = vmul.f32 %v2068, %v2075
      %v2083 = vmul.f32 %v2069, %v2079
      %v2084 = vadd.f32 %v2066, %v2082
      %v2085 = vadd.f32 %v2067, %v2083
      %v2086 = vld [vmem:[%s1387] sm:$0x7f]
      %v2087 = vld [vmem:[%s1387 + $0x8] sm:$0x7f]
      %v2088 = vld [vmem:[%s225] ss:$8 sm:$0x3]
      %v2090 = vlaneseq
      %v2091 = vshrl.u32 %v2090, 7
      %v2092 = vsub.s32 0, %v2091
      %v2093 = vrot.slane %v2088, %v2092
      %v2094 = vlaneseq
      %v2095 = vshrl.u32 %v2094, 7
      %v2096 = vsub.s32 1, %v2095
      %v2097 = vrot.slane %v2088, %v2096
      %v2100 = vmul.f32 %v2086, %v2093
      %v2101 = vmul.f32 %v2087, %v2097
      %v2102 = vadd.f32 %v2084, %v2100
      %v2103 = vadd.f32 %v2085, %v2101
      %v2104 = vld [vmem:[%s1636] sm:$0x7f]
      %v2105 = vld [vmem:[%s1636 + $0x8] sm:$0x7f]
      %v2106 = vld [vmem:[%s245] ss:$8 sm:$0x3]
      %v2108 = vlaneseq
      %v2109 = vshrl.u32 %v2108, 7
      %v2110 = vsub.s32 0, %v2109
      %v2111 = vrot.slane %v2106, %v2110
      %v2112 = vlaneseq
      %v2113 = vshrl.u32 %v2112, 7
      %v2114 = vsub.s32 1, %v2113
      %v2115 = vrot.slane %v2106, %v2114
      %v2118 = vmul.f32 %v2104, %v2111
      %v2119 = vmul.f32 %v2105, %v2115
      %v2120 = vadd.f32 %v2102, %v2118
      %v2121 = vadd.f32 %v2103, %v2119
      %v2122 = vld [vmem:[%s1655] sm:$0x7f]
      %v2123 = vld [vmem:[%s1655 + $0x8] sm:$0x7f]
      %v2124 = vld [vmem:[%s265] ss:$8 sm:$0x3]
      %v2126 = vlaneseq
      %v2127 = vshrl.u32 %v2126, 7
      %v2128 = vsub.s32 0, %v2127
      %v2129 = vrot.slane %v2124, %v2128
      %v2130 = vlaneseq
      %v2131 = vshrl.u32 %v2130, 7
      %v2132 = vsub.s32 1, %v2131
      %v2133 = vrot.slane %v2124, %v2132
      %v2136 = vmul.f32 %v2122, %v2129
      %v2137 = vmul.f32 %v2123, %v2133
      %v2138 = vadd.f32 %v2120, %v2136
      %v2139 = vadd.f32 %v2121, %v2137
      %v2140 = vld [vmem:[%s1674] sm:$0x7f]
      %v2141 = vld [vmem:[%s1674 + $0x8] sm:$0x7f]
      %v2142 = vld [vmem:[%s285] ss:$8 sm:$0x3]
      %v2144 = vlaneseq
      %v2145 = vshrl.u32 %v2144, 7
      %v2146 = vsub.s32 0, %v2145
      %v2147 = vrot.slane %v2142, %v2146
      %v2148 = vlaneseq
      %v2149 = vshrl.u32 %v2148, 7
      %v2150 = vsub.s32 1, %v2149
      %v2151 = vrot.slane %v2142, %v2150
      %v2154 = vmul.f32 %v2140, %v2147
      %v2155 = vmul.f32 %v2141, %v2151
      %v2156 = vadd.f32 %v2138, %v2154
      %v2157 = vadd.f32 %v2139, %v2155
      %v2158 = vld [vmem:[%s1693] sm:$0x7f]
      %v2159 = vld [vmem:[%s1693 + $0x8] sm:$0x7f]
      %v2160 = vld [vmem:[%s305] ss:$8 sm:$0x3]
      %v2162 = vlaneseq
      %v2163 = vshrl.u32 %v2162, 7
      %v2164 = vsub.s32 0, %v2163
      %v2165 = vrot.slane %v2160, %v2164
      %v2166 = vlaneseq
      %v2167 = vshrl.u32 %v2166, 7
      %v2168 = vsub.s32 1, %v2167
      %v2169 = vrot.slane %v2160, %v2168
      %v2172 = vmul.f32 %v2158, %v2165
      %v2173 = vmul.f32 %v2159, %v2169
      %v2174 = vadd.f32 %v2156, %v2172
      %v2175 = vadd.f32 %v2157, %v2173
      %v2176 = vld [vmem:[%s1942] sm:$0x7f]
      %v2177 = vld [vmem:[%s1942 + $0x8] sm:$0x7f]
      %v2178 = vld [vmem:[%s325] ss:$8 sm:$0x3]
      %v2180 = vlaneseq
      %v2181 = vshrl.u32 %v2180, 7
      %v2182 = vsub.s32 0, %v2181
      %v2183 = vrot.slane %v2178, %v2182
      %v2184 = vlaneseq
      %v2185 = vshrl.u32 %v2184, 7
      %v2186 = vsub.s32 1, %v2185
      %v2187 = vrot.slane %v2178, %v2186
      %v2190 = vmul.f32 %v2176, %v2183
      %v2191 = vmul.f32 %v2177, %v2187
      %v2192 = vadd.f32 %v2174, %v2190
      %v2193 = vadd.f32 %v2175, %v2191
      %v2194 = vld [vmem:[%s1961] sm:$0x7f]
      %v2195 = vld [vmem:[%s1961 + $0x8] sm:$0x7f]
      %v2196 = vld [vmem:[%s345] ss:$8 sm:$0x3]
      %v2198 = vlaneseq
      %v2199 = vshrl.u32 %v2198, 7
      %v2200 = vsub.s32 0, %v2199
      %v2201 = vrot.slane %v2196, %v2200
      %v2202 = vlaneseq
      %v2203 = vshrl.u32 %v2202, 7
      %v2204 = vsub.s32 1, %v2203
      %v2205 = vrot.slane %v2196, %v2204
      %v2208 = vmul.f32 %v2194, %v2201
      %v2209 = vmul.f32 %v2195, %v2205
      %v2210 = vadd.f32 %v2192, %v2208
      %v2211 = vadd.f32 %v2193, %v2209
      %v2212 = vld [vmem:[%s1980] sm:$0x7f]
      %v2213 = vld [vmem:[%s1980 + $0x8] sm:$0x7f]
      %v2214 = vld [vmem:[%s365] ss:$8 sm:$0x3]
      %v2216 = vlaneseq
      %v2217 = vshrl.u32 %v2216, 7
      %v2218 = vsub.s32 0, %v2217
      %v2219 = vrot.slane %v2214, %v2218
      %v2220 = vlaneseq
      %v2221 = vshrl.u32 %v2220, 7
      %v2222 = vsub.s32 1, %v2221
      %v2223 = vrot.slane %v2214, %v2222
      %v2226 = vmul.f32 %v2212, %v2219
      %v2227 = vmul.f32 %v2213, %v2223
      %v2228 = vadd.f32 %v2210, %v2226
      %v2229 = vadd.f32 %v2211, %v2227
      %v2230 = vld [vmem:[%s1999] sm:$0x7f]
      %v2231 = vld [vmem:[%s1999 + $0x8] sm:$0x7f]
      %v2232 = vld [vmem:[%s385] ss:$8 sm:$0x3]
      %v2234 = vlaneseq
      %v2235 = vshrl.u32 %v2234, 7
      %v2236 = vsub.s32 0, %v2235
      %v2237 = vrot.slane %v2232, %v2236
      %v2238 = vlaneseq
      %v2239 = vshrl.u32 %v2238, 7
      %v2240 = vsub.s32 1, %v2239
      %v2241 = vrot.slane %v2232, %v2240
      %v2244 = vmul.f32 %v2230, %v2237
      %v2245 = vmul.f32 %v2231, %v2241
      %v2246 = vadd.f32 %v2228, %v2244
      %v2247 = vadd.f32 %v2229, %v2245
      %s2248 = scalar_lea.vmem %s153, 144
      %v2249 = vld [vmem:[%s2248] sm:$0x7f]
      %v2250 = vld [vmem:[%s2248 + $0x8] sm:$0x7f]
      %v2251 = vld [vmem:[%s405] ss:$8 sm:$0x3]
      %v2253 = vlaneseq
      %v2254 = vshrl.u32 %v2253, 7
      %v2255 = vsub.s32 0, %v2254
      %v2256 = vrot.slane %v2251, %v2255
      %v2257 = vlaneseq
      %v2258 = vshrl.u32 %v2257, 7
      %v2259 = vsub.s32 1, %v2258
      %v2260 = vrot.slane %v2251, %v2259
      %v2263 = vmul.f32 %v2249, %v2256
      %v2264 = vmul.f32 %v2250, %v2260
      %v2265 = vadd.f32 %v2246, %v2263
      %v2266 = vadd.f32 %v2247, %v2264
      %s2267 = scalar_lea.vmem %s153, 304
      %v2268 = vld [vmem:[%s2267] sm:$0x7f]
      %v2269 = vld [vmem:[%s2267 + $0x8] sm:$0x7f]
      %v2270 = vld [vmem:[%s425] ss:$8 sm:$0x3]
      %v2272 = vlaneseq
      %v2273 = vshrl.u32 %v2272, 7
      %v2274 = vsub.s32 0, %v2273
      %v2275 = vrot.slane %v2270, %v2274
      %v2276 = vlaneseq
      %v2277 = vshrl.u32 %v2276, 7
      %v2278 = vsub.s32 1, %v2277
      %v2279 = vrot.slane %v2270, %v2278
      %v2282 = vmul.f32 %v2268, %v2275
      %v2283 = vmul.f32 %v2269, %v2279
      %v2284 = vadd.f32 %v2265, %v2282
      %v2285 = vadd.f32 %v2266, %v2283
      %s2286 = scalar_lea.vmem %s153, 464
      %v2287 = vld [vmem:[%s2286] sm:$0x7f]
      %v2288 = vld [vmem:[%s2286 + $0x8] sm:$0x7f]
      %v2289 = vld [vmem:[%s445] ss:$8 sm:$0x3]
      %v2291 = vlaneseq
      %v2292 = vshrl.u32 %v2291, 7
      %v2293 = vsub.s32 0, %v2292
      %v2294 = vrot.slane %v2289, %v2293
      %v2295 = vlaneseq
      %v2296 = vshrl.u32 %v2295, 7
      %v2297 = vsub.s32 1, %v2296
      %v2298 = vrot.slane %v2289, %v2297
      %v2301 = vmul.f32 %v2287, %v2294
      %v2302 = vmul.f32 %v2288, %v2298
      %v2303 = vadd.f32 %v2284, %v2301
      %v2304 = vadd.f32 %v2285, %v2302
      %s2305 = scalar_lea.vmem %s153, 624
      %v2306 = vld [vmem:[%s2305] sm:$0x7f]
      %v2307 = vld [vmem:[%s2305 + $0x8] sm:$0x7f]
      %v2308 = vld [vmem:[%s465] ss:$8 sm:$0x3]
      %v2310 = vlaneseq
      %v2311 = vshrl.u32 %v2310, 7
      %v2312 = vsub.s32 0, %v2311
      %v2313 = vrot.slane %v2308, %v2312
      %v2314 = vlaneseq
      %v2315 = vshrl.u32 %v2314, 7
      %v2316 = vsub.s32 1, %v2315
      %v2317 = vrot.slane %v2308, %v2316
      %v2320 = vmul.f32 %v2306, %v2313
      %v2321 = vmul.f32 %v2307, %v2317
      %v2322 = vadd.f32 %v2303, %v2320
      %v2323 = vadd.f32 %v2304, %v2321
      %v2324 = vmax.f32 %v2322, 0.0
      %v2325 = vmax.f32 %v2323, 0.0
      %v2326 = vpack.c.bf16 %v2324, %v2324
      %v2327 = vpack.c.bf16 %v2325, %v2325
      %v2330 = vunpack.c.l.b16 %v2326
      %v2331 = vunpack.c.l.b16 %v2327
      %v2332 = vpack.c.b16 %v2331, %v2330
      %s2334 = scalar_lea.vmem %s163, 48
      %v2335 = vld [vmem:[%s2334] sm:$0xff]
      %v2336 = vsel %vm498, %v2332, %v2335
      %2337 = vst [vmem:[%s2334] sm:$0xff] %v2336
      %p2338 = scmp.lt.s32.totalorder %s13, 1
      %s2339 = scalar_select %p2338, %s13, 1
      %s2340 = smul.addr %s2339, 14
      %s2341 = smul.addr %s2340, 4
      %s2342 = scalar_lea.vmem %s2, %s2341
      // Predicated region
      $region29: #{forward.3} parent=27 // pred_check
        %p2343 = pneg %p83
      $region30: #{forward.3} parent=27 // pred_check_branch
        %2345 = sbr.rel (%p2343) target = $region32
      $region31: #{forward.3} parent=27 // pred_region
        _
      $region32: #{forward.3} parent=27 // pred_fallthru
        _
    $region28: #{forward.3} parent=5 // pred_fallthru
      _
    %p2346 = scmp.le.s32.totalorder 2, %s8
    // Predicated region
    $region33: #{forward.3} parent=5 // pred_check
      %p2347 = pneg %p2346
    $region34: #{forward.3} parent=5 // pred_check_branch
      %2349 = sbr.rel (%p2347) target = $region36
    $region35: #{forward.3} parent=5 // pred_region
      %s2350 = ssub.s32 %s8, 2
      // Predicated region
      $region37: #{forward.3} parent=35 // pred_check
        %p2351 = pneg %p89
      $region38: #{forward.3} parent=35 // pred_check_branch
        %2353 = sbr.rel (%p2351) target = $region40
      $region39: #{forward.3} parent=35 // pred_region
        %p2354 = scmp.lt.s32.totalorder %s14, 1
        %s2355 = scalar_select %p2354, %s14, 1
        %s2356 = smul.addr %s2355, 14
        %s2357 = smul.addr %s2356, 4
        %s2358 = scalar_lea.vmem %s2, %s2357
      $region40: #{forward.3} parent=35 // pred_fallthru
        _
    $region36: #{forward.3} parent=5 // pred_fallthru
      _
  $region6: #{forward.3} parent=0 // loop_footer
    %s12 = sadd.s32 1, %s8
  $region7: #{forward.3} parent=0 // loop_footer_branch
    %7 = sbr.rel target = $region3
  $region8: #{forward.3} parent=0 // loop_exit
    _

// kernel: forward.4
$region0: #{forward.4}
  #allocation0 [shape = 'u32[]', space=smem, size = 0x4, offset = 0x4, fixed_abs, tag = 'smem constant byte address 0x4 - core index']
  #allocation1 [shape = 'u32[144,128]{1,0:T(1,128)}', space=vmem, size = 0x12000, scoped, tag = 'internal scratch']
  %s0 = inlined_call_operand.vmem [shape: bf16[2,361,2304], index: 0, kind: input, shape index: {}]
  %s1 = inlined_call_operand.vmem [shape: bf16[2304,256], index: 1, kind: input, shape index: {}]
  %s2 = inlined_call_operand.vmem [shape: f32[1,256], index: 2, kind: input, shape index: {}]
  %s3 = inlined_call_operand.vmem [shape: f32[2,361,256], index: 3, kind: output, shape index: {0}]
  %s4 = inlined_call_operand.vmem [shape: f32[2,1,256], index: 4, kind: output, shape index: {1}]
  %s5 = inlined_call_operand.vmem [shape: f32[2,1,256], index: 5, kind: output, shape index: {2}]
  %6 = xla_tuple %s3, %s4, %s5
  %s7 = sld [smem:[#allocation0]]
  $region61: #{forward.4} parent=0
    _
  %s9 = ssub.s32 1, %s7
  %s10 = scalar_select 0, %s9, %s7
  loop: start=0, step=1, limit=4
  $region2: #{forward.4} parent=0 // loop_pre_header
    _
  $region3: #{forward.4} parent=0 // loop_header
    %s12 = sphi 0, %s16
    %p13 = scmp.ge.s32.totalorder %s12, 4
    %s22 = sphi 0, %s24
    %s25 = sphi 0, %s22
    %s26 = sphi 0, %s25
    %s42 = sphi 0, %s26
    %s46 = sphi 0, %s46
    %s48 = sphi 0, %s46
    %s49 = sphi 0, %s48
    %s63 = sphi 0, %s49
    %s67 = sphi 0, %s67
    %s69 = sphi 0, %s67
    %s70 = sphi 0, %s69
    %s84 = sphi 0, %s70
    %s90 = sphi 0, %s92
    %s93 = sphi 0, %s90
    %s94 = sphi 0, %s93
    %s110 = sphi 0, %s94
    %s116 = sphi 0, %s118
    %s119 = sphi 0, %s116
    %s120 = sphi 0, %s119
    %s136 = sphi 0, %s120
    %s142 = sphi 0, %s144
    %s145 = sphi 0, %s142
    %s146 = sphi 0, %s145
    %s162 = sphi 0, %s146
  $region4: #{forward.4} parent=0 // loop_header_branch
    %15 = sbr.rel (%p13) target = $region8
  $region5: #{forward.4} parent=0 // loop_body
    %s17 = ssub.s32 %s12, 1
    %s18 = ssub.s32 %s12, 2
    %s19 = sadd.s32 %s12, 1
    %s20 = ssub.s32 %s12, %s19
    %p21 = scmp.eq.s32.totalorder %s20, 0
    %s23 = sadd.s32 %s22, 1
    %s24 = scalar_select %p21, %s22, %s23
    %p27 = pneg %p21
    %p28 = scmp.eq.s32.totalorder %s12, 1
    %p29 = por %p27, %p28
    %p30 = scmp.ne.s32.totalorder %s22, %s25
    %p31 = scmp.eq.s32.totalorder %s12, 0
    %p32 = por %p30, %p31
    %p33 = scmp.ne.s32.totalorder %s22, %s25
    %p34 = scmp.eq.s32.totalorder %s17, 1
    %p35 = por %p33, %p34
    %p36 = scmp.ne.s32.totalorder %s25, %s26
    %p37 = scmp.eq.s32.totalorder %s17, 0
    %p38 = por %p36, %p37
    %p39 = scmp.ne.s32.totalorder %s25, %s26
    %p40 = scmp.eq.s32.totalorder %s18, 1
    %p41 = por %p39, %p40
    %p43 = scmp.ne.s32.totalorder %s26, %s42
    %p44 = scmp.eq.s32.totalorder %s18, 0
    %p45 = por %p43, %p44
    %s47 = sadd.s32 %s46, 1
    %p50 = scmp.eq.s32.totalorder %s12, 1
    %p51 = scmp.ne.s32.totalorder %s46, %s48
    %p52 = scmp.eq.s32.totalorder %s12, 0
    %p53 = por %p51, %p52
    %p54 = scmp.ne.s32.totalorder %s46, %s48
    %p55 = scmp.eq.s32.totalorder %s17, 1
    %p56 = por %p54, %p55
    %p57 = scmp.ne.s32.totalorder %s48, %s49
    %p58 = scmp.eq.s32.totalorder %s17, 0
    %p59 = por %p57, %p58
    %p60 = scmp.ne.s32.totalorder %s48, %s49
    %p61 = scmp.eq.s32.totalorder %s18, 1
    %p62 = por %p60, %p61
    %p64 = scmp.ne.s32.totalorder %s49, %s63
    %p65 = scmp.eq.s32.totalorder %s18, 0
    %p66 = por %p64, %p65
    %s68 = sadd.s32 %s67, 1
    %p71 = scmp.eq.s32.totalorder %s12, 1
    %p72 = scmp.ne.s32.totalorder %s67, %s69
    %p73 = scmp.eq.s32.totalorder %s12, 0
    %p74 = por %p72, %p73
    %p75 = scmp.ne.s32.totalorder %s67, %s69
    %p76 = scmp.eq.s32.totalorder %s17, 1
    %p77 = por %p75, %p76
    %p78 = scmp.ne.s32.totalorder %s69, %s70
    %p79 = scmp.eq.s32.totalorder %s17, 0
    %p80 = por %p78, %p79
    %p81 = scmp.ne.s32.totalorder %s69, %s70
    %p82 = scmp.eq.s32.totalorder %s18, 1
    %p83 = por %p81, %p82
    %p85 = scmp.ne.s32.totalorder %s70, %s84
    %p86 = scmp.eq.s32.totalorder %s18, 0
    %p87 = por %p85, %p86
    %s88 = ssub.s32 %s12, %s19
    %p89 = scmp.eq.s32.totalorder %s88, 0
    %s91 = sadd.s32 %s90, 1
    %s92 = scalar_select %p89, %s90, %s91
    %p95 = pneg %p89
    %p96 = scmp.eq.s32.totalorder %s12, 1
    %p97 = por %p95, %p96
    %p98 = scmp.ne.s32.totalorder %s90, %s93
    %p99 = scmp.eq.s32.totalorder %s12, 0
    %p100 = por %p98, %p99
    %p101 = scmp.ne.s32.totalorder %s90, %s93
    %p102 = scmp.eq.s32.totalorder %s17, 1
    %p103 = por %p101, %p102
    %p104 = scmp.ne.s32.totalorder %s93, %s94
    %p105 = scmp.eq.s32.totalorder %s17, 0
    %p106 = por %p104, %p105
    %p107 = scmp.ne.s32.totalorder %s93, %s94
    %p108 = scmp.eq.s32.totalorder %s18, 1
    %p109 = por %p107, %p108
    %p111 = scmp.ne.s32.totalorder %s94, %s110
    %p112 = scmp.eq.s32.totalorder %s18, 0
    %p113 = por %p111, %p112
    %s114 = ssub.s32 %s12, %s19
    %p115 = scmp.eq.s32.totalorder %s114, 0
    %s117 = sadd.s32 %s116, 1
    %s118 = scalar_select %p115, %s116, %s117
    %p121 = pneg %p115
    %p122 = scmp.eq.s32.totalorder %s12, 1
    %p123 = por %p121, %p122
    %p124 = scmp.ne.s32.totalorder %s116, %s119
    %p125 = scmp.eq.s32.totalorder %s12, 0
    %p126 = por %p124, %p125
    %p127 = scmp.ne.s32.totalorder %s116, %s119
    %p128 = scmp.eq.s32.totalorder %s17, 1
    %p129 = por %p127, %p128
    %p130 = scmp.ne.s32.totalorder %s119, %s120
    %p131 = scmp.eq.s32.totalorder %s17, 0
    %p132 = por %p130, %p131
    %p133 = scmp.ne.s32.totalorder %s119, %s120
    %p134 = scmp.eq.s32.totalorder %s18, 1
    %p135 = por %p133, %p134
    %p137 = scmp.ne.s32.totalorder %s120, %s136
    %p138 = scmp.eq.s32.totalorder %s18, 0
    %p139 = por %p137, %p138
    %s140 = ssub.s32 %s12, %s19
    %p141 = scmp.eq.s32.totalorder %s140, 0
    %s143 = sadd.s32 %s142, 1
    %s144 = scalar_select %p141, %s142, %s143
    %p147 = pneg %p141
    %p148 = scmp.eq.s32.totalorder %s12, 1
    %p149 = por %p147, %p148
    %p150 = scmp.ne.s32.totalorder %s142, %s145
    %p151 = scmp.eq.s32.totalorder %s12, 0
    %p152 = por %p150, %p151
    %p153 = scmp.ne.s32.totalorder %s142, %s145
    %p154 = scmp.eq.s32.totalorder %s17, 1
    %p155 = por %p153, %p154
    %p156 = scmp.ne.s32.totalorder %s145, %s146
    %p157 = scmp.eq.s32.totalorder %s17, 0
    %p158 = por %p156, %p157
    %p159 = scmp.ne.s32.totalorder %s145, %s146
    %p160 = scmp.eq.s32.totalorder %s18, 1
    %p161 = por %p159, %p160
    %p163 = scmp.ne.s32.totalorder %s146, %s162
    %p164 = scmp.eq.s32.totalorder %s18, 0
    %p165 = por %p163, %p164
    %p166 = scmp.le.s32.totalorder 1, %s12
    %p167 = scmp.lt.s32.totalorder %s12, 3
    %p168 = pnand %p166, %p167
    %p169 = pneg %p168
    // Predicated region
    $region9: #{forward.4} parent=5 // pred_check
      _
    $region10: #{forward.4} parent=5 // pred_check_branch
      %171 = sbr.rel (%p168) target = $region12
    $region11: #{forward.4} parent=5 // pred_region
      %s172 = ssub.s32 %s12, 1
      // Predicated region
      $region13: #{forward.4} parent=11 // pred_check
        %p173 = pneg %p59
      $region14: #{forward.4} parent=11 // pred_check_branch
        %175 = sbr.rel (%p173) target = $region16
      $region15: #{forward.4} parent=11 // pred_region
        _
      $region16: #{forward.4} parent=11 // pred_fallthru
        _
      // Predicated region
      $region17: #{forward.4} parent=11 // pred_check
        %p176 = pneg %p80
      $region18: #{forward.4} parent=11 // pred_check_branch
        %178 = sbr.rel (%p176) target = $region20
      $region19: #{forward.4} parent=11 // pred_region
        _
      $region20: #{forward.4} parent=11 // pred_fallthru
        _
    $region12: #{forward.4} parent=5 // pred_fallthru
      _
    %p179 = scmp.lt.s32.totalorder %s12, 2
    // Predicated region
    $region21: #{forward.4} parent=5 // pred_check
      %p180 = pneg %p179
    $region22: #{forward.4} parent=5 // pred_check_branch
      %182 = sbr.rel (%p180) target = $region24
    $region23: #{forward.4} parent=5 // pred_region
      // Predicated region
      $region25: #{forward.4} parent=23 // pred_check
        %p183 = pneg %p32
      $region26: #{forward.4} parent=23 // pred_check_branch
        %185 = sbr.rel (%p183) target = $region28
      $region27: #{forward.4} parent=23 // pred_region
        %p186 = scmp.lt.s32.totalorder %s12, 1
        %s187 = scalar_select %p186, %s12, 1
        %s188 = smul.addr %s187, 828
        %s189 = smul.addr %s188, 4
        %s190 = scalar_lea.vmem %s0, %s189
      $region28: #{forward.4} parent=23 // pred_fallthru
        _
    $region24: #{forward.4} parent=5 // pred_fallthru
      _
    %p191 = scmp.le.s32.totalorder 1, %s12
    %p192 = scmp.lt.s32.totalorder %s12, 3
    %p193 = pnand %p191, %p192
    %p194 = pneg %p193
    // Predicated region
    $region29: #{forward.4} parent=5 // pred_check
      _
    $region30: #{forward.4} parent=5 // pred_check_branch
      %196 = sbr.rel (%p193) target = $region32
    $region31: #{forward.4} parent=5 // pred_region
      %s197 = ssub.s32 %s12, 1
      %p198 = scmp.lt.s32.totalorder %s17, 1
      %s199 = scalar_select %p198, %s17, 1
      %s200 = smul.addr %s199, 828
      %s201 = smul.addr %s200, 4
      %s202 = scalar_lea.vmem %s0, %s201
      %p203 = pneg %p38
      %p204 = pneg %p35
      %p205 = pneg %p59
      %p206 = pneg %p56
      %p207 = pneg %p80
      %p208 = pneg %p77
      %p209 = pneg %p106
      %p210 = pneg %p103
      %p211 = scmp.lt.s32.totalorder %s17, 1
      %s212 = scalar_select %p211, %s17, 1
      %s213 = smul.addr %s212, 92
      %s214 = smul.addr %s213, 8
      %s215 = scalar_lea.vmem %s3, %s214
      %p216 = pneg %p132
      %p217 = pneg %p129
      %p218 = scmp.lt.s32.totalorder %s17, 1
      %s219 = scalar_select %p218, %s17, 1
      %s220 = smul.addr %s219, 2
      %s221 = scalar_lea.vmem %s4, %s220
      %p222 = pneg %p158
      %p223 = pneg %p155
      %p224 = scmp.lt.s32.totalorder %s17, 1
      %s225 = scalar_select %p224, %s17, 1
      %s226 = smul.addr %s225, 2
      %s227 = scalar_lea.vmem %s5, %s226
      %p228 = scmp.lt.s32.totalorder %s17, 1
      %s229 = scalar_select %p228, %s17, 1
      %s230 = smul.addr %s229, 828
      %s231 = smul.addr %s230, 4
      %s232 = scalar_lea.vmem %s0, %s231
      %p233 = scmp.lt.s32.totalorder %s17, 1
      %s234 = scalar_select %p233, %s17, 1
      %s235 = smul.addr %s234, 92
      %s236 = smul.addr %s235, 8
      %s237 = scalar_lea.vmem %s3, %s236
      %p238 = scmp.lt.s32.totalorder %s17, 1
      %s239 = scalar_select %p238, %s17, 1
      %s240 = smul.addr %s239, 2
      %s241 = scalar_lea.vmem %s4, %s240
      %p242 = scmp.lt.s32.totalorder %s17, 1
      %s243 = scalar_select %p242, %s17, 1
      %s244 = smul.addr %s243, 2
      %s245 = scalar_lea.vmem %s5, %s244
      %v246 = vld [vmem:[%s232] sm:$0xff]
      %v247 = vld [vmem:[%s232 + $0x8] sm:$0xff]
      %v248 = vld [vmem:[%s232 + $0x10] sm:$0xff]
      %v249 = vld [vmem:[%s232 + $0x18] sm:$0xff]
      %v250 = vld [vmem:[%s232 + $0x20] sm:$0xff]
      %v251 = vld [vmem:[%s232 + $0x28] sm:$0xff]
      %v252 = vld [vmem:[%s232 + $0x30] sm:$0xff]
      %v253 = vld [vmem:[%s232 + $0x38] sm:$0xff]
      %v254 = vld [vmem:[%s232 + $0x40] sm:$0xff]
      %v255 = vld [vmem:[%s232 + $0x48] sm:$0xff]
      %v256 = vld [vmem:[%s232 + $0x50] sm:$0xff]
      %v257 = vld [vmem:[%s232 + $0x58] sm:$0xff]
      %v258 = vld [vmem:[%s232 + $0x60] sm:$0xff]
      %v259 = vld [vmem:[%s232 + $0x68] sm:$0xff]
      %v260 = vld [vmem:[%s232 + $0x70] sm:$0xff]
      %v261 = vld [vmem:[%s232 + $0x78] sm:$0xff]
      %v262 = vld [vmem:[%s232 + $0x80] sm:$0xff]
      %v263 = vld [vmem:[%s232 + $0x88] sm:$0xff]
      %v264 = vld [vmem:[%s232 + $0x90] sm:$0xff]
      %v265 = vld [vmem:[%s232 + $0x98] sm:$0xff]
      %v266 = vld [vmem:[%s232 + $0xa0] sm:$0xff]
      %v267 = vld [vmem:[%s232 + $0xa8] sm:$0xff]
      %v268 = vld [vmem:[%s232 + $0xb0] sm:$0xff]
      %v269 = vld [vmem:[%s232 + $0xb8] sm:$0xff]
      %v270 = vld [vmem:[%s232 + $0xc0] sm:$0xff]
      %v271 = vld [vmem:[%s232 + $0xc8] sm:$0xff]
      %v272 = vld [vmem:[%s232 + $0xd0] sm:$0xff]
      %v273 = vld [vmem:[%s232 + $0xd8] sm:$0xff]
      %v274 = vld [vmem:[%s232 + $0xe0] sm:$0xff]
      %v275 = vld [vmem:[%s232 + $0xe8] sm:$0xff]
      %v276 = vld [vmem:[%s232 + $0xf0] sm:$0xff]
      %v277 = vld [vmem:[%s232 + $0xf8] sm:$0xff]
      %v278 = vld [vmem:[%s232 + $0x100] sm:$0xff]
      %v279 = vld [vmem:[%s232 + $0x108] sm:$0xff]
      %v280 = vld [vmem:[%s232 + $0x110] sm:$0xff]
      %v281 = vld [vmem:[%s232 + $0x118] sm:$0xff]
      %v282 = vld [vmem:[%s232 + $0x120] sm:$0xff]
      %v283 = vld [vmem:[%s232 + $0x128] sm:$0xff]
      %v284 = vld [vmem:[%s232 + $0x130] sm:$0xff]
      %v285 = vld [vmem:[%s232 + $0x138] sm:$0xff]
      %v286 = vld [vmem:[%s232 + $0x140] sm:$0xff]
      %v287 = vld [vmem:[%s232 + $0x148] sm:$0xff]
      %v288 = vld [vmem:[%s232 + $0x150] sm:$0xff]
      %v289 = vld [vmem:[%s232 + $0x158] sm:$0xff]
      %v290 = vld [vmem:[%s232 + $0x160] sm:$0xff]
      %v291 = vld [vmem:[%s232 + $0x168] sm:$0xff]
      %v292 = vld [vmem:[%s232 + $0x170] sm:$0xff]
      %v293 = vld [vmem:[%s232 + $0x178] sm:$0xff]
      %v294 = vld [vmem:[%s232 + $0x180] sm:$0xff]
      %v295 = vld [vmem:[%s232 + $0x188] sm:$0xff]
      %v296 = vld [vmem:[%s232 + $0x190] sm:$0xff]
      %v297 = vld [vmem:[%s232 + $0x198] sm:$0xff]
      %v298 = vld [vmem:[%s232 + $0x1a0] sm:$0xff]
      %v299 = vld [vmem:[%s232 + $0x1a8] sm:$0xff]
      %v300 = vld [vmem:[%s232 + $0x1b0] sm:$0xff]
      %v301 = vld [vmem:[%s232 + $0x1b8] sm:$0xff]
      %v302 = vld [vmem:[%s232 + $0x1c0] sm:$0xff]
      %v303 = vld [vmem:[%s232 + $0x1c8] sm:$0xff]
      %v304 = vld [vmem:[%s232 + $0x1d0] sm:$0xff]
      %v305 = vld [vmem:[%s232 + $0x1d8] sm:$0xff]
      %v306 = vld [vmem:[%s232 + $0x1e0] sm:$0xff]
      %v307 = vld [vmem:[%s232 + $0x1e8] sm:$0xff]
      %v308 = vld [vmem:[%s232 + $0x1f0] sm:$0xff]
      %v309 = vld [vmem:[%s232 + $0x1f8] sm:$0xff]
      %v310 = vld [vmem:[%s232 + $0x200] sm:$0xff]
      %v311 = vld [vmem:[%s232 + $0x208] sm:$0xff]
      %v312 = vld [vmem:[%s232 + $0x210] sm:$0xff]
      %v313 = vld [vmem:[%s232 + $0x218] sm:$0xff]
      %v314 = vld [vmem:[%s232 + $0x220] sm:$0xff]
      %v315 = vld [vmem:[%s232 + $0x228] sm:$0xff]
      %v316 = vld [vmem:[%s232 + $0x230] sm:$0xff]
      %v317 = vld [vmem:[%s232 + $0x238] sm:$0xff]
      %v318 = vld [vmem:[%s232 + $0x240] sm:$0xff]
      %v319 = vld [vmem:[%s232 + $0x248] sm:$0xff]
      %v320 = vld [vmem:[%s232 + $0x250] sm:$0xff]
      %v321 = vld [vmem:[%s232 + $0x258] sm:$0xff]
      %v322 = vld [vmem:[%s232 + $0x260] sm:$0xff]
      %v323 = vld [vmem:[%s232 + $0x268] sm:$0xff]
      %v324 = vld [vmem:[%s232 + $0x270] sm:$0xff]
      %v325 = vld [vmem:[%s232 + $0x278] sm:$0xff]
      %v326 = vld [vmem:[%s232 + $0x280] sm:$0xff]
      %v327 = vld [vmem:[%s232 + $0x288] sm:$0xff]
      %v328 = vld [vmem:[%s232 + $0x290] sm:$0xff]
      %v329 = vld [vmem:[%s232 + $0x298] sm:$0xff]
      %v330 = vld [vmem:[%s232 + $0x2a0] sm:$0xff]
      %v331 = vld [vmem:[%s232 + $0x2a8] sm:$0xff]
      %v332 = vld [vmem:[%s232 + $0x2b0] sm:$0xff]
      %v333 = vld [vmem:[%s232 + $0x2b8] sm:$0xff]
      %v334 = vld [vmem:[%s232 + $0x2c0] sm:$0xff]
      %v335 = vld [vmem:[%s232 + $0x2c8] sm:$0xff]
      %v336 = vld [vmem:[%s232 + $0x2d0] sm:$0xff]
      %v337 = vld [vmem:[%s232 + $0x2d8] sm:$0xff]
      %v338 = vld [vmem:[%s232 + $0x2e0] sm:$0xff]
      %v339 = vld [vmem:[%s232 + $0x2e8] sm:$0xff]
      %v340 = vld [vmem:[%s232 + $0x2f0] sm:$0xff]
      %v341 = vld [vmem:[%s232 + $0x2f8] sm:$0xff]
      %v342 = vld [vmem:[%s232 + $0x300] sm:$0xff]
      %v343 = vld [vmem:[%s232 + $0x308] sm:$0xff]
      %v344 = vld [vmem:[%s232 + $0x310] sm:$0xff]
      %v345 = vld [vmem:[%s232 + $0x318] sm:$0xff]
      %v346 = vld [vmem:[%s232 + $0x320] sm:$0xff]
      %v347 = vld [vmem:[%s232 + $0x328] sm:$0xff]
      %v348 = vld [vmem:[%s232 + $0x330] sm:$0xff]
      %v349 = vld [vmem:[%s232 + $0x338] sm:$0xff]
      %v350 = vld [vmem:[%s232 + $0x340] sm:$0xff]
      %v351 = vld [vmem:[%s232 + $0x348] sm:$0xff]
      %v352 = vld [vmem:[%s232 + $0x350] sm:$0xff]
      %v353 = vld [vmem:[%s232 + $0x358] sm:$0xff]
      %v354 = vld [vmem:[%s232 + $0x360] sm:$0xff]
      %v355 = vld [vmem:[%s232 + $0x368] sm:$0xff]
      %v356 = vld [vmem:[%s232 + $0x370] sm:$0xff]
      %v357 = vld [vmem:[%s232 + $0x378] sm:$0xff]
      %v358 = vld [vmem:[%s232 + $0x380] sm:$0xff]
      %v359 = vld [vmem:[%s232 + $0x388] sm:$0xff]
      %v360 = vld [vmem:[%s232 + $0x390] sm:$0xff]
      %v361 = vld [vmem:[%s232 + $0x398] sm:$0xff]
      %v362 = vld [vmem:[%s232 + $0x3a0] sm:$0xff]
      %v363 = vld [vmem:[%s232 + $0x3a8] sm:$0xff]
      %v364 = vld [vmem:[%s232 + $0x3b0] sm:$0xff]
      %v365 = vld [vmem:[%s232 + $0x3b8] sm:$0xff]
      %v366 = vld [vmem:[%s232 + $0x3c0] sm:$0xff]
      %v367 = vld [vmem:[%s232 + $0x3c8] sm:$0xff]
      %v368 = vld [vmem:[%s232 + $0x3d0] sm:$0xff]
      %v369 = vld [vmem:[%s232 + $0x3d8] sm:$0xff]
      %v370 = vld [vmem:[%s232 + $0x3e0] sm:$0xff]
      %v371 = vld [vmem:[%s232 + $0x3e8] sm:$0xff]
      %v372 = vld [vmem:[%s232 + $0x3f0] sm:$0xff]
      %v373 = vld [vmem:[%s232 + $0x3f8] sm:$0xff]
      %v374 = vld [vmem:[%s232 + $0x400] sm:$0xff]
      %v375 = vld [vmem:[%s232 + $0x408] sm:$0xff]
      %v376 = vld [vmem:[%s232 + $0x410] sm:$0xff]
      %v377 = vld [vmem:[%s232 + $0x418] sm:$0xff]
      %v378 = vld [vmem:[%s232 + $0x420] sm:$0xff]
      %v379 = vld [vmem:[%s232 + $0x428] sm:$0xff]
      %v380 = vld [vmem:[%s232 + $0x430] sm:$0xff]
      %v381 = vld [vmem:[%s232 + $0x438] sm:$0xff]
      %v382 = vld [vmem:[%s232 + $0x440] sm:$0xff]
      %v383 = vld [vmem:[%s232 + $0x448] sm:$0xff]
      %v384 = vld [vmem:[%s232 + $0x450] sm:$0xff]
      %v385 = vld [vmem:[%s232 + $0x458] sm:$0xff]
      %v386 = vld [vmem:[%s232 + $0x460] sm:$0xff]
      %v387 = vld [vmem:[%s232 + $0x468] sm:$0xff]
      %v388 = vld [vmem:[%s232 + $0x470] sm:$0xff]
      %v389 = vld [vmem:[%s232 + $0x478] sm:$0xff]
      %v390 = vld [vmem:[%s232 + $0x480] sm:$0xff]
      %v391 = vld [vmem:[%s232 + $0x488] sm:$0xff]
      %v392 = vld [vmem:[%s232 + $0x490] sm:$0xff]
      %v393 = vld [vmem:[%s232 + $0x498] sm:$0xff]
      %v394 = vld [vmem:[%s232 + $0x4a0] sm:$0xff]
      %v395 = vld [vmem:[%s232 + $0x4a8] sm:$0xff]
      %v396 = vld [vmem:[%s232 + $0x4b0] sm:$0xff]
      %v397 = vld [vmem:[%s232 + $0x4b8] sm:$0xff]
      %v398 = vld [vmem:[%s232 + $0x4c0] sm:$0xff]
      %v399 = vld [vmem:[%s232 + $0x4c8] sm:$0xff]
      %v400 = vld [vmem:[%s232 + $0x4d0] sm:$0xff]
      %v401 = vld [vmem:[%s232 + $0x4d8] sm:$0xff]
      %v402 = vld [vmem:[%s232 + $0x4e0] sm:$0xff]
      %v403 = vld [vmem:[%s232 + $0x4e8] sm:$0xff]
      %v404 = vld [vmem:[%s232 + $0x4f0] sm:$0xff]
      %v405 = vld [vmem:[%s232 + $0x4f8] sm:$0xff]
      %v406 = vld [vmem:[%s232 + $0x500] sm:$0xff]
      %v407 = vld [vmem:[%s232 + $0x508] sm:$0xff]
      %v408 = vld [vmem:[%s232 + $0x510] sm:$0xff]
      %v409 = vld [vmem:[%s232 + $0x518] sm:$0xff]
      %v410 = vld [vmem:[%s232 + $0x520] sm:$0xff]
      %v411 = vld [vmem:[%s232 + $0x528] sm:$0xff]
      %v412 = vld [vmem:[%s232 + $0x530] sm:$0xff]
      %v413 = vld [vmem:[%s232 + $0x538] sm:$0xff]
      %v414 = vld [vmem:[%s232 + $0x540] sm:$0xff]
      %v415 = vld [vmem:[%s232 + $0x548] sm:$0xff]
      %v416 = vld [vmem:[%s232 + $0x550] sm:$0xff]
      %v417 = vld [vmem:[%s232 + $0x558] sm:$0xff]
      %v418 = vld [vmem:[%s232 + $0x560] sm:$0xff]
      %v419 = vld [vmem:[%s232 + $0x568] sm:$0xff]
      %v420 = vld [vmem:[%s232 + $0x570] sm:$0xff]
      %v421 = vld [vmem:[%s232 + $0x578] sm:$0xff]
      %v422 = vld [vmem:[%s232 + $0x580] sm:$0xff]
      %v423 = vld [vmem:[%s232 + $0x588] sm:$0xff]
      %v424 = vld [vmem:[%s232 + $0x590] sm:$0xff]
      %v425 = vld [vmem:[%s232 + $0x598] sm:$0xff]
      %v426 = vld [vmem:[%s232 + $0x5a0] sm:$0xff]
      %v427 = vld [vmem:[%s232 + $0x5a8] sm:$0xff]
      %v428 = vld [vmem:[%s232 + $0x5b0] sm:$0xff]
      %v429 = vld [vmem:[%s232 + $0x5b8] sm:$0xff]
      %v430 = vld [vmem:[%s232 + $0x5c0] sm:$0xff]
      %v431 = vld [vmem:[%s232 + $0x5c8] sm:$0xff]
      %v432 = vld [vmem:[%s232 + $0x5d0] sm:$0xff]
      %v433 = vld [vmem:[%s232 + $0x5d8] sm:$0xff]
      %v434 = vld [vmem:[%s232 + $0x5e0] sm:$0xff]
      %v435 = vld [vmem:[%s232 + $0x5e8] sm:$0xff]
      %v436 = vld [vmem:[%s232 + $0x5f0] sm:$0xff]
      %v437 = vld [vmem:[%s232 + $0x5f8] sm:$0xff]
      %v438 = vld [vmem:[%s232 + $0x600] sm:$0xff]
      %v439 = vld [vmem:[%s232 + $0x608] sm:$0xff]
      %v440 = vld [vmem:[%s232 + $0x610] sm:$0xff]
      %v441 = vld [vmem:[%s232 + $0x618] sm:$0xff]
      %v442 = vld [vmem:[%s232 + $0x620] sm:$0xff]
      %v443 = vld [vmem:[%s232 + $0x628] sm:$0xff]
      %v444 = vld [vmem:[%s232 + $0x630] sm:$0xff]
      %v445 = vld [vmem:[%s232 + $0x638] sm:$0xff]
      %v446 = vld [vmem:[%s232 + $0x640] sm:$0xff]
      %v447 = vld [vmem:[%s232 + $0x648] sm:$0xff]
      %v448 = vld [vmem:[%s232 + $0x650] sm:$0xff]
      %v449 = vld [vmem:[%s232 + $0x658] sm:$0xff]
      %v450 = vld [vmem:[%s232 + $0x660] sm:$0xff]
      %v451 = vld [vmem:[%s232 + $0x668] sm:$0xff]
      %v452 = vld [vmem:[%s232 + $0x670] sm:$0xff]
      %v453 = vld [vmem:[%s232 + $0x678] sm:$0xff]
      %v454 = vld [vmem:[%s232 + $0x680] sm:$0xff]
      %v455 = vld [vmem:[%s232 + $0x688] sm:$0xff]
      %v456 = vld [vmem:[%s232 + $0x690] sm:$0xff]
      %v457 = vld [vmem:[%s232 + $0x698] sm:$0xff]
      %v458 = vld [vmem:[%s232 + $0x6a0] sm:$0xff]
      %v459 = vld [vmem:[%s232 + $0x6a8] sm:$0xff]
      %v460 = vld [vmem:[%s232 + $0x6b0] sm:$0xff]
      %v461 = vld [vmem:[%s232 + $0x6b8] sm:$0xff]
      %v462 = vld [vmem:[%s232 + $0x6c0] sm:$0xff]
      %v463 = vld [vmem:[%s232 + $0x6c8] sm:$0xff]
      %v464 = vld [vmem:[%s232 + $0x6d0] sm:$0xff]
      %v465 = vld [vmem:[%s232 + $0x6d8] sm:$0xff]
      %v466 = vld [vmem:[%s232 + $0x6e0] sm:$0xff]
      %v467 = vld [vmem:[%s232 + $0x6e8] sm:$0xff]
      %v468 = vld [vmem:[%s232 + $0x6f0] sm:$0xff]
      %v469 = vld [vmem:[%s232 + $0x6f8] sm:$0xff]
      %v470 = vld [vmem:[%s232 + $0x700] sm:$0xff]
      %v471 = vld [vmem:[%s232 + $0x708] sm:$0xff]
      %v472 = vld [vmem:[%s232 + $0x710] sm:$0xff]
      %v473 = vld [vmem:[%s232 + $0x718] sm:$0xff]
      %v474 = vld [vmem:[%s232 + $0x720] sm:$0xff]
      %v475 = vld [vmem:[%s232 + $0x728] sm:$0xff]
      %v476 = vld [vmem:[%s232 + $0x730] sm:$0xff]
      %v477 = vld [vmem:[%s232 + $0x738] sm:$0xff]
      %v478 = vld [vmem:[%s232 + $0x740] sm:$0xff]
      %v479 = vld [vmem:[%s232 + $0x748] sm:$0xff]
      %v480 = vld [vmem:[%s232 + $0x750] sm:$0xff]
      %v481 = vld [vmem:[%s232 + $0x758] sm:$0xff]
      %v482 = vld [vmem:[%s232 + $0x760] sm:$0xff]
      %v483 = vld [vmem:[%s232 + $0x768] sm:$0xff]
      %v484 = vld [vmem:[%s232 + $0x770] sm:$0xff]
      %v485 = vld [vmem:[%s232 + $0x778] sm:$0xff]
      %v486 = vld [vmem:[%s232 + $0x780] sm:$0xff]
      %v487 = vld [vmem:[%s232 + $0x788] sm:$0xff]
      %v488 = vld [vmem:[%s232 + $0x790] sm:$0xff]
      %v489 = vld [vmem:[%s232 + $0x798] sm:$0xff]
      %v490 = vld [vmem:[%s232 + $0x7a0] sm:$0xff]
      %v491 = vld [vmem:[%s232 + $0x7a8] sm:$0xff]
      %v492 = vld [vmem:[%s232 + $0x7b0] sm:$0xff]
      %v493 = vld [vmem:[%s232 + $0x7b8] sm:$0xff]
      %v494 = vld [vmem:[%s232 + $0x7c0] sm:$0xff]
      %v495 = vld [vmem:[%s232 + $0x7c8] sm:$0xff]
      %v496 = vld [vmem:[%s232 + $0x7d0] sm:$0xff]
      %v497 = vld [vmem:[%s232 + $0x7d8] sm:$0xff]
      %v498 = vld [vmem:[%s232 + $0x7e0] sm:$0xff]
      %v499 = vld [vmem:[%s232 + $0x7e8] sm:$0xff]
      %v500 = vld [vmem:[%s232 + $0x7f0] sm:$0xff]
      %v501 = vld [vmem:[%s232 + $0x7f8] sm:$0xff]
      %v502 = vld [vmem:[%s232 + $0x800] sm:$0xff]
      %v503 = vld [vmem:[%s232 + $0x808] sm:$0xff]
      %v504 = vld [vmem:[%s232 + $0x810] sm:$0xff]
      %v505 = vld [vmem:[%s232 + $0x818] sm:$0xff]
      %v506 = vld [vmem:[%s232 + $0x820] sm:$0xff]
      %v507 = vld [vmem:[%s232 + $0x828] sm:$0xff]
      %v508 = vld [vmem:[%s232 + $0x830] sm:$0xff]
      %v509 = vld [vmem:[%s232 + $0x838] sm:$0xff]
      %v510 = vld [vmem:[%s232 + $0x840] sm:$0xff]
      %v511 = vld [vmem:[%s232 + $0x848] sm:$0xff]
      %v512 = vld [vmem:[%s232 + $0x850] sm:$0xff]
      %v513 = vld [vmem:[%s232 + $0x858] sm:$0xff]
      %v514 = vld [vmem:[%s232 + $0x860] sm:$0xff]
      %v515 = vld [vmem:[%s232 + $0x868] sm:$0xff]
      %v516 = vld [vmem:[%s232 + $0x870] sm:$0xff]
      %v517 = vld [vmem:[%s232 + $0x878] sm:$0xff]
      %v518 = vld [vmem:[%s232 + $0x880] sm:$0xff]
      %v519 = vld [vmem:[%s232 + $0x888] sm:$0xff]
      %v520 = vld [vmem:[%s232 + $0x890] sm:$0xff]
      %v521 = vld [vmem:[%s232 + $0x898] sm:$0xff]
      %v522 = vld [vmem:[%s232 + $0x8a0] sm:$0xff]
      %v523 = vld [vmem:[%s232 + $0x8a8] sm:$0xff]
      %v524 = vld [vmem:[%s232 + $0x8b0] sm:$0xff]
      %v525 = vld [vmem:[%s232 + $0x8b8] sm:$0xff]
      %v526 = vld [vmem:[%s232 + $0x8c0] sm:$0xff]
      %v527 = vld [vmem:[%s232 + $0x8c8] sm:$0xff]
      %v528 = vld [vmem:[%s232 + $0x8d0] sm:$0xff]
      %v529 = vld [vmem:[%s232 + $0x8d8] sm:$0xff]
      %v530 = vld [vmem:[%s232 + $0x8e0] sm:$0xff]
      %v531 = vld [vmem:[%s232 + $0x8e8] sm:$0xff]
      %v532 = vld [vmem:[%s232 + $0x8f0] sm:$0xff]
      %v533 = vld [vmem:[%s232 + $0x8f8] sm:$0xff]
      %v534 = vld [vmem:[%s232 + $0x900] sm:$0xff]
      %v535 = vld [vmem:[%s232 + $0x908] sm:$0xff]
      %v536 = vld [vmem:[%s232 + $0x910] sm:$0xff]
      %v537 = vld [vmem:[%s232 + $0x918] sm:$0xff]
      %v538 = vld [vmem:[%s232 + $0x920] sm:$0xff]
      %v539 = vld [vmem:[%s232 + $0x928] sm:$0xff]
      %v540 = vld [vmem:[%s232 + $0x930] sm:$0xff]
      %v541 = vld [vmem:[%s232 + $0x938] sm:$0xff]
      %v542 = vld [vmem:[%s232 + $0x940] sm:$0xff]
      %v543 = vld [vmem:[%s232 + $0x948] sm:$0xff]
      %v544 = vld [vmem:[%s232 + $0x950] sm:$0xff]
      %v545 = vld [vmem:[%s232 + $0x958] sm:$0xff]
      %v546 = vld [vmem:[%s232 + $0x960] sm:$0xff]
      %v547 = vld [vmem:[%s232 + $0x968] sm:$0xff]
      %v548 = vld [vmem:[%s232 + $0x970] sm:$0xff]
      %v549 = vld [vmem:[%s232 + $0x978] sm:$0xff]
      %v550 = vld [vmem:[%s232 + $0x980] sm:$0xff]
      %v551 = vld [vmem:[%s232 + $0x988] sm:$0xff]
      %v552 = vld [vmem:[%s232 + $0x990] sm:$0xff]
      %v553 = vld [vmem:[%s232 + $0x998] sm:$0xff]
      %v554 = vld [vmem:[%s232 + $0x9a0] sm:$0xff]
      %v555 = vld [vmem:[%s232 + $0x9a8] sm:$0xff]
      %v556 = vld [vmem:[%s232 + $0x9b0] sm:$0xff]
      %v557 = vld [vmem:[%s232 + $0x9b8] sm:$0xff]
      %v558 = vld [vmem:[%s232 + $0x9c0] sm:$0xff]
      %v559 = vld [vmem:[%s232 + $0x9c8] sm:$0xff]
      %v560 = vld [vmem:[%s232 + $0x9d0] sm:$0xff]
      %v561 = vld [vmem:[%s232 + $0x9d8] sm:$0xff]
      %v562 = vld [vmem:[%s232 + $0x9e0] sm:$0xff]
      %v563 = vld [vmem:[%s232 + $0x9e8] sm:$0xff]
      %v564 = vld [vmem:[%s232 + $0x9f0] sm:$0xff]
      %v565 = vld [vmem:[%s232 + $0x9f8] sm:$0xff]
      %v566 = vld [vmem:[%s232 + $0xa00] sm:$0xff]
      %v567 = vld [vmem:[%s232 + $0xa08] sm:$0xff]
      %v568 = vld [vmem:[%s232 + $0xa10] sm:$0xff]
      %v569 = vld [vmem:[%s232 + $0xa18] sm:$0xff]
      %v570 = vld [vmem:[%s232 + $0xa20] sm:$0xff]
      %v571 = vld [vmem:[%s232 + $0xa28] sm:$0xff]
      %v572 = vld [vmem:[%s232 + $0xa30] sm:$0xff]
      %v573 = vld [vmem:[%s232 + $0xa38] sm:$0xff]
      %v574 = vld [vmem:[%s232 + $0xa40] sm:$0xff]
      %v575 = vld [vmem:[%s232 + $0xa48] sm:$0xff]
      %v576 = vld [vmem:[%s232 + $0xa50] sm:$0xff]
      %v577 = vld [vmem:[%s232 + $0xa58] sm:$0xff]
      %v578 = vld [vmem:[%s232 + $0xa60] sm:$0xff]
      %v579 = vld [vmem:[%s232 + $0xa68] sm:$0xff]
      %v580 = vld [vmem:[%s232 + $0xa70] sm:$0xff]
      %v581 = vld [vmem:[%s232 + $0xa78] sm:$0xff]
      %v582 = vld [vmem:[%s232 + $0xa80] sm:$0xff]
      %v583 = vld [vmem:[%s232 + $0xa88] sm:$0xff]
      %v584 = vld [vmem:[%s232 + $0xa90] sm:$0xff]
      %v585 = vld [vmem:[%s232 + $0xa98] sm:$0xff]
      %v586 = vld [vmem:[%s232 + $0xaa0] sm:$0xff]
      %v587 = vld [vmem:[%s232 + $0xaa8] sm:$0xff]
      %v588 = vld [vmem:[%s232 + $0xab0] sm:$0xff]
      %v589 = vld [vmem:[%s232 + $0xab8] sm:$0xff]
      %v590 = vld [vmem:[%s232 + $0xac0] sm:$0xff]
      %v591 = vld [vmem:[%s232 + $0xac8] sm:$0xff]
      %v592 = vld [vmem:[%s232 + $0xad0] sm:$0xff]
      %v593 = vld [vmem:[%s232 + $0xad8] sm:$0xff]
      %v594 = vld [vmem:[%s232 + $0xae0] sm:$0xff]
      %v595 = vld [vmem:[%s232 + $0xae8] sm:$0xff]
      %v596 = vld [vmem:[%s232 + $0xaf0] sm:$0xff]
      %v597 = vld [vmem:[%s232 + $0xaf8] sm:$0xff]
      %v598 = vld [vmem:[%s232 + $0xb00] sm:$0xff]
      %v599 = vld [vmem:[%s232 + $0xb08] sm:$0xff]
      %v600 = vld [vmem:[%s232 + $0xb10] sm:$0xff]
      %v601 = vld [vmem:[%s232 + $0xb18] sm:$0xff]
      %v602 = vld [vmem:[%s232 + $0xb20] sm:$0xff]
      %v603 = vld [vmem:[%s232 + $0xb28] sm:$0xff]
      %v604 = vld [vmem:[%s232 + $0xb30] sm:$0xff]
      %v605 = vld [vmem:[%s232 + $0xb38] sm:$0xff]
      %v606 = vld [vmem:[%s232 + $0xb40] sm:$0xff]
      %v607 = vld [vmem:[%s232 + $0xb48] sm:$0xff]
      %v608 = vld [vmem:[%s232 + $0xb50] sm:$0xff]
      %v609 = vld [vmem:[%s232 + $0xb58] sm:$0xff]
      %v610 = vld [vmem:[%s232 + $0xb60] sm:$0xff]
      %v611 = vld [vmem:[%s232 + $0xb68] sm:$0xff]
      %v612 = vld [vmem:[%s232 + $0xb70] sm:$0xff]
      %v613 = vld [vmem:[%s232 + $0xb78] sm:$0xff]
      %v614 = vld [vmem:[%s232 + $0xb80] sm:$0xff]
      %v615 = vld [vmem:[%s232 + $0xb88] sm:$0xff]
      %v616 = vld [vmem:[%s232 + $0xb90] sm:$0xff]
      %v617 = vld [vmem:[%s232 + $0xb98] sm:$0xff]
      %v618 = vld [vmem:[%s232 + $0xba0] sm:$0xff]
      %v619 = vld [vmem:[%s232 + $0xba8] sm:$0xff]
      %v620 = vld [vmem:[%s232 + $0xbb0] sm:$0xff]
      %v621 = vld [vmem:[%s232 + $0xbb8] sm:$0xff]
      %v622 = vld [vmem:[%s232 + $0xbc0] sm:$0xff]
      %v623 = vld [vmem:[%s232 + $0xbc8] sm:$0xff]
      %v624 = vld [vmem:[%s232 + $0xbd0] sm:$0xff]
      %v625 = vld [vmem:[%s232 + $0xbd8] sm:$0xff]
      %v626 = vld [vmem:[%s232 + $0xbe0] sm:$0xff]
      %v627 = vld [vmem:[%s232 + $0xbe8] sm:$0xff]
      %v628 = vld [vmem:[%s232 + $0xbf0] sm:$0xff]
      %v629 = vld [vmem:[%s232 + $0xbf8] sm:$0xff]
      %v630 = vld [vmem:[%s232 + $0xc00] sm:$0xff]
      %v631 = vld [vmem:[%s232 + $0xc08] sm:$0xff]
      %v632 = vld [vmem:[%s232 + $0xc10] sm:$0xff]
      %v633 = vld [vmem:[%s232 + $0xc18] sm:$0xff]
      %v634 = vld [vmem:[%s232 + $0xc20] sm:$0xff]
      %v635 = vld [vmem:[%s232 + $0xc28] sm:$0xff]
      %v636 = vld [vmem:[%s232 + $0xc30] sm:$0xff]
      %v637 = vld [vmem:[%s232 + $0xc38] sm:$0xff]
      %v638 = vld [vmem:[%s232 + $0xc40] sm:$0xff]
      %v639 = vld [vmem:[%s232 + $0xc48] sm:$0xff]
      %v640 = vld [vmem:[%s232 + $0xc50] sm:$0xff]
      %v641 = vld [vmem:[%s232 + $0xc58] sm:$0xff]
      %v642 = vld [vmem:[%s232 + $0xc60] sm:$0xff]
      %v643 = vld [vmem:[%s232 + $0xc68] sm:$0xff]
      %v644 = vld [vmem:[%s232 + $0xc70] sm:$0xff]
      %v645 = vld [vmem:[%s232 + $0xc78] sm:$0xff]
      %v646 = vld [vmem:[%s232 + $0xc80] sm:$0xff]
      %v647 = vld [vmem:[%s232 + $0xc88] sm:$0xff]
      %v648 = vld [vmem:[%s232 + $0xc90] sm:$0xff]
      %v649 = vld [vmem:[%s232 + $0xc98] sm:$0xff]
      %v650 = vld [vmem:[%s232 + $0xca0] sm:$0xff]
      %v651 = vld [vmem:[%s232 + $0xca8] sm:$0x11]
      %v652 = vld [vmem:[%s232 + $0xcb0] sm:$0x11]
      %v653 = vld [vmem:[%s232 + $0xcb8] sm:$0x11]
      %v654 = vld [vmem:[%s232 + $0xcc0] sm:$0x11]
      %v655 = vld [vmem:[%s232 + $0xcc8] sm:$0x11]
      %v656 = vld [vmem:[%s232 + $0xcd0] sm:$0x11]
      %v657 = vld [vmem:[%s232 + $0xcd8] sm:$0x11]
      %v658 = vld [vmem:[%s232 + $0xce0] sm:$0x11]
      %v659 = vld [vmem:[%s232 + $0xce8] sm:$0x11]
      %v660 = vld [vmem:[%s1] sm:$0xff]
      %v661 = vld [vmem:[%s1 + $0x8] sm:$0xff]
      %v662 = vld [vmem:[%s1 + $0x10] sm:$0xff]
      %v663 = vld [vmem:[%s1 + $0x18] sm:$0xff]
      %v664 = vld [vmem:[%s1 + $0x20] sm:$0xff]
      %v665 = vld [vmem:[%s1 + $0x28] sm:$0xff]
      %v666 = vld [vmem:[%s1 + $0x30] sm:$0xff]
      %v667 = vld [vmem:[%s1 + $0x38] sm:$0xff]
      %v668 = vld [vmem:[%s1 + $0x40] sm:$0xff]
      %v669 = vld [vmem:[%s1 + $0x48] sm:$0xff]
      %v670 = vld [vmem:[%s1 + $0x50] sm:$0xff]
      %v671 = vld [vmem:[%s1 + $0x58] sm:$0xff]
      %v672 = vld [vmem:[%s1 + $0x60] sm:$0xff]
      %v673 = vld [vmem:[%s1 + $0x68] sm:$0xff]
      %v674 = vld [vmem:[%s1 + $0x70] sm:$0xff]
      %v675 = vld [vmem:[%s1 + $0x78] sm:$0xff]
      %v676 = vld [vmem:[%s1 + $0x80] sm:$0xff]
      %v677 = vld [vmem:[%s1 + $0x88] sm:$0xff]
      %v678 = vld [vmem:[%s1 + $0x90] sm:$0xff]
      %v679 = vld [vmem:[%s1 + $0x98] sm:$0xff]
      %v680 = vld [vmem:[%s1 + $0xa0] sm:$0xff]
      %v681 = vld [vmem:[%s1 + $0xa8] sm:$0xff]
      %v682 = vld [vmem:[%s1 + $0xb0] sm:$0xff]
      %v683 = vld [vmem:[%s1 + $0xb8] sm:$0xff]
      %v684 = vld [vmem:[%s1 + $0xc0] sm:$0xff]
      %v685 = vld [vmem:[%s1 + $0xc8] sm:$0xff]
      %v686 = vld [vmem:[%s1 + $0xd0] sm:$0xff]
      %v687 = vld [vmem:[%s1 + $0xd8] sm:$0xff]
      %v688 = vld [vmem:[%s1 + $0xe0] sm:$0xff]
      %v689 = vld [vmem:[%s1 + $0xe8] sm:$0xff]
      %v690 = vld [vmem:[%s1 + $0xf0] sm:$0xff]
      %v691 = vld [vmem:[%s1 + $0xf8] sm:$0xff]
      %v692 = vld [vmem:[%s1 + $0x100] sm:$0xff]
      %v693 = vld [vmem:[%s1 + $0x108] sm:$0xff]
      %v694 = vld [vmem:[%s1 + $0x110] sm:$0xff]
      %v695 = vld [vmem:[%s1 + $0x118] sm:$0xff]
      %v696 = vld [vmem:[%s1 + $0x120] sm:$0xff]
      %v697 = vld [vmem:[%s1 + $0x128] sm:$0xff]
      %v698 = vld [vmem:[%s1 + $0x130] sm:$0xff]
      %v699 = vld [vmem:[%s1 + $0x138] sm:$0xff]
      %v700 = vld [vmem:[%s1 + $0x140] sm:$0xff]
      %v701 = vld [vmem:[%s1 + $0x148] sm:$0xff]
      %v702 = vld [vmem:[%s1 + $0x150] sm:$0xff]
      %v703 = vld [vmem:[%s1 + $0x158] sm:$0xff]
      %v704 = vld [vmem:[%s1 + $0x160] sm:$0xff]
      %v705 = vld [vmem:[%s1 + $0x168] sm:$0xff]
      %v706 = vld [vmem:[%s1 + $0x170] sm:$0xff]
      %v707 = vld [vmem:[%s1 + $0x178] sm:$0xff]
      %v708 = vld [vmem:[%s1 + $0x180] sm:$0xff]
      %v709 = vld [vmem:[%s1 + $0x188] sm:$0xff]
      %v710 = vld [vmem:[%s1 + $0x190] sm:$0xff]
      %v711 = vld [vmem:[%s1 + $0x198] sm:$0xff]
      %v712 = vld [vmem:[%s1 + $0x1a0] sm:$0xff]
      %v713 = vld [vmem:[%s1 + $0x1a8] sm:$0xff]
      %v714 = vld [vmem:[%s1 + $0x1b0] sm:$0xff]
      %v715 = vld [vmem:[%s1 + $0x1b8] sm:$0xff]
      %v716 = vld [vmem:[%s1 + $0x1c0] sm:$0xff]
      %v717 = vld [vmem:[%s1 + $0x1c8] sm:$0xff]
      %v718 = vld [vmem:[%s1 + $0x1d0] sm:$0xff]
      %v719 = vld [vmem:[%s1 + $0x1d8] sm:$0xff]
      %v720 = vld [vmem:[%s1 + $0x1e0] sm:$0xff]
      %v721 = vld [vmem:[%s1 + $0x1e8] sm:$0xff]
      %v722 = vld [vmem:[%s1 + $0x1f0] sm:$0xff]
      %v723 = vld [vmem:[%s1 + $0x1f8] sm:$0xff]
      %v724 = vld [vmem:[%s1 + $0x200] sm:$0xff]
      %v725 = vld [vmem:[%s1 + $0x208] sm:$0xff]
      %v726 = vld [vmem:[%s1 + $0x210] sm:$0xff]
      %v727 = vld [vmem:[%s1 + $0x218] sm:$0xff]
      %v728 = vld [vmem:[%s1 + $0x220] sm:$0xff]
      %v729 = vld [vmem:[%s1 + $0x228] sm:$0xff]
      %v730 = vld [vmem:[%s1 + $0x230] sm:$0xff]
      %v731 = vld [vmem:[%s1 + $0x238] sm:$0xff]
      %v732 = vld [vmem:[%s1 + $0x240] sm:$0xff]
      %v733 = vld [vmem:[%s1 + $0x248] sm:$0xff]
      %v734 = vld [vmem:[%s1 + $0x250] sm:$0xff]
      %v735 = vld [vmem:[%s1 + $0x258] sm:$0xff]
      %v736 = vld [vmem:[%s1 + $0x260] sm:$0xff]
      %v737 = vld [vmem:[%s1 + $0x268] sm:$0xff]
      %v738 = vld [vmem:[%s1 + $0x270] sm:$0xff]
      %v739 = vld [vmem:[%s1 + $0x278] sm:$0xff]
      %v740 = vld [vmem:[%s1 + $0x280] sm:$0xff]
      %v741 = vld [vmem:[%s1 + $0x288] sm:$0xff]
      %v742 = vld [vmem:[%s1 + $0x290] sm:$0xff]
      %v743 = vld [vmem:[%s1 + $0x298] sm:$0xff]
      %v744 = vld [vmem:[%s1 + $0x2a0] sm:$0xff]
      %v745 = vld [vmem:[%s1 + $0x2a8] sm:$0xff]
      %v746 = vld [vmem:[%s1 + $0x2b0] sm:$0xff]
      %v747 = vld [vmem:[%s1 + $0x2b8] sm:$0xff]
      %v748 = vld [vmem:[%s1 + $0x2c0] sm:$0xff]
      %v749 = vld [vmem:[%s1 + $0x2c8] sm:$0xff]
      %v750 = vld [vmem:[%s1 + $0x2d0] sm:$0xff]
      %v751 = vld [vmem:[%s1 + $0x2d8] sm:$0xff]
      %v752 = vld [vmem:[%s1 + $0x2e0] sm:$0xff]
      %v753 = vld [vmem:[%s1 + $0x2e8] sm:$0xff]
      %v754 = vld [vmem:[%s1 + $0x2f0] sm:$0xff]
      %v755 = vld [vmem:[%s1 + $0x2f8] sm:$0xff]
      %v756 = vld [vmem:[%s1 + $0x300] sm:$0xff]
      %v757 = vld [vmem:[%s1 + $0x308] sm:$0xff]
      %v758 = vld [vmem:[%s1 + $0x310] sm:$0xff]
      %v759 = vld [vmem:[%s1 + $0x318] sm:$0xff]
      %v760 = vld [vmem:[%s1 + $0x320] sm:$0xff]
      %v761 = vld [vmem:[%s1 + $0x328] sm:$0xff]
      %v762 = vld [vmem:[%s1 + $0x330] sm:$0xff]
      %v763 = vld [vmem:[%s1 + $0x338] sm:$0xff]
      %v764 = vld [vmem:[%s1 + $0x340] sm:$0xff]
      %v765 = vld [vmem:[%s1 + $0x348] sm:$0xff]
      %v766 = vld [vmem:[%s1 + $0x350] sm:$0xff]
      %v767 = vld [vmem:[%s1 + $0x358] sm:$0xff]
      %v768 = vld [vmem:[%s1 + $0x360] sm:$0xff]
      %v769 = vld [vmem:[%s1 + $0x368] sm:$0xff]
      %v770 = vld [vmem:[%s1 + $0x370] sm:$0xff]
      %v771 = vld [vmem:[%s1 + $0x378] sm:$0xff]
      %v772 = vld [vmem:[%s1 + $0x380] sm:$0xff]
      %v773 = vld [vmem:[%s1 + $0x388] sm:$0xff]
      %v774 = vld [vmem:[%s1 + $0x390] sm:$0xff]
      %v775 = vld [vmem:[%s1 + $0x398] sm:$0xff]
      %v776 = vld [vmem:[%s1 + $0x3a0] sm:$0xff]
      %v777 = vld [vmem:[%s1 + $0x3a8] sm:$0xff]
      %v778 = vld [vmem:[%s1 + $0x3b0] sm:$0xff]
      %v779 = vld [vmem:[%s1 + $0x3b8] sm:$0xff]
      %v780 = vld [vmem:[%s1 + $0x3c0] sm:$0xff]
      %v781 = vld [vmem:[%s1 + $0x3c8] sm:$0xff]
      %v782 = vld [vmem:[%s1 + $0x3d0] sm:$0xff]
      %v783 = vld [vmem:[%s1 + $0x3d8] sm:$0xff]
      %v784 = vld [vmem:[%s1 + $0x3e0] sm:$0xff]
      %v785 = vld [vmem:[%s1 + $0x3e8] sm:$0xff]
      %v786 = vld [vmem:[%s1 + $0x3f0] sm:$0xff]
      %v787 = vld [vmem:[%s1 + $0x3f8] sm:$0xff]
      %v788 = vld [vmem:[%s1 + $0x400] sm:$0xff]
      %v789 = vld [vmem:[%s1 + $0x408] sm:$0xff]
      %v790 = vld [vmem:[%s1 + $0x410] sm:$0xff]
      %v791 = vld [vmem:[%s1 + $0x418] sm:$0xff]
      %v792 = vld [vmem:[%s1 + $0x420] sm:$0xff]
      %v793 = vld [vmem:[%s1 + $0x428] sm:$0xff]
      %v794 = vld [vmem:[%s1 + $0x430] sm:$0xff]
      %v795 = vld [vmem:[%s1 + $0x438] sm:$0xff]
      %v796 = vld [vmem:[%s1 + $0x440] sm:$0xff]
      %v797 = vld [vmem:[%s1 + $0x448] sm:$0xff]
      %v798 = vld [vmem:[%s1 + $0x450] sm:$0xff]
      %v799 = vld [vmem:[%s1 + $0x458] sm:$0xff]
      %v800 = vld [vmem:[%s1 + $0x460] sm:$0xff]
      %v801 = vld [vmem:[%s1 + $0x468] sm:$0xff]
      %v802 = vld [vmem:[%s1 + $0x470] sm:$0xff]
      %v803 = vld [vmem:[%s1 + $0x478] sm:$0xff]
      %v804 = vld [vmem:[%s1 + $0x480] sm:$0xff]
      %v805 = vld [vmem:[%s1 + $0x488] sm:$0xff]
      %v806 = vld [vmem:[%s1 + $0x490] sm:$0xff]
      %v807 = vld [vmem:[%s1 + $0x498] sm:$0xff]
      %v808 = vld [vmem:[%s1 + $0x4a0] sm:$0xff]
      %v809 = vld [vmem:[%s1 + $0x4a8] sm:$0xff]
      %v810 = vld [vmem:[%s1 + $0x4b0] sm:$0xff]
      %v811 = vld [vmem:[%s1 + $0x4b8] sm:$0xff]
      %v812 = vld [vmem:[%s1 + $0x4c0] sm:$0xff]
      %v813 = vld [vmem:[%s1 + $0x4c8] sm:$0xff]
      %v814 = vld [vmem:[%s1 + $0x4d0] sm:$0xff]
      %v815 = vld [vmem:[%s1 + $0x4d8] sm:$0xff]
      %v816 = vld [vmem:[%s1 + $0x4e0] sm:$0xff]
      %v817 = vld [vmem:[%s1 + $0x4e8] sm:$0xff]
      %v818 = vld [vmem:[%s1 + $0x4f0] sm:$0xff]
      %v819 = vld [vmem:[%s1 + $0x4f8] sm:$0xff]
      %v820 = vld [vmem:[%s1 + $0x500] sm:$0xff]
      %v821 = vld [vmem:[%s1 + $0x508] sm:$0xff]
      %v822 = vld [vmem:[%s1 + $0x510] sm:$0xff]
      %v823 = vld [vmem:[%s1 + $0x518] sm:$0xff]
      %v824 = vld [vmem:[%s1 + $0x520] sm:$0xff]
      %v825 = vld [vmem:[%s1 + $0x528] sm:$0xff]
      %v826 = vld [vmem:[%s1 + $0x530] sm:$0xff]
      %v827 = vld [vmem:[%s1 + $0x538] sm:$0xff]
      %v828 = vld [vmem:[%s1 + $0x540] sm:$0xff]
      %v829 = vld [vmem:[%s1 + $0x548] sm:$0xff]
      %v830 = vld [vmem:[%s1 + $0x550] sm:$0xff]
      %v831 = vld [vmem:[%s1 + $0x558] sm:$0xff]
      %v832 = vld [vmem:[%s1 + $0x560] sm:$0xff]
      %v833 = vld [vmem:[%s1 + $0x568] sm:$0xff]
      %v834 = vld [vmem:[%s1 + $0x570] sm:$0xff]
      %v835 = vld [vmem:[%s1 + $0x578] sm:$0xff]
      %v836 = vld [vmem:[%s1 + $0x580] sm:$0xff]
      %v837 = vld [vmem:[%s1 + $0x588] sm:$0xff]
      %v838 = vld [vmem:[%s1 + $0x590] sm:$0xff]
      %v839 = vld [vmem:[%s1 + $0x598] sm:$0xff]
      %v840 = vld [vmem:[%s1 + $0x5a0] sm:$0xff]
      %v841 = vld [vmem:[%s1 + $0x5a8] sm:$0xff]
      %v842 = vld [vmem:[%s1 + $0x5b0] sm:$0xff]
      %v843 = vld [vmem:[%s1 + $0x5b8] sm:$0xff]
      %v844 = vld [vmem:[%s1 + $0x5c0] sm:$0xff]
      %v845 = vld [vmem:[%s1 + $0x5c8] sm:$0xff]
      %v846 = vld [vmem:[%s1 + $0x5d0] sm:$0xff]
      %v847 = vld [vmem:[%s1 + $0x5d8] sm:$0xff]
      %v848 = vld [vmem:[%s1 + $0x5e0] sm:$0xff]
      %v849 = vld [vmem:[%s1 + $0x5e8] sm:$0xff]
      %v850 = vld [vmem:[%s1 + $0x5f0] sm:$0xff]
      %v851 = vld [vmem:[%s1 + $0x5f8] sm:$0xff]
      %v852 = vld [vmem:[%s1 + $0x600] sm:$0xff]
      %v853 = vld [vmem:[%s1 + $0x608] sm:$0xff]
      %v854 = vld [vmem:[%s1 + $0x610] sm:$0xff]
      %v855 = vld [vmem:[%s1 + $0x618] sm:$0xff]
      %v856 = vld [vmem:[%s1 + $0x620] sm:$0xff]
      %v857 = vld [vmem:[%s1 + $0x628] sm:$0xff]
      %v858 = vld [vmem:[%s1 + $0x630] sm:$0xff]
      %v859 = vld [vmem:[%s1 + $0x638] sm:$0xff]
      %v860 = vld [vmem:[%s1 + $0x640] sm:$0xff]
      %v861 = vld [vmem:[%s1 + $0x648] sm:$0xff]
      %v862 = vld [vmem:[%s1 + $0x650] sm:$0xff]
      %v863 = vld [vmem:[%s1 + $0x658] sm:$0xff]
      %v864 = vld [vmem:[%s1 + $0x660] sm:$0xff]
      %v865 = vld [vmem:[%s1 + $0x668] sm:$0xff]
      %v866 = vld [vmem:[%s1 + $0x670] sm:$0xff]
      %v867 = vld [vmem:[%s1 + $0x678] sm:$0xff]
      %v868 = vld [vmem:[%s1 + $0x680] sm:$0xff]
      %v869 = vld [vmem:[%s1 + $0x688] sm:$0xff]
      %v870 = vld [vmem:[%s1 + $0x690] sm:$0xff]
      %v871 = vld [vmem:[%s1 + $0x698] sm:$0xff]
      %v872 = vld [vmem:[%s1 + $0x6a0] sm:$0xff]
      %v873 = vld [vmem:[%s1 + $0x6a8] sm:$0xff]
      %v874 = vld [vmem:[%s1 + $0x6b0] sm:$0xff]
      %v875 = vld [vmem:[%s1 + $0x6b8] sm:$0xff]
      %v876 = vld [vmem:[%s1 + $0x6c0] sm:$0xff]
      %v877 = vld [vmem:[%s1 + $0x6c8] sm:$0xff]
      %v878 = vld [vmem:[%s1 + $0x6d0] sm:$0xff]
      %v879 = vld [vmem:[%s1 + $0x6d8] sm:$0xff]
      %v880 = vld [vmem:[%s1 + $0x6e0] sm:$0xff]
      %v881 = vld [vmem:[%s1 + $0x6e8] sm:$0xff]
      %v882 = vld [vmem:[%s1 + $0x6f0] sm:$0xff]
      %v883 = vld [vmem:[%s1 + $0x6f8] sm:$0xff]
      %v884 = vld [vmem:[%s1 + $0x700] sm:$0xff]
      %v885 = vld [vmem:[%s1 + $0x708] sm:$0xff]
      %v886 = vld [vmem:[%s1 + $0x710] sm:$0xff]
      %v887 = vld [vmem:[%s1 + $0x718] sm:$0xff]
      %v888 = vld [vmem:[%s1 + $0x720] sm:$0xff]
      %v889 = vld [vmem:[%s1 + $0x728] sm:$0xff]
      %v890 = vld [vmem:[%s1 + $0x730] sm:$0xff]
      %v891 = vld [vmem:[%s1 + $0x738] sm:$0xff]
      %v892 = vld [vmem:[%s1 + $0x740] sm:$0xff]
      %v893 = vld [vmem:[%s1 + $0x748] sm:$0xff]
      %v894 = vld [vmem:[%s1 + $0x750] sm:$0xff]
      %v895 = vld [vmem:[%s1 + $0x758] sm:$0xff]
      %v896 = vld [vmem:[%s1 + $0x760] sm:$0xff]
      %v897 = vld [vmem:[%s1 + $0x768] sm:$0xff]
      %v898 = vld [vmem:[%s1 + $0x770] sm:$0xff]
      %v899 = vld [vmem:[%s1 + $0x778] sm:$0xff]
      %v900 = vld [vmem:[%s1 + $0x780] sm:$0xff]
      %v901 = vld [vmem:[%s1 + $0x788] sm:$0xff]
      %v902 = vld [vmem:[%s1 + $0x790] sm:$0xff]
      %v903 = vld [vmem:[%s1 + $0x798] sm:$0xff]
      %v904 = vld [vmem:[%s1 + $0x7a0] sm:$0xff]
      %v905 = vld [vmem:[%s1 + $0x7a8] sm:$0xff]
      %v906 = vld [vmem:[%s1 + $0x7b0] sm:$0xff]
      %v907 = vld [vmem:[%s1 + $0x7b8] sm:$0xff]
      %v908 = vld [vmem:[%s1 + $0x7c0] sm:$0xff]
      %v909 = vld [vmem:[%s1 + $0x7c8] sm:$0xff]
      %v910 = vld [vmem:[%s1 + $0x7d0] sm:$0xff]
      %v911 = vld [vmem:[%s1 + $0x7d8] sm:$0xff]
      %v912 = vld [vmem:[%s1 + $0x7e0] sm:$0xff]
      %v913 = vld [vmem:[%s1 + $0x7e8] sm:$0xff]
      %v914 = vld [vmem:[%s1 + $0x7f0] sm:$0xff]
      %v915 = vld [vmem:[%s1 + $0x7f8] sm:$0xff]
      %v916 = vld [vmem:[%s1 + $0x800] sm:$0xff]
      %v917 = vld [vmem:[%s1 + $0x808] sm:$0xff]
      %v918 = vld [vmem:[%s1 + $0x810] sm:$0xff]
      %v919 = vld [vmem:[%s1 + $0x818] sm:$0xff]
      %v920 = vld [vmem:[%s1 + $0x820] sm:$0xff]
      %v921 = vld [vmem:[%s1 + $0x828] sm:$0xff]
      %v922 = vld [vmem:[%s1 + $0x830] sm:$0xff]
      %v923 = vld [vmem:[%s1 + $0x838] sm:$0xff]
      %v924 = vld [vmem:[%s1 + $0x840] sm:$0xff]
      %v925 = vld [vmem:[%s1 + $0x848] sm:$0xff]
      %v926 = vld [vmem:[%s1 + $0x850] sm:$0xff]
      %v927 = vld [vmem:[%s1 + $0x858] sm:$0xff]
      %v928 = vld [vmem:[%s1 + $0x860] sm:$0xff]
      %v929 = vld [vmem:[%s1 + $0x868] sm:$0xff]
      %v930 = vld [vmem:[%s1 + $0x870] sm:$0xff]
      %v931 = vld [vmem:[%s1 + $0x878] sm:$0xff]
      %v932 = vld [vmem:[%s1 + $0x880] sm:$0xff]
      %v933 = vld [vmem:[%s1 + $0x888] sm:$0xff]
      %v934 = vld [vmem:[%s1 + $0x890] sm:$0xff]
      %v935 = vld [vmem:[%s1 + $0x898] sm:$0xff]
      %v936 = vld [vmem:[%s1 + $0x8a0] sm:$0xff]
      %v937 = vld [vmem:[%s1 + $0x8a8] sm:$0xff]
      %v938 = vld [vmem:[%s1 + $0x8b0] sm:$0xff]
      %v939 = vld [vmem:[%s1 + $0x8b8] sm:$0xff]
      %v940 = vld [vmem:[%s1 + $0x8c0] sm:$0xff]
      %v941 = vld [vmem:[%s1 + $0x8c8] sm:$0xff]
      %v942 = vld [vmem:[%s1 + $0x8d0] sm:$0xff]
      %v943 = vld [vmem:[%s1 + $0x8d8] sm:$0xff]
      %v944 = vld [vmem:[%s1 + $0x8e0] sm:$0xff]
      %v945 = vld [vmem:[%s1 + $0x8e8] sm:$0xff]
      %v946 = vld [vmem:[%s1 + $0x8f0] sm:$0xff]
      %v947 = vld [vmem:[%s1 + $0x8f8] sm:$0xff]
      %v948 = vld [vmem:[%s2] sm:$0x3]
      %v950 = vlaneseq
      %v951 = vshrl.u32 %v950, 7
      %v952 = vsub.s32 0, %v951
      %v953 = vrot.slane %v948, %v952
      %v954 = vlaneseq
      %v955 = vshrl.u32 %v954, 7
      %v956 = vsub.s32 1, %v955
      %v957 = vrot.slane %v948, %v956
      %v1374 = vunpack.c.l.b16 %v246
      %v1375 = vunpack.c.h.b16 %v246
      %v1376 = vunpack.c.l.b16 %v247
      %v1377 = vunpack.c.h.b16 %v247
      %v1378 = vunpack.c.l.b16 %v248
      %v1379 = vunpack.c.h.b16 %v248
      %v1380 = vunpack.c.l.b16 %v249
      %v1381 = vunpack.c.h.b16 %v249
      %v1382 = vunpack.c.l.b16 %v250
      %v1383 = vunpack.c.h.b16 %v250
      %v1384 = vunpack.c.l.b16 %v251
      %v1385 = vunpack.c.h.b16 %v251
      %v1386 = vunpack.c.l.b16 %v252
      %v1387 = vunpack.c.h.b16 %v252
      %v1388 = vunpack.c.l.b16 %v253
      %v1389 = vunpack.c.h.b16 %v253
      %v1390 = vunpack.c.l.b16 %v254
      %v1391 = vunpack.c.h.b16 %v254
      %v1392 = vunpack.c.l.b16 %v255
      %v1393 = vunpack.c.h.b16 %v255
      %v1394 = vunpack.c.l.b16 %v256
      %v1395 = vunpack.c.h.b16 %v256
      %v1396 = vunpack.c.l.b16 %v257
      %v1397 = vunpack.c.h.b16 %v257
      %v1398 = vunpack.c.l.b16 %v258
      %v1399 = vunpack.c.h.b16 %v258
      %v1400 = vunpack.c.l.b16 %v259
      %v1401 = vunpack.c.h.b16 %v259
      %v1402 = vunpack.c.l.b16 %v260
      %v1403 = vunpack.c.h.b16 %v260
      %v1404 = vunpack.c.l.b16 %v261
      %v1405 = vunpack.c.h.b16 %v261
      %v1406 = vunpack.c.l.b16 %v262
      %v1407 = vunpack.c.h.b16 %v262
      %v1408 = vunpack.c.l.b16 %v263
      %v1409 = vunpack.c.h.b16 %v263
      %v1410 = vunpack.c.l.b16 %v264
      %v1411 = vunpack.c.h.b16 %v264
      %v1412 = vunpack.c.l.b16 %v265
      %v1413 = vunpack.c.h.b16 %v265
      %v1414 = vunpack.c.l.b16 %v266
      %v1415 = vunpack.c.h.b16 %v266
      %v1416 = vunpack.c.l.b16 %v267
      %v1417 = vunpack.c.h.b16 %v267
      %v1418 = vunpack.c.l.b16 %v268
      %v1419 = vunpack.c.h.b16 %v268
      %v1420 = vunpack.c.l.b16 %v269
      %v1421 = vunpack.c.h.b16 %v269
      %v1422 = vunpack.c.l.b16 %v270
      %v1423 = vunpack.c.h.b16 %v270
      %v1424 = vunpack.c.l.b16 %v271
      %v1425 = vunpack.c.h.b16 %v271
      %v1426 = vunpack.c.l.b16 %v272
      %v1427 = vunpack.c.h.b16 %v272
      %v1428 = vunpack.c.l.b16 %v273
      %v1429 = vunpack.c.h.b16 %v273
      %v1430 = vunpack.c.l.b16 %v274
      %v1431 = vunpack.c.h.b16 %v274
      %v1432 = vunpack.c.l.b16 %v275
      %v1433 = vunpack.c.h.b16 %v275
      %v1434 = vunpack.c.l.b16 %v276
      %v1435 = vunpack.c.h.b16 %v276
      %v1436 = vunpack.c.l.b16 %v277
      %v1437 = vunpack.c.h.b16 %v277
      %v1438 = vunpack.c.l.b16 %v278
      %v1439 = vunpack.c.h.b16 %v278
      %v1440 = vunpack.c.l.b16 %v279
      %v1441 = vunpack.c.h.b16 %v279
      %v1442 = vunpack.c.l.b16 %v280
      %v1443 = vunpack.c.h.b16 %v280
      %v1444 = vunpack.c.l.b16 %v281
      %v1445 = vunpack.c.h.b16 %v281
      %v1446 = vunpack.c.l.b16 %v282
      %v1447 = vunpack.c.h.b16 %v282
      %v1448 = vunpack.c.l.b16 %v283
      %v1449 = vunpack.c.h.b16 %v283
      %v1450 = vunpack.c.l.b16 %v284
      %v1451 = vunpack.c.h.b16 %v284
      %v1452 = vunpack.c.l.b16 %v285
      %v1453 = vunpack.c.h.b16 %v285
      %v1454 = vunpack.c.l.b16 %v286
      %v1455 = vunpack.c.h.b16 %v286
      %v1456 = vunpack.c.l.b16 %v287
      %v1457 = vunpack.c.h.b16 %v287
      %v1458 = vunpack.c.l.b16 %v288
      %v1459 = vunpack.c.h.b16 %v288
      %v1460 = vunpack.c.l.b16 %v289
      %v1461 = vunpack.c.h.b16 %v289
      %v1462 = vunpack.c.l.b16 %v290
      %v1463 = vunpack.c.h.b16 %v290
      %v1464 = vunpack.c.l.b16 %v291
      %v1465 = vunpack.c.h.b16 %v291
      %v1466 = vunpack.c.l.b16 %v292
      %v1467 = vunpack.c.h.b16 %v292
      %v1468 = vunpack.c.l.b16 %v293
      %v1469 = vunpack.c.h.b16 %v293
      %v1470 = vunpack.c.l.b16 %v294
      %v1471 = vunpack.c.h.b16 %v294
      %v1472 = vunpack.c.l.b16 %v295
      %v1473 = vunpack.c.h.b16 %v295
      %v1474 = vunpack.c.l.b16 %v296
      %v1475 = vunpack.c.h.b16 %v296
      %v1476 = vunpack.c.l.b16 %v297
      %v1477 = vunpack.c.h.b16 %v297
      %v1478 = vunpack.c.l.b16 %v298
      %v1479 = vunpack.c.h.b16 %v298
      %v1480 = vunpack.c.l.b16 %v299
      %v1481 = vunpack.c.h.b16 %v299
      %v1482 = vunpack.c.l.b16 %v300
      %v1483 = vunpack.c.h.b16 %v300
      %v1484 = vunpack.c.l.b16 %v301
      %v1485 = vunpack.c.h.b16 %v301
      %v1486 = vunpack.c.l.b16 %v302
      %v1487 = vunpack.c.h.b16 %v302
      %v1488 = vunpack.c.l.b16 %v303
      %v1489 = vunpack.c.h.b16 %v303
      %v1490 = vunpack.c.l.b16 %v304
      %v1491 = vunpack.c.h.b16 %v304
      %v1492 = vunpack.c.l.b16 %v305
      %v1493 = vunpack.c.h.b16 %v305
      %v1494 = vunpack.c.l.b16 %v306
      %v1495 = vunpack.c.h.b16 %v306
      %v1496 = vunpack.c.l.b16 %v307
      %v1497 = vunpack.c.h.b16 %v307
      %v1498 = vunpack.c.l.b16 %v308
      %v1499 = vunpack.c.h.b16 %v308
      %v1500 = vunpack.c.l.b16 %v309
      %v1501 = vunpack.c.h.b16 %v309
      %v1502 = vunpack.c.l.b16 %v310
      %v1503 = vunpack.c.h.b16 %v310
      %v1504 = vunpack.c.l.b16 %v311
      %v1505 = vunpack.c.h.b16 %v311
      %v1506 = vunpack.c.l.b16 %v312
      %v1507 = vunpack.c.h.b16 %v312
      %v1508 = vunpack.c.l.b16 %v313
      %v1509 = vunpack.c.h.b16 %v313
      %v1510 = vunpack.c.l.b16 %v314
      %v1511 = vunpack.c.h.b16 %v314
      %v1512 = vunpack.c.l.b16 %v315
      %v1513 = vunpack.c.h.b16 %v315
      %v1514 = vunpack.c.l.b16 %v316
      %v1515 = vunpack.c.h.b16 %v316
      %v1516 = vunpack.c.l.b16 %v317
      %v1517 = vunpack.c.h.b16 %v317
      %v1518 = vunpack.c.l.b16 %v318
      %v1519 = vunpack.c.h.b16 %v318
      %v1520 = vunpack.c.l.b16 %v319
      %v1521 = vunpack.c.h.b16 %v319
      %v1522 = vunpack.c.l.b16 %v320
      %v1523 = vunpack.c.h.b16 %v320
      %v1524 = vunpack.c.l.b16 %v321
      %v1525 = vunpack.c.h.b16 %v321
      %v1526 = vunpack.c.l.b16 %v322
      %v1527 = vunpack.c.h.b16 %v322
      %v1528 = vunpack.c.l.b16 %v323
      %v1529 = vunpack.c.h.b16 %v323
      %v1530 = vunpack.c.l.b16 %v324
      %v1531 = vunpack.c.h.b16 %v324
      %v1532 = vunpack.c.l.b16 %v325
      %v1533 = vunpack.c.h.b16 %v325
      %v1534 = vunpack.c.l.b16 %v326
      %v1535 = vunpack.c.h.b16 %v326
      %v1536 = vunpack.c.l.b16 %v327
      %v1537 = vunpack.c.h.b16 %v327
      %v1538 = vunpack.c.l.b16 %v328
      %v1539 = vunpack.c.h.b16 %v328
      %v1540 = vunpack.c.l.b16 %v329
      %v1541 = vunpack.c.h.b16 %v329
      %v1542 = vunpack.c.l.b16 %v330
      %v1543 = vunpack.c.h.b16 %v330
      %v1544 = vunpack.c.l.b16 %v331
      %v1545 = vunpack.c.h.b16 %v331
      %v1546 = vunpack.c.l.b16 %v332
      %v1547 = vunpack.c.h.b16 %v332
      %v1548 = vunpack.c.l.b16 %v333
      %v1549 = vunpack.c.h.b16 %v333
      %v1550 = vunpack.c.l.b16 %v334
      %v1551 = vunpack.c.h.b16 %v334
      %v1552 = vunpack.c.l.b16 %v335
      %v1553 = vunpack.c.h.b16 %v335
      %v1554 = vunpack.c.l.b16 %v336
      %v1555 = vunpack.c.h.b16 %v336
      %v1556 = vunpack.c.l.b16 %v337
      %v1557 = vunpack.c.h.b16 %v337
      %v1558 = vunpack.c.l.b16 %v338
      %v1559 = vunpack.c.h.b16 %v338
      %v1560 = vunpack.c.l.b16 %v339
      %v1561 = vunpack.c.h.b16 %v339
      %v1562 = vunpack.c.l.b16 %v340
      %v1563 = vunpack.c.h.b16 %v340
      %v1564 = vunpack.c.l.b16 %v341
      %v1565 = vunpack.c.h.b16 %v341
      %v1566 = vunpack.c.l.b16 %v342
      %v1567 = vunpack.c.h.b16 %v342
      %v1568 = vunpack.c.l.b16 %v343
      %v1569 = vunpack.c.h.b16 %v343
      %v1570 = vunpack.c.l.b16 %v344
      %v1571 = vunpack.c.h.b16 %v344
      %v1572 = vunpack.c.l.b16 %v345
      %v1573 = vunpack.c.h.b16 %v345
      %v1574 = vunpack.c.l.b16 %v346
      %v1575 = vunpack.c.h.b16 %v346
      %v1576 = vunpack.c.l.b16 %v347
      %v1577 = vunpack.c.h.b16 %v347
      %v1578 = vunpack.c.l.b16 %v348
      %v1579 = vunpack.c.h.b16 %v348
      %v1580 = vunpack.c.l.b16 %v349
      %v1581 = vunpack.c.h.b16 %v349
      %v1582 = vunpack.c.l.b16 %v350
      %v1583 = vunpack.c.h.b16 %v350
      %v1584 = vunpack.c.l.b16 %v351
      %v1585 = vunpack.c.h.b16 %v351
      %v1586 = vunpack.c.l.b16 %v352
      %v1587 = vunpack.c.h.b16 %v352
      %v1588 = vunpack.c.l.b16 %v353
      %v1589 = vunpack.c.h.b16 %v353
      %v1590 = vunpack.c.l.b16 %v354
      %v1591 = vunpack.c.h.b16 %v354
      %v1592 = vunpack.c.l.b16 %v355
      %v1593 = vunpack.c.h.b16 %v355
      %v1594 = vunpack.c.l.b16 %v356
      %v1595 = vunpack.c.h.b16 %v356
      %v1596 = vunpack.c.l.b16 %v357
      %v1597 = vunpack.c.h.b16 %v357
      %v1598 = vunpack.c.l.b16 %v358
      %v1599 = vunpack.c.h.b16 %v358
      %v1600 = vunpack.c.l.b16 %v359
      %v1601 = vunpack.c.h.b16 %v359
      %v1602 = vunpack.c.l.b16 %v360
      %v1603 = vunpack.c.h.b16 %v360
      %v1604 = vunpack.c.l.b16 %v361
      %v1605 = vunpack.c.h.b16 %v361
      %v1606 = vunpack.c.l.b16 %v362
      %v1607 = vunpack.c.h.b16 %v362
      %v1608 = vunpack.c.l.b16 %v363
      %v1609 = vunpack.c.h.b16 %v363
      %v1610 = vunpack.c.l.b16 %v364
      %v1611 = vunpack.c.h.b16 %v364
      %v1612 = vunpack.c.l.b16 %v365
      %v1613 = vunpack.c.h.b16 %v365
      %v1614 = vunpack.c.l.b16 %v366
      %v1615 = vunpack.c.h.b16 %v366
      %v1616 = vunpack.c.l.b16 %v367
      %v1617 = vunpack.c.h.b16 %v367
      %v1618 = vunpack.c.l.b16 %v368
      %v1619 = vunpack.c.h.b16 %v368
      %v1620 = vunpack.c.l.b16 %v369
      %v1621 = vunpack.c.h.b16 %v369
      %v1622 = vunpack.c.l.b16 %v370
      %v1623 = vunpack.c.h.b16 %v370
      %v1624 = vunpack.c.l.b16 %v371
      %v1625 = vunpack.c.h.b16 %v371
      %v1626 = vunpack.c.l.b16 %v372
      %v1627 = vunpack.c.h.b16 %v372
      %v1628 = vunpack.c.l.b16 %v373
      %v1629 = vunpack.c.h.b16 %v373
      %v1630 = vunpack.c.l.b16 %v374
      %v1631 = vunpack.c.h.b16 %v374
      %v1632 = vunpack.c.l.b16 %v375
      %v1633 = vunpack.c.h.b16 %v375
      %v1634 = vunpack.c.l.b16 %v376
      %v1635 = vunpack.c.h.b16 %v376
      %v1636 = vunpack.c.l.b16 %v377
      %v1637 = vunpack.c.h.b16 %v377
      %v1638 = vunpack.c.l.b16 %v378
      %v1639 = vunpack.c.h.b16 %v378
      %v1640 = vunpack.c.l.b16 %v379
      %v1641 = vunpack.c.h.b16 %v379
      %v1642 = vunpack.c.l.b16 %v380
      %v1643 = vunpack.c.h.b16 %v380
      %v1644 = vunpack.c.l.b16 %v381
      %v1645 = vunpack.c.h.b16 %v381
      %v1646 = vunpack.c.l.b16 %v382
      %v1647 = vunpack.c.h.b16 %v382
      %v1648 = vunpack.c.l.b16 %v383
      %v1649 = vunpack.c.h.b16 %v383
      %v1650 = vunpack.c.l.b16 %v384
      %v1651 = vunpack.c.h.b16 %v384
      %v1652 = vunpack.c.l.b16 %v385
      %v1653 = vunpack.c.h.b16 %v385
      %v1654 = vunpack.c.l.b16 %v386
      %v1655 = vunpack.c.h.b16 %v386
      %v1656 = vunpack.c.l.b16 %v387
      %v1657 = vunpack.c.h.b16 %v387
      %v1658 = vunpack.c.l.b16 %v388
      %v1659 = vunpack.c.h.b16 %v388
      %v1660 = vunpack.c.l.b16 %v389
      %v1661 = vunpack.c.h.b16 %v389
      %v1662 = vunpack.c.l.b16 %v390
      %v1663 = vunpack.c.h.b16 %v390
      %v1664 = vunpack.c.l.b16 %v391
      %v1665 = vunpack.c.h.b16 %v391
      %v1666 = vunpack.c.l.b16 %v392
      %v1667 = vunpack.c.h.b16 %v392
      %v1668 = vunpack.c.l.b16 %v393
      %v1669 = vunpack.c.h.b16 %v393
      %v1670 = vunpack.c.l.b16 %v394
      %v1671 = vunpack.c.h.b16 %v394
      %v1672 = vunpack.c.l.b16 %v395
      %v1673 = vunpack.c.h.b16 %v395
      %v1674 = vunpack.c.l.b16 %v396
      %v1675 = vunpack.c.h.b16 %v396
      %v1676 = vunpack.c.l.b16 %v397
      %v1677 = vunpack.c.h.b16 %v397
      %v1678 = vunpack.c.l.b16 %v398
      %v1679 = vunpack.c.h.b16 %v398
      %v1680 = vunpack.c.l.b16 %v399
      %v1681 = vunpack.c.h.b16 %v399
      %v1682 = vunpack.c.l.b16 %v400
      %v1683 = vunpack.c.h.b16 %v400
      %v1684 = vunpack.c.l.b16 %v401
      %v1685 = vunpack.c.h.b16 %v401
      %v1686 = vunpack.c.l.b16 %v402
      %v1687 = vunpack.c.h.b16 %v402
      %v1688 = vunpack.c.l.b16 %v403
      %v1689 = vunpack.c.h.b16 %v403
      %v1690 = vunpack.c.l.b16 %v404
      %v1691 = vunpack.c.h.b16 %v404
      %v1692 = vunpack.c.l.b16 %v405
      %v1693 = vunpack.c.h.b16 %v405
      %v1694 = vunpack.c.l.b16 %v406
      %v1695 = vunpack.c.h.b16 %v406
      %v1696 = vunpack.c.l.b16 %v407
      %v1697 = vunpack.c.h.b16 %v407
      %v1698 = vunpack.c.l.b16 %v408
      %v1699 = vunpack.c.h.b16 %v408
      %v1700 = vunpack.c.l.b16 %v409
      %v1701 = vunpack.c.h.b16 %v409
      %v1702 = vunpack.c.l.b16 %v410
      %v1703 = vunpack.c.h.b16 %v410
      %v1704 = vunpack.c.l.b16 %v411
      %v1705 = vunpack.c.h.b16 %v411
      %v1706 = vunpack.c.l.b16 %v412
      %v1707 = vunpack.c.h.b16 %v412
      %v1708 = vunpack.c.l.b16 %v413
      %v1709 = vunpack.c.h.b16 %v413
      %v1710 = vunpack.c.l.b16 %v414
      %v1711 = vunpack.c.h.b16 %v414
      %v1712 = vunpack.c.l.b16 %v415
      %v1713 = vunpack.c.h.b16 %v415
      %v1714 = vunpack.c.l.b16 %v416
      %v1715 = vunpack.c.h.b16 %v416
      %v1716 = vunpack.c.l.b16 %v417
      %v1717 = vunpack.c.h.b16 %v417
      %v1718 = vunpack.c.l.b16 %v418
      %v1719 = vunpack.c.h.b16 %v418
      %v1720 = vunpack.c.l.b16 %v419
      %v1721 = vunpack.c.h.b16 %v419
      %v1722 = vunpack.c.l.b16 %v420
      %v1723 = vunpack.c.h.b16 %v420
      %v1724 = vunpack.c.l.b16 %v421
      %v1725 = vunpack.c.h.b16 %v421
      %v1726 = vunpack.c.l.b16 %v422
      %v1727 = vunpack.c.h.b16 %v422
      %v1728 = vunpack.c.l.b16 %v423
      %v1729 = vunpack.c.h.b16 %v423
      %v1730 = vunpack.c.l.b16 %v424
      %v1731 = vunpack.c.h.b16 %v424
      %v1732 = vunpack.c.l.b16 %v425
      %v1733 = vunpack.c.h.b16 %v425
      %v1734 = vunpack.c.l.b16 %v426
      %v1735 = vunpack.c.h.b16 %v426
      %v1736 = vunpack.c.l.b16 %v427
      %v1737 = vunpack.c.h.b16 %v427
      %v1738 = vunpack.c.l.b16 %v428
      %v1739 = vunpack.c.h.b16 %v428
      %v1740 = vunpack.c.l.b16 %v429
      %v1741 = vunpack.c.h.b16 %v429
      %v1742 = vunpack.c.l.b16 %v430
      %v1743 = vunpack.c.h.b16 %v430
      %v1744 = vunpack.c.l.b16 %v431
      %v1745 = vunpack.c.h.b16 %v431
      %v1746 = vunpack.c.l.b16 %v432
      %v1747 = vunpack.c.h.b16 %v432
      %v1748 = vunpack.c.l.b16 %v433
      %v1749 = vunpack.c.h.b16 %v433
      %v1750 = vunpack.c.l.b16 %v434
      %v1751 = vunpack.c.h.b16 %v434
      %v1752 = vunpack.c.l.b16 %v435
      %v1753 = vunpack.c.h.b16 %v435
      %v1754 = vunpack.c.l.b16 %v436
      %v1755 = vunpack.c.h.b16 %v436
      %v1756 = vunpack.c.l.b16 %v437
      %v1757 = vunpack.c.h.b16 %v437
      %v1758 = vunpack.c.l.b16 %v438
      %v1759 = vunpack.c.h.b16 %v438
      %v1760 = vunpack.c.l.b16 %v439
      %v1761 = vunpack.c.h.b16 %v439
      %v1762 = vunpack.c.l.b16 %v440
      %v1763 = vunpack.c.h.b16 %v440
      %v1764 = vunpack.c.l.b16 %v441
      %v1765 = vunpack.c.h.b16 %v441
      %v1766 = vunpack.c.l.b16 %v442
      %v1767 = vunpack.c.h.b16 %v442
      %v1768 = vunpack.c.l.b16 %v443
      %v1769 = vunpack.c.h.b16 %v443
      %v1770 = vunpack.c.l.b16 %v444
      %v1771 = vunpack.c.h.b16 %v444
      %v1772 = vunpack.c.l.b16 %v445
      %v1773 = vunpack.c.h.b16 %v445
      %v1774 = vunpack.c.l.b16 %v446
      %v1775 = vunpack.c.h.b16 %v446
      %v1776 = vunpack.c.l.b16 %v447
      %v1777 = vunpack.c.h.b16 %v447
      %v1778 = vunpack.c.l.b16 %v448
      %v1779 = vunpack.c.h.b16 %v448
      %v1780 = vunpack.c.l.b16 %v449
      %v1781 = vunpack.c.h.b16 %v449
      %v1782 = vunpack.c.l.b16 %v450
      %v1783 = vunpack.c.h.b16 %v450
      %v1784 = vunpack.c.l.b16 %v451
      %v1785 = vunpack.c.h.b16 %v451
      %v1786 = vunpack.c.l.b16 %v452
      %v1787 = vunpack.c.h.b16 %v452
      %v1788 = vunpack.c.l.b16 %v453
      %v1789 = vunpack.c.h.b16 %v453
      %v1790 = vunpack.c.l.b16 %v454
      %v1791 = vunpack.c.h.b16 %v454
      %v1792 = vunpack.c.l.b16 %v455
      %v1793 = vunpack.c.h.b16 %v455
      %v1794 = vunpack.c.l.b16 %v456
      %v1795 = vunpack.c.h.b16 %v456
      %v1796 = vunpack.c.l.b16 %v457
      %v1797 = vunpack.c.h.b16 %v457
      %v1798 = vunpack.c.l.b16 %v458
      %v1799 = vunpack.c.h.b16 %v458
      %v1800 = vunpack.c.l.b16 %v459
      %v1801 = vunpack.c.h.b16 %v459
      %v1802 = vunpack.c.l.b16 %v460
      %v1803 = vunpack.c.h.b16 %v460
      %v1804 = vunpack.c.l.b16 %v461
      %v1805 = vunpack.c.h.b16 %v461
      %v1806 = vunpack.c.l.b16 %v462
      %v1807 = vunpack.c.h.b16 %v462
      %v1808 = vunpack.c.l.b16 %v463
      %v1809 = vunpack.c.h.b16 %v463
      %v1810 = vunpack.c.l.b16 %v464
      %v1811 = vunpack.c.h.b16 %v464
      %v1812 = vunpack.c.l.b16 %v465
      %v1813 = vunpack.c.h.b16 %v465
      %v1814 = vunpack.c.l.b16 %v466
      %v1815 = vunpack.c.h.b16 %v466
      %v1816 = vunpack.c.l.b16 %v467
      %v1817 = vunpack.c.h.b16 %v467
      %v1818 = vunpack.c.l.b16 %v468
      %v1819 = vunpack.c.h.b16 %v468
      %v1820 = vunpack.c.l.b16 %v469
      %v1821 = vunpack.c.h.b16 %v469
      %v1822 = vunpack.c.l.b16 %v470
      %v1823 = vunpack.c.h.b16 %v470
      %v1824 = vunpack.c.l.b16 %v471
      %v1825 = vunpack.c.h.b16 %v471
      %v1826 = vunpack.c.l.b16 %v472
      %v1827 = vunpack.c.h.b16 %v472
      %v1828 = vunpack.c.l.b16 %v473
      %v1829 = vunpack.c.h.b16 %v473
      %v1830 = vunpack.c.l.b16 %v474
      %v1831 = vunpack.c.h.b16 %v474
      %v1832 = vunpack.c.l.b16 %v475
      %v1833 = vunpack.c.h.b16 %v475
      %v1834 = vunpack.c.l.b16 %v476
      %v1835 = vunpack.c.h.b16 %v476
      %v1836 = vunpack.c.l.b16 %v477
      %v1837 = vunpack.c.h.b16 %v477
      %v1838 = vunpack.c.l.b16 %v478
      %v1839 = vunpack.c.h.b16 %v478
      %v1840 = vunpack.c.l.b16 %v479
      %v1841 = vunpack.c.h.b16 %v479
      %v1842 = vunpack.c.l.b16 %v480
      %v1843 = vunpack.c.h.b16 %v480
      %v1844 = vunpack.c.l.b16 %v481
      %v1845 = vunpack.c.h.b16 %v481
      %v1846 = vunpack.c.l.b16 %v482
      %v1847 = vunpack.c.h.b16 %v482
      %v1848 = vunpack.c.l.b16 %v483
      %v1849 = vunpack.c.h.b16 %v483
      %v1850 = vunpack.c.l.b16 %v484
      %v1851 = vunpack.c.h.b16 %v484
      %v1852 = vunpack.c.l.b16 %v485
      %v1853 = vunpack.c.h.b16 %v485
      %v1854 = vunpack.c.l.b16 %v486
      %v1855 = vunpack.c.h.b16 %v486
      %v1856 = vunpack.c.l.b16 %v487
      %v1857 = vunpack.c.h.b16 %v487
      %v1858 = vunpack.c.l.b16 %v488
      %v1859 = vunpack.c.h.b16 %v488
      %v1860 = vunpack.c.l.b16 %v489
      %v1861 = vunpack.c.h.b16 %v489
      %v1862 = vunpack.c.l.b16 %v490
      %v1863 = vunpack.c.h.b16 %v490
      %v1864 = vunpack.c.l.b16 %v491
      %v1865 = vunpack.c.h.b16 %v491
      %v1866 = vunpack.c.l.b16 %v492
      %v1867 = vunpack.c.h.b16 %v492
      %v1868 = vunpack.c.l.b16 %v493
      %v1869 = vunpack.c.h.b16 %v493
      %v1870 = vunpack.c.l.b16 %v494
      %v1871 = vunpack.c.h.b16 %v494
      %v1872 = vunpack.c.l.b16 %v495
      %v1873 = vunpack.c.h.b16 %v495
      %v1874 = vunpack.c.l.b16 %v496
      %v1875 = vunpack.c.h.b16 %v496
      %v1876 = vunpack.c.l.b16 %v497
      %v1877 = vunpack.c.h.b16 %v497
      %v1878 = vunpack.c.l.b16 %v498
      %v1879 = vunpack.c.h.b16 %v498
      %v1880 = vunpack.c.l.b16 %v499
      %v1881 = vunpack.c.h.b16 %v499
      %v1882 = vunpack.c.l.b16 %v500
      %v1883 = vunpack.c.h.b16 %v500
      %v1884 = vunpack.c.l.b16 %v501
      %v1885 = vunpack.c.h.b16 %v501
      %v1886 = vunpack.c.l.b16 %v502
      %v1887 = vunpack.c.h.b16 %v502
      %v1888 = vunpack.c.l.b16 %v503
      %v1889 = vunpack.c.h.b16 %v503
      %v1890 = vunpack.c.l.b16 %v504
      %v1891 = vunpack.c.h.b16 %v504
      %v1892 = vunpack.c.l.b16 %v505
      %v1893 = vunpack.c.h.b16 %v505
      %v1894 = vunpack.c.l.b16 %v506
      %v1895 = vunpack.c.h.b16 %v506
      %v1896 = vunpack.c.l.b16 %v507
      %v1897 = vunpack.c.h.b16 %v507
      %v1898 = vunpack.c.l.b16 %v508
      %v1899 = vunpack.c.h.b16 %v508
      %v1900 = vunpack.c.l.b16 %v509
      %v1901 = vunpack.c.h.b16 %v509
      %v1902 = vunpack.c.l.b16 %v510
      %v1903 = vunpack.c.h.b16 %v510
      %v1904 = vunpack.c.l.b16 %v511
      %v1905 = vunpack.c.h.b16 %v511
      %v1906 = vunpack.c.l.b16 %v512
      %v1907 = vunpack.c.h.b16 %v512
      %v1908 = vunpack.c.l.b16 %v513
      %v1909 = vunpack.c.h.b16 %v513
      %v1910 = vunpack.c.l.b16 %v514
      %v1911 = vunpack.c.h.b16 %v514
      %v1912 = vunpack.c.l.b16 %v515
      %v1913 = vunpack.c.h.b16 %v515
      %v1914 = vunpack.c.l.b16 %v516
      %v1915 = vunpack.c.h.b16 %v516
      %v1916 = vunpack.c.l.b16 %v517
      %v1917 = vunpack.c.h.b16 %v517
      %v1918 = vunpack.c.l.b16 %v518
      %v1919 = vunpack.c.h.b16 %v518
      %v1920 = vunpack.c.l.b16 %v519
      %v1921 = vunpack.c.h.b16 %v519
      %v1922 = vunpack.c.l.b16 %v520
      %v1923 = vunpack.c.h.b16 %v520
      %v1924 = vunpack.c.l.b16 %v521
      %v1925 = vunpack.c.h.b16 %v521
      %v1926 = vunpack.c.l.b16 %v522
      %v1927 = vunpack.c.h.b16 %v522
      %v1928 = vunpack.c.l.b16 %v523
      %v1929 = vunpack.c.h.b16 %v523
      %v1930 = vunpack.c.l.b16 %v524
      %v1931 = vunpack.c.h.b16 %v524
      %v1932 = vunpack.c.l.b16 %v525
      %v1933 = vunpack.c.h.b16 %v525
      %v1934 = vunpack.c.l.b16 %v526
      %v1935 = vunpack.c.h.b16 %v526
      %v1936 = vunpack.c.l.b16 %v527
      %v1937 = vunpack.c.h.b16 %v527
      %v1938 = vunpack.c.l.b16 %v528
      %v1939 = vunpack.c.h.b16 %v528
      %v1940 = vunpack.c.l.b16 %v529
      %v1941 = vunpack.c.h.b16 %v529
      %v1942 = vunpack.c.l.b16 %v530
      %v1943 = vunpack.c.h.b16 %v530
      %v1944 = vunpack.c.l.b16 %v531
      %v1945 = vunpack.c.h.b16 %v531
      %v1946 = vunpack.c.l.b16 %v532
      %v1947 = vunpack.c.h.b16 %v532
      %v1948 = vunpack.c.l.b16 %v533
      %v1949 = vunpack.c.h.b16 %v533
      %v1950 = vunpack.c.l.b16 %v534
      %v1951 = vunpack.c.h.b16 %v534
      %v1952 = vunpack.c.l.b16 %v535
      %v1953 = vunpack.c.h.b16 %v535
      %v1954 = vunpack.c.l.b16 %v536
      %v1955 = vunpack.c.h.b16 %v536
      %v1956 = vunpack.c.l.b16 %v537
      %v1957 = vunpack.c.h.b16 %v537
      %v1958 = vunpack.c.l.b16 %v538
      %v1959 = vunpack.c.h.b16 %v538
      %v1960 = vunpack.c.l.b16 %v539
      %v1961 = vunpack.c.h.b16 %v539
      %v1962 = vunpack.c.l.b16 %v540
      %v1963 = vunpack.c.h.b16 %v540
      %v1964 = vunpack.c.l.b16 %v541
      %v1965 = vunpack.c.h.b16 %v541
      %v1966 = vunpack.c.l.b16 %v542
      %v1967 = vunpack.c.h.b16 %v542
      %v1968 = vunpack.c.l.b16 %v543
      %v1969 = vunpack.c.h.b16 %v543
      %v1970 = vunpack.c.l.b16 %v544
      %v1971 = vunpack.c.h.b16 %v544
      %v1972 = vunpack.c.l.b16 %v545
      %v1973 = vunpack.c.h.b16 %v545
      %v1974 = vunpack.c.l.b16 %v546
      %v1975 = vunpack.c.h.b16 %v546
      %v1976 = vunpack.c.l.b16 %v547
      %v1977 = vunpack.c.h.b16 %v547
      %v1978 = vunpack.c.l.b16 %v548
      %v1979 = vunpack.c.h.b16 %v548
      %v1980 = vunpack.c.l.b16 %v549
      %v1981 = vunpack.c.h.b16 %v549
      %v1982 = vunpack.c.l.b16 %v550
      %v1983 = vunpack.c.h.b16 %v550
      %v1984 = vunpack.c.l.b16 %v551
      %v1985 = vunpack.c.h.b16 %v551
      %v1986 = vunpack.c.l.b16 %v552
      %v1987 = vunpack.c.h.b16 %v552
      %v1988 = vunpack.c.l.b16 %v553
      %v1989 = vunpack.c.h.b16 %v553
      %v1990 = vunpack.c.l.b16 %v554
      %v1991 = vunpack.c.h.b16 %v554
      %v1992 = vunpack.c.l.b16 %v555
      %v1993 = vunpack.c.h.b16 %v555
      %v1994 = vunpack.c.l.b16 %v556
      %v1995 = vunpack.c.h.b16 %v556
      %v1996 = vunpack.c.l.b16 %v557
      %v1997 = vunpack.c.h.b16 %v557
      %v1998 = vunpack.c.l.b16 %v558
      %v1999 = vunpack.c.h.b16 %v558
      %v2000 = vunpack.c.l.b16 %v559
      %v2001 = vunpack.c.h.b16 %v559
      %v2002 = vunpack.c.l.b16 %v560
      %v2003 = vunpack.c.h.b16 %v560
      %v2004 = vunpack.c.l.b16 %v561
      %v2005 = vunpack.c.h.b16 %v561
      %v2006 = vunpack.c.l.b16 %v562
      %v2007 = vunpack.c.h.b16 %v562
      %v2008 = vunpack.c.l.b16 %v563
      %v2009 = vunpack.c.h.b16 %v563
      %v2010 = vunpack.c.l.b16 %v564
      %v2011 = vunpack.c.h.b16 %v564
      %v2012 = vunpack.c.l.b16 %v565
      %v2013 = vunpack.c.h.b16 %v565
      %v2014 = vunpack.c.l.b16 %v566
      %v2015 = vunpack.c.h.b16 %v566
      %v2016 = vunpack.c.l.b16 %v567
      %v2017 = vunpack.c.h.b16 %v567
      %v2018 = vunpack.c.l.b16 %v568
      %v2019 = vunpack.c.h.b16 %v568
      %v2020 = vunpack.c.l.b16 %v569
      %v2021 = vunpack.c.h.b16 %v569
      %v2022 = vunpack.c.l.b16 %v570
      %v2023 = vunpack.c.h.b16 %v570
      %v2024 = vunpack.c.l.b16 %v571
      %v2025 = vunpack.c.h.b16 %v571
      %v2026 = vunpack.c.l.b16 %v572
      %v2027 = vunpack.c.h.b16 %v572
      %v2028 = vunpack.c.l.b16 %v573
      %v2029 = vunpack.c.h.b16 %v573
      %v2030 = vunpack.c.l.b16 %v574
      %v2031 = vunpack.c.h.b16 %v574
      %v2032 = vunpack.c.l.b16 %v575
      %v2033 = vunpack.c.h.b16 %v575
      %v2034 = vunpack.c.l.b16 %v576
      %v2035 = vunpack.c.h.b16 %v576
      %v2036 = vunpack.c.l.b16 %v577
      %v2037 = vunpack.c.h.b16 %v577
      %v2038 = vunpack.c.l.b16 %v578
      %v2039 = vunpack.c.h.b16 %v578
      %v2040 = vunpack.c.l.b16 %v579
      %v2041 = vunpack.c.h.b16 %v579
      %v2042 = vunpack.c.l.b16 %v580
      %v2043 = vunpack.c.h.b16 %v580
      %v2044 = vunpack.c.l.b16 %v581
      %v2045 = vunpack.c.h.b16 %v581
      %v2046 = vunpack.c.l.b16 %v582
      %v2047 = vunpack.c.h.b16 %v582
      %v2048 = vunpack.c.l.b16 %v583
      %v2049 = vunpack.c.h.b16 %v583
      %v2050 = vunpack.c.l.b16 %v584
      %v2051 = vunpack.c.h.b16 %v584
      %v2052 = vunpack.c.l.b16 %v585
      %v2053 = vunpack.c.h.b16 %v585
      %v2054 = vunpack.c.l.b16 %v586
      %v2055 = vunpack.c.h.b16 %v586
      %v2056 = vunpack.c.l.b16 %v587
      %v2057 = vunpack.c.h.b16 %v587
      %v2058 = vunpack.c.l.b16 %v588
      %v2059 = vunpack.c.h.b16 %v588
      %v2060 = vunpack.c.l.b16 %v589
      %v2061 = vunpack.c.h.b16 %v589
      %v2062 = vunpack.c.l.b16 %v590
      %v2063 = vunpack.c.h.b16 %v590
      %v2064 = vunpack.c.l.b16 %v591
      %v2065 = vunpack.c.h.b16 %v591
      %v2066 = vunpack.c.l.b16 %v592
      %v2067 = vunpack.c.h.b16 %v592
      %v2068 = vunpack.c.l.b16 %v593
      %v2069 = vunpack.c.h.b16 %v593
      %v2070 = vunpack.c.l.b16 %v594
      %v2071 = vunpack.c.h.b16 %v594
      %v2072 = vunpack.c.l.b16 %v595
      %v2073 = vunpack.c.h.b16 %v595
      %v2074 = vunpack.c.l.b16 %v596
      %v2075 = vunpack.c.h.b16 %v596
      %v2076 = vunpack.c.l.b16 %v597
      %v2077 = vunpack.c.h.b16 %v597
      %v2078 = vunpack.c.l.b16 %v598
      %v2079 = vunpack.c.h.b16 %v598
      %v2080 = vunpack.c.l.b16 %v599
      %v2081 = vunpack.c.h.b16 %v599
      %v2082 = vunpack.c.l.b16 %v600
      %v2083 = vunpack.c.h.b16 %v600
      %v2084 = vunpack.c.l.b16 %v601
      %v2085 = vunpack.c.h.b16 %v601
      %v2086 = vunpack.c.l.b16 %v602
      %v2087 = vunpack.c.h.b16 %v602
      %v2088 = vunpack.c.l.b16 %v603
      %v2089 = vunpack.c.h.b16 %v603
      %v2090 = vunpack.c.l.b16 %v604
      %v2091 = vunpack.c.h.b16 %v604
      %v2092 = vunpack.c.l.b16 %v605
      %v2093 = vunpack.c.h.b16 %v605
      %v2094 = vunpack.c.l.b16 %v606
      %v2095 = vunpack.c.h.b16 %v606
      %v2096 = vunpack.c.l.b16 %v607
      %v2097 = vunpack.c.h.b16 %v607
      %v2098 = vunpack.c.l.b16 %v608
      %v2099 = vunpack.c.h.b16 %v608
      %v2100 = vunpack.c.l.b16 %v609
      %v2101 = vunpack.c.h.b16 %v609
      %v2102 = vunpack.c.l.b16 %v610
      %v2103 = vunpack.c.h.b16 %v610
      %v2104 = vunpack.c.l.b16 %v611
      %v2105 = vunpack.c.h.b16 %v611
      %v2106 = vunpack.c.l.b16 %v612
      %v2107 = vunpack.c.h.b16 %v612
      %v2108 = vunpack.c.l.b16 %v613
      %v2109 = vunpack.c.h.b16 %v613
      %v2110 = vunpack.c.l.b16 %v614
      %v2111 = vunpack.c.h.b16 %v614
      %v2112 = vunpack.c.l.b16 %v615
      %v2113 = vunpack.c.h.b16 %v615
      %v2114 = vunpack.c.l.b16 %v616
      %v2115 = vunpack.c.h.b16 %v616
      %v2116 = vunpack.c.l.b16 %v617
      %v2117 = vunpack.c.h.b16 %v617
      %v2118 = vunpack.c.l.b16 %v618
      %v2119 = vunpack.c.h.b16 %v618
      %v2120 = vunpack.c.l.b16 %v619
      %v2121 = vunpack.c.h.b16 %v619
      %v2122 = vunpack.c.l.b16 %v620
      %v2123 = vunpack.c.h.b16 %v620
      %v2124 = vunpack.c.l.b16 %v621
      %v2125 = vunpack.c.h.b16 %v621
      %v2126 = vunpack.c.l.b16 %v622
      %v2127 = vunpack.c.h.b16 %v622
      %v2128 = vunpack.c.l.b16 %v623
      %v2129 = vunpack.c.h.b16 %v623
      %v2130 = vunpack.c.l.b16 %v624
      %v2131 = vunpack.c.h.b16 %v624
      %v2132 = vunpack.c.l.b16 %v625
      %v2133 = vunpack.c.h.b16 %v625
      %v2134 = vunpack.c.l.b16 %v626
      %v2135 = vunpack.c.h.b16 %v626
      %v2136 = vunpack.c.l.b16 %v627
      %v2137 = vunpack.c.h.b16 %v627
      %v2138 = vunpack.c.l.b16 %v628
      %v2139 = vunpack.c.h.b16 %v628
      %v2140 = vunpack.c.l.b16 %v629
      %v2141 = vunpack.c.h.b16 %v629
      %v2142 = vunpack.c.l.b16 %v630
      %v2143 = vunpack.c.h.b16 %v630
      %v2144 = vunpack.c.l.b16 %v631
      %v2145 = vunpack.c.h.b16 %v631
      %v2146 = vunpack.c.l.b16 %v632
      %v2147 = vunpack.c.h.b16 %v632
      %v2148 = vunpack.c.l.b16 %v633
      %v2149 = vunpack.c.h.b16 %v633
      %v2150 = vunpack.c.l.b16 %v634
      %v2151 = vunpack.c.h.b16 %v634
      %v2152 = vunpack.c.l.b16 %v635
      %v2153 = vunpack.c.h.b16 %v635
      %v2154 = vunpack.c.l.b16 %v636
      %v2155 = vunpack.c.h.b16 %v636
      %v2156 = vunpack.c.l.b16 %v637
      %v2157 = vunpack.c.h.b16 %v637
      %v2158 = vunpack.c.l.b16 %v638
      %v2159 = vunpack.c.h.b16 %v638
      %v2160 = vunpack.c.l.b16 %v639
      %v2161 = vunpack.c.h.b16 %v639
      %v2162 = vunpack.c.l.b16 %v640
      %v2163 = vunpack.c.h.b16 %v640
      %v2164 = vunpack.c.l.b16 %v641
      %v2165 = vunpack.c.h.b16 %v641
      %v2166 = vunpack.c.l.b16 %v642
      %v2167 = vunpack.c.h.b16 %v642
      %v2168 = vunpack.c.l.b16 %v643
      %v2169 = vunpack.c.h.b16 %v643
      %v2170 = vunpack.c.l.b16 %v644
      %v2171 = vunpack.c.h.b16 %v644
      %v2172 = vunpack.c.l.b16 %v645
      %v2173 = vunpack.c.h.b16 %v645
      %v2174 = vunpack.c.l.b16 %v646
      %v2175 = vunpack.c.h.b16 %v646
      %v2176 = vunpack.c.l.b16 %v647
      %v2177 = vunpack.c.h.b16 %v647
      %v2178 = vunpack.c.l.b16 %v648
      %v2179 = vunpack.c.h.b16 %v648
      %v2180 = vunpack.c.l.b16 %v649
      %v2181 = vunpack.c.h.b16 %v649
      %v2182 = vunpack.c.l.b16 %v650
      %v2183 = vunpack.c.h.b16 %v650
      %v2184 = vunpack.c.l.b16 %v651
      %v2185 = vunpack.c.h.b16 %v651
      %v2186 = vunpack.c.l.b16 %v652
      %v2187 = vunpack.c.h.b16 %v652
      %v2188 = vunpack.c.l.b16 %v653
      %v2189 = vunpack.c.h.b16 %v653
      %v2190 = vunpack.c.l.b16 %v654
      %v2191 = vunpack.c.h.b16 %v654
      %v2192 = vunpack.c.l.b16 %v655
      %v2193 = vunpack.c.h.b16 %v655
      %v2194 = vunpack.c.l.b16 %v656
      %v2195 = vunpack.c.h.b16 %v656
      %v2196 = vunpack.c.l.b16 %v657
      %v2197 = vunpack.c.h.b16 %v657
      %v2198 = vunpack.c.l.b16 %v658
      %v2199 = vunpack.c.h.b16 %v658
      %v2200 = vunpack.c.l.b16 %v659
      %v2201 = vunpack.c.h.b16 %v659
      %v2202 = vpack.c.b16 %v1392, %v1374
      %v2203 = vpack.c.b16 %v1393, %v1375
      %v2204 = vpack.c.b16 %v1394, %v1376
      %v2205 = vpack.c.b16 %v1395, %v1377
      %v2206 = vpack.c.b16 %v1396, %v1378
      %v2207 = vpack.c.b16 %v1397, %v1379
      %v2208 = vpack.c.b16 %v1398, %v1380
      %v2209 = vpack.c.b16 %v1399, %v1381
      %v2210 = vpack.c.b16 %v1400, %v1382
      %v2211 = vpack.c.b16 %v1401, %v1383
      %v2212 = vpack.c.b16 %v1402, %v1384
      %v2213 = vpack.c.b16 %v1403, %v1385
      %v2214 = vpack.c.b16 %v1404, %v1386
      %v2215 = vpack.c.b16 %v1405, %v1387
      %v2216 = vpack.c.b16 %v1406, %v1388
      %v2217 = vpack.c.b16 %v1407, %v1389
      %v2218 = vpack.c.b16 %v1408, %v1390
      %v2219 = vpack.c.b16 %v1409, %v1391
      %v2220 = vpack.c.b16 %v1428, %v1410
      %v2221 = vpack.c.b16 %v1429, %v1411
      %v2222 = vpack.c.b16 %v1430, %v1412
      %v2223 = vpack.c.b16 %v1431, %v1413
      %v2224 = vpack.c.b16 %v1432, %v1414
      %v2225 = vpack.c.b16 %v1433, %v1415
      %v2226 = vpack.c.b16 %v1434, %v1416
      %v2227 = vpack.c.b16 %v1435, %v1417
      %v2228 = vpack.c.b16 %v1436, %v1418
      %v2229 = vpack.c.b16 %v1437, %v1419
      %v2230 = vpack.c.b16 %v1438, %v1420
      %v2231 = vpack.c.b16 %v1439, %v1421
      %v2232 = vpack.c.b16 %v1440, %v1422
      %v2233 = vpack.c.b16 %v1441, %v1423
      %v2234 = vpack.c.b16 %v1442, %v1424
      %v2235 = vpack.c.b16 %v1443, %v1425
      %v2236 = vpack.c.b16 %v1444, %v1426
      %v2237 = vpack.c.b16 %v1445, %v1427
      %v2238 = vpack.c.b16 %v1464, %v1446
      %v2239 = vpack.c.b16 %v1465, %v1447
      %v2240 = vpack.c.b16 %v1466, %v1448
      %v2241 = vpack.c.b16 %v1467, %v1449
      %v2242 = vpack.c.b16 %v1468, %v1450
      %v2243 = vpack.c.b16 %v1469, %v1451
      %v2244 = vpack.c.b16 %v1470, %v1452
      %v2245 = vpack.c.b16 %v1471, %v1453
      %v2246 = vpack.c.b16 %v1472, %v1454
      %v2247 = vpack.c.b16 %v1473, %v1455
      %v2248 = vpack.c.b16 %v1474, %v1456
      %v2249 = vpack.c.b16 %v1475, %v1457
      %v2250 = vpack.c.b16 %v1476, %v1458
      %v2251 = vpack.c.b16 %v1477, %v1459
      %v2252 = vpack.c.b16 %v1478, %v1460
      %v2253 = vpack.c.b16 %v1479, %v1461
      %v2254 = vpack.c.b16 %v1480, %v1462
      %v2255 = vpack.c.b16 %v1481, %v1463
      %v2256 = vpack.c.b16 %v1500, %v1482
      %v2257 = vpack.c.b16 %v1501, %v1483
      %v2258 = vpack.c.b16 %v1502, %v1484
      %v2259 = vpack.c.b16 %v1503, %v1485
      %v2260 = vpack.c.b16 %v1504, %v1486
      %v2261 = vpack.c.b16 %v1505, %v1487
      %v2262 = vpack.c.b16 %v1506, %v1488
      %v2263 = vpack.c.b16 %v1507, %v1489
      %v2264 = vpack.c.b16 %v1508, %v1490
      %v2265 = vpack.c.b16 %v1509, %v1491
      %v2266 = vpack.c.b16 %v1510, %v1492
      %v2267 = vpack.c.b16 %v1511, %v1493
      %v2268 = vpack.c.b16 %v1512, %v1494
      %v2269 = vpack.c.b16 %v1513, %v1495
      %v2270 = vpack.c.b16 %v1514, %v1496
      %v2271 = vpack.c.b16 %v1515, %v1497
      %v2272 = vpack.c.b16 %v1516, %v1498
      %v2273 = vpack.c.b16 %v1517, %v1499
      %v2274 = vpack.c.b16 %v1536, %v1518
      %v2275 = vpack.c.b16 %v1537, %v1519
      %v2276 = vpack.c.b16 %v1538, %v1520
      %v2277 = vpack.c.b16 %v1539, %v1521
      %v2278 = vpack.c.b16 %v1540, %v1522
      %v2279 = vpack.c.b16 %v1541, %v1523
      %v2280 = vpack.c.b16 %v1542, %v1524
      %v2281 = vpack.c.b16 %v1543, %v1525
      %v2282 = vpack.c.b16 %v1544, %v1526
      %v2283 = vpack.c.b16 %v1545, %v1527
      %v2284 = vpack.c.b16 %v1546, %v1528
      %v2285 = vpack.c.b16 %v1547, %v1529
      %v2286 = vpack.c.b16 %v1548, %v1530
      %v2287 = vpack.c.b16 %v1549, %v1531
      %v2288 = vpack.c.b16 %v1550, %v1532
      %v2289 = vpack.c.b16 %v1551, %v1533
      %v2290 = vpack.c.b16 %v1552, %v1534
      %v2291 = vpack.c.b16 %v1553, %v1535
      %v2292 = vpack.c.b16 %v1572, %v1554
      %v2293 = vpack.c.b16 %v1573, %v1555
      %v2294 = vpack.c.b16 %v1574, %v1556
      %v2295 = vpack.c.b16 %v1575, %v1557
      %v2296 = vpack.c.b16 %v1576, %v1558
      %v2297 = vpack.c.b16 %v1577, %v1559
      %v2298 = vpack.c.b16 %v1578, %v1560
      %v2299 = vpack.c.b16 %v1579, %v1561
      %v2300 = vpack.c.b16 %v1580, %v1562
      %v2301 = vpack.c.b16 %v1581, %v1563
      %v2302 = vpack.c.b16 %v1582, %v1564
      %v2303 = vpack.c.b16 %v1583, %v1565
      %v2304 = vpack.c.b16 %v1584, %v1566
      %v2305 = vpack.c.b16 %v1585, %v1567
      %v2306 = vpack.c.b16 %v1586, %v1568
      %v2307 = vpack.c.b16 %v1587, %v1569
      %v2308 = vpack.c.b16 %v1588, %v1570
      %v2309 = vpack.c.b16 %v1589, %v1571
      %v2310 = vpack.c.b16 %v1608, %v1590
      %v2311 = vpack.c.b16 %v1609, %v1591
      %v2312 = vpack.c.b16 %v1610, %v1592
      %v2313 = vpack.c.b16 %v1611, %v1593
      %v2314 = vpack.c.b16 %v1612, %v1594
      %v2315 = vpack.c.b16 %v1613, %v1595
      %v2316 = vpack.c.b16 %v1614, %v1596
      %v2317 = vpack.c.b16 %v1615, %v1597
      %v2318 = vpack.c.b16 %v1616, %v1598
      %v2319 = vpack.c.b16 %v1617, %v1599
      %v2320 = vpack.c.b16 %v1618, %v1600
      %v2321 = vpack.c.b16 %v1619, %v1601
      %v2322 = vpack.c.b16 %v1620, %v1602
      %v2323 = vpack.c.b16 %v1621, %v1603
      %v2324 = vpack.c.b16 %v1622, %v1604
      %v2325 = vpack.c.b16 %v1623, %v1605
      %v2326 = vpack.c.b16 %v1624, %v1606
      %v2327 = vpack.c.b16 %v1625, %v1607
      %v2328 = vpack.c.b16 %v1644, %v1626
      %v2329 = vpack.c.b16 %v1645, %v1627
      %v2330 = vpack.c.b16 %v1646, %v1628
      %v2331 = vpack.c.b16 %v1647, %v1629
      %v2332 = vpack.c.b16 %v1648, %v1630
      %v2333 = vpack.c.b16 %v1649, %v1631
      %v2334 = vpack.c.b16 %v1650, %v1632
      %v2335 = vpack.c.b16 %v1651, %v1633
      %v2336 = vpack.c.b16 %v1652, %v1634
      %v2337 = vpack.c.b16 %v1653, %v1635
      %v2338 = vpack.c.b16 %v1654, %v1636
      %v2339 = vpack.c.b16 %v1655, %v1637
      %v2340 = vpack.c.b16 %v1656, %v1638
      %v2341 = vpack.c.b16 %v1657, %v1639
      %v2342 = vpack.c.b16 %v1658, %v1640
      %v2343 = vpack.c.b16 %v1659, %v1641
      %v2344 = vpack.c.b16 %v1660, %v1642
      %v2345 = vpack.c.b16 %v1661, %v1643
      %v2346 = vpack.c.b16 %v1680, %v1662
      %v2347 = vpack.c.b16 %v1681, %v1663
      %v2348 = vpack.c.b16 %v1682, %v1664
      %v2349 = vpack.c.b16 %v1683, %v1665
      %v2350 = vpack.c.b16 %v1684, %v1666
      %v2351 = vpack.c.b16 %v1685, %v1667
      %v2352 = vpack.c.b16 %v1686, %v1668
      %v2353 = vpack.c.b16 %v1687, %v1669
      %v2354 = vpack.c.b16 %v1688, %v1670
      %v2355 = vpack.c.b16 %v1689, %v1671
      %v2356 = vpack.c.b16 %v1690, %v1672
      %v2357 = vpack.c.b16 %v1691, %v1673
      %v2358 = vpack.c.b16 %v1692, %v1674
      %v2359 = vpack.c.b16 %v1693, %v1675
      %v2360 = vpack.c.b16 %v1694, %v1676
      %v2361 = vpack.c.b16 %v1695, %v1677
      %v2362 = vpack.c.b16 %v1696, %v1678
      %v2363 = vpack.c.b16 %v1697, %v1679
      %v2364 = vpack.c.b16 %v1716, %v1698
      %v2365 = vpack.c.b16 %v1717, %v1699
      %v2366 = vpack.c.b16 %v1718, %v1700
      %v2367 = vpack.c.b16 %v1719, %v1701
      %v2368 = vpack.c.b16 %v1720, %v1702
      %v2369 = vpack.c.b16 %v1721, %v1703
      %v2370 = vpack.c.b16 %v1722, %v1704
      %v2371 = vpack.c.b16 %v1723, %v1705
      %v2372 = vpack.c.b16 %v1724, %v1706
      %v2373 = vpack.c.b16 %v1725, %v1707
      %v2374 = vpack.c.b16 %v1726, %v1708
      %v2375 = vpack.c.b16 %v1727, %v1709
      %v2376 = vpack.c.b16 %v1728, %v1710
      %v2377 = vpack.c.b16 %v1729, %v1711
      %v2378 = vpack.c.b16 %v1730, %v1712
      %v2379 = vpack.c.b16 %v1731, %v1713
      %v2380 = vpack.c.b16 %v1732, %v1714
      %v2381 = vpack.c.b16 %v1733, %v1715
      %v2382 = vpack.c.b16 %v1752, %v1734
      %v2383 = vpack.c.b16 %v1753, %v1735
      %v2384 = vpack.c.b16 %v1754, %v1736
      %v2385 = vpack.c.b16 %v1755, %v1737
      %v2386 = vpack.c.b16 %v1756, %v1738
      %v2387 = vpack.c.b16 %v1757, %v1739
      %v2388 = vpack.c.b16 %v1758, %v1740
      %v2389 = vpack.c.b16 %v1759, %v1741
      %v2390 = vpack.c.b16 %v1760, %v1742
      %v2391 = vpack.c.b16 %v1761, %v1743
      %v2392 = vpack.c.b16 %v1762, %v1744
      %v2393 = vpack.c.b16 %v1763, %v1745
      %v2394 = vpack.c.b16 %v1764, %v1746
      %v2395 = vpack.c.b16 %v1765, %v1747
      %v2396 = vpack.c.b16 %v1766, %v1748
      %v2397 = vpack.c.b16 %v1767, %v1749
      %v2398 = vpack.c.b16 %v1768, %v1750
      %v2399 = vpack.c.b16 %v1769, %v1751
      %v2400 = vpack.c.b16 %v1788, %v1770
      %v2401 = vpack.c.b16 %v1789, %v1771
      %v2402 = vpack.c.b16 %v1790, %v1772
      %v2403 = vpack.c.b16 %v1791, %v1773
      %v2404 = vpack.c.b16 %v1792, %v1774
      %v2405 = vpack.c.b16 %v1793, %v1775
      %v2406 = vpack.c.b16 %v1794, %v1776
      %v2407 = vpack.c.b16 %v1795, %v1777
      %v2408 = vpack.c.b16 %v1796, %v1778
      %v2409 = vpack.c.b16 %v1797, %v1779
      %v2410 = vpack.c.b16 %v1798, %v1780
      %v2411 = vpack.c.b16 %v1799, %v1781
      %v2412 = vpack.c.b16 %v1800, %v1782
      %v2413 = vpack.c.b16 %v1801, %v1783
      %v2414 = vpack.c.b16 %v1802, %v1784
      %v2415 = vpack.c.b16 %v1803, %v1785
      %v2416 = vpack.c.b16 %v1804, %v1786
      %v2417 = vpack.c.b16 %v1805, %v1787
      %v2418 = vpack.c.b16 %v1824, %v1806
      %v2419 = vpack.c.b16 %v1825, %v1807
      %v2420 = vpack.c.b16 %v1826, %v1808
      %v2421 = vpack.c.b16 %v1827, %v1809
      %v2422 = vpack.c.b16 %v1828, %v1810
      %v2423 = vpack.c.b16 %v1829, %v1811
      %v2424 = vpack.c.b16 %v1830, %v1812
      %v2425 = vpack.c.b16 %v1831, %v1813
      %v2426 = vpack.c.b16 %v1832, %v1814
      %v2427 = vpack.c.b16 %v1833, %v1815
      %v2428 = vpack.c.b16 %v1834, %v1816
      %v2429 = vpack.c.b16 %v1835, %v1817
      %v2430 = vpack.c.b16 %v1836, %v1818
      %v2431 = vpack.c.b16 %v1837, %v1819
      %v2432 = vpack.c.b16 %v1838, %v1820
      %v2433 = vpack.c.b16 %v1839, %v1821
      %v2434 = vpack.c.b16 %v1840, %v1822
      %v2435 = vpack.c.b16 %v1841, %v1823
      %v2436 = vpack.c.b16 %v1860, %v1842
      %v2437 = vpack.c.b16 %v1861, %v1843
      %v2438 = vpack.c.b16 %v1862, %v1844
      %v2439 = vpack.c.b16 %v1863, %v1845
      %v2440 = vpack.c.b16 %v1864, %v1846
      %v2441 = vpack.c.b16 %v1865, %v1847
      %v2442 = vpack.c.b16 %v1866, %v1848
      %v2443 = vpack.c.b16 %v1867, %v1849
      %v2444 = vpack.c.b16 %v1868, %v1850
      %v2445 = vpack.c.b16 %v1869, %v1851
      %v2446 = vpack.c.b16 %v1870, %v1852
      %v2447 = vpack.c.b16 %v1871, %v1853
      %v2448 = vpack.c.b16 %v1872, %v1854
      %v2449 = vpack.c.b16 %v1873, %v1855
      %v2450 = vpack.c.b16 %v1874, %v1856
      %v2451 = vpack.c.b16 %v1875, %v1857
      %v2452 = vpack.c.b16 %v1876, %v1858
      %v2453 = vpack.c.b16 %v1877, %v1859
      %v2454 = vpack.c.b16 %v1896, %v1878
      %v2455 = vpack.c.b16 %v1897, %v1879
      %v2456 = vpack.c.b16 %v1898, %v1880
      %v2457 = vpack.c.b16 %v1899, %v1881
      %v2458 = vpack.c.b16 %v1900, %v1882
      %v2459 = vpack.c.b16 %v1901, %v1883
      %v2460 = vpack.c.b16 %v1902, %v1884
      %v2461 = vpack.c.b16 %v1903, %v1885
      %v2462 = vpack.c.b16 %v1904, %v1886
      %v2463 = vpack.c.b16 %v1905, %v1887
      %v2464 = vpack.c.b16 %v1906, %v1888
      %v2465 = vpack.c.b16 %v1907, %v1889
      %v2466 = vpack.c.b16 %v1908, %v1890
      %v2467 = vpack.c.b16 %v1909, %v1891
      %v2468 = vpack.c.b16 %v1910, %v1892
      %v2469 = vpack.c.b16 %v1911, %v1893
      %v2470 = vpack.c.b16 %v1912, %v1894
      %v2471 = vpack.c.b16 %v1913, %v1895
      %v2472 = vpack.c.b16 %v1932, %v1914
      %v2473 = vpack.c.b16 %v1933, %v1915
      %v2474 = vpack.c.b16 %v1934, %v1916
      %v2475 = vpack.c.b16 %v1935, %v1917
      %v2476 = vpack.c.b16 %v1936, %v1918
      %v2477 = vpack.c.b16 %v1937, %v1919
      %v2478 = vpack.c.b16 %v1938, %v1920
      %v2479 = vpack.c.b16 %v1939, %v1921
      %v2480 = vpack.c.b16 %v1940, %v1922
      %v2481 = vpack.c.b16 %v1941, %v1923
      %v2482 = vpack.c.b16 %v1942, %v1924
      %v2483 = vpack.c.b16 %v1943, %v1925
      %v2484 = vpack.c.b16 %v1944, %v1926
      %v2485 = vpack.c.b16 %v1945, %v1927
      %v2486 = vpack.c.b16 %v1946, %v1928
      %v2487 = vpack.c.b16 %v1947, %v1929
      %v2488 = vpack.c.b16 %v1948, %v1930
      %v2489 = vpack.c.b16 %v1949, %v1931
      %v2490 = vpack.c.b16 %v1968, %v1950
      %v2491 = vpack.c.b16 %v1969, %v1951
      %v2492 = vpack.c.b16 %v1970, %v1952
      %v2493 = vpack.c.b16 %v1971, %v1953
      %v2494 = vpack.c.b16 %v1972, %v1954
      %v2495 = vpack.c.b16 %v1973, %v1955
      %v2496 = vpack.c.b16 %v1974, %v1956
      %v2497 = vpack.c.b16 %v1975, %v1957
      %v2498 = vpack.c.b16 %v1976, %v1958
      %v2499 = vpack.c.b16 %v1977, %v1959
      %v2500 = vpack.c.b16 %v1978, %v1960
      %v2501 = vpack.c.b16 %v1979, %v1961
      %v2502 = vpack.c.b16 %v1980, %v1962
      %v2503 = vpack.c.b16 %v1981, %v1963
      %v2504 = vpack.c.b16 %v1982, %v1964
      %v2505 = vpack.c.b16 %v1983, %v1965
      %v2506 = vpack.c.b16 %v1984, %v1966
      %v2507 = vpack.c.b16 %v1985, %v1967
      %v2508 = vpack.c.b16 %v2004, %v1986
      %v2509 = vpack.c.b16 %v2005, %v1987
      %v2510 = vpack.c.b16 %v2006, %v1988
      %v2511 = vpack.c.b16 %v2007, %v1989
      %v2512 = vpack.c.b16 %v2008, %v1990
      %v2513 = vpack.c.b16 %v2009, %v1991
      %v2514 = vpack.c.b16 %v2010, %v1992
      %v2515 = vpack.c.b16 %v2011, %v1993
      %v2516 = vpack.c.b16 %v2012, %v1994
      %v2517 = vpack.c.b16 %v2013, %v1995
      %v2518 = vpack.c.b16 %v2014, %v1996
      %v2519 = vpack.c.b16 %v2015, %v1997
      %v2520 = vpack.c.b16 %v2016, %v1998
      %v2521 = vpack.c.b16 %v2017, %v1999
      %v2522 = vpack.c.b16 %v2018, %v2000
      %v2523 = vpack.c.b16 %v2019, %v2001
      %v2524 = vpack.c.b16 %v2020, %v2002
      %v2525 = vpack.c.b16 %v2021, %v2003
      %v2526 = vpack.c.b16 %v2040, %v2022
      %v2527 = vpack.c.b16 %v2041, %v2023
      %v2528 = vpack.c.b16 %v2042, %v2024
      %v2529 = vpack.c.b16 %v2043, %v2025
      %v2530 = vpack.c.b16 %v2044, %v2026
      %v2531 = vpack.c.b16 %v2045, %v2027
      %v2532 = vpack.c.b16 %v2046, %v2028
      %v2533 = vpack.c.b16 %v2047, %v2029
      %v2534 = vpack.c.b16 %v2048, %v2030
      %v2535 = vpack.c.b16 %v2049, %v2031
      %v2536 = vpack.c.b16 %v2050, %v2032
      %v2537 = vpack.c.b16 %v2051, %v2033
      %v2538 = vpack.c.b16 %v2052, %v2034
      %v2539 = vpack.c.b16 %v2053, %v2035
      %v2540 = vpack.c.b16 %v2054, %v2036
      %v2541 = vpack.c.b16 %v2055, %v2037
      %v2542 = vpack.c.b16 %v2056, %v2038
      %v2543 = vpack.c.b16 %v2057, %v2039
      %v2544 = vpack.c.b16 %v2076, %v2058
      %v2545 = vpack.c.b16 %v2077, %v2059
      %v2546 = vpack.c.b16 %v2078, %v2060
      %v2547 = vpack.c.b16 %v2079, %v2061
      %v2548 = vpack.c.b16 %v2080, %v2062
      %v2549 = vpack.c.b16 %v2081, %v2063
      %v2550 = vpack.c.b16 %v2082, %v2064
      %v2551 = vpack.c.b16 %v2083, %v2065
      %v2552 = vpack.c.b16 %v2084, %v2066
      %v2553 = vpack.c.b16 %v2085, %v2067
      %v2554 = vpack.c.b16 %v2086, %v2068
      %v2555 = vpack.c.b16 %v2087, %v2069
      %v2556 = vpack.c.b16 %v2088, %v2070
      %v2557 = vpack.c.b16 %v2089, %v2071
      %v2558 = vpack.c.b16 %v2090, %v2072
      %v2559 = vpack.c.b16 %v2091, %v2073
      %v2560 = vpack.c.b16 %v2092, %v2074
      %v2561 = vpack.c.b16 %v2093, %v2075
      %v2562 = vpack.c.b16 %v2112, %v2094
      %v2563 = vpack.c.b16 %v2113, %v2095
      %v2564 = vpack.c.b16 %v2114, %v2096
      %v2565 = vpack.c.b16 %v2115, %v2097
      %v2566 = vpack.c.b16 %v2116, %v2098
      %v2567 = vpack.c.b16 %v2117, %v2099
      %v2568 = vpack.c.b16 %v2118, %v2100
      %v2569 = vpack.c.b16 %v2119, %v2101
      %v2570 = vpack.c.b16 %v2120, %v2102
      %v2571 = vpack.c.b16 %v2121, %v2103
      %v2572 = vpack.c.b16 %v2122, %v2104
      %v2573 = vpack.c.b16 %v2123, %v2105
      %v2574 = vpack.c.b16 %v2124, %v2106
      %v2575 = vpack.c.b16 %v2125, %v2107
      %v2576 = vpack.c.b16 %v2126, %v2108
      %v2577 = vpack.c.b16 %v2127, %v2109
      %v2578 = vpack.c.b16 %v2128, %v2110
      %v2579 = vpack.c.b16 %v2129, %v2111
      %v2580 = vpack.c.b16 %v2148, %v2130
      %v2581 = vpack.c.b16 %v2149, %v2131
      %v2582 = vpack.c.b16 %v2150, %v2132
      %v2583 = vpack.c.b16 %v2151, %v2133
      %v2584 = vpack.c.b16 %v2152, %v2134
      %v2585 = vpack.c.b16 %v2153, %v2135
      %v2586 = vpack.c.b16 %v2154, %v2136
      %v2587 = vpack.c.b16 %v2155, %v2137
      %v2588 = vpack.c.b16 %v2156, %v2138
      %v2589 = vpack.c.b16 %v2157, %v2139
      %v2590 = vpack.c.b16 %v2158, %v2140
      %v2591 = vpack.c.b16 %v2159, %v2141
      %v2592 = vpack.c.b16 %v2160, %v2142
      %v2593 = vpack.c.b16 %v2161, %v2143
      %v2594 = vpack.c.b16 %v2162, %v2144
      %v2595 = vpack.c.b16 %v2163, %v2145
      %v2596 = vpack.c.b16 %v2164, %v2146
      %v2597 = vpack.c.b16 %v2165, %v2147
      %v2598 = vpack.c.b16 %v2184, %v2166
      %v2599 = vpack.c.b16 %v2185, %v2167
      %v2600 = vpack.c.b16 %v2186, %v2168
      %v2601 = vpack.c.b16 %v2187, %v2169
      %v2602 = vpack.c.b16 %v2188, %v2170
      %v2603 = vpack.c.b16 %v2189, %v2171
      %v2604 = vpack.c.b16 %v2190, %v2172
      %v2605 = vpack.c.b16 %v2191, %v2173
      %v2606 = vpack.c.b16 %v2192, %v2174
      %v2607 = vpack.c.b16 %v2193, %v2175
      %v2608 = vpack.c.b16 %v2194, %v2176
      %v2609 = vpack.c.b16 %v2195, %v2177
      %v2610 = vpack.c.b16 %v2196, %v2178
      %v2611 = vpack.c.b16 %v2197, %v2179
      %v2612 = vpack.c.b16 %v2198, %v2180
      %v2613 = vpack.c.b16 %v2199, %v2181
      %v2614 = vpack.c.b16 %v2200, %v2182
      %v2615 = vpack.c.b16 %v2201, %v2183
      %v3318 = vunpack.c.l.b16 %v660
      %v3319 = vunpack.c.h.b16 %v660
      %v3320 = vunpack.c.l.b16 %v661
      %v3321 = vunpack.c.h.b16 %v661
      %v3322 = vunpack.c.l.b16 %v662
      %v3323 = vunpack.c.h.b16 %v662
      %v3324 = vunpack.c.l.b16 %v663
      %v3325 = vunpack.c.h.b16 %v663
      %v3326 = vunpack.c.l.b16 %v664
      %v3327 = vunpack.c.h.b16 %v664
      %v3328 = vunpack.c.l.b16 %v665
      %v3329 = vunpack.c.h.b16 %v665
      %v3330 = vunpack.c.l.b16 %v666
      %v3331 = vunpack.c.h.b16 %v666
      %v3332 = vunpack.c.l.b16 %v667
      %v3333 = vunpack.c.h.b16 %v667
      %v3334 = vunpack.c.l.b16 %v668
      %v3335 = vunpack.c.h.b16 %v668
      %v3336 = vunpack.c.l.b16 %v669
      %v3337 = vunpack.c.h.b16 %v669
      %v3338 = vunpack.c.l.b16 %v670
      %v3339 = vunpack.c.h.b16 %v670
      %v3340 = vunpack.c.l.b16 %v671
      %v3341 = vunpack.c.h.b16 %v671
      %v3342 = vunpack.c.l.b16 %v672
      %v3343 = vunpack.c.h.b16 %v672
      %v3344 = vunpack.c.l.b16 %v673
      %v3345 = vunpack.c.h.b16 %v673
      %v3346 = vunpack.c.l.b16 %v674
      %v3347 = vunpack.c.h.b16 %v674
      %v3348 = vunpack.c.l.b16 %v675
      %v3349 = vunpack.c.h.b16 %v675
      %v3350 = vunpack.c.l.b16 %v676
      %v3351 = vunpack.c.h.b16 %v676
      %v3352 = vunpack.c.l.b16 %v677
      %v3353 = vunpack.c.h.b16 %v677
      %v3354 = vunpack.c.l.b16 %v678
      %v3355 = vunpack.c.h.b16 %v678
      %v3356 = vunpack.c.l.b16 %v679
      %v3357 = vunpack.c.h.b16 %v679
      %v3358 = vunpack.c.l.b16 %v680
      %v3359 = vunpack.c.h.b16 %v680
      %v3360 = vunpack.c.l.b16 %v681
      %v3361 = vunpack.c.h.b16 %v681
      %v3362 = vunpack.c.l.b16 %v682
      %v3363 = vunpack.c.h.b16 %v682
      %v3364 = vunpack.c.l.b16 %v683
      %v3365 = vunpack.c.h.b16 %v683
      %v3366 = vunpack.c.l.b16 %v684
      %v3367 = vunpack.c.h.b16 %v684
      %v3368 = vunpack.c.l.b16 %v685
      %v3369 = vunpack.c.h.b16 %v685
      %v3370 = vunpack.c.l.b16 %v686
      %v3371 = vunpack.c.h.b16 %v686
      %v3372 = vunpack.c.l.b16 %v687
      %v3373 = vunpack.c.h.b16 %v687
      %v3374 = vunpack.c.l.b16 %v688
      %v3375 = vunpack.c.h.b16 %v688
      %v3376 = vunpack.c.l.b16 %v689
      %v3377 = vunpack.c.h.b16 %v689
      %v3378 = vunpack.c.l.b16 %v690
      %v3379 = vunpack.c.h.b16 %v690
      %v3380 = vunpack.c.l.b16 %v691
      %v3381 = vunpack.c.h.b16 %v691
      %v3382 = vunpack.c.l.b16 %v692
      %v3383 = vunpack.c.h.b16 %v692
      %v3384 = vunpack.c.l.b16 %v693
      %v3385 = vunpack.c.h.b16 %v693
      %v3386 = vunpack.c.l.b16 %v694
      %v3387 = vunpack.c.h.b16 %v694
      %v3388 = vunpack.c.l.b16 %v695
      %v3389 = vunpack.c.h.b16 %v695
      %v3390 = vunpack.c.l.b16 %v696
      %v3391 = vunpack.c.h.b16 %v696
      %v3392 = vunpack.c.l.b16 %v697
      %v3393 = vunpack.c.h.b16 %v697
      %v3394 = vunpack.c.l.b16 %v698
      %v3395 = vunpack.c.h.b16 %v698
      %v3396 = vunpack.c.l.b16 %v699
      %v3397 = vunpack.c.h.b16 %v699
      %v3398 = vunpack.c.l.b16 %v700
      %v3399 = vunpack.c.h.b16 %v700
      %v3400 = vunpack.c.l.b16 %v701
      %v3401 = vunpack.c.h.b16 %v701
      %v3402 = vunpack.c.l.b16 %v702
      %v3403 = vunpack.c.h.b16 %v702
      %v3404 = vunpack.c.l.b16 %v703
      %v3405 = vunpack.c.h.b16 %v703
      %v3406 = vunpack.c.l.b16 %v704
      %v3407 = vunpack.c.h.b16 %v704
      %v3408 = vunpack.c.l.b16 %v705
      %v3409 = vunpack.c.h.b16 %v705
      %v3410 = vunpack.c.l.b16 %v706
      %v3411 = vunpack.c.h.b16 %v706
      %v3412 = vunpack.c.l.b16 %v707
      %v3413 = vunpack.c.h.b16 %v707
      %v3414 = vunpack.c.l.b16 %v708
      %v3415 = vunpack.c.h.b16 %v708
      %v3416 = vunpack.c.l.b16 %v709
      %v3417 = vunpack.c.h.b16 %v709
      %v3418 = vunpack.c.l.b16 %v710
      %v3419 = vunpack.c.h.b16 %v710
      %v3420 = vunpack.c.l.b16 %v711
      %v3421 = vunpack.c.h.b16 %v711
      %v3422 = vunpack.c.l.b16 %v712
      %v3423 = vunpack.c.h.b16 %v712
      %v3424 = vunpack.c.l.b16 %v713
      %v3425 = vunpack.c.h.b16 %v713
      %v3426 = vunpack.c.l.b16 %v714
      %v3427 = vunpack.c.h.b16 %v714
      %v3428 = vunpack.c.l.b16 %v715
      %v3429 = vunpack.c.h.b16 %v715
      %v3430 = vunpack.c.l.b16 %v716
      %v3431 = vunpack.c.h.b16 %v716
      %v3432 = vunpack.c.l.b16 %v717
      %v3433 = vunpack.c.h.b16 %v717
      %v3434 = vunpack.c.l.b16 %v718
      %v3435 = vunpack.c.h.b16 %v718
      %v3436 = vunpack.c.l.b16 %v719
      %v3437 = vunpack.c.h.b16 %v719
      %v3438 = vunpack.c.l.b16 %v720
      %v3439 = vunpack.c.h.b16 %v720
      %v3440 = vunpack.c.l.b16 %v721
      %v3441 = vunpack.c.h.b16 %v721
      %v3442 = vunpack.c.l.b16 %v722
      %v3443 = vunpack.c.h.b16 %v722
      %v3444 = vunpack.c.l.b16 %v723
      %v3445 = vunpack.c.h.b16 %v723
      %v3446 = vunpack.c.l.b16 %v724
      %v3447 = vunpack.c.h.b16 %v724
      %v3448 = vunpack.c.l.b16 %v725
      %v3449 = vunpack.c.h.b16 %v725
      %v3450 = vunpack.c.l.b16 %v726
      %v3451 = vunpack.c.h.b16 %v726
      %v3452 = vunpack.c.l.b16 %v727
      %v3453 = vunpack.c.h.b16 %v727
      %v3454 = vunpack.c.l.b16 %v728
      %v3455 = vunpack.c.h.b16 %v728
      %v3456 = vunpack.c.l.b16 %v729
      %v3457 = vunpack.c.h.b16 %v729
      %v3458 = vunpack.c.l.b16 %v730
      %v3459 = vunpack.c.h.b16 %v730
      %v3460 = vunpack.c.l.b16 %v731
      %v3461 = vunpack.c.h.b16 %v731
      %v3462 = vunpack.c.l.b16 %v732
      %v3463 = vunpack.c.h.b16 %v732
      %v3464 = vunpack.c.l.b16 %v733
      %v3465 = vunpack.c.h.b16 %v733
      %v3466 = vunpack.c.l.b16 %v734
      %v3467 = vunpack.c.h.b16 %v734
      %v3468 = vunpack.c.l.b16 %v735
      %v3469 = vunpack.c.h.b16 %v735
      %v3470 = vunpack.c.l.b16 %v736
      %v3471 = vunpack.c.h.b16 %v736
      %v3472 = vunpack.c.l.b16 %v737
      %v3473 = vunpack.c.h.b16 %v737
      %v3474 = vunpack.c.l.b16 %v738
      %v3475 = vunpack.c.h.b16 %v738
      %v3476 = vunpack.c.l.b16 %v739
      %v3477 = vunpack.c.h.b16 %v739
      %v3478 = vunpack.c.l.b16 %v740
      %v3479 = vunpack.c.h.b16 %v740
      %v3480 = vunpack.c.l.b16 %v741
      %v3481 = vunpack.c.h.b16 %v741
      %v3482 = vunpack.c.l.b16 %v742
      %v3483 = vunpack.c.h.b16 %v742
      %v3484 = vunpack.c.l.b16 %v743
      %v3485 = vunpack.c.h.b16 %v743
      %v3486 = vunpack.c.l.b16 %v744
      %v3487 = vunpack.c.h.b16 %v744
      %v3488 = vunpack.c.l.b16 %v745
      %v3489 = vunpack.c.h.b16 %v745
      %v3490 = vunpack.c.l.b16 %v746
      %v3491 = vunpack.c.h.b16 %v746
      %v3492 = vunpack.c.l.b16 %v747
      %v3493 = vunpack.c.h.b16 %v747
      %v3494 = vunpack.c.l.b16 %v748
      %v3495 = vunpack.c.h.b16 %v748
      %v3496 = vunpack.c.l.b16 %v749
      %v3497 = vunpack.c.h.b16 %v749
      %v3498 = vunpack.c.l.b16 %v750
      %v3499 = vunpack.c.h.b16 %v750
      %v3500 = vunpack.c.l.b16 %v751
      %v3501 = vunpack.c.h.b16 %v751
      %v3502 = vunpack.c.l.b16 %v752
      %v3503 = vunpack.c.h.b16 %v752
      %v3504 = vunpack.c.l.b16 %v753
      %v3505 = vunpack.c.h.b16 %v753
      %v3506 = vunpack.c.l.b16 %v754
      %v3507 = vunpack.c.h.b16 %v754
      %v3508 = vunpack.c.l.b16 %v755
      %v3509 = vunpack.c.h.b16 %v755
      %v3510 = vunpack.c.l.b16 %v756
      %v3511 = vunpack.c.h.b16 %v756
      %v3512 = vunpack.c.l.b16 %v757
      %v3513 = vunpack.c.h.b16 %v757
      %v3514 = vunpack.c.l.b16 %v758
      %v3515 = vunpack.c.h.b16 %v758
      %v3516 = vunpack.c.l.b16 %v759
      %v3517 = vunpack.c.h.b16 %v759
      %v3518 = vunpack.c.l.b16 %v760
      %v3519 = vunpack.c.h.b16 %v760
      %v3520 = vunpack.c.l.b16 %v761
      %v3521 = vunpack.c.h.b16 %v761
      %v3522 = vunpack.c.l.b16 %v762
      %v3523 = vunpack.c.h.b16 %v762
      %v3524 = vunpack.c.l.b16 %v763
      %v3525 = vunpack.c.h.b16 %v763
      %v3526 = vunpack.c.l.b16 %v764
      %v3527 = vunpack.c.h.b16 %v764
      %v3528 = vunpack.c.l.b16 %v765
      %v3529 = vunpack.c.h.b16 %v765
      %v3530 = vunpack.c.l.b16 %v766
      %v3531 = vunpack.c.h.b16 %v766
      %v3532 = vunpack.c.l.b16 %v767
      %v3533 = vunpack.c.h.b16 %v767
      %v3534 = vunpack.c.l.b16 %v768
      %v3535 = vunpack.c.h.b16 %v768
      %v3536 = vunpack.c.l.b16 %v769
      %v3537 = vunpack.c.h.b16 %v769
      %v3538 = vunpack.c.l.b16 %v770
      %v3539 = vunpack.c.h.b16 %v770
      %v3540 = vunpack.c.l.b16 %v771
      %v3541 = vunpack.c.h.b16 %v771
      %v3542 = vunpack.c.l.b16 %v772
      %v3543 = vunpack.c.h.b16 %v772
      %v3544 = vunpack.c.l.b16 %v773
      %v3545 = vunpack.c.h.b16 %v773
      %v3546 = vunpack.c.l.b16 %v774
      %v3547 = vunpack.c.h.b16 %v774
      %v3548 = vunpack.c.l.b16 %v775
      %v3549 = vunpack.c.h.b16 %v775
      %v3550 = vunpack.c.l.b16 %v776
      %v3551 = vunpack.c.h.b16 %v776
      %v3552 = vunpack.c.l.b16 %v777
      %v3553 = vunpack.c.h.b16 %v777
      %v3554 = vunpack.c.l.b16 %v778
      %v3555 = vunpack.c.h.b16 %v778
      %v3556 = vunpack.c.l.b16 %v779
      %v3557 = vunpack.c.h.b16 %v779
      %v3558 = vunpack.c.l.b16 %v780
      %v3559 = vunpack.c.h.b16 %v780
      %v3560 = vunpack.c.l.b16 %v781
      %v3561 = vunpack.c.h.b16 %v781
      %v3562 = vunpack.c.l.b16 %v782
      %v3563 = vunpack.c.h.b16 %v782
      %v3564 = vunpack.c.l.b16 %v783
      %v3565 = vunpack.c.h.b16 %v783
      %v3566 = vunpack.c.l.b16 %v784
      %v3567 = vunpack.c.h.b16 %v784
      %v3568 = vunpack.c.l.b16 %v785
      %v3569 = vunpack.c.h.b16 %v785
      %v3570 = vunpack.c.l.b16 %v786
      %v3571 = vunpack.c.h.b16 %v786
      %v3572 = vunpack.c.l.b16 %v787
      %v3573 = vunpack.c.h.b16 %v787
      %v3574 = vunpack.c.l.b16 %v788
      %v3575 = vunpack.c.h.b16 %v788
      %v3576 = vunpack.c.l.b16 %v789
      %v3577 = vunpack.c.h.b16 %v789
      %v3578 = vunpack.c.l.b16 %v790
      %v3579 = vunpack.c.h.b16 %v790
      %v3580 = vunpack.c.l.b16 %v791
      %v3581 = vunpack.c.h.b16 %v791
      %v3582 = vunpack.c.l.b16 %v792
      %v3583 = vunpack.c.h.b16 %v792
      %v3584 = vunpack.c.l.b16 %v793
      %v3585 = vunpack.c.h.b16 %v793
      %v3586 = vunpack.c.l.b16 %v794
      %v3587 = vunpack.c.h.b16 %v794
      %v3588 = vunpack.c.l.b16 %v795
      %v3589 = vunpack.c.h.b16 %v795
      %v3590 = vunpack.c.l.b16 %v796
      %v3591 = vunpack.c.h.b16 %v796
      %v3592 = vunpack.c.l.b16 %v797
      %v3593 = vunpack.c.h.b16 %v797
      %v3594 = vunpack.c.l.b16 %v798
      %v3595 = vunpack.c.h.b16 %v798
      %v3596 = vunpack.c.l.b16 %v799
      %v3597 = vunpack.c.h.b16 %v799
      %v3598 = vunpack.c.l.b16 %v800
      %v3599 = vunpack.c.h.b16 %v800
      %v3600 = vunpack.c.l.b16 %v801
      %v3601 = vunpack.c.h.b16 %v801
      %v3602 = vunpack.c.l.b16 %v802
      %v3603 = vunpack.c.h.b16 %v802
      %v3604 = vunpack.c.l.b16 %v803
      %v3605 = vunpack.c.h.b16 %v803
      %v3606 = vunpack.c.l.b16 %v804
      %v3607 = vunpack.c.h.b16 %v804
      %v3608 = vunpack.c.l.b16 %v805
      %v3609 = vunpack.c.h.b16 %v805
      %v3610 = vunpack.c.l.b16 %v806
      %v3611 = vunpack.c.h.b16 %v806
      %v3612 = vunpack.c.l.b16 %v807
      %v3613 = vunpack.c.h.b16 %v807
      %v3614 = vunpack.c.l.b16 %v808
      %v3615 = vunpack.c.h.b16 %v808
      %v3616 = vunpack.c.l.b16 %v809
      %v3617 = vunpack.c.h.b16 %v809
      %v3618 = vunpack.c.l.b16 %v810
      %v3619 = vunpack.c.h.b16 %v810
      %v3620 = vunpack.c.l.b16 %v811
      %v3621 = vunpack.c.h.b16 %v811
      %v3622 = vunpack.c.l.b16 %v812
      %v3623 = vunpack.c.h.b16 %v812
      %v3624 = vunpack.c.l.b16 %v813
      %v3625 = vunpack.c.h.b16 %v813
      %v3626 = vunpack.c.l.b16 %v814
      %v3627 = vunpack.c.h.b16 %v814
      %v3628 = vunpack.c.l.b16 %v815
      %v3629 = vunpack.c.h.b16 %v815
      %v3630 = vunpack.c.l.b16 %v816
      %v3631 = vunpack.c.h.b16 %v816
      %v3632 = vunpack.c.l.b16 %v817
      %v3633 = vunpack.c.h.b16 %v817
      %v3634 = vunpack.c.l.b16 %v818
      %v3635 = vunpack.c.h.b16 %v818
      %v3636 = vunpack.c.l.b16 %v819
      %v3637 = vunpack.c.h.b16 %v819
      %v3638 = vunpack.c.l.b16 %v820
      %v3639 = vunpack.c.h.b16 %v820
      %v3640 = vunpack.c.l.b16 %v821
      %v3641 = vunpack.c.h.b16 %v821
      %v3642 = vunpack.c.l.b16 %v822
      %v3643 = vunpack.c.h.b16 %v822
      %v3644 = vunpack.c.l.b16 %v823
      %v3645 = vunpack.c.h.b16 %v823
      %v3646 = vunpack.c.l.b16 %v824
      %v3647 = vunpack.c.h.b16 %v824
      %v3648 = vunpack.c.l.b16 %v825
      %v3649 = vunpack.c.h.b16 %v825
      %v3650 = vunpack.c.l.b16 %v826
      %v3651 = vunpack.c.h.b16 %v826
      %v3652 = vunpack.c.l.b16 %v827
      %v3653 = vunpack.c.h.b16 %v827
      %v3654 = vunpack.c.l.b16 %v828
      %v3655 = vunpack.c.h.b16 %v828
      %v3656 = vunpack.c.l.b16 %v829
      %v3657 = vunpack.c.h.b16 %v829
      %v3658 = vunpack.c.l.b16 %v830
      %v3659 = vunpack.c.h.b16 %v830
      %v3660 = vunpack.c.l.b16 %v831
      %v3661 = vunpack.c.h.b16 %v831
      %v3662 = vunpack.c.l.b16 %v832
      %v3663 = vunpack.c.h.b16 %v832
      %v3664 = vunpack.c.l.b16 %v833
      %v3665 = vunpack.c.h.b16 %v833
      %v3666 = vunpack.c.l.b16 %v834
      %v3667 = vunpack.c.h.b16 %v834
      %v3668 = vunpack.c.l.b16 %v835
      %v3669 = vunpack.c.h.b16 %v835
      %v3670 = vunpack.c.l.b16 %v836
      %v3671 = vunpack.c.h.b16 %v836
      %v3672 = vunpack.c.l.b16 %v837
      %v3673 = vunpack.c.h.b16 %v837
      %v3674 = vunpack.c.l.b16 %v838
      %v3675 = vunpack.c.h.b16 %v838
      %v3676 = vunpack.c.l.b16 %v839
      %v3677 = vunpack.c.h.b16 %v839
      %v3678 = vunpack.c.l.b16 %v840
      %v3679 = vunpack.c.h.b16 %v840
      %v3680 = vunpack.c.l.b16 %v841
      %v3681 = vunpack.c.h.b16 %v841
      %v3682 = vunpack.c.l.b16 %v842
      %v3683 = vunpack.c.h.b16 %v842
      %v3684 = vunpack.c.l.b16 %v843
      %v3685 = vunpack.c.h.b16 %v843
      %v3686 = vunpack.c.l.b16 %v844
      %v3687 = vunpack.c.h.b16 %v844
      %v3688 = vunpack.c.l.b16 %v845
      %v3689 = vunpack.c.h.b16 %v845
      %v3690 = vunpack.c.l.b16 %v846
      %v3691 = vunpack.c.h.b16 %v846
      %v3692 = vunpack.c.l.b16 %v847
      %v3693 = vunpack.c.h.b16 %v847
      %v3694 = vunpack.c.l.b16 %v848
      %v3695 = vunpack.c.h.b16 %v848
      %v3696 = vunpack.c.l.b16 %v849
      %v3697 = vunpack.c.h.b16 %v849
      %v3698 = vunpack.c.l.b16 %v850
      %v3699 = vunpack.c.h.b16 %v850
      %v3700 = vunpack.c.l.b16 %v851
      %v3701 = vunpack.c.h.b16 %v851
      %v3702 = vunpack.c.l.b16 %v852
      %v3703 = vunpack.c.h.b16 %v852
      %v3704 = vunpack.c.l.b16 %v853
      %v3705 = vunpack.c.h.b16 %v853
      %v3706 = vunpack.c.l.b16 %v854
      %v3707 = vunpack.c.h.b16 %v854
      %v3708 = vunpack.c.l.b16 %v855
      %v3709 = vunpack.c.h.b16 %v855
      %v3710 = vunpack.c.l.b16 %v856
      %v3711 = vunpack.c.h.b16 %v856
      %v3712 = vunpack.c.l.b16 %v857
      %v3713 = vunpack.c.h.b16 %v857
      %v3714 = vunpack.c.l.b16 %v858
      %v3715 = vunpack.c.h.b16 %v858
      %v3716 = vunpack.c.l.b16 %v859
      %v3717 = vunpack.c.h.b16 %v859
      %v3718 = vunpack.c.l.b16 %v860
      %v3719 = vunpack.c.h.b16 %v860
      %v3720 = vunpack.c.l.b16 %v861
      %v3721 = vunpack.c.h.b16 %v861
      %v3722 = vunpack.c.l.b16 %v862
      %v3723 = vunpack.c.h.b16 %v862
      %v3724 = vunpack.c.l.b16 %v863
      %v3725 = vunpack.c.h.b16 %v863
      %v3726 = vunpack.c.l.b16 %v864
      %v3727 = vunpack.c.h.b16 %v864
      %v3728 = vunpack.c.l.b16 %v865
      %v3729 = vunpack.c.h.b16 %v865
      %v3730 = vunpack.c.l.b16 %v866
      %v3731 = vunpack.c.h.b16 %v866
      %v3732 = vunpack.c.l.b16 %v867
      %v3733 = vunpack.c.h.b16 %v867
      %v3734 = vunpack.c.l.b16 %v868
      %v3735 = vunpack.c.h.b16 %v868
      %v3736 = vunpack.c.l.b16 %v869
      %v3737 = vunpack.c.h.b16 %v869
      %v3738 = vunpack.c.l.b16 %v870
      %v3739 = vunpack.c.h.b16 %v870
      %v3740 = vunpack.c.l.b16 %v871
      %v3741 = vunpack.c.h.b16 %v871
      %v3742 = vunpack.c.l.b16 %v872
      %v3743 = vunpack.c.h.b16 %v872
      %v3744 = vunpack.c.l.b16 %v873
      %v3745 = vunpack.c.h.b16 %v873
      %v3746 = vunpack.c.l.b16 %v874
      %v3747 = vunpack.c.h.b16 %v874
      %v3748 = vunpack.c.l.b16 %v875
      %v3749 = vunpack.c.h.b16 %v875
      %v3750 = vunpack.c.l.b16 %v876
      %v3751 = vunpack.c.h.b16 %v876
      %v3752 = vunpack.c.l.b16 %v877
      %v3753 = vunpack.c.h.b16 %v877
      %v3754 = vunpack.c.l.b16 %v878
      %v3755 = vunpack.c.h.b16 %v878
      %v3756 = vunpack.c.l.b16 %v879
      %v3757 = vunpack.c.h.b16 %v879
      %v3758 = vunpack.c.l.b16 %v880
      %v3759 = vunpack.c.h.b16 %v880
      %v3760 = vunpack.c.l.b16 %v881
      %v3761 = vunpack.c.h.b16 %v881
      %v3762 = vunpack.c.l.b16 %v882
      %v3763 = vunpack.c.h.b16 %v882
      %v3764 = vunpack.c.l.b16 %v883
      %v3765 = vunpack.c.h.b16 %v883
      %v3766 = vunpack.c.l.b16 %v884
      %v3767 = vunpack.c.h.b16 %v884
      %v3768 = vunpack.c.l.b16 %v885
      %v3769 = vunpack.c.h.b16 %v885
      %v3770 = vunpack.c.l.b16 %v886
      %v3771 = vunpack.c.h.b16 %v886
      %v3772 = vunpack.c.l.b16 %v887
      %v3773 = vunpack.c.h.b16 %v887
      %v3774 = vunpack.c.l.b16 %v888
      %v3775 = vunpack.c.h.b16 %v888
      %v3776 = vunpack.c.l.b16 %v889
      %v3777 = vunpack.c.h.b16 %v889
      %v3778 = vunpack.c.l.b16 %v890
      %v3779 = vunpack.c.h.b16 %v890
      %v3780 = vunpack.c.l.b16 %v891
      %v3781 = vunpack.c.h.b16 %v891
      %v3782 = vunpack.c.l.b16 %v892
      %v3783 = vunpack.c.h.b16 %v892
      %v3784 = vunpack.c.l.b16 %v893
      %v3785 = vunpack.c.h.b16 %v893
      %v3786 = vunpack.c.l.b16 %v894
      %v3787 = vunpack.c.h.b16 %v894
      %v3788 = vunpack.c.l.b16 %v895
      %v3789 = vunpack.c.h.b16 %v895
      %v3790 = vunpack.c.l.b16 %v896
      %v3791 = vunpack.c.h.b16 %v896
      %v3792 = vunpack.c.l.b16 %v897
      %v3793 = vunpack.c.h.b16 %v897
      %v3794 = vunpack.c.l.b16 %v898
      %v3795 = vunpack.c.h.b16 %v898
      %v3796 = vunpack.c.l.b16 %v899
      %v3797 = vunpack.c.h.b16 %v899
      %v3798 = vunpack.c.l.b16 %v900
      %v3799 = vunpack.c.h.b16 %v900
      %v3800 = vunpack.c.l.b16 %v901
      %v3801 = vunpack.c.h.b16 %v901
      %v3802 = vunpack.c.l.b16 %v902
      %v3803 = vunpack.c.h.b16 %v902
      %v3804 = vunpack.c.l.b16 %v903
      %v3805 = vunpack.c.h.b16 %v903
      %v3806 = vunpack.c.l.b16 %v904
      %v3807 = vunpack.c.h.b16 %v904
      %v3808 = vunpack.c.l.b16 %v905
      %v3809 = vunpack.c.h.b16 %v905
      %v3810 = vunpack.c.l.b16 %v906
      %v3811 = vunpack.c.h.b16 %v906
      %v3812 = vunpack.c.l.b16 %v907
      %v3813 = vunpack.c.h.b16 %v907
      %v3814 = vunpack.c.l.b16 %v908
      %v3815 = vunpack.c.h.b16 %v908
      %v3816 = vunpack.c.l.b16 %v909
      %v3817 = vunpack.c.h.b16 %v909
      %v3818 = vunpack.c.l.b16 %v910
      %v3819 = vunpack.c.h.b16 %v910
      %v3820 = vunpack.c.l.b16 %v911
      %v3821 = vunpack.c.h.b16 %v911
      %v3822 = vunpack.c.l.b16 %v912
      %v3823 = vunpack.c.h.b16 %v912
      %v3824 = vunpack.c.l.b16 %v913
      %v3825 = vunpack.c.h.b16 %v913
      %v3826 = vunpack.c.l.b16 %v914
      %v3827 = vunpack.c.h.b16 %v914
      %v3828 = vunpack.c.l.b16 %v915
      %v3829 = vunpack.c.h.b16 %v915
      %v3830 = vunpack.c.l.b16 %v916
      %v3831 = vunpack.c.h.b16 %v916
      %v3832 = vunpack.c.l.b16 %v917
      %v3833 = vunpack.c.h.b16 %v917
      %v3834 = vunpack.c.l.b16 %v918
      %v3835 = vunpack.c.h.b16 %v918
      %v3836 = vunpack.c.l.b16 %v919
      %v3837 = vunpack.c.h.b16 %v919
      %v3838 = vunpack.c.l.b16 %v920
      %v3839 = vunpack.c.h.b16 %v920
      %v3840 = vunpack.c.l.b16 %v921
      %v3841 = vunpack.c.h.b16 %v921
      %v3842 = vunpack.c.l.b16 %v922
      %v3843 = vunpack.c.h.b16 %v922
      %v3844 = vunpack.c.l.b16 %v923
      %v3845 = vunpack.c.h.b16 %v923
      %v3846 = vunpack.c.l.b16 %v924
      %v3847 = vunpack.c.h.b16 %v924
      %v3848 = vunpack.c.l.b16 %v925
      %v3849 = vunpack.c.h.b16 %v925
      %v3850 = vunpack.c.l.b16 %v926
      %v3851 = vunpack.c.h.b16 %v926
      %v3852 = vunpack.c.l.b16 %v927
      %v3853 = vunpack.c.h.b16 %v927
      %v3854 = vunpack.c.l.b16 %v928
      %v3855 = vunpack.c.h.b16 %v928
      %v3856 = vunpack.c.l.b16 %v929
      %v3857 = vunpack.c.h.b16 %v929
      %v3858 = vunpack.c.l.b16 %v930
      %v3859 = vunpack.c.h.b16 %v930
      %v3860 = vunpack.c.l.b16 %v931
      %v3861 = vunpack.c.h.b16 %v931
      %v3862 = vunpack.c.l.b16 %v932
      %v3863 = vunpack.c.h.b16 %v932
      %v3864 = vunpack.c.l.b16 %v933
      %v3865 = vunpack.c.h.b16 %v933
      %v3866 = vunpack.c.l.b16 %v934
      %v3867 = vunpack.c.h.b16 %v934
      %v3868 = vunpack.c.l.b16 %v935
      %v3869 = vunpack.c.h.b16 %v935
      %v3870 = vunpack.c.l.b16 %v936
      %v3871 = vunpack.c.h.b16 %v936
      %v3872 = vunpack.c.l.b16 %v937
      %v3873 = vunpack.c.h.b16 %v937
      %v3874 = vunpack.c.l.b16 %v938
      %v3875 = vunpack.c.h.b16 %v938
      %v3876 = vunpack.c.l.b16 %v939
      %v3877 = vunpack.c.h.b16 %v939
      %v3878 = vunpack.c.l.b16 %v940
      %v3879 = vunpack.c.h.b16 %v940
      %v3880 = vunpack.c.l.b16 %v941
      %v3881 = vunpack.c.h.b16 %v941
      %v3882 = vunpack.c.l.b16 %v942
      %v3883 = vunpack.c.h.b16 %v942
      %v3884 = vunpack.c.l.b16 %v943
      %v3885 = vunpack.c.h.b16 %v943
      %v3886 = vunpack.c.l.b16 %v944
      %v3887 = vunpack.c.h.b16 %v944
      %v3888 = vunpack.c.l.b16 %v945
      %v3889 = vunpack.c.h.b16 %v945
      %v3890 = vunpack.c.l.b16 %v946
      %v3891 = vunpack.c.h.b16 %v946
      %v3892 = vunpack.c.l.b16 %v947
      %v3893 = vunpack.c.h.b16 %v947
      %v3894 = vpack.c.b16 %v3320, %v3318
      %v3895 = vpack.c.b16 %v3321, %v3319
      %v3896 = vpack.c.b16 %v3324, %v3322
      %v3897 = vpack.c.b16 %v3325, %v3323
      %v3898 = vpack.c.b16 %v3328, %v3326
      %v3899 = vpack.c.b16 %v3329, %v3327
      %v3900 = vpack.c.b16 %v3332, %v3330
      %v3901 = vpack.c.b16 %v3333, %v3331
      %v3902 = vpack.c.b16 %v3336, %v3334
      %v3903 = vpack.c.b16 %v3337, %v3335
      %v3904 = vpack.c.b16 %v3340, %v3338
      %v3905 = vpack.c.b16 %v3341, %v3339
      %v3906 = vpack.c.b16 %v3344, %v3342
      %v3907 = vpack.c.b16 %v3345, %v3343
      %v3908 = vpack.c.b16 %v3348, %v3346
      %v3909 = vpack.c.b16 %v3349, %v3347
      %v3910 = vpack.c.b16 %v3352, %v3350
      %v3911 = vpack.c.b16 %v3353, %v3351
      %v3912 = vpack.c.b16 %v3356, %v3354
      %v3913 = vpack.c.b16 %v3357, %v3355
      %v3914 = vpack.c.b16 %v3360, %v3358
      %v3915 = vpack.c.b16 %v3361, %v3359
      %v3916 = vpack.c.b16 %v3364, %v3362
      %v3917 = vpack.c.b16 %v3365, %v3363
      %v3918 = vpack.c.b16 %v3368, %v3366
      %v3919 = vpack.c.b16 %v3369, %v3367
      %v3920 = vpack.c.b16 %v3372, %v3370
      %v3921 = vpack.c.b16 %v3373, %v3371
      %v3922 = vpack.c.b16 %v3376, %v3374
      %v3923 = vpack.c.b16 %v3377, %v3375
      %v3924 = vpack.c.b16 %v3380, %v3378
      %v3925 = vpack.c.b16 %v3381, %v3379
      %v3926 = vpack.c.b16 %v3384, %v3382
      %v3927 = vpack.c.b16 %v3385, %v3383
      %v3928 = vpack.c.b16 %v3388, %v3386
      %v3929 = vpack.c.b16 %v3389, %v3387
      %v3930 = vpack.c.b16 %v3392, %v3390
      %v3931 = vpack.c.b16 %v3393, %v3391
      %v3932 = vpack.c.b16 %v3396, %v3394
      %v3933 = vpack.c.b16 %v3397, %v3395
      %v3934 = vpack.c.b16 %v3400, %v3398
      %v3935 = vpack.c.b16 %v3401, %v3399
      %v3936 = vpack.c.b16 %v3404, %v3402
      %v3937 = vpack.c.b16 %v3405, %v3403
      %v3938 = vpack.c.b16 %v3408, %v3406
      %v3939 = vpack.c.b16 %v3409, %v3407
      %v3940 = vpack.c.b16 %v3412, %v3410
      %v3941 = vpack.c.b16 %v3413, %v3411
      %v3942 = vpack.c.b16 %v3416, %v3414
      %v3943 = vpack.c.b16 %v3417, %v3415
      %v3944 = vpack.c.b16 %v3420, %v3418
      %v3945 = vpack.c.b16 %v3421, %v3419
      %v3946 = vpack.c.b16 %v3424, %v3422
      %v3947 = vpack.c.b16 %v3425, %v3423
      %v3948 = vpack.c.b16 %v3428, %v3426
      %v3949 = vpack.c.b16 %v3429, %v3427
      %v3950 = vpack.c.b16 %v3432, %v3430
      %v3951 = vpack.c.b16 %v3433, %v3431
      %v3952 = vpack.c.b16 %v3436, %v3434
      %v3953 = vpack.c.b16 %v3437, %v3435
      %v3954 = vpack.c.b16 %v3440, %v3438
      %v3955 = vpack.c.b16 %v3441, %v3439
      %v3956 = vpack.c.b16 %v3444, %v3442
      %v3957 = vpack.c.b16 %v3445, %v3443
      %v3958 = vpack.c.b16 %v3448, %v3446
      %v3959 = vpack.c.b16 %v3449, %v3447
      %v3960 = vpack.c.b16 %v3452, %v3450
      %v3961 = vpack.c.b16 %v3453, %v3451
      %v3962 = vpack.c.b16 %v3456, %v3454
      %v3963 = vpack.c.b16 %v3457, %v3455
      %v3964 = vpack.c.b16 %v3460, %v3458
      %v3965 = vpack.c.b16 %v3461, %v3459
      %v3966 = vpack.c.b16 %v3464, %v3462
      %v3967 = vpack.c.b16 %v3465, %v3463
      %v3968 = vpack.c.b16 %v3468, %v3466
      %v3969 = vpack.c.b16 %v3469, %v3467
      %v3970 = vpack.c.b16 %v3472, %v3470
      %v3971 = vpack.c.b16 %v3473, %v3471
      %v3972 = vpack.c.b16 %v3476, %v3474
      %v3973 = vpack.c.b16 %v3477, %v3475
      %v3974 = vpack.c.b16 %v3480, %v3478
      %v3975 = vpack.c.b16 %v3481, %v3479
      %v3976 = vpack.c.b16 %v3484, %v3482
      %v3977 = vpack.c.b16 %v3485, %v3483
      %v3978 = vpack.c.b16 %v3488, %v3486
      %v3979 = vpack.c.b16 %v3489, %v3487
      %v3980 = vpack.c.b16 %v3492, %v3490
      %v3981 = vpack.c.b16 %v3493, %v3491
      %v3982 = vpack.c.b16 %v3496, %v3494
      %v3983 = vpack.c.b16 %v3497, %v3495
      %v3984 = vpack.c.b16 %v3500, %v3498
      %v3985 = vpack.c.b16 %v3501, %v3499
      %v3986 = vpack.c.b16 %v3504, %v3502
      %v3987 = vpack.c.b16 %v3505, %v3503
      %v3988 = vpack.c.b16 %v3508, %v3506
      %v3989 = vpack.c.b16 %v3509, %v3507
      %v3990 = vpack.c.b16 %v3512, %v3510
      %v3991 = vpack.c.b16 %v3513, %v3511
      %v3992 = vpack.c.b16 %v3516, %v3514
      %v3993 = vpack.c.b16 %v3517, %v3515
      %v3994 = vpack.c.b16 %v3520, %v3518
      %v3995 = vpack.c.b16 %v3521, %v3519
      %v3996 = vpack.c.b16 %v3524, %v3522
      %v3997 = vpack.c.b16 %v3525, %v3523
      %v3998 = vpack.c.b16 %v3528, %v3526
      %v3999 = vpack.c.b16 %v3529, %v3527
      %v4000 = vpack.c.b16 %v3532, %v3530
      %v4001 = vpack.c.b16 %v3533, %v3531
      %v4002 = vpack.c.b16 %v3536, %v3534
      %v4003 = vpack.c.b16 %v3537, %v3535
      %v4004 = vpack.c.b16 %v3540, %v3538
      %v4005 = vpack.c.b16 %v3541, %v3539
      %v4006 = vpack.c.b16 %v3544, %v3542
      %v4007 = vpack.c.b16 %v3545, %v3543
      %v4008 = vpack.c.b16 %v3548, %v3546
      %v4009 = vpack.c.b16 %v3549, %v3547
      %v4010 = vpack.c.b16 %v3552, %v3550
      %v4011 = vpack.c.b16 %v3553, %v3551
      %v4012 = vpack.c.b16 %v3556, %v3554
      %v4013 = vpack.c.b16 %v3557, %v3555
      %v4014 = vpack.c.b16 %v3560, %v3558
      %v4015 = vpack.c.b16 %v3561, %v3559
      %v4016 = vpack.c.b16 %v3564, %v3562
      %v4017 = vpack.c.b16 %v3565, %v3563
      %v4018 = vpack.c.b16 %v3568, %v3566
      %v4019 = vpack.c.b16 %v3569, %v3567
      %v4020 = vpack.c.b16 %v3572, %v3570
      %v4021 = vpack.c.b16 %v3573, %v3571
      %v4022 = vpack.c.b16 %v3576, %v3574
      %v4023 = vpack.c.b16 %v3577, %v3575
      %v4024 = vpack.c.b16 %v3580, %v3578
      %v4025 = vpack.c.b16 %v3581, %v3579
      %v4026 = vpack.c.b16 %v3584, %v3582
      %v4027 = vpack.c.b16 %v3585, %v3583
      %v4028 = vpack.c.b16 %v3588, %v3586
      %v4029 = vpack.c.b16 %v3589, %v3587
      %v4030 = vpack.c.b16 %v3592, %v3590
      %v4031 = vpack.c.b16 %v3593, %v3591
      %v4032 = vpack.c.b16 %v3596, %v3594
      %v4033 = vpack.c.b16 %v3597, %v3595
      %v4034 = vpack.c.b16 %v3600, %v3598
      %v4035 = vpack.c.b16 %v3601, %v3599
      %v4036 = vpack.c.b16 %v3604, %v3602
      %v4037 = vpack.c.b16 %v3605, %v3603
      %v4038 = vpack.c.b16 %v3608, %v3606
      %v4039 = vpack.c.b16 %v3609, %v3607
      %v4040 = vpack.c.b16 %v3612, %v3610
      %v4041 = vpack.c.b16 %v3613, %v3611
      %v4042 = vpack.c.b16 %v3616, %v3614
      %v4043 = vpack.c.b16 %v3617, %v3615
      %v4044 = vpack.c.b16 %v3620, %v3618
      %v4045 = vpack.c.b16 %v3621, %v3619
      %v4046 = vpack.c.b16 %v3624, %v3622
      %v4047 = vpack.c.b16 %v3625, %v3623
      %v4048 = vpack.c.b16 %v3628, %v3626
      %v4049 = vpack.c.b16 %v3629, %v3627
      %v4050 = vpack.c.b16 %v3632, %v3630
      %v4051 = vpack.c.b16 %v3633, %v3631
      %v4052 = vpack.c.b16 %v3636, %v3634
      %v4053 = vpack.c.b16 %v3637, %v3635
      %v4054 = vpack.c.b16 %v3640, %v3638
      %v4055 = vpack.c.b16 %v3641, %v3639
      %v4056 = vpack.c.b16 %v3644, %v3642
      %v4057 = vpack.c.b16 %v3645, %v3643
      %v4058 = vpack.c.b16 %v3648, %v3646
      %v4059 = vpack.c.b16 %v3649, %v3647
      %v4060 = vpack.c.b16 %v3652, %v3650
      %v4061 = vpack.c.b16 %v3653, %v3651
      %v4062 = vpack.c.b16 %v3656, %v3654
      %v4063 = vpack.c.b16 %v3657, %v3655
      %v4064 = vpack.c.b16 %v3660, %v3658
      %v4065 = vpack.c.b16 %v3661, %v3659
      %v4066 = vpack.c.b16 %v3664, %v3662
      %v4067 = vpack.c.b16 %v3665, %v3663
      %v4068 = vpack.c.b16 %v3668, %v3666
      %v4069 = vpack.c.b16 %v3669, %v3667
      %v4070 = vpack.c.b16 %v3672, %v3670
      %v4071 = vpack.c.b16 %v3673, %v3671
      %v4072 = vpack.c.b16 %v3676, %v3674
      %v4073 = vpack.c.b16 %v3677, %v3675
      %v4074 = vpack.c.b16 %v3680, %v3678
      %v4075 = vpack.c.b16 %v3681, %v3679
      %v4076 = vpack.c.b16 %v3684, %v3682
      %v4077 = vpack.c.b16 %v3685, %v3683
      %v4078 = vpack.c.b16 %v3688, %v3686
      %v4079 = vpack.c.b16 %v3689, %v3687
      %v4080 = vpack.c.b16 %v3692, %v3690
      %v4081 = vpack.c.b16 %v3693, %v3691
      %v4082 = vpack.c.b16 %v3696, %v3694
      %v4083 = vpack.c.b16 %v3697, %v3695
      %v4084 = vpack.c.b16 %v3700, %v3698
      %v4085 = vpack.c.b16 %v3701, %v3699
      %v4086 = vpack.c.b16 %v3704, %v3702
      %v4087 = vpack.c.b16 %v3705, %v3703
      %v4088 = vpack.c.b16 %v3708, %v3706
      %v4089 = vpack.c.b16 %v3709, %v3707
      %v4090 = vpack.c.b16 %v3712, %v3710
      %v4091 = vpack.c.b16 %v3713, %v3711
      %v4092 = vpack.c.b16 %v3716, %v3714
      %v4093 = vpack.c.b16 %v3717, %v3715
      %v4094 = vpack.c.b16 %v3720, %v3718
      %v4095 = vpack.c.b16 %v3721, %v3719
      %v4096 = vpack.c.b16 %v3724, %v3722
      %v4097 = vpack.c.b16 %v3725, %v3723
      %v4098 = vpack.c.b16 %v3728, %v3726
      %v4099 = vpack.c.b16 %v3729, %v3727
      %v4100 = vpack.c.b16 %v3732, %v3730
      %v4101 = vpack.c.b16 %v3733, %v3731
      %v4102 = vpack.c.b16 %v3736, %v3734
      %v4103 = vpack.c.b16 %v3737, %v3735
      %v4104 = vpack.c.b16 %v3740, %v3738
      %v4105 = vpack.c.b16 %v3741, %v3739
      %v4106 = vpack.c.b16 %v3744, %v3742
      %v4107 = vpack.c.b16 %v3745, %v3743
      %v4108 = vpack.c.b16 %v3748, %v3746
      %v4109 = vpack.c.b16 %v3749, %v3747
      %v4110 = vpack.c.b16 %v3752, %v3750
      %v4111 = vpack.c.b16 %v3753, %v3751
      %v4112 = vpack.c.b16 %v3756, %v3754
      %v4113 = vpack.c.b16 %v3757, %v3755
      %v4114 = vpack.c.b16 %v3760, %v3758
      %v4115 = vpack.c.b16 %v3761, %v3759
      %v4116 = vpack.c.b16 %v3764, %v3762
      %v4117 = vpack.c.b16 %v3765, %v3763
      %v4118 = vpack.c.b16 %v3768, %v3766
      %v4119 = vpack.c.b16 %v3769, %v3767
      %v4120 = vpack.c.b16 %v3772, %v3770
      %v4121 = vpack.c.b16 %v3773, %v3771
      %v4122 = vpack.c.b16 %v3776, %v3774
      %v4123 = vpack.c.b16 %v3777, %v3775
      %v4124 = vpack.c.b16 %v3780, %v3778
      %v4125 = vpack.c.b16 %v3781, %v3779
      %v4126 = vpack.c.b16 %v3784, %v3782
      %v4127 = vpack.c.b16 %v3785, %v3783
      %v4128 = vpack.c.b16 %v3788, %v3786
      %v4129 = vpack.c.b16 %v3789, %v3787
      %v4130 = vpack.c.b16 %v3792, %v3790
      %v4131 = vpack.c.b16 %v3793, %v3791
      %v4132 = vpack.c.b16 %v3796, %v3794
      %v4133 = vpack.c.b16 %v3797, %v3795
      %v4134 = vpack.c.b16 %v3800, %v3798
      %v4135 = vpack.c.b16 %v3801, %v3799
      %v4136 = vpack.c.b16 %v3804, %v3802
      %v4137 = vpack.c.b16 %v3805, %v3803
      %v4138 = vpack.c.b16 %v3808, %v3806
      %v4139 = vpack.c.b16 %v3809, %v3807
      %v4140 = vpack.c.b16 %v3812, %v3810
      %v4141 = vpack.c.b16 %v3813, %v3811
      %v4142 = vpack.c.b16 %v3816, %v3814
      %v4143 = vpack.c.b16 %v3817, %v3815
      %v4144 = vpack.c.b16 %v3820, %v3818
      %v4145 = vpack.c.b16 %v3821, %v3819
      %v4146 = vpack.c.b16 %v3824, %v3822
      %v4147 = vpack.c.b16 %v3825, %v3823
      %v4148 = vpack.c.b16 %v3828, %v3826
      %v4149 = vpack.c.b16 %v3829, %v3827
      %v4150 = vpack.c.b16 %v3832, %v3830
      %v4151 = vpack.c.b16 %v3833, %v3831
      %v4152 = vpack.c.b16 %v3836, %v3834
      %v4153 = vpack.c.b16 %v3837, %v3835
      %v4154 = vpack.c.b16 %v3840, %v3838
      %v4155 = vpack.c.b16 %v3841, %v3839
      %v4156 = vpack.c.b16 %v3844, %v3842
      %v4157 = vpack.c.b16 %v3845, %v3843
      %v4158 = vpack.c.b16 %v3848, %v3846
      %v4159 = vpack.c.b16 %v3849, %v3847
      %v4160 = vpack.c.b16 %v3852, %v3850
      %v4161 = vpack.c.b16 %v3853, %v3851
      %v4162 = vpack.c.b16 %v3856, %v3854
      %v4163 = vpack.c.b16 %v3857, %v3855
      %v4164 = vpack.c.b16 %v3860, %v3858
      %v4165 = vpack.c.b16 %v3861, %v3859
      %v4166 = vpack.c.b16 %v3864, %v3862
      %v4167 = vpack.c.b16 %v3865, %v3863
      %v4168 = vpack.c.b16 %v3868, %v3866
      %v4169 = vpack.c.b16 %v3869, %v3867
      %v4170 = vpack.c.b16 %v3872, %v3870
      %v4171 = vpack.c.b16 %v3873, %v3871
      %v4172 = vpack.c.b16 %v3876, %v3874
      %v4173 = vpack.c.b16 %v3877, %v3875
      %v4174 = vpack.c.b16 %v3880, %v3878
      %v4175 = vpack.c.b16 %v3881, %v3879
      %v4176 = vpack.c.b16 %v3884, %v3882
      %v4177 = vpack.c.b16 %v3885, %v3883
      %v4178 = vpack.c.b16 %v3888, %v3886
      %v4179 = vpack.c.b16 %v3889, %v3887
      %v4180 = vpack.c.b16 %v3892, %v3890
      %v4181 = vpack.c.b16 %v3893, %v3891
      %4470 = vmatprep.subr.bf16.mxu0 %v3895
      %4471 = vmatpush1.bf16.msra.mxu0 %v3894
      %4472 = vmatprep.subr.bf16.mxu0 %v3897
      %4473 = vmatpush1.bf16.msra.mxu0 %v3896
      %4474 = vmatprep.subr.bf16.mxu0 %v3899
      %4475 = vmatpush1.bf16.msra.mxu0 %v3898
      %4476 = vmatprep.subr.bf16.mxu0 %v3901
      %4477 = vmatpush1.bf16.msra.mxu0 %v3900
      %4478 = vmatprep.subr.bf16.mxu0 %v3903
      %4479 = vmatpush1.bf16.msra.mxu0 %v3902
      %4480 = vmatprep.subr.bf16.mxu0 %v3905
      %4481 = vmatpush1.bf16.msra.mxu0 %v3904
      %4482 = vmatprep.subr.bf16.mxu0 %v3907
      %4483 = vmatpush1.bf16.msra.mxu0 %v3906
      %4484 = vmatprep.subr.bf16.mxu0 %v3909
      %4485 = vmatpush1.bf16.msra.mxu0 %v3908
      %4486 = vmatprep.subr.bf16.mxu0 %v3911
      %4487 = vmatpush1.bf16.msra.mxu0 %v3910
      %4488 = vmatprep.subr.bf16.mxu0 %v3913
      %4489 = vmatpush1.bf16.msra.mxu0 %v3912
      %4490 = vmatprep.subr.bf16.mxu0 %v3915
      %4491 = vmatpush1.bf16.msra.mxu0 %v3914
      %4492 = vmatprep.subr.bf16.mxu0 %v3917
      %4493 = vmatpush1.bf16.msra.mxu0 %v3916
      %4494 = vmatprep.subr.bf16.mxu0 %v3919
      %4495 = vmatpush1.bf16.msra.mxu0 %v3918
      %4496 = vmatprep.subr.bf16.mxu0 %v3921
      %4497 = vmatpush1.bf16.msra.mxu0 %v3920
      %4498 = vmatprep.subr.bf16.mxu0 %v3923
      %4499 = vmatpush1.bf16.msra.mxu0 %v3922
      %4500 = vmatprep.subr.bf16.mxu0 %v3925
      %4501 = vmatpush1.bf16.msra.mxu0 %v3924
      %4502 = vmatprep.mubr.bf16.mxu0 %v2203
      %4503 = vmatmul.mubr.bf16.gmra.mrb[0].mxu0 %v2202
      %v4504 = vpop.f32.mrb[0].mxu0
      %v4505 = vadd.f32 %v953, %v4504
      %v4506 = vpop.f32.mrb[0].mxu0
      %v4507 = vadd.f32 %v957, %v4506
      %v4508 = vpop.f32.mrb[0].mxu0
      %v4509 = vadd.f32 %v953, %v4508
      %v4510 = vpop.f32.mrb[0].mxu0
      %v4511 = vadd.f32 %v957, %v4510
      %4512 = vmatprep.mubr.bf16.mxu0 %v2221
      %4513 = vmatmul.mubr.bf16.gmra.mrb[0].mxu0 %v2220
      %v4514 = vpop.f32.mrb[0].mxu0
      %v4515 = vadd.f32 %v953, %v4514
      %v4516 = vpop.f32.mrb[0].mxu0
      %v4517 = vadd.f32 %v957, %v4516
      %v4518 = vpop.f32.mrb[0].mxu0
      %v4519 = vadd.f32 %v953, %v4518
      %v4520 = vpop.f32.mrb[0].mxu0
      %v4521 = vadd.f32 %v957, %v4520
      %4522 = vmatprep.mubr.bf16.mxu0 %v2239
      %4523 = vmatmul.mubr.bf16.gmra.mrb[0].mxu0 %v2238
      %v4524 = vpop.f32.mrb[0].mxu0
      %v4525 = vadd.f32 %v953, %v4524
      %v4526 = vpop.f32.mrb[0].mxu0
      %v4527 = vadd.f32 %v957, %v4526
      %v4528 = vpop.f32.mrb[0].mxu0
      %v4529 = vadd.f32 %v953, %v4528
      %v4530 = vpop.f32.mrb[0].mxu0
      %v4531 = vadd.f32 %v957, %v4530
      %4532 = vmatprep.mubr.bf16.mxu0 %v2257
      %4533 = vmatmul.mubr.bf16.gmra.mrb[0].mxu0 %v2256
      %v4534 = vpop.f32.mrb[0].mxu0
      %v4535 = vadd.f32 %v953, %v4534
      %v4536 = vpop.f32.mrb[0].mxu0
      %v4537 = vadd.f32 %v957, %v4536
      %v4538 = vpop.f32.mrb[0].mxu0
      %v4539 = vadd.f32 %v953, %v4538
      %v4540 = vpop.f32.mrb[0].mxu0
      %v4541 = vadd.f32 %v957, %v4540
      %4542 = vmatprep.mubr.bf16.mxu0 %v2275
      %4543 = vmatmul.mubr.bf16.gmra.mrb[0].mxu0 %v2274
      %v4544 = vpop.f32.mrb[0].mxu0
      %v4545 = vadd.f32 %v953, %v4544
      %v4546 = vpop.f32.mrb[0].mxu0
      %v4547 = vadd.f32 %v957, %v4546
      %v4548 = vpop.f32.mrb[0].mxu0
      %v4549 = vadd.f32 %v953, %v4548
      %v4550 = vpop.f32.mrb[0].mxu0
      %v4551 = vadd.f32 %v957, %v4550
      %4552 = vmatprep.mubr.bf16.mxu0 %v2293
      %4553 = vmatmul.mubr.bf16.gmra.mrb[0].mxu0 %v2292
      %v4554 = vpop.f32.mrb[0].mxu0
      %v4555 = vadd.f32 %v953, %v4554
      %v4556 = vpop.f32.mrb[0].mxu0
      %v4557 = vadd.f32 %v957, %v4556
      %v4558 = vpop.f32.mrb[0].mxu0
      %v4559 = vadd.f32 %v953, %v4558
      %v4560 = vpop.f32.mrb[0].mxu0
      %v4561 = vadd.f32 %v957, %v4560
      %4562 = vmatprep.mubr.bf16.mxu0 %v2311
      %4563 = vmatmul.mubr.bf16.gmra.mrb[0].mxu0 %v2310
      %v4564 = vpop.f32.mrb[0].mxu0
      %v4565 = vadd.f32 %v953, %v4564
      %v4566 = vpop.f32.mrb[0].mxu0
      %v4567 = vadd.f32 %v957, %v4566
      %v4568 = vpop.f32.mrb[0].mxu0
      %v4569 = vadd.f32 %v953, %v4568
      %v4570 = vpop.f32.mrb[0].mxu0
      %v4571 = vadd.f32 %v957, %v4570
      %4572 = vmatprep.mubr.bf16.mxu0 %v2329
      %4573 = vmatmul.mubr.bf16.gmra.mrb[0].mxu0 %v2328
      %v4574 = vpop.f32.mrb[0].mxu0
      %v4575 = vadd.f32 %v953, %v4574
      %v4576 = vpop.f32.mrb[0].mxu0
      %v4577 = vadd.f32 %v957, %v4576
      %v4578 = vpop.f32.mrb[0].mxu0
      %v4579 = vadd.f32 %v953, %v4578
      %v4580 = vpop.f32.mrb[0].mxu0
      %v4581 = vadd.f32 %v957, %v4580
      %4582 = vmatprep.mubr.bf16.mxu0 %v2347
      %4583 = vmatmul.mubr.bf16.gmra.mrb[0].mxu0 %v2346
      %v4584 = vpop.f32.mrb[0].mxu0
      %v4585 = vadd.f32 %v953, %v4584
      %v4586 = vpop.f32.mrb[0].mxu0
      %v4587 = vadd.f32 %v957, %v4586
      %v4588 = vpop.f32.mrb[0].mxu0
      %v4589 = vadd.f32 %v953, %v4588
      %v4590 = vpop.f32.mrb[0].mxu0
      %v4591 = vadd.f32 %v957, %v4590
      %4592 = vmatprep.mubr.bf16.mxu0 %v2365
      %4593 = vmatmul.mubr.bf16.gmra.mrb[0].mxu0 %v2364
      %v4594 = vpop.f32.mrb[0].mxu0
      %v4595 = vadd.f32 %v953, %v4594
      %v4596 = vpop.f32.mrb[0].mxu0
      %v4597 = vadd.f32 %v957, %v4596
      %v4598 = vpop.f32.mrb[0].mxu0
      %v4599 = vadd.f32 %v953, %v4598
      %v4600 = vpop.f32.mrb[0].mxu0
      %v4601 = vadd.f32 %v957, %v4600
      %4602 = vmatprep.mubr.bf16.mxu0 %v2383
      %4603 = vmatmul.mubr.bf16.gmra.mrb[0].mxu0 %v2382
      %v4604 = vpop.f32.mrb[0].mxu0
      %v4605 = vadd.f32 %v953, %v4604
      %v4606 = vpop.f32.mrb[0].mxu0
      %v4607 = vadd.f32 %v957, %v4606
      %v4608 = vpop.f32.mrb[0].mxu0
      %v4609 = vadd.f32 %v953, %v4608
      %v4610 = vpop.f32.mrb[0].mxu0
      %v4611 = vadd.f32 %v957, %v4610
      %4612 = vmatprep.mubr.bf16.mxu0 %v2401
      %4613 = vmatmul.mubr.bf16.gmra.mrb[0].mxu0 %v2400
      %v4614 = vpop.f32.mrb[0].mxu0
      %v4615 = vadd.f32 %v953, %v4614
      %v4616 = vpop.f32.mrb[0].mxu0
      %v4617 = vadd.f32 %v957, %v4616
      %v4618 = vpop.f32.mrb[0].mxu0
      %v4619 = vadd.f32 %v953, %v4618
      %v4620 = vpop.f32.mrb[0].mxu0
      %v4621 = vadd.f32 %v957, %v4620
      %4622 = vmatprep.mubr.bf16.mxu0 %v2419
      %4623 = vmatmul.mubr.bf16.gmra.mrb[0].mxu0 %v2418
      %v4624 = vpop.f32.mrb[0].mxu0
      %v4625 = vadd.f32 %v953, %v4624
      %v4626 = vpop.f32.mrb[0].mxu0
      %v4627 = vadd.f32 %v957, %v4626
      %v4628 = vpop.f32.mrb[0].mxu0
      %v4629 = vadd.f32 %v953, %v4628
      %v4630 = vpop.f32.mrb[0].mxu0
      %v4631 = vadd.f32 %v957, %v4630
      %4632 = vmatprep.mubr.bf16.mxu0 %v2437
      %4633 = vmatmul.mubr.bf16.gmra.mrb[0].mxu0 %v2436
      %v4634 = vpop.f32.mrb[0].mxu0
      %v4635 = vadd.f32 %v953, %v4634
      %v4636 = vpop.f32.mrb[0].mxu0
      %v4637 = vadd.f32 %v957, %v4636
      %v4638 = vpop.f32.mrb[0].mxu0
      %v4639 = vadd.f32 %v953, %v4638
      %v4640 = vpop.f32.mrb[0].mxu0
      %v4641 = vadd.f32 %v957, %v4640
      %4642 = vmatprep.mubr.bf16.mxu0 %v2455
      %4643 = vmatmul.mubr.bf16.gmra.mrb[0].mxu0 %v2454
      %v4644 = vpop.f32.mrb[0].mxu0
      %v4645 = vadd.f32 %v953, %v4644
      %v4646 = vpop.f32.mrb[0].mxu0
      %v4647 = vadd.f32 %v957, %v4646
      %v4648 = vpop.f32.mrb[0].mxu0
      %v4649 = vadd.f32 %v953, %v4648
      %v4650 = vpop.f32.mrb[0].mxu0
      %v4651 = vadd.f32 %v957, %v4650
      %4652 = vmatprep.mubr.bf16.mxu0 %v2473
      %4653 = vmatmul.mubr.bf16.gmra.mrb[0].mxu0 %v2472
      %v4654 = vpop.f32.mrb[0].mxu0
      %v4655 = vadd.f32 %v953, %v4654
      %v4656 = vpop.f32.mrb[0].mxu0
      %v4657 = vadd.f32 %v957, %v4656
      %v4658 = vpop.f32.mrb[0].mxu0
      %v4659 = vadd.f32 %v953, %v4658
      %v4660 = vpop.f32.mrb[0].mxu0
      %v4661 = vadd.f32 %v957, %v4660
      %4662 = vmatprep.mubr.bf16.mxu0 %v2491
      %4663 = vmatmul.mubr.bf16.gmra.mrb[0].mxu0 %v2490
      %v4664 = vpop.f32.mrb[0].mxu0
      %v4665 = vadd.f32 %v953, %v4664
      %v4666 = vpop.f32.mrb[0].mxu0
      %v4667 = vadd.f32 %v957, %v4666
      %v4668 = vpop.f32.mrb[0].mxu0
      %v4669 = vadd.f32 %v953, %v4668
      %v4670 = vpop.f32.mrb[0].mxu0
      %v4671 = vadd.f32 %v957, %v4670
      %4672 = vmatprep.mubr.bf16.mxu0 %v2509
      %4673 = vmatmul.mubr.bf16.gmra.mrb[0].mxu0 %v2508
      %v4674 = vpop.f32.mrb[0].mxu0
      %v4675 = vadd.f32 %v953, %v4674
      %v4676 = vpop.f32.mrb[0].mxu0
      %v4677 = vadd.f32 %v957, %v4676
      %v4678 = vpop.f32.mrb[0].mxu0
      %v4679 = vadd.f32 %v953, %v4678
      %v4680 = vpop.f32.mrb[0].mxu0
      %v4681 = vadd.f32 %v957, %v4680
      %4682 = vmatprep.mubr.bf16.mxu0 %v2527
      %4683 = vmatmul.mubr.bf16.gmra.mrb[0].mxu0 %v2526
      %v4684 = vpop.f32.mrb[0].mxu0
      %v4685 = vadd.f32 %v953, %v4684
      %v4686 = vpop.f32.mrb[0].mxu0
      %v4687 = vadd.f32 %v957, %v4686
      %v4688 = vpop.f32.mrb[0].mxu0
      %v4689 = vadd.f32 %v953, %v4688
      %v4690 = vpop.f32.mrb[0].mxu0
      %v4691 = vadd.f32 %v957, %v4690
      %4692 = vmatprep.mubr.bf16.mxu0 %v2545
      %4693 = vmatmul.mubr.bf16.gmra.mrb[0].mxu0 %v2544
      %v4694 = vpop.f32.mrb[0].mxu0
      %v4695 = vadd.f32 %v953, %v4694
      %v4696 = vpop.f32.mrb[0].mxu0
      %v4697 = vadd.f32 %v957, %v4696
      %v4698 = vpop.f32.mrb[0].mxu0
      %v4699 = vadd.f32 %v953, %v4698
      %v4700 = vpop.f32.mrb[0].mxu0
      %v4701 = vadd.f32 %v957, %v4700
      %4702 = vmatprep.mubr.bf16.mxu0 %v2563
      %4703 = vmatmul.mubr.bf16.gmra.mrb[0].mxu0 %v2562
      %v4704 = vpop.f32.mrb[0].mxu0
      %v4705 = vadd.f32 %v953, %v4704
      %v4706 = vpop.f32.mrb[0].mxu0
      %v4707 = vadd.f32 %v957, %v4706
      %v4708 = vpop.f32.mrb[0].mxu0
      %v4709 = vadd.f32 %v953, %v4708
      %v4710 = vpop.f32.mrb[0].mxu0
      %v4711 = vadd.f32 %v957, %v4710
      %4712 = vmatprep.mubr.bf16.mxu0 %v2581
      %4713 = vmatmul.mubr.bf16.gmra.mrb[0].mxu0 %v2580
      %v4714 = vpop.f32.mrb[0].mxu0
      %v4715 = vadd.f32 %v953, %v4714
      %v4716 = vpop.f32.mrb[0].mxu0
      %v4717 = vadd.f32 %v957, %v4716
      %v4718 = vpop.f32.mrb[0].mxu0
      %v4719 = vadd.f32 %v953, %v4718
      %v4720 = vpop.f32.mrb[0].mxu0
      %v4721 = vadd.f32 %v957, %v4720
      %4722 = vmatprep.mubr.bf16.mxu0 %v2599
      %4723 = vmatmul.mubr.bf16.gmra.mrb[0].mxu0 %v2598
      %v4724 = vpop.f32.mrb[0].mxu0
      %v4725 = vadd.f32 %v953, %v4724
      %v4726 = vpop.f32.mrb[0].mxu0
      %v4727 = vadd.f32 %v957, %v4726
      %v4728 = vpop.f32.mrb[0].mxu0
      %v4729 = vadd.f32 %v953, %v4728
      %v4730 = vpop.f32.mrb[0].mxu0
      %v4731 = vadd.f32 %v957, %v4730
      %4732 = vdwg.mxu0
      %4733 = vmatprep.subr.bf16.mxu0 %v3927
      %4734 = vmatpush1.bf16.msra.mxu0 %v3926
      %4735 = vmatprep.subr.bf16.mxu0 %v3929
      %4736 = vmatpush1.bf16.msra.mxu0 %v3928
      %4737 = vmatprep.subr.bf16.mxu0 %v3931
      %4738 = vmatpush1.bf16.msra.mxu0 %v3930
      %4739 = vmatprep.subr.bf16.mxu0 %v3933
      %4740 = vmatpush1.bf16.msra.mxu0 %v3932
      %4741 = vmatprep.subr.bf16.mxu0 %v3935
      %4742 = vmatpush1.bf16.msra.mxu0 %v3934
      %4743 = vmatprep.subr.bf16.mxu0 %v3937
      %4744 = vmatpush1.bf16.msra.mxu0 %v3936
      %4745 = vmatprep.subr.bf16.mxu0 %v3939
      %4746 = vmatpush1.bf16.msra.mxu0 %v3938
      %4747 = vmatprep.subr.bf16.mxu0 %v3941
      %4748 = vmatpush1.bf16.msra.mxu0 %v3940
      %4749 = vmatprep.subr.bf16.mxu0 %v3943
      %4750 = vmatpush1.bf16.msra.mxu0 %v3942
      %4751 = vmatprep.subr.bf16.mxu0 %v3945
      %4752 = vmatpush1.bf16.msra.mxu0 %v3944
      %4753 = vmatprep.subr.bf16.mxu0 %v3947
      %4754 = vmatpush1.bf16.msra.mxu0 %v3946
      %4755 = vmatprep.subr.bf16.mxu0 %v3949
      %4756 = vmatpush1.bf16.msra.mxu0 %v3948
      %4757 = vmatprep.subr.bf16.mxu0 %v3951
      %4758 = vmatpush1.bf16.msra.mxu0 %v3950
      %4759 = vmatprep.subr.bf16.mxu0 %v3953
      %4760 = vmatpush1.bf16.msra.mxu0 %v3952
      %4761 = vmatprep.subr.bf16.mxu0 %v3955
      %4762 = vmatpush1.bf16.msra.mxu0 %v3954
      %4763 = vmatprep.subr.bf16.mxu0 %v3957
      %4764 = vmatpush1.bf16.msra.mxu0 %v3956
      %4765 = vmatprep.mubr.bf16.mxu0 %v2205
      %4766 = vmatmul.mubr.bf16.gmra.mrb[0].mxu0 %v2204
      %v4767 = vpop.f32.mrb[0].mxu0
      %v4768 = vadd.f32 %v4505, %v4767
      %v4769 = vpop.f32.mrb[0].mxu0
      %v4770 = vadd.f32 %v4507, %v4769
      %v4771 = vpop.f32.mrb[0].mxu0
      %v4772 = vadd.f32 %v4509, %v4771
      %v4773 = vpop.f32.mrb[0].mxu0
      %v4774 = vadd.f32 %v4511, %v4773
      %4775 = vmatprep.mubr.bf16.mxu0 %v2223
      %4776 = vmatmul.mubr.bf16.gmra.mrb[0].mxu0 %v2222
      %v4777 = vpop.f32.mrb[0].mxu0
      %v4778 = vadd.f32 %v4515, %v4777
      %v4779 = vpop.f32.mrb[0].mxu0
      %v4780 = vadd.f32 %v4517, %v4779
      %v4781 = vpop.f32.mrb[0].mxu0
      %v4782 = vadd.f32 %v4519, %v4781
      %v4783 = vpop.f32.mrb[0].mxu0
      %v4784 = vadd.f32 %v4521, %v4783
      %4785 = vmatprep.mubr.bf16.mxu0 %v2241
      %4786 = vmatmul.mubr.bf16.gmra.mrb[0].mxu0 %v2240
      %v4787 = vpop.f32.mrb[0].mxu0
      %v4788 = vadd.f32 %v4525, %v4787
      %v4789 = vpop.f32.mrb[0].mxu0
      %v4790 = vadd.f32 %v4527, %v4789
      %v4791 = vpop.f32.mrb[0].mxu0
      %v4792 = vadd.f32 %v4529, %v4791
      %v4793 = vpop.f32.mrb[0].mxu0
      %v4794 = vadd.f32 %v4531, %v4793
      %4795 = vmatprep.mubr.bf16.mxu0 %v2259
      %4796 = vmatmul.mubr.bf16.gmra.mrb[0].mxu0 %v2258
      %v4797 = vpop.f32.mrb[0].mxu0
      %v4798 = vadd.f32 %v4535, %v4797
      %v4799 = vpop.f32.mrb[0].mxu0
      %v4800 = vadd.f32 %v4537, %v4799
      %v4801 = vpop.f32.mrb[0].mxu0
      %v4802 = vadd.f32 %v4539, %v4801
      %v4803 = vpop.f32.mrb[0].mxu0
      %v4804 = vadd.f32 %v4541, %v4803
      %4805 = vmatprep.mubr.bf16.mxu0 %v2277
      %4806 = vmatmul.mubr.bf16.gmra.mrb[0].mxu0 %v2276
      %v4807 = vpop.f32.mrb[0].mxu0
      %v4808 = vadd.f32 %v4545, %v4807
      %v4809 = vpop.f32.mrb[0].mxu0
      %v4810 = vadd.f32 %v4547, %v4809
      %v4811 = vpop.f32.mrb[0].mxu0
      %v4812 = vadd.f32 %v4549, %v4811
      %v4813 = vpop.f32.mrb[0].mxu0
      %v4814 = vadd.f32 %v4551, %v4813
      %4815 = vmatprep.mubr.bf16.mxu0 %v2295
      %4816 = vmatmul.mubr.bf16.gmra.mrb[0].mxu0 %v2294
      %v4817 = vpop.f32.mrb[0].mxu0
      %v4818 = vadd.f32 %v4555, %v4817
      %v4819 = vpop.f32.mrb[0].mxu0
      %v4820 = vadd.f32 %v4557, %v4819
      %v4821 = vpop.f32.mrb[0].mxu0
      %v4822 = vadd.f32 %v4559, %v4821
      %v4823 = vpop.f32.mrb[0].mxu0
      %v4824 = vadd.f32 %v4561, %v4823
      %4825 = vmatprep.mubr.bf16.mxu0 %v2313
      %4826 = vmatmul.mubr.bf16.gmra.mrb[0].mxu0 %v2312
      %v4827 = vpop.f32.mrb[0].mxu0
      %v4828 = vadd.f32 %v4565, %v4827
      %v4829 = vpop.f32.mrb[0].mxu0
      %v4830 = vadd.f32 %v4567, %v4829
      %v4831 = vpop.f32.mrb[0].mxu0
      %v4832 = vadd.f32 %v4569, %v4831
      %v4833 = vpop.f32.mrb[0].mxu0
      %v4834 = vadd.f32 %v4571, %v4833
      %4835 = vmatprep.mubr.bf16.mxu0 %v2331
      %4836 = vmatmul.mubr.bf16.gmra.mrb[0].mxu0 %v2330
      %v4837 = vpop.f32.mrb[0].mxu0
      %v4838 = vadd.f32 %v4575, %v4837
      %v4839 = vpop.f32.mrb[0].mxu0
      %v4840 = vadd.f32 %v4577, %v4839
      %v4841 = vpop.f32.mrb[0].mxu0
      %v4842 = vadd.f32 %v4579, %v4841
      %v4843 = vpop.f32.mrb[0].mxu0
      %v4844 = vadd.f32 %v4581, %v4843
      %4845 = vmatprep.mubr.bf16.mxu0 %v2349
      %4846 = vmatmul.mubr.bf16.gmra.mrb[0].mxu0 %v2348
      %v4847 = vpop.f32.mrb[0].mxu0
      %v4848 = vadd.f32 %v4585, %v4847
      %v4849 = vpop.f32.mrb[0].mxu0
      %v4850 = vadd.f32 %v4587, %v4849
      %v4851 = vpop.f32.mrb[0].mxu0
      %v4852 = vadd.f32 %v4589, %v4851
      %v4853 = vpop.f32.mrb[0].mxu0
      %v4854 = vadd.f32 %v4591, %v4853
      %4855 = vmatprep.mubr.bf16.mxu0 %v2367
      %4856 = vmatmul.mubr.bf16.gmra.mrb[0].mxu0 %v2366
      %v4857 = vpop.f32.mrb[0].mxu0
      %v4858 = vadd.f32 %v4595, %v4857
      %v4859 = vpop.f32.mrb[0].mxu0
      %v4860 = vadd.f32 %v4597, %v4859
      %v4861 = vpop.f32.mrb[0].mxu0
      %v4862 = vadd.f32 %v4599, %v4861
      %v4863 = vpop.f32.mrb[0].mxu0
      %v4864 = vadd.f32 %v4601, %v4863
      %4865 = vmatprep.mubr.bf16.mxu0 %v2385
      %4866 = vmatmul.mubr.bf16.gmra.mrb[0].mxu0 %v2384
      %v4867 = vpop.f32.mrb[0].mxu0
      %v4868 = vadd.f32 %v4605, %v4867
      %v4869 = vpop.f32.mrb[0].mxu0
      %v4870 = vadd.f32 %v4607, %v4869
      %v4871 = vpop.f32.mrb[0].mxu0
      %v4872 = vadd.f32 %v4609, %v4871
      %v4873 = vpop.f32.mrb[0].mxu0
      %v4874 = vadd.f32 %v4611, %v4873
      %4875 = vmatprep.mubr.bf16.mxu0 %v2403
      %4876 = vmatmul.mubr.bf16.gmra.mrb[0].mxu0 %v2402
      %v4877 = vpop.f32.mrb[0].mxu0
      %v4878 = vadd.f32 %v4615, %v4877
      %v4879 = vpop.f32.mrb[0].mxu0
      %v4880 = vadd.f32 %v4617, %v4879
      %v4881 = vpop.f32.mrb[0].mxu0
      %v4882 = vadd.f32 %v4619, %v4881
      %v4883 = vpop.f32.mrb[0].mxu0
      %v4884 = vadd.f32 %v4621, %v4883
      %4885 = vmatprep.mubr.bf16.mxu0 %v2421
      %4886 = vmatmul.mubr.bf16.gmra.mrb[0].mxu0 %v2420
      %v4887 = vpop.f32.mrb[0].mxu0
      %v4888 = vadd.f32 %v4625, %v4887
      %v4889 = vpop.f32.mrb[0].mxu0
      %v4890 = vadd.f32 %v4627, %v4889
      %v4891 = vpop.f32.mrb[0].mxu0
      %v4892 = vadd.f32 %v4629, %v4891
      %v4893 = vpop.f32.mrb[0].mxu0
      %v4894 = vadd.f32 %v4631, %v4893
      %4895 = vmatprep.mubr.bf16.mxu0 %v2439
      %4896 = vmatmul.mubr.bf16.gmra.mrb[0].mxu0 %v2438
      %v4897 = vpop.f32.mrb[0].mxu0
      %v4898 = vadd.f32 %v4635, %v4897
      %v4899 = vpop.f32.mrb[0].mxu0
      %v4900 = vadd.f32 %v4637, %v4899
      %v4901 = vpop.f32.mrb[0].mxu0
      %v4902 = vadd.f32 %v4639, %v4901
      %v4903 = vpop.f32.mrb[0].mxu0
      %v4904 = vadd.f32 %v4641, %v4903
      %4905 = vmatprep.mubr.bf16.mxu0 %v2457
      %4906 = vmatmul.mubr.bf16.gmra.mrb[0].mxu0 %v2456
      %v4907 = vpop.f32.mrb[0].mxu0
      %v4908 = vadd.f32 %v4645, %v4907
      %v4909 = vpop.f32.mrb[0].mxu0
      %v4910 = vadd.f32 %v4647, %v4909
      %v4911 = vpop.f32.mrb[0].mxu0
      %v4912 = vadd.f32 %v4649, %v4911
      %v4913 = vpop.f32.mrb[0].mxu0
      %v4914 = vadd.f32 %v4651, %v4913
      %4915 = vmatprep.mubr.bf16.mxu0 %v2475
      %4916 = vmatmul.mubr.bf16.gmra.mrb[0].mxu0 %v2474
      %v4917 = vpop.f32.mrb[0].mxu0
      %v4918 = vadd.f32 %v4655, %v4917
      %v4919 = vpop.f32.mrb[0].mxu0
      %v4920 = vadd.f32 %v4657, %v4919
      %v4921 = vpop.f32.mrb[0].mxu0
      %v4922 = vadd.f32 %v4659, %v4921
      %v4923 = vpop.f32.mrb[0].mxu0
      %v4924 = vadd.f32 %v4661, %v4923
      %4925 = vmatprep.mubr.bf16.mxu0 %v2493
      %4926 = vmatmul.mubr.bf16.gmra.mrb[0].mxu0 %v2492
      %v4927 = vpop.f32.mrb[0].mxu0
      %v4928 = vadd.f32 %v4665, %v4927
      %v4929 = vpop.f32.mrb[0].mxu0
      %v4930 = vadd.f32 %v4667, %v4929
      %v4931 = vpop.f32.mrb[0].mxu0
      %v4932 = vadd.f32 %v4669, %v4931
      %v4933 = vpop.f32.mrb[0].mxu0
      %v4934 = vadd.f32 %v4671, %v4933
      %4935 = vmatprep.mubr.bf16.mxu0 %v2511
      %4936 = vmatmul.mubr.bf16.gmra.mrb[0].mxu0 %v2510
      %v4937 = vpop.f32.mrb[0].mxu0
      %v4938 = vadd.f32 %v4675, %v4937
      %v4939 = vpop.f32.mrb[0].mxu0
      %v4940 = vadd.f32 %v4677, %v4939
      %v4941 = vpop.f32.mrb[0].mxu0
      %v4942 = vadd.f32 %v4679, %v4941
      %v4943 = vpop.f32.mrb[0].mxu0
      %v4944 = vadd.f32 %v4681, %v4943
      %4945 = vmatprep.mubr.bf16.mxu0 %v2529
      %4946 = vmatmul.mubr.bf16.gmra.mrb[0].mxu0 %v2528
      %v4947 = vpop.f32.mrb[0].mxu0
      %v4948 = vadd.f32 %v4685, %v4947
      %v4949 = vpop.f32.mrb[0].mxu0
      %v4950 = vadd.f32 %v4687, %v4949
      %v4951 = vpop.f32.mrb[0].mxu0
      %v4952 = vadd.f32 %v4689, %v4951
      %v4953 = vpop.f32.mrb[0].mxu0
      %v4954 = vadd.f32 %v4691, %v4953
      %4955 = vmatprep.mubr.bf16.mxu0 %v2547
      %4956 = vmatmul.mubr.bf16.gmra.mrb[0].mxu0 %v2546
      %v4957 = vpop.f32.mrb[0].mxu0
      %v4958 = vadd.f32 %v4695, %v4957
      %v4959 = vpop.f32.mrb[0].mxu0
      %v4960 = vadd.f32 %v4697, %v4959
      %v4961 = vpop.f32.mrb[0].mxu0
      %v4962 = vadd.f32 %v4699, %v4961
      %v4963 = vpop.f32.mrb[0].mxu0
      %v4964 = vadd.f32 %v4701, %v4963
      %4965 = vmatprep.mubr.bf16.mxu0 %v2565
      %4966 = vmatmul.mubr.bf16.gmra.mrb[0].mxu0 %v2564
      %v4967 = vpop.f32.mrb[0].mxu0
      %v4968 = vadd.f32 %v4705, %v4967
      %v4969 = vpop.f32.mrb[0].mxu0
      %v4970 = vadd.f32 %v4707, %v4969
      %v4971 = vpop.f32.mrb[0].mxu0
      %v4972 = vadd.f32 %v4709, %v4971
      %v4973 = vpop.f32.mrb[0].mxu0
      %v4974 = vadd.f32 %v4711, %v4973
      %4975 = vmatprep.mubr.bf16.mxu0 %v2583
      %4976 = vmatmul.mubr.bf16.gmra.mrb[0].mxu0 %v2582
      %v4977 = vpop.f32.mrb[0].mxu0
      %v4978 = vadd.f32 %v4715, %v4977
      %v4979 = vpop.f32.mrb[0].mxu0
      %v4980 = vadd.f32 %v4717, %v4979
      %v4981 = vpop.f32.mrb[0].mxu0
      %v4982 = vadd.f32 %v4719, %v4981
      %v4983 = vpop.f32.mrb[0].mxu0
      %v4984 = vadd.f32 %v4721, %v4983
      %4985 = vmatprep.mubr.bf16.mxu0 %v2601
      %4986 = vmatmul.mubr.bf16.gmra.mrb[0].mxu0 %v2600
      %v4987 = vpop.f32.mrb[0].mxu0
      %v4988 = vadd.f32 %v4725, %v4987
      %v4989 = vpop.f32.mrb[0].mxu0
      %v4990 = vadd.f32 %v4727, %v4989
      %v4991 = vpop.f32.mrb[0].mxu0
      %v4992 = vadd.f32 %v4729, %v4991
      %v4993 = vpop.f32.mrb[0].mxu0
      %v4994 = vadd.f32 %v4731, %v4993
      %4995 = vdwg.mxu0
      %4996 = vmatprep.subr.bf16.mxu0 %v3959
      %4997 = vmatpush1.bf16.msra.mxu0 %v3958
      %4998 = vmatprep.subr.bf16.mxu0 %v3961
      %4999 = vmatpush1.bf16.msra.mxu0 %v3960
      %5000 = vmatprep.subr.bf16.mxu0 %v3963
      %5001 = vmatpush1.bf16.msra.mxu0 %v3962
      %5002 = vmatprep.subr.bf16.mxu0 %v3965
      %5003 = vmatpush1.bf16.msra.mxu0 %v3964
      %5004 = vmatprep.subr.bf16.mxu0 %v3967
      %5005 = vmatpush1.bf16.msra.mxu0 %v3966
      %5006 = vmatprep.subr.bf16.mxu0 %v3969
      %5007 = vmatpush1.bf16.msra.mxu0 %v3968
      %5008 = vmatprep.subr.bf16.mxu0 %v3971
      %5009 = vmatpush1.bf16.msra.mxu0 %v3970
      %5010 = vmatprep.subr.bf16.mxu0 %v3973
      %5011 = vmatpush1.bf16.msra.mxu0 %v3972
      %5012 = vmatprep.subr.bf16.mxu0 %v3975
      %5013 = vmatpush1.bf16.msra.mxu0 %v3974
      %5014 = vmatprep.subr.bf16.mxu0 %v3977
      %5015 = vmatpush1.bf16.msra.mxu0 %v3976
      %5016 = vmatprep.subr.bf16.mxu0 %v3979
      %5017 = vmatpush1.bf16.msra.mxu0 %v3978
      %5018 = vmatprep.subr.bf16.mxu0 %v3981
      %5019 = vmatpush1.bf16.msra.mxu0 %v3980
      %5020 = vmatprep.subr.bf16.mxu0 %v3983
      %5021 = vmatpush1.bf16.msra.mxu0 %v3982
      %5022 = vmatprep.subr.bf16.mxu0 %v3985
      %5023 = vmatpush1.bf16.msra.mxu0 %v3984
      %5024 = vmatprep.subr.bf16.mxu0 %v3987
      %5025 = vmatpush1.bf16.msra.mxu0 %v3986
      %5026 = vmatprep.subr.bf16.mxu0 %v3989
      %5027 = vmatpush1.bf16.msra.mxu0 %v3988
      %5028 = vmatprep.mubr.bf16.mxu0 %v2207
      %5029 = vmatmul.mubr.bf16.gmra.mrb[0].mxu0 %v2206
      %v5030 = vpop.f32.mrb[0].mxu0
      %v5031 = vadd.f32 %v4768, %v5030
      %v5032 = vpop.f32.mrb[0].mxu0
      %v5033 = vadd.f32 %v4770, %v5032
      %v5034 = vpop.f32.mrb[0].mxu0
      %v5035 = vadd.f32 %v4772, %v5034
      %v5036 = vpop.f32.mrb[0].mxu0
      %v5037 = vadd.f32 %v4774, %v5036
      %5038 = vmatprep.mubr.bf16.mxu0 %v2225
      %5039 = vmatmul.mubr.bf16.gmra.mrb[0].mxu0 %v2224
      %v5040 = vpop.f32.mrb[0].mxu0
      %v5041 = vadd.f32 %v4778, %v5040
      %v5042 = vpop.f32.mrb[0].mxu0
      %v5043 = vadd.f32 %v4780, %v5042
      %v5044 = vpop.f32.mrb[0].mxu0
      %v5045 = vadd.f32 %v4782, %v5044
      %v5046 = vpop.f32.mrb[0].mxu0
      %v5047 = vadd.f32 %v4784, %v5046
      %5048 = vmatprep.mubr.bf16.mxu0 %v2243
      %5049 = vmatmul.mubr.bf16.gmra.mrb[0].mxu0 %v2242
      %v5050 = vpop.f32.mrb[0].mxu0
      %v5051 = vadd.f32 %v4788, %v5050
      %v5052 = vpop.f32.mrb[0].mxu0
      %v5053 = vadd.f32 %v4790, %v5052
      %v5054 = vpop.f32.mrb[0].mxu0
      %v5055 = vadd.f32 %v4792, %v5054
      %v5056 = vpop.f32.mrb[0].mxu0
      %v5057 = vadd.f32 %v4794, %v5056
      %5058 = vmatprep.mubr.bf16.mxu0 %v2261
      %5059 = vmatmul.mubr.bf16.gmra.mrb[0].mxu0 %v2260
      %v5060 = vpop.f32.mrb[0].mxu0
      %v5061 = vadd.f32 %v4798, %v5060
      %v5062 = vpop.f32.mrb[0].mxu0
      %v5063 = vadd.f32 %v4800, %v5062
      %v5064 = vpop.f32.mrb[0].mxu0
      %v5065 = vadd.f32 %v4802, %v5064
      %v5066 = vpop.f32.mrb[0].mxu0
      %v5067 = vadd.f32 %v4804, %v5066
      %5068 = vmatprep.mubr.bf16.mxu0 %v2279
      %5069 = vmatmul.mubr.bf16.gmra.mrb[0].mxu0 %v2278
      %v5070 = vpop.f32.mrb[0].mxu0
      %v5071 = vadd.f32 %v4808, %v5070
      %v5072 = vpop.f32.mrb[0].mxu0
      %v5073 = vadd.f32 %v4810, %v5072
      %v5074 = vpop.f32.mrb[0].mxu0
      %v5075 = vadd.f32 %v4812, %v5074
      %v5076 = vpop.f32.mrb[0].mxu0
      %v5077 = vadd.f32 %v4814, %v5076
      %5078 = vmatprep.mubr.bf16.mxu0 %v2297
      %5079 = vmatmul.mubr.bf16.gmra.mrb[0].mxu0 %v2296
      %v5080 = vpop.f32.mrb[0].mxu0
      %v5081 = vadd.f32 %v4818, %v5080
      %v5082 = vpop.f32.mrb[0].mxu0
      %v5083 = vadd.f32 %v4820, %v5082
      %v5084 = vpop.f32.mrb[0].mxu0
      %v5085 = vadd.f32 %v4822, %v5084
      %v5086 = vpop.f32.mrb[0].mxu0
      %v5087 = vadd.f32 %v4824, %v5086
      %5088 = vmatprep.mubr.bf16.mxu0 %v2315
      %5089 = vmatmul.mubr.bf16.gmra.mrb[0].mxu0 %v2314
      %v5090 = vpop.f32.mrb[0].mxu0
      %v5091 = vadd.f32 %v4828, %v5090
      %v5092 = vpop.f32.mrb[0].mxu0
      %v5093 = vadd.f32 %v4830, %v5092
      %v5094 = vpop.f32.mrb[0].mxu0
      %v5095 = vadd.f32 %v4832, %v5094
      %v5096 = vpop.f32.mrb[0].mxu0
      %v5097 = vadd.f32 %v4834, %v5096
      %5098 = vmatprep.mubr.bf16.mxu0 %v2333
      %5099 = vmatmul.mubr.bf16.gmra.mrb[0].mxu0 %v2332
      %v5100 = vpop.f32.mrb[0].mxu0
      %v5101 = vadd.f32 %v4838, %v5100
      %v5102 = vpop.f32.mrb[0].mxu0
      %v5103 = vadd.f32 %v4840, %v5102
      %v5104 = vpop.f32.mrb[0].mxu0
      %v5105 = vadd.f32 %v4842, %v5104
      %v5106 = vpop.f32.mrb[0].mxu0
      %v5107 = vadd.f32 %v4844, %v5106
      %5108 = vmatprep.mubr.bf16.mxu0 %v2351
      %5109 = vmatmul.mubr.bf16.gmra.mrb[0].mxu0 %v2350
      %v5110 = vpop.f32.mrb[0].mxu0
      %v5111 = vadd.f32 %v4848, %v5110
      %v5112 = vpop.f32.mrb[0].mxu0
      %v5113 = vadd.f32 %v4850, %v5112
      %v5114 = vpop.f32.mrb[0].mxu0
      %v5115 = vadd.f32 %v4852, %v5114
      %v5116 = vpop.f32.mrb[0].mxu0
      %v5117 = vadd.f32 %v4854, %v5116
      %5118 = vmatprep.mubr.bf16.mxu0 %v2369
      %5119 = vmatmul.mubr.bf16.gmra.mrb[0].mxu0 %v2368
      %v5120 = vpop.f32.mrb[0].mxu0
      %v5121 = vadd.f32 %v4858, %v5120
      %v5122 = vpop.f32.mrb[0].mxu0
      %v5123 = vadd.f32 %v4860, %v5122
      %v5124 = vpop.f32.mrb[0].mxu0
      %v5125 = vadd.f32 %v4862, %v5124
      %v5126 = vpop.f32.mrb[0].mxu0
      %v5127 = vadd.f32 %v4864, %v5126
      %5128 = vmatprep.mubr.bf16.mxu0 %v2387
      %5129 = vmatmul.mubr.bf16.gmra.mrb[0].mxu0 %v2386
      %v5130 = vpop.f32.mrb[0].mxu0
      %v5131 = vadd.f32 %v4868, %v5130
      %v5132 = vpop.f32.mrb[0].mxu0
      %v5133 = vadd.f32 %v4870, %v5132
      %v5134 = vpop.f32.mrb[0].mxu0
      %v5135 = vadd.f32 %v4872, %v5134
      %v5136 = vpop.f32.mrb[0].mxu0
      %v5137 = vadd.f32 %v4874, %v5136
      %5138 = vmatprep.mubr.bf16.mxu0 %v2405
      %5139 = vmatmul.mubr.bf16.gmra.mrb[0].mxu0 %v2404
      %v5140 = vpop.f32.mrb[0].mxu0
      %v5141 = vadd.f32 %v4878, %v5140
      %v5142 = vpop.f32.mrb[0].mxu0
      %v5143 = vadd.f32 %v4880, %v5142
      %v5144 = vpop.f32.mrb[0].mxu0
      %v5145 = vadd.f32 %v4882, %v5144
      %v5146 = vpop.f32.mrb[0].mxu0
      %v5147 = vadd.f32 %v4884, %v5146
      %5148 = vmatprep.mubr.bf16.mxu0 %v2423
      %5149 = vmatmul.mubr.bf16.gmra.mrb[0].mxu0 %v2422
      %v5150 = vpop.f32.mrb[0].mxu0
      %v5151 = vadd.f32 %v4888, %v5150
      %v5152 = vpop.f32.mrb[0].mxu0
      %v5153 = vadd.f32 %v4890, %v5152
      %v5154 = vpop.f32.mrb[0].mxu0
      %v5155 = vadd.f32 %v4892, %v5154
      %v5156 = vpop.f32.mrb[0].mxu0
      %v5157 = vadd.f32 %v4894, %v5156
      %5158 = vmatprep.mubr.bf16.mxu0 %v2441
      %5159 = vmatmul.mubr.bf16.gmra.mrb[0].mxu0 %v2440
      %v5160 = vpop.f32.mrb[0].mxu0
      %v5161 = vadd.f32 %v4898, %v5160
      %v5162 = vpop.f32.mrb[0].mxu0
      %v5163 = vadd.f32 %v4900, %v5162
      %v5164 = vpop.f32.mrb[0].mxu0
      %v5165 = vadd.f32 %v4902, %v5164
      %v5166 = vpop.f32.mrb[0].mxu0
      %v5167 = vadd.f32 %v4904, %v5166
      %5168 = vmatprep.mubr.bf16.mxu0 %v2459
      %5169 = vmatmul.mubr.bf16.gmra.mrb[0].mxu0 %v2458
      %v5170 = vpop.f32.mrb[0].mxu0
      %v5171 = vadd.f32 %v4908, %v5170
      %v5172 = vpop.f32.mrb[0].mxu0
      %v5173 = vadd.f32 %v4910, %v5172
      %v5174 = vpop.f32.mrb[0].mxu0
      %v5175 = vadd.f32 %v4912, %v5174
      %v5176 = vpop.f32.mrb[0].mxu0
      %v5177 = vadd.f32 %v4914, %v5176
      %5178 = vmatprep.mubr.bf16.mxu0 %v2477
      %5179 = vmatmul.mubr.bf16.gmra.mrb[0].mxu0 %v2476
      %v5180 = vpop.f32.mrb[0].mxu0
      %v5181 = vadd.f32 %v4918, %v5180
      %v5182 = vpop.f32.mrb[0].mxu0
      %v5183 = vadd.f32 %v4920, %v5182
      %v5184 = vpop.f32.mrb[0].mxu0
      %v5185 = vadd.f32 %v4922, %v5184
      %v5186 = vpop.f32.mrb[0].mxu0
      %v5187 = vadd.f32 %v4924, %v5186
      %5188 = vmatprep.mubr.bf16.mxu0 %v2495
      %5189 = vmatmul.mubr.bf16.gmra.mrb[0].mxu0 %v2494
      %v5190 = vpop.f32.mrb[0].mxu0
      %v5191 = vadd.f32 %v4928, %v5190
      %v5192 = vpop.f32.mrb[0].mxu0
      %v5193 = vadd.f32 %v4930, %v5192
      %v5194 = vpop.f32.mrb[0].mxu0
      %v5195 = vadd.f32 %v4932, %v5194
      %v5196 = vpop.f32.mrb[0].mxu0
      %v5197 = vadd.f32 %v4934, %v5196
      %5198 = vmatprep.mubr.bf16.mxu0 %v2513
      %5199 = vmatmul.mubr.bf16.gmra.mrb[0].mxu0 %v2512
      %v5200 = vpop.f32.mrb[0].mxu0
      %v5201 = vadd.f32 %v4938, %v5200
      %v5202 = vpop.f32.mrb[0].mxu0
      %v5203 = vadd.f32 %v4940, %v5202
      %v5204 = vpop.f32.mrb[0].mxu0
      %v5205 = vadd.f32 %v4942, %v5204
      %v5206 = vpop.f32.mrb[0].mxu0
      %v5207 = vadd.f32 %v4944, %v5206
      %5208 = vmatprep.mubr.bf16.mxu0 %v2531
      %5209 = vmatmul.mubr.bf16.gmra.mrb[0].mxu0 %v2530
      %v5210 = vpop.f32.mrb[0].mxu0
      %v5211 = vadd.f32 %v4948, %v5210
      %v5212 = vpop.f32.mrb[0].mxu0
      %v5213 = vadd.f32 %v4950, %v5212
      %v5214 = vpop.f32.mrb[0].mxu0
      %v5215 = vadd.f32 %v4952, %v5214
      %v5216 = vpop.f32.mrb[0].mxu0
      %v5217 = vadd.f32 %v4954, %v5216
      %5218 = vmatprep.mubr.bf16.mxu0 %v2549
      %5219 = vmatmul.mubr.bf16.gmra.mrb[0].mxu0 %v2548
      %v5220 = vpop.f32.mrb[0].mxu0
      %v5221 = vadd.f32 %v4958, %v5220
      %v5222 = vpop.f32.mrb[0].mxu0
      %v5223 = vadd.f32 %v4960, %v5222
      %v5224 = vpop.f32.mrb[0].mxu0
      %v5225 = vadd.f32 %v4962, %v5224
      %v5226 = vpop.f32.mrb[0].mxu0
      %v5227 = vadd.f32 %v4964, %v5226
      %5228 = vmatprep.mubr.bf16.mxu0 %v2567
      %5229 = vmatmul.mubr.bf16.gmra.mrb[0].mxu0 %v2566
      %v5230 = vpop.f32.mrb[0].mxu0
      %v5231 = vadd.f32 %v4968, %v5230
      %v5232 = vpop.f32.mrb[0].mxu0
      %v5233 = vadd.f32 %v4970, %v5232
      %v5234 = vpop.f32.mrb[0].mxu0
      %v5235 = vadd.f32 %v4972, %v5234
      %v5236 = vpop.f32.mrb[0].mxu0
      %v5237 = vadd.f32 %v4974, %v5236
      %5238 = vmatprep.mubr.bf16.mxu0 %v2585
      %5239 = vmatmul.mubr.bf16.gmra.mrb[0].mxu0 %v2584
      %v5240 = vpop.f32.mrb[0].mxu0
      %v5241 = vadd.f32 %v4978, %v5240
      %v5242 = vpop.f32.mrb[0].mxu0
      %v5243 = vadd.f32 %v4980, %v5242
      %v5244 = vpop.f32.mrb[0].mxu0
      %v5245 = vadd.f32 %v4982, %v5244
      %v5246 = vpop.f32.mrb[0].mxu0
      %v5247 = vadd.f32 %v4984, %v5246
      %5248 = vmatprep.mubr.bf16.mxu0 %v2603
      %5249 = vmatmul.mubr.bf16.gmra.mrb[0].mxu0 %v2602
      %v5250 = vpop.f32.mrb[0].mxu0
      %v5251 = vadd.f32 %v4988, %v5250
      %v5252 = vpop.f32.mrb[0].mxu0
      %v5253 = vadd.f32 %v4990, %v5252
      %v5254 = vpop.f32.mrb[0].mxu0
      %v5255 = vadd.f32 %v4992, %v5254
      %v5256 = vpop.f32.mrb[0].mxu0
      %v5257 = vadd.f32 %v4994, %v5256
      %5258 = vdwg.mxu0
      %5259 = vmatprep.subr.bf16.mxu0 %v3991
      %5260 = vmatpush1.bf16.msra.mxu0 %v3990
      %5261 = vmatprep.subr.bf16.mxu0 %v3993
      %5262 = vmatpush1.bf16.msra.mxu0 %v3992
      %5263 = vmatprep.subr.bf16.mxu0 %v3995
      %5264 = vmatpush1.bf16.msra.mxu0 %v3994
      %5265 = vmatprep.subr.bf16.mxu0 %v3997
      %5266 = vmatpush1.bf16.msra.mxu0 %v3996
      %5267 = vmatprep.subr.bf16.mxu0 %v3999
      %5268 = vmatpush1.bf16.msra.mxu0 %v3998
      %5269 = vmatprep.subr.bf16.mxu0 %v4001
      %5270 = vmatpush1.bf16.msra.mxu0 %v4000
      %5271 = vmatprep.subr.bf16.mxu0 %v4003
      %5272 = vmatpush1.bf16.msra.mxu0 %v4002
      %5273 = vmatprep.subr.bf16.mxu0 %v4005
      %5274 = vmatpush1.bf16.msra.mxu0 %v4004
      %5275 = vmatprep.subr.bf16.mxu0 %v4007
      %5276 = vmatpush1.bf16.msra.mxu0 %v4006
      %5277 = vmatprep.subr.bf16.mxu0 %v4009
      %5278 = vmatpush1.bf16.msra.mxu0 %v4008
      %5279 = vmatprep.subr.bf16.mxu0 %v4011
      %5280 = vmatpush1.bf16.msra.mxu0 %v4010
      %5281 = vmatprep.subr.bf16.mxu0 %v4013
      %5282 = vmatpush1.bf16.msra.mxu0 %v4012
      %5283 = vmatprep.subr.bf16.mxu0 %v4015
      %5284 = vmatpush1.bf16.msra.mxu0 %v4014
      %5285 = vmatprep.subr.bf16.mxu0 %v4017
      %5286 = vmatpush1.bf16.msra.mxu0 %v4016
      %5287 = vmatprep.subr.bf16.mxu0 %v4019
      %5288 = vmatpush1.bf16.msra.mxu0 %v4018
      %5289 = vmatprep.subr.bf16.mxu0 %v4021
      %5290 = vmatpush1.bf16.msra.mxu0 %v4020
      %5291 = vmatprep.mubr.bf16.mxu0 %v2209
      %5292 = vmatmul.mubr.bf16.gmra.mrb[0].mxu0 %v2208
      %v5293 = vpop.f32.mrb[0].mxu0
      %v5294 = vadd.f32 %v5031, %v5293
      %v5295 = vpop.f32.mrb[0].mxu0
      %v5296 = vadd.f32 %v5033, %v5295
      %v5297 = vpop.f32.mrb[0].mxu0
      %v5298 = vadd.f32 %v5035, %v5297
      %v5299 = vpop.f32.mrb[0].mxu0
      %v5300 = vadd.f32 %v5037, %v5299
      %5301 = vmatprep.mubr.bf16.mxu0 %v2227
      %5302 = vmatmul.mubr.bf16.gmra.mrb[0].mxu0 %v2226
      %v5303 = vpop.f32.mrb[0].mxu0
      %v5304 = vadd.f32 %v5041, %v5303
      %v5305 = vpop.f32.mrb[0].mxu0
      %v5306 = vadd.f32 %v5043, %v5305
      %v5307 = vpop.f32.mrb[0].mxu0
      %v5308 = vadd.f32 %v5045, %v5307
      %v5309 = vpop.f32.mrb[0].mxu0
      %v5310 = vadd.f32 %v5047, %v5309
      %5311 = vmatprep.mubr.bf16.mxu0 %v2245
      %5312 = vmatmul.mubr.bf16.gmra.mrb[0].mxu0 %v2244
      %v5313 = vpop.f32.mrb[0].mxu0
      %v5314 = vadd.f32 %v5051, %v5313
      %v5315 = vpop.f32.mrb[0].mxu0
      %v5316 = vadd.f32 %v5053, %v5315
      %v5317 = vpop.f32.mrb[0].mxu0
      %v5318 = vadd.f32 %v5055, %v5317
      %v5319 = vpop.f32.mrb[0].mxu0
      %v5320 = vadd.f32 %v5057, %v5319
      %5321 = vmatprep.mubr.bf16.mxu0 %v2263
      %5322 = vmatmul.mubr.bf16.gmra.mrb[0].mxu0 %v2262
      %v5323 = vpop.f32.mrb[0].mxu0
      %v5324 = vadd.f32 %v5061, %v5323
      %v5325 = vpop.f32.mrb[0].mxu0
      %v5326 = vadd.f32 %v5063, %v5325
      %v5327 = vpop.f32.mrb[0].mxu0
      %v5328 = vadd.f32 %v5065, %v5327
      %v5329 = vpop.f32.mrb[0].mxu0
      %v5330 = vadd.f32 %v5067, %v5329
      %5331 = vmatprep.mubr.bf16.mxu0 %v2281
      %5332 = vmatmul.mubr.bf16.gmra.mrb[0].mxu0 %v2280
      %v5333 = vpop.f32.mrb[0].mxu0
      %v5334 = vadd.f32 %v5071, %v5333
      %v5335 = vpop.f32.mrb[0].mxu0
      %v5336 = vadd.f32 %v5073, %v5335
      %v5337 = vpop.f32.mrb[0].mxu0
      %v5338 = vadd.f32 %v5075, %v5337
      %v5339 = vpop.f32.mrb[0].mxu0
      %v5340 = vadd.f32 %v5077, %v5339
      %5341 = vmatprep.mubr.bf16.mxu0 %v2299
      %5342 = vmatmul.mubr.bf16.gmra.mrb[0].mxu0 %v2298
      %v5343 = vpop.f32.mrb[0].mxu0
      %v5344 = vadd.f32 %v5081, %v5343
      %v5345 = vpop.f32.mrb[0].mxu0
      %v5346 = vadd.f32 %v5083, %v5345
      %v5347 = vpop.f32.mrb[0].mxu0
      %v5348 = vadd.f32 %v5085, %v5347
      %v5349 = vpop.f32.mrb[0].mxu0
      %v5350 = vadd.f32 %v5087, %v5349
      %5351 = vmatprep.mubr.bf16.mxu0 %v2317
      %5352 = vmatmul.mubr.bf16.gmra.mrb[0].mxu0 %v2316
      %v5353 = vpop.f32.mrb[0].mxu0
      %v5354 = vadd.f32 %v5091, %v5353
      %v5355 = vpop.f32.mrb[0].mxu0
      %v5356 = vadd.f32 %v5093, %v5355
      %v5357 = vpop.f32.mrb[0].mxu0
      %v5358 = vadd.f32 %v5095, %v5357
      %v5359 = vpop.f32.mrb[0].mxu0
      %v5360 = vadd.f32 %v5097, %v5359
      %5361 = vmatprep.mubr.bf16.mxu0 %v2335
      %5362 = vmatmul.mubr.bf16.gmra.mrb[0].mxu0 %v2334
      %v5363 = vpop.f32.mrb[0].mxu0
      %v5364 = vadd.f32 %v5101, %v5363
      %v5365 = vpop.f32.mrb[0].mxu0
      %v5366 = vadd.f32 %v5103, %v5365
      %v5367 = vpop.f32.mrb[0].mxu0
      %v5368 = vadd.f32 %v5105, %v5367
      %v5369 = vpop.f32.mrb[0].mxu0
      %v5370 = vadd.f32 %v5107, %v5369
      %5371 = vmatprep.mubr.bf16.mxu0 %v2353
      %5372 = vmatmul.mubr.bf16.gmra.mrb[0].mxu0 %v2352
      %v5373 = vpop.f32.mrb[0].mxu0
      %v5374 = vadd.f32 %v5111, %v5373
      %v5375 = vpop.f32.mrb[0].mxu0
      %v5376 = vadd.f32 %v5113, %v5375
      %v5377 = vpop.f32.mrb[0].mxu0
      %v5378 = vadd.f32 %v5115, %v5377
      %v5379 = vpop.f32.mrb[0].mxu0
      %v5380 = vadd.f32 %v5117, %v5379
      %5381 = vmatprep.mubr.bf16.mxu0 %v2371
      %5382 = vmatmul.mubr.bf16.gmra.mrb[0].mxu0 %v2370
      %v5383 = vpop.f32.mrb[0].mxu0
      %v5384 = vadd.f32 %v5121, %v5383
      %v5385 = vpop.f32.mrb[0].mxu0
      %v5386 = vadd.f32 %v5123, %v5385
      %v5387 = vpop.f32.mrb[0].mxu0
      %v5388 = vadd.f32 %v5125, %v5387
      %v5389 = vpop.f32.mrb[0].mxu0
      %v5390 = vadd.f32 %v5127, %v5389
      %5391 = vmatprep.mubr.bf16.mxu0 %v2389
      %5392 = vmatmul.mubr.bf16.gmra.mrb[0].mxu0 %v2388
      %v5393 = vpop.f32.mrb[0].mxu0
      %v5394 = vadd.f32 %v5131, %v5393
      %v5395 = vpop.f32.mrb[0].mxu0
      %v5396 = vadd.f32 %v5133, %v5395
      %v5397 = vpop.f32.mrb[0].mxu0
      %v5398 = vadd.f32 %v5135, %v5397
      %v5399 = vpop.f32.mrb[0].mxu0
      %v5400 = vadd.f32 %v5137, %v5399
      %5401 = vmatprep.mubr.bf16.mxu0 %v2407
      %5402 = vmatmul.mubr.bf16.gmra.mrb[0].mxu0 %v2406
      %v5403 = vpop.f32.mrb[0].mxu0
      %v5404 = vadd.f32 %v5141, %v5403
      %v5405 = vpop.f32.mrb[0].mxu0
      %v5406 = vadd.f32 %v5143, %v5405
      %v5407 = vpop.f32.mrb[0].mxu0
      %v5408 = vadd.f32 %v5145, %v5407
      %v5409 = vpop.f32.mrb[0].mxu0
      %v5410 = vadd.f32 %v5147, %v5409
      %5411 = vmatprep.mubr.bf16.mxu0 %v2425
      %5412 = vmatmul.mubr.bf16.gmra.mrb[0].mxu0 %v2424
      %v5413 = vpop.f32.mrb[0].mxu0
      %v5414 = vadd.f32 %v5151, %v5413
      %v5415 = vpop.f32.mrb[0].mxu0
      %v5416 = vadd.f32 %v5153, %v5415
      %v5417 = vpop.f32.mrb[0].mxu0
      %v5418 = vadd.f32 %v5155, %v5417
      %v5419 = vpop.f32.mrb[0].mxu0
      %v5420 = vadd.f32 %v5157, %v5419
      %5421 = vmatprep.mubr.bf16.mxu0 %v2443
      %5422 = vmatmul.mubr.bf16.gmra.mrb[0].mxu0 %v2442
      %v5423 = vpop.f32.mrb[0].mxu0
      %v5424 = vadd.f32 %v5161, %v5423
      %v5425 = vpop.f32.mrb[0].mxu0
      %v5426 = vadd.f32 %v5163, %v5425
      %v5427 = vpop.f32.mrb[0].mxu0
      %v5428 = vadd.f32 %v5165, %v5427
      %v5429 = vpop.f32.mrb[0].mxu0
      %v5430 = vadd.f32 %v5167, %v5429
      %5431 = vmatprep.mubr.bf16.mxu0 %v2461
      %5432 = vmatmul.mubr.bf16.gmra.mrb[0].mxu0 %v2460
      %v5433 = vpop.f32.mrb[0].mxu0
      %v5434 = vadd.f32 %v5171, %v5433
      %v5435 = vpop.f32.mrb[0].mxu0
      %v5436 = vadd.f32 %v5173, %v5435
      %v5437 = vpop.f32.mrb[0].mxu0
      %v5438 = vadd.f32 %v5175, %v5437
      %v5439 = vpop.f32.mrb[0].mxu0
      %v5440 = vadd.f32 %v5177, %v5439
      %5441 = vmatprep.mubr.bf16.mxu0 %v2479
      %5442 = vmatmul.mubr.bf16.gmra.mrb[0].mxu0 %v2478
      %v5443 = vpop.f32.mrb[0].mxu0
      %v5444 = vadd.f32 %v5181, %v5443
      %v5445 = vpop.f32.mrb[0].mxu0
      %v5446 = vadd.f32 %v5183, %v5445
      %v5447 = vpop.f32.mrb[0].mxu0
      %v5448 = vadd.f32 %v5185, %v5447
      %v5449 = vpop.f32.mrb[0].mxu0
      %v5450 = vadd.f32 %v5187, %v5449
      %5451 = vmatprep.mubr.bf16.mxu0 %v2497
      %5452 = vmatmul.mubr.bf16.gmra.mrb[0].mxu0 %v2496
      %v5453 = vpop.f32.mrb[0].mxu0
      %v5454 = vadd.f32 %v5191, %v5453
      %v5455 = vpop.f32.mrb[0].mxu0
      %v5456 = vadd.f32 %v5193, %v5455
      %v5457 = vpop.f32.mrb[0].mxu0
      %v5458 = vadd.f32 %v5195, %v5457
      %v5459 = vpop.f32.mrb[0].mxu0
      %v5460 = vadd.f32 %v5197, %v5459
      %5461 = vmatprep.mubr.bf16.mxu0 %v2515
      %5462 = vmatmul.mubr.bf16.gmra.mrb[0].mxu0 %v2514
      %v5463 = vpop.f32.mrb[0].mxu0
      %v5464 = vadd.f32 %v5201, %v5463
      %v5465 = vpop.f32.mrb[0].mxu0
      %v5466 = vadd.f32 %v5203, %v5465
      %v5467 = vpop.f32.mrb[0].mxu0
      %v5468 = vadd.f32 %v5205, %v5467
      %v5469 = vpop.f32.mrb[0].mxu0
      %v5470 = vadd.f32 %v5207, %v5469
      %5471 = vmatprep.mubr.bf16.mxu0 %v2533
      %5472 = vmatmul.mubr.bf16.gmra.mrb[0].mxu0 %v2532
      %v5473 = vpop.f32.mrb[0].mxu0
      %v5474 = vadd.f32 %v5211, %v5473
      %v5475 = vpop.f32.mrb[0].mxu0
      %v5476 = vadd.f32 %v5213, %v5475
      %v5477 = vpop.f32.mrb[0].mxu0
      %v5478 = vadd.f32 %v5215, %v5477
      %v5479 = vpop.f32.mrb[0].mxu0
      %v5480 = vadd.f32 %v5217, %v5479
      %5481 = vmatprep.mubr.bf16.mxu0 %v2551
      %5482 = vmatmul.mubr.bf16.gmra.mrb[0].mxu0 %v2550
      %v5483 = vpop.f32.mrb[0].mxu0
      %v5484 = vadd.f32 %v5221, %v5483
      %v5485 = vpop.f32.mrb[0].mxu0
      %v5486 = vadd.f32 %v5223, %v5485
      %v5487 = vpop.f32.mrb[0].mxu0
      %v5488 = vadd.f32 %v5225, %v5487
      %v5489 = vpop.f32.mrb[0].mxu0
      %v5490 = vadd.f32 %v5227, %v5489
      %5491 = vmatprep.mubr.bf16.mxu0 %v2569
      %5492 = vmatmul.mubr.bf16.gmra.mrb[0].mxu0 %v2568
      %v5493 = vpop.f32.mrb[0].mxu0
      %v5494 = vadd.f32 %v5231, %v5493
      %v5495 = vpop.f32.mrb[0].mxu0
      %v5496 = vadd.f32 %v5233, %v5495
      %v5497 = vpop.f32.mrb[0].mxu0
      %v5498 = vadd.f32 %v5235, %v5497
      %v5499 = vpop.f32.mrb[0].mxu0
      %v5500 = vadd.f32 %v5237, %v5499
      %5501 = vmatprep.mubr.bf16.mxu0 %v2587
      %5502 = vmatmul.mubr.bf16.gmra.mrb[0].mxu0 %v2586
      %v5503 = vpop.f32.mrb[0].mxu0
      %v5504 = vadd.f32 %v5241, %v5503
      %v5505 = vpop.f32.mrb[0].mxu0
      %v5506 = vadd.f32 %v5243, %v5505
      %v5507 = vpop.f32.mrb[0].mxu0
      %v5508 = vadd.f32 %v5245, %v5507
      %v5509 = vpop.f32.mrb[0].mxu0
      %v5510 = vadd.f32 %v5247, %v5509
      %5511 = vmatprep.mubr.bf16.mxu0 %v2605
      %5512 = vmatmul.mubr.bf16.gmra.mrb[0].mxu0 %v2604
      %v5513 = vpop.f32.mrb[0].mxu0
      %v5514 = vadd.f32 %v5251, %v5513
      %v5515 = vpop.f32.mrb[0].mxu0
      %v5516 = vadd.f32 %v5253, %v5515
      %v5517 = vpop.f32.mrb[0].mxu0
      %v5518 = vadd.f32 %v5255, %v5517
      %v5519 = vpop.f32.mrb[0].mxu0
      %v5520 = vadd.f32 %v5257, %v5519
      %5521 = vdwg.mxu0
      %5522 = vmatprep.subr.bf16.mxu0 %v4023
      %5523 = vmatpush1.bf16.msra.mxu0 %v4022
      %5524 = vmatprep.subr.bf16.mxu0 %v4025
      %5525 = vmatpush1.bf16.msra.mxu0 %v4024
      %5526 = vmatprep.subr.bf16.mxu0 %v4027
      %5527 = vmatpush1.bf16.msra.mxu0 %v4026
      %5528 = vmatprep.subr.bf16.mxu0 %v4029
      %5529 = vmatpush1.bf16.msra.mxu0 %v4028
      %5530 = vmatprep.subr.bf16.mxu0 %v4031
      %5531 = vmatpush1.bf16.msra.mxu0 %v4030
      %5532 = vmatprep.subr.bf16.mxu0 %v4033
      %5533 = vmatpush1.bf16.msra.mxu0 %v4032
      %5534 = vmatprep.subr.bf16.mxu0 %v4035
      %5535 = vmatpush1.bf16.msra.mxu0 %v4034
      %5536 = vmatprep.subr.bf16.mxu0 %v4037
      %5537 = vmatpush1.bf16.msra.mxu0 %v4036
      %5538 = vmatprep.subr.bf16.mxu0 %v4039
      %5539 = vmatpush1.bf16.msra.mxu0 %v4038
      %5540 = vmatprep.subr.bf16.mxu0 %v4041
      %5541 = vmatpush1.bf16.msra.mxu0 %v4040
      %5542 = vmatprep.subr.bf16.mxu0 %v4043
      %5543 = vmatpush1.bf16.msra.mxu0 %v4042
      %5544 = vmatprep.subr.bf16.mxu0 %v4045
      %5545 = vmatpush1.bf16.msra.mxu0 %v4044
      %5546 = vmatprep.subr.bf16.mxu0 %v4047
      %5547 = vmatpush1.bf16.msra.mxu0 %v4046
      %5548 = vmatprep.subr.bf16.mxu0 %v4049
      %5549 = vmatpush1.bf16.msra.mxu0 %v4048
      %5550 = vmatprep.subr.bf16.mxu0 %v4051
      %5551 = vmatpush1.bf16.msra.mxu0 %v4050
      %5552 = vmatprep.subr.bf16.mxu0 %v4053
      %5553 = vmatpush1.bf16.msra.mxu0 %v4052
      %5554 = vmatprep.mubr.bf16.mxu0 %v2211
      %5555 = vmatmul.mubr.bf16.gmra.mrb[0].mxu0 %v2210
      %v5556 = vpop.f32.mrb[0].mxu0
      %v5557 = vadd.f32 %v5294, %v5556
      %v5558 = vpop.f32.mrb[0].mxu0
      %v5559 = vadd.f32 %v5296, %v5558
      %v5560 = vpop.f32.mrb[0].mxu0
      %v5561 = vadd.f32 %v5298, %v5560
      %v5562 = vpop.f32.mrb[0].mxu0
      %v5563 = vadd.f32 %v5300, %v5562
      %5564 = vmatprep.mubr.bf16.mxu0 %v2229
      %5565 = vmatmul.mubr.bf16.gmra.mrb[0].mxu0 %v2228
      %v5566 = vpop.f32.mrb[0].mxu0
      %v5567 = vadd.f32 %v5304, %v5566
      %v5568 = vpop.f32.mrb[0].mxu0
      %v5569 = vadd.f32 %v5306, %v5568
      %v5570 = vpop.f32.mrb[0].mxu0
      %v5571 = vadd.f32 %v5308, %v5570
      %v5572 = vpop.f32.mrb[0].mxu0
      %v5573 = vadd.f32 %v5310, %v5572
      %5574 = vmatprep.mubr.bf16.mxu0 %v2247
      %5575 = vmatmul.mubr.bf16.gmra.mrb[0].mxu0 %v2246
      %v5576 = vpop.f32.mrb[0].mxu0
      %v5577 = vadd.f32 %v5314, %v5576
      %v5578 = vpop.f32.mrb[0].mxu0
      %v5579 = vadd.f32 %v5316, %v5578
      %v5580 = vpop.f32.mrb[0].mxu0
      %v5581 = vadd.f32 %v5318, %v5580
      %v5582 = vpop.f32.mrb[0].mxu0
      %v5583 = vadd.f32 %v5320, %v5582
      %5584 = vmatprep.mubr.bf16.mxu0 %v2265
      %5585 = vmatmul.mubr.bf16.gmra.mrb[0].mxu0 %v2264
      %v5586 = vpop.f32.mrb[0].mxu0
      %v5587 = vadd.f32 %v5324, %v5586
      %v5588 = vpop.f32.mrb[0].mxu0
      %v5589 = vadd.f32 %v5326, %v5588
      %v5590 = vpop.f32.mrb[0].mxu0
      %v5591 = vadd.f32 %v5328, %v5590
      %v5592 = vpop.f32.mrb[0].mxu0
      %v5593 = vadd.f32 %v5330, %v5592
      %5594 = vmatprep.mubr.bf16.mxu0 %v2283
      %5595 = vmatmul.mubr.bf16.gmra.mrb[0].mxu0 %v2282
      %v5596 = vpop.f32.mrb[0].mxu0
      %v5597 = vadd.f32 %v5334, %v5596
      %v5598 = vpop.f32.mrb[0].mxu0
      %v5599 = vadd.f32 %v5336, %v5598
      %v5600 = vpop.f32.mrb[0].mxu0
      %v5601 = vadd.f32 %v5338, %v5600
      %v5602 = vpop.f32.mrb[0].mxu0
      %v5603 = vadd.f32 %v5340, %v5602
      %5604 = vmatprep.mubr.bf16.mxu0 %v2301
      %5605 = vmatmul.mubr.bf16.gmra.mrb[0].mxu0 %v2300
      %v5606 = vpop.f32.mrb[0].mxu0
      %v5607 = vadd.f32 %v5344, %v5606
      %v5608 = vpop.f32.mrb[0].mxu0
      %v5609 = vadd.f32 %v5346, %v5608
      %v5610 = vpop.f32.mrb[0].mxu0
      %v5611 = vadd.f32 %v5348, %v5610
      %v5612 = vpop.f32.mrb[0].mxu0
      %v5613 = vadd.f32 %v5350, %v5612
      %5614 = vmatprep.mubr.bf16.mxu0 %v2319
      %5615 = vmatmul.mubr.bf16.gmra.mrb[0].mxu0 %v2318
      %v5616 = vpop.f32.mrb[0].mxu0
      %v5617 = vadd.f32 %v5354, %v5616
      %v5618 = vpop.f32.mrb[0].mxu0
      %v5619 = vadd.f32 %v5356, %v5618
      %v5620 = vpop.f32.mrb[0].mxu0
      %v5621 = vadd.f32 %v5358, %v5620
      %v5622 = vpop.f32.mrb[0].mxu0
      %v5623 = vadd.f32 %v5360, %v5622
      %5624 = vmatprep.mubr.bf16.mxu0 %v2337
      %5625 = vmatmul.mubr.bf16.gmra.mrb[0].mxu0 %v2336
      %v5626 = vpop.f32.mrb[0].mxu0
      %v5627 = vadd.f32 %v5364, %v5626
      %v5628 = vpop.f32.mrb[0].mxu0
      %v5629 = vadd.f32 %v5366, %v5628
      %v5630 = vpop.f32.mrb[0].mxu0
      %v5631 = vadd.f32 %v5368, %v5630
      %v5632 = vpop.f32.mrb[0].mxu0
      %v5633 = vadd.f32 %v5370, %v5632
      %5634 = vmatprep.mubr.bf16.mxu0 %v2355
      %5635 = vmatmul.mubr.bf16.gmra.mrb[0].mxu0 %v2354
      %v5636 = vpop.f32.mrb[0].mxu0
      %v5637 = vadd.f32 %v5374, %v5636
      %v5638 = vpop.f32.mrb[0].mxu0
      %v5639 = vadd.f32 %v5376, %v5638
      %v5640 = vpop.f32.mrb[0].mxu0
      %v5641 = vadd.f32 %v5378, %v5640
      %v5642 = vpop.f32.mrb[0].mxu0
      %v5643 = vadd.f32 %v5380, %v5642
      %5644 = vmatprep.mubr.bf16.mxu0 %v2373
      %5645 = vmatmul.mubr.bf16.gmra.mrb[0].mxu0 %v2372
      %v5646 = vpop.f32.mrb[0].mxu0
      %v5647 = vadd.f32 %v5384, %v5646
      %v5648 = vpop.f32.mrb[0].mxu0
      %v5649 = vadd.f32 %v5386, %v5648
      %v5650 = vpop.f32.mrb[0].mxu0
      %v5651 = vadd.f32 %v5388, %v5650
      %v5652 = vpop.f32.mrb[0].mxu0
      %v5653 = vadd.f32 %v5390, %v5652
      %5654 = vmatprep.mubr.bf16.mxu0 %v2391
      %5655 = vmatmul.mubr.bf16.gmra.mrb[0].mxu0 %v2390
      %v5656 = vpop.f32.mrb[0].mxu0
      %v5657 = vadd.f32 %v5394, %v5656
      %v5658 = vpop.f32.mrb[0].mxu0
      %v5659 = vadd.f32 %v5396, %v5658
      %v5660 = vpop.f32.mrb[0].mxu0
      %v5661 = vadd.f32 %v5398, %v5660
      %v5662 = vpop.f32.mrb[0].mxu0
      %v5663 = vadd.f32 %v5400, %v5662
      %5664 = vmatprep.mubr.bf16.mxu0 %v2409
      %5665 = vmatmul.mubr.bf16.gmra.mrb[0].mxu0 %v2408
      %v5666 = vpop.f32.mrb[0].mxu0
      %v5667 = vadd.f32 %v5404, %v5666
      %v5668 = vpop.f32.mrb[0].mxu0
      %v5669 = vadd.f32 %v5406, %v5668
      %v5670 = vpop.f32.mrb[0].mxu0
      %v5671 = vadd.f32 %v5408, %v5670
      %v5672 = vpop.f32.mrb[0].mxu0
      %v5673 = vadd.f32 %v5410, %v5672
      %5674 = vmatprep.mubr.bf16.mxu0 %v2427
      %5675 = vmatmul.mubr.bf16.gmra.mrb[0].mxu0 %v2426
      %v5676 = vpop.f32.mrb[0].mxu0
      %v5677 = vadd.f32 %v5414, %v5676
      %v5678 = vpop.f32.mrb[0].mxu0
      %v5679 = vadd.f32 %v5416, %v5678
      %v5680 = vpop.f32.mrb[0].mxu0
      %v5681 = vadd.f32 %v5418, %v5680
      %v5682 = vpop.f32.mrb[0].mxu0
      %v5683 = vadd.f32 %v5420, %v5682
      %5684 = vmatprep.mubr.bf16.mxu0 %v2445
      %5685 = vmatmul.mubr.bf16.gmra.mrb[0].mxu0 %v2444
      %v5686 = vpop.f32.mrb[0].mxu0
      %v5687 = vadd.f32 %v5424, %v5686
      %v5688 = vpop.f32.mrb[0].mxu0
      %v5689 = vadd.f32 %v5426, %v5688
      %v5690 = vpop.f32.mrb[0].mxu0
      %v5691 = vadd.f32 %v5428, %v5690
      %v5692 = vpop.f32.mrb[0].mxu0
      %v5693 = vadd.f32 %v5430, %v5692
      %5694 = vmatprep.mubr.bf16.mxu0 %v2463
      %5695 = vmatmul.mubr.bf16.gmra.mrb[0].mxu0 %v2462
      %v5696 = vpop.f32.mrb[0].mxu0
      %v5697 = vadd.f32 %v5434, %v5696
      %v5698 = vpop.f32.mrb[0].mxu0
      %v5699 = vadd.f32 %v5436, %v5698
      %v5700 = vpop.f32.mrb[0].mxu0
      %v5701 = vadd.f32 %v5438, %v5700
      %v5702 = vpop.f32.mrb[0].mxu0
      %v5703 = vadd.f32 %v5440, %v5702
      %5704 = vmatprep.mubr.bf16.mxu0 %v2481
      %5705 = vmatmul.mubr.bf16.gmra.mrb[0].mxu0 %v2480
      %v5706 = vpop.f32.mrb[0].mxu0
      %v5707 = vadd.f32 %v5444, %v5706
      %v5708 = vpop.f32.mrb[0].mxu0
      %v5709 = vadd.f32 %v5446, %v5708
      %v5710 = vpop.f32.mrb[0].mxu0
      %v5711 = vadd.f32 %v5448, %v5710
      %v5712 = vpop.f32.mrb[0].mxu0
      %v5713 = vadd.f32 %v5450, %v5712
      %5714 = vmatprep.mubr.bf16.mxu0 %v2499
      %5715 = vmatmul.mubr.bf16.gmra.mrb[0].mxu0 %v2498
      %v5716 = vpop.f32.mrb[0].mxu0
      %v5717 = vadd.f32 %v5454, %v5716
      %v5718 = vpop.f32.mrb[0].mxu0
      %v5719 = vadd.f32 %v5456, %v5718
      %v5720 = vpop.f32.mrb[0].mxu0
      %v5721 = vadd.f32 %v5458, %v5720
      %v5722 = vpop.f32.mrb[0].mxu0
      %v5723 = vadd.f32 %v5460, %v5722
      %5724 = vmatprep.mubr.bf16.mxu0 %v2517
      %5725 = vmatmul.mubr.bf16.gmra.mrb[0].mxu0 %v2516
      %v5726 = vpop.f32.mrb[0].mxu0
      %v5727 = vadd.f32 %v5464, %v5726
      %v5728 = vpop.f32.mrb[0].mxu0
      %v5729 = vadd.f32 %v5466, %v5728
      %v5730 = vpop.f32.mrb[0].mxu0
      %v5731 = vadd.f32 %v5468, %v5730
      %v5732 = vpop.f32.mrb[0].mxu0
      %v5733 = vadd.f32 %v5470, %v5732
      %5734 = vmatprep.mubr.bf16.mxu0 %v2535
      %5735 = vmatmul.mubr.bf16.gmra.mrb[0].mxu0 %v2534
      %v5736 = vpop.f32.mrb[0].mxu0
      %v5737 = vadd.f32 %v5474, %v5736
      %v5738 = vpop.f32.mrb[0].mxu0
      %v5739 = vadd.f32 %v5476, %v5738
      %v5740 = vpop.f32.mrb[0].mxu0
      %v5741 = vadd.f32 %v5478, %v5740
      %v5742 = vpop.f32.mrb[0].mxu0
      %v5743 = vadd.f32 %v5480, %v5742
      %5744 = vmatprep.mubr.bf16.mxu0 %v2553
      %5745 = vmatmul.mubr.bf16.gmra.mrb[0].mxu0 %v2552
      %v5746 = vpop.f32.mrb[0].mxu0
      %v5747 = vadd.f32 %v5484, %v5746
      %v5748 = vpop.f32.mrb[0].mxu0
      %v5749 = vadd.f32 %v5486, %v5748
      %v5750 = vpop.f32.mrb[0].mxu0
      %v5751 = vadd.f32 %v5488, %v5750
      %v5752 = vpop.f32.mrb[0].mxu0
      %v5753 = vadd.f32 %v5490, %v5752
      %5754 = vmatprep.mubr.bf16.mxu0 %v2571
      %5755 = vmatmul.mubr.bf16.gmra.mrb[0].mxu0 %v2570
      %v5756 = vpop.f32.mrb[0].mxu0
      %v5757 = vadd.f32 %v5494, %v5756
      %v5758 = vpop.f32.mrb[0].mxu0
      %v5759 = vadd.f32 %v5496, %v5758
      %v5760 = vpop.f32.mrb[0].mxu0
      %v5761 = vadd.f32 %v5498, %v5760
      %v5762 = vpop.f32.mrb[0].mxu0
      %v5763 = vadd.f32 %v5500, %v5762
      %5764 = vmatprep.mubr.bf16.mxu0 %v2589
      %5765 = vmatmul.mubr.bf16.gmra.mrb[0].mxu0 %v2588
      %v5766 = vpop.f32.mrb[0].mxu0
      %v5767 = vadd.f32 %v5504, %v5766
      %v5768 = vpop.f32.mrb[0].mxu0
      %v5769 = vadd.f32 %v5506, %v5768
      %v5770 = vpop.f32.mrb[0].mxu0
      %v5771 = vadd.f32 %v5508, %v5770
      %v5772 = vpop.f32.mrb[0].mxu0
      %v5773 = vadd.f32 %v5510, %v5772
      %5774 = vmatprep.mubr.bf16.mxu0 %v2607
      %5775 = vmatmul.mubr.bf16.gmra.mrb[0].mxu0 %v2606
      %v5776 = vpop.f32.mrb[0].mxu0
      %v5777 = vadd.f32 %v5514, %v5776
      %v5778 = vpop.f32.mrb[0].mxu0
      %v5779 = vadd.f32 %v5516, %v5778
      %v5780 = vpop.f32.mrb[0].mxu0
      %v5781 = vadd.f32 %v5518, %v5780
      %v5782 = vpop.f32.mrb[0].mxu0
      %v5783 = vadd.f32 %v5520, %v5782
      %5784 = vdwg.mxu0
      %5785 = vmatprep.subr.bf16.mxu0 %v4055
      %5786 = vmatpush1.bf16.msra.mxu0 %v4054
      %5787 = vmatprep.subr.bf16.mxu0 %v4057
      %5788 = vmatpush1.bf16.msra.mxu0 %v4056
      %5789 = vmatprep.subr.bf16.mxu0 %v4059
      %5790 = vmatpush1.bf16.msra.mxu0 %v4058
      %5791 = vmatprep.subr.bf16.mxu0 %v4061
      %5792 = vmatpush1.bf16.msra.mxu0 %v4060
      %5793 = vmatprep.subr.bf16.mxu0 %v4063
      %5794 = vmatpush1.bf16.msra.mxu0 %v4062
      %5795 = vmatprep.subr.bf16.mxu0 %v4065
      %5796 = vmatpush1.bf16.msra.mxu0 %v4064
      %5797 = vmatprep.subr.bf16.mxu0 %v4067
      %5798 = vmatpush1.bf16.msra.mxu0 %v4066
      %5799 = vmatprep.subr.bf16.mxu0 %v4069
      %5800 = vmatpush1.bf16.msra.mxu0 %v4068
      %5801 = vmatprep.subr.bf16.mxu0 %v4071
      %5802 = vmatpush1.bf16.msra.mxu0 %v4070
      %5803 = vmatprep.subr.bf16.mxu0 %v4073
      %5804 = vmatpush1.bf16.msra.mxu0 %v4072
      %5805 = vmatprep.subr.bf16.mxu0 %v4075
      %5806 = vmatpush1.bf16.msra.mxu0 %v4074
      %5807 = vmatprep.subr.bf16.mxu0 %v4077
      %5808 = vmatpush1.bf16.msra.mxu0 %v4076
      %5809 = vmatprep.subr.bf16.mxu0 %v4079
      %5810 = vmatpush1.bf16.msra.mxu0 %v4078
      %5811 = vmatprep.subr.bf16.mxu0 %v4081
      %5812 = vmatpush1.bf16.msra.mxu0 %v4080
      %5813 = vmatprep.subr.bf16.mxu0 %v4083
      %5814 = vmatpush1.bf16.msra.mxu0 %v4082
      %5815 = vmatprep.subr.bf16.mxu0 %v4085
      %5816 = vmatpush1.bf16.msra.mxu0 %v4084
      %5817 = vmatprep.mubr.bf16.mxu0 %v2213
      %5818 = vmatmul.mubr.bf16.gmra.mrb[0].mxu0 %v2212
      %v5819 = vpop.f32.mrb[0].mxu0
      %v5820 = vadd.f32 %v5557, %v5819
      %v5821 = vpop.f32.mrb[0].mxu0
      %v5822 = vadd.f32 %v5559, %v5821
      %v5823 = vpop.f32.mrb[0].mxu0
      %v5824 = vadd.f32 %v5561, %v5823
      %v5825 = vpop.f32.mrb[0].mxu0
      %v5826 = vadd.f32 %v5563, %v5825
      %5827 = vmatprep.mubr.bf16.mxu0 %v2231
      %5828 = vmatmul.mubr.bf16.gmra.mrb[0].mxu0 %v2230
      %v5829 = vpop.f32.mrb[0].mxu0
      %v5830 = vadd.f32 %v5567, %v5829
      %v5831 = vpop.f32.mrb[0].mxu0
      %v5832 = vadd.f32 %v5569, %v5831
      %v5833 = vpop.f32.mrb[0].mxu0
      %v5834 = vadd.f32 %v5571, %v5833
      %v5835 = vpop.f32.mrb[0].mxu0
      %v5836 = vadd.f32 %v5573, %v5835
      %5837 = vmatprep.mubr.bf16.mxu0 %v2249
      %5838 = vmatmul.mubr.bf16.gmra.mrb[0].mxu0 %v2248
      %v5839 = vpop.f32.mrb[0].mxu0
      %v5840 = vadd.f32 %v5577, %v5839
      %v5841 = vpop.f32.mrb[0].mxu0
      %v5842 = vadd.f32 %v5579, %v5841
      %v5843 = vpop.f32.mrb[0].mxu0
      %v5844 = vadd.f32 %v5581, %v5843
      %v5845 = vpop.f32.mrb[0].mxu0
      %v5846 = vadd.f32 %v5583, %v5845
      %5847 = vmatprep.mubr.bf16.mxu0 %v2267
      %5848 = vmatmul.mubr.bf16.gmra.mrb[0].mxu0 %v2266
      %v5849 = vpop.f32.mrb[0].mxu0
      %v5850 = vadd.f32 %v5587, %v5849
      %v5851 = vpop.f32.mrb[0].mxu0
      %v5852 = vadd.f32 %v5589, %v5851
      %v5853 = vpop.f32.mrb[0].mxu0
      %v5854 = vadd.f32 %v5591, %v5853
      %v5855 = vpop.f32.mrb[0].mxu0
      %v5856 = vadd.f32 %v5593, %v5855
      %5857 = vmatprep.mubr.bf16.mxu0 %v2285
      %5858 = vmatmul.mubr.bf16.gmra.mrb[0].mxu0 %v2284
      %v5859 = vpop.f32.mrb[0].mxu0
      %v5860 = vadd.f32 %v5597, %v5859
      %v5861 = vpop.f32.mrb[0].mxu0
      %v5862 = vadd.f32 %v5599, %v5861
      %v5863 = vpop.f32.mrb[0].mxu0
      %v5864 = vadd.f32 %v5601, %v5863
      %v5865 = vpop.f32.mrb[0].mxu0
      %v5866 = vadd.f32 %v5603, %v5865
      %5867 = vmatprep.mubr.bf16.mxu0 %v2303
      %5868 = vmatmul.mubr.bf16.gmra.mrb[0].mxu0 %v2302
      %v5869 = vpop.f32.mrb[0].mxu0
      %v5870 = vadd.f32 %v5607, %v5869
      %v5871 = vpop.f32.mrb[0].mxu0
      %v5872 = vadd.f32 %v5609, %v5871
      %v5873 = vpop.f32.mrb[0].mxu0
      %v5874 = vadd.f32 %v5611, %v5873
      %v5875 = vpop.f32.mrb[0].mxu0
      %v5876 = vadd.f32 %v5613, %v5875
      %5877 = vmatprep.mubr.bf16.mxu0 %v2321
      %5878 = vmatmul.mubr.bf16.gmra.mrb[0].mxu0 %v2320
      %v5879 = vpop.f32.mrb[0].mxu0
      %v5880 = vadd.f32 %v5617, %v5879
      %v5881 = vpop.f32.mrb[0].mxu0
      %v5882 = vadd.f32 %v5619, %v5881
      %v5883 = vpop.f32.mrb[0].mxu0
      %v5884 = vadd.f32 %v5621, %v5883
      %v5885 = vpop.f32.mrb[0].mxu0
      %v5886 = vadd.f32 %v5623, %v5885
      %5887 = vmatprep.mubr.bf16.mxu0 %v2339
      %5888 = vmatmul.mubr.bf16.gmra.mrb[0].mxu0 %v2338
      %v5889 = vpop.f32.mrb[0].mxu0
      %v5890 = vadd.f32 %v5627, %v5889
      %v5891 = vpop.f32.mrb[0].mxu0
      %v5892 = vadd.f32 %v5629, %v5891
      %v5893 = vpop.f32.mrb[0].mxu0
      %v5894 = vadd.f32 %v5631, %v5893
      %v5895 = vpop.f32.mrb[0].mxu0
      %v5896 = vadd.f32 %v5633, %v5895
      %5897 = vmatprep.mubr.bf16.mxu0 %v2357
      %5898 = vmatmul.mubr.bf16.gmra.mrb[0].mxu0 %v2356
      %v5899 = vpop.f32.mrb[0].mxu0
      %v5900 = vadd.f32 %v5637, %v5899
      %v5901 = vpop.f32.mrb[0].mxu0
      %v5902 = vadd.f32 %v5639, %v5901
      %v5903 = vpop.f32.mrb[0].mxu0
      %v5904 = vadd.f32 %v5641, %v5903
      %v5905 = vpop.f32.mrb[0].mxu0
      %v5906 = vadd.f32 %v5643, %v5905
      %5907 = vmatprep.mubr.bf16.mxu0 %v2375
      %5908 = vmatmul.mubr.bf16.gmra.mrb[0].mxu0 %v2374
      %v5909 = vpop.f32.mrb[0].mxu0
      %v5910 = vadd.f32 %v5647, %v5909
      %v5911 = vpop.f32.mrb[0].mxu0
      %v5912 = vadd.f32 %v5649, %v5911
      %v5913 = vpop.f32.mrb[0].mxu0
      %v5914 = vadd.f32 %v5651, %v5913
      %v5915 = vpop.f32.mrb[0].mxu0
      %v5916 = vadd.f32 %v5653, %v5915
      %5917 = vmatprep.mubr.bf16.mxu0 %v2393
      %5918 = vmatmul.mubr.bf16.gmra.mrb[0].mxu0 %v2392
      %v5919 = vpop.f32.mrb[0].mxu0
      %v5920 = vadd.f32 %v5657, %v5919
      %v5921 = vpop.f32.mrb[0].mxu0
      %v5922 = vadd.f32 %v5659, %v5921
      %v5923 = vpop.f32.mrb[0].mxu0
      %v5924 = vadd.f32 %v5661, %v5923
      %v5925 = vpop.f32.mrb[0].mxu0
      %v5926 = vadd.f32 %v5663, %v5925
      %5927 = vmatprep.mubr.bf16.mxu0 %v2411
      %5928 = vmatmul.mubr.bf16.gmra.mrb[0].mxu0 %v2410
      %v5929 = vpop.f32.mrb[0].mxu0
      %v5930 = vadd.f32 %v5667, %v5929
      %v5931 = vpop.f32.mrb[0].mxu0
      %v5932 = vadd.f32 %v5669, %v5931
      %v5933 = vpop.f32.mrb[0].mxu0
      %v5934 = vadd.f32 %v5671, %v5933
      %v5935 = vpop.f32.mrb[0].mxu0
      %v5936 = vadd.f32 %v5673, %v5935
      %5937 = vmatprep.mubr.bf16.mxu0 %v2429
      %5938 = vmatmul.mubr.bf16.gmra.mrb[0].mxu0 %v2428
      %v5939 = vpop.f32.mrb[0].mxu0
      %v5940 = vadd.f32 %v5677, %v5939
      %v5941 = vpop.f32.mrb[0].mxu0
      %v5942 = vadd.f32 %v5679, %v5941
      %v5943 = vpop.f32.mrb[0].mxu0
      %v5944 = vadd.f32 %v5681, %v5943
      %v5945 = vpop.f32.mrb[0].mxu0
      %v5946 = vadd.f32 %v5683, %v5945
      %5947 = vmatprep.mubr.bf16.mxu0 %v2447
      %5948 = vmatmul.mubr.bf16.gmra.mrb[0].mxu0 %v2446
      %v5949 = vpop.f32.mrb[0].mxu0
      %v5950 = vadd.f32 %v5687, %v5949
      %v5951 = vpop.f32.mrb[0].mxu0
      %v5952 = vadd.f32 %v5689, %v5951
      %v5953 = vpop.f32.mrb[0].mxu0
      %v5954 = vadd.f32 %v5691, %v5953
      %v5955 = vpop.f32.mrb[0].mxu0
      %v5956 = vadd.f32 %v5693, %v5955
      %5957 = vmatprep.mubr.bf16.mxu0 %v2465
      %5958 = vmatmul.mubr.bf16.gmra.mrb[0].mxu0 %v2464
      %v5959 = vpop.f32.mrb[0].mxu0
      %v5960 = vadd.f32 %v5697, %v5959
      %v5961 = vpop.f32.mrb[0].mxu0
      %v5962 = vadd.f32 %v5699, %v5961
      %v5963 = vpop.f32.mrb[0].mxu0
      %v5964 = vadd.f32 %v5701, %v5963
      %v5965 = vpop.f32.mrb[0].mxu0
      %v5966 = vadd.f32 %v5703, %v5965
      %5967 = vmatprep.mubr.bf16.mxu0 %v2483
      %5968 = vmatmul.mubr.bf16.gmra.mrb[0].mxu0 %v2482
      %v5969 = vpop.f32.mrb[0].mxu0
      %v5970 = vadd.f32 %v5707, %v5969
      %v5971 = vpop.f32.mrb[0].mxu0
      %v5972 = vadd.f32 %v5709, %v5971
      %v5973 = vpop.f32.mrb[0].mxu0
      %v5974 = vadd.f32 %v5711, %v5973
      %v5975 = vpop.f32.mrb[0].mxu0
      %v5976 = vadd.f32 %v5713, %v5975
      %5977 = vmatprep.mubr.bf16.mxu0 %v2501
      %5978 = vmatmul.mubr.bf16.gmra.mrb[0].mxu0 %v2500
      %v5979 = vpop.f32.mrb[0].mxu0
      %v5980 = vadd.f32 %v5717, %v5979
      %v5981 = vpop.f32.mrb[0].mxu0
      %v5982 = vadd.f32 %v5719, %v5981
      %v5983 = vpop.f32.mrb[0].mxu0
      %v5984 = vadd.f32 %v5721, %v5983
      %v5985 = vpop.f32.mrb[0].mxu0
      %v5986 = vadd.f32 %v5723, %v5985
      %5987 = vmatprep.mubr.bf16.mxu0 %v2519
      %5988 = vmatmul.mubr.bf16.gmra.mrb[0].mxu0 %v2518
      %v5989 = vpop.f32.mrb[0].mxu0
      %v5990 = vadd.f32 %v5727, %v5989
      %v5991 = vpop.f32.mrb[0].mxu0
      %v5992 = vadd.f32 %v5729, %v5991
      %v5993 = vpop.f32.mrb[0].mxu0
      %v5994 = vadd.f32 %v5731, %v5993
      %v5995 = vpop.f32.mrb[0].mxu0
      %v5996 = vadd.f32 %v5733, %v5995
      %5997 = vmatprep.mubr.bf16.mxu0 %v2537
      %5998 = vmatmul.mubr.bf16.gmra.mrb[0].mxu0 %v2536
      %v5999 = vpop.f32.mrb[0].mxu0
      %v6000 = vadd.f32 %v5737, %v5999
      %v6001 = vpop.f32.mrb[0].mxu0
      %v6002 = vadd.f32 %v5739, %v6001
      %v6003 = vpop.f32.mrb[0].mxu0
      %v6004 = vadd.f32 %v5741, %v6003
      %v6005 = vpop.f32.mrb[0].mxu0
      %v6006 = vadd.f32 %v5743, %v6005
      %6007 = vmatprep.mubr.bf16.mxu0 %v2555
      %6008 = vmatmul.mubr.bf16.gmra.mrb[0].mxu0 %v2554
      %v6009 = vpop.f32.mrb[0].mxu0
      %v6010 = vadd.f32 %v5747, %v6009
      %v6011 = vpop.f32.mrb[0].mxu0
      %v6012 = vadd.f32 %v5749, %v6011
      %v6013 = vpop.f32.mrb[0].mxu0
      %v6014 = vadd.f32 %v5751, %v6013
      %v6015 = vpop.f32.mrb[0].mxu0
      %v6016 = vadd.f32 %v5753, %v6015
      %6017 = vmatprep.mubr.bf16.mxu0 %v2573
      %6018 = vmatmul.mubr.bf16.gmra.mrb[0].mxu0 %v2572
      %v6019 = vpop.f32.mrb[0].mxu0
      %v6020 = vadd.f32 %v5757, %v6019
      %v6021 = vpop.f32.mrb[0].mxu0
      %v6022 = vadd.f32 %v5759, %v6021
      %v6023 = vpop.f32.mrb[0].mxu0
      %v6024 = vadd.f32 %v5761, %v6023
      %v6025 = vpop.f32.mrb[0].mxu0
      %v6026 = vadd.f32 %v5763, %v6025
      %6027 = vmatprep.mubr.bf16.mxu0 %v2591
      %6028 = vmatmul.mubr.bf16.gmra.mrb[0].mxu0 %v2590
      %v6029 = vpop.f32.mrb[0].mxu0
      %v6030 = vadd.f32 %v5767, %v6029
      %v6031 = vpop.f32.mrb[0].mxu0
      %v6032 = vadd.f32 %v5769, %v6031
      %v6033 = vpop.f32.mrb[0].mxu0
      %v6034 = vadd.f32 %v5771, %v6033
      %v6035 = vpop.f32.mrb[0].mxu0
      %v6036 = vadd.f32 %v5773, %v6035
      %6037 = vmatprep.mubr.bf16.mxu0 %v2609
      %6038 = vmatmul.mubr.bf16.gmra.mrb[0].mxu0 %v2608
      %v6039 = vpop.f32.mrb[0].mxu0
      %v6040 = vadd.f32 %v5777, %v6039
      %v6041 = vpop.f32.mrb[0].mxu0
      %v6042 = vadd.f32 %v5779, %v6041
      %v6043 = vpop.f32.mrb[0].mxu0
      %v6044 = vadd.f32 %v5781, %v6043
      %v6045 = vpop.f32.mrb[0].mxu0
      %v6046 = vadd.f32 %v5783, %v6045
      %6047 = vdwg.mxu0
      %6048 = vmatprep.subr.bf16.mxu0 %v4087
      %6049 = vmatpush1.bf16.msra.mxu0 %v4086
      %6050 = vmatprep.subr.bf16.mxu0 %v4089
      %6051 = vmatpush1.bf16.msra.mxu0 %v4088
      %6052 = vmatprep.subr.bf16.mxu0 %v4091
      %6053 = vmatpush1.bf16.msra.mxu0 %v4090
      %6054 = vmatprep.subr.bf16.mxu0 %v4093
      %6055 = vmatpush1.bf16.msra.mxu0 %v4092
      %6056 = vmatprep.subr.bf16.mxu0 %v4095
      %6057 = vmatpush1.bf16.msra.mxu0 %v4094
      %6058 = vmatprep.subr.bf16.mxu0 %v4097
      %6059 = vmatpush1.bf16.msra.mxu0 %v4096
      %6060 = vmatprep.subr.bf16.mxu0 %v4099
      %6061 = vmatpush1.bf16.msra.mxu0 %v4098
      %6062 = vmatprep.subr.bf16.mxu0 %v4101
      %6063 = vmatpush1.bf16.msra.mxu0 %v4100
      %6064 = vmatprep.subr.bf16.mxu0 %v4103
      %6065 = vmatpush1.bf16.msra.mxu0 %v4102
      %6066 = vmatprep.subr.bf16.mxu0 %v4105
      %6067 = vmatpush1.bf16.msra.mxu0 %v4104
      %6068 = vmatprep.subr.bf16.mxu0 %v4107
      %6069 = vmatpush1.bf16.msra.mxu0 %v4106
      %6070 = vmatprep.subr.bf16.mxu0 %v4109
      %6071 = vmatpush1.bf16.msra.mxu0 %v4108
      %6072 = vmatprep.subr.bf16.mxu0 %v4111
      %6073 = vmatpush1.bf16.msra.mxu0 %v4110
      %6074 = vmatprep.subr.bf16.mxu0 %v4113
      %6075 = vmatpush1.bf16.msra.mxu0 %v4112
      %6076 = vmatprep.subr.bf16.mxu0 %v4115
      %6077 = vmatpush1.bf16.msra.mxu0 %v4114
      %6078 = vmatprep.subr.bf16.mxu0 %v4117
      %6079 = vmatpush1.bf16.msra.mxu0 %v4116
      %6080 = vmatprep.mubr.bf16.mxu0 %v2215
      %6081 = vmatmul.mubr.bf16.gmra.mrb[0].mxu0 %v2214
      %v6082 = vpop.f32.mrb[0].mxu0
      %v6083 = vadd.f32 %v5820, %v6082
      %v6084 = vpop.f32.mrb[0].mxu0
      %v6085 = vadd.f32 %v5822, %v6084
      %v6086 = vpop.f32.mrb[0].mxu0
      %v6087 = vadd.f32 %v5824, %v6086
      %v6088 = vpop.f32.mrb[0].mxu0
      %v6089 = vadd.f32 %v5826, %v6088
      %6090 = vmatprep.mubr.bf16.mxu0 %v2233
      %6091 = vmatmul.mubr.bf16.gmra.mrb[0].mxu0 %v2232
      %v6092 = vpop.f32.mrb[0].mxu0
      %v6093 = vadd.f32 %v5830, %v6092
      %v6094 = vpop.f32.mrb[0].mxu0
      %v6095 = vadd.f32 %v5832, %v6094
      %v6096 = vpop.f32.mrb[0].mxu0
      %v6097 = vadd.f32 %v5834, %v6096
      %v6098 = vpop.f32.mrb[0].mxu0
      %v6099 = vadd.f32 %v5836, %v6098
      %6100 = vmatprep.mubr.bf16.mxu0 %v2251
      %6101 = vmatmul.mubr.bf16.gmra.mrb[0].mxu0 %v2250
      %v6102 = vpop.f32.mrb[0].mxu0
      %v6103 = vadd.f32 %v5840, %v6102
      %v6104 = vpop.f32.mrb[0].mxu0
      %v6105 = vadd.f32 %v5842, %v6104
      %v6106 = vpop.f32.mrb[0].mxu0
      %v6107 = vadd.f32 %v5844, %v6106
      %v6108 = vpop.f32.mrb[0].mxu0
      %v6109 = vadd.f32 %v5846, %v6108
      %6110 = vmatprep.mubr.bf16.mxu0 %v2269
      %6111 = vmatmul.mubr.bf16.gmra.mrb[0].mxu0 %v2268
      %v6112 = vpop.f32.mrb[0].mxu0
      %v6113 = vadd.f32 %v5850, %v6112
      %v6114 = vpop.f32.mrb[0].mxu0
      %v6115 = vadd.f32 %v5852, %v6114
      %v6116 = vpop.f32.mrb[0].mxu0
      %v6117 = vadd.f32 %v5854, %v6116
      %v6118 = vpop.f32.mrb[0].mxu0
      %v6119 = vadd.f32 %v5856, %v6118
      %6120 = vmatprep.mubr.bf16.mxu0 %v2287
      %6121 = vmatmul.mubr.bf16.gmra.mrb[0].mxu0 %v2286
      %v6122 = vpop.f32.mrb[0].mxu0
      %v6123 = vadd.f32 %v5860, %v6122
      %v6124 = vpop.f32.mrb[0].mxu0
      %v6125 = vadd.f32 %v5862, %v6124
      %v6126 = vpop.f32.mrb[0].mxu0
      %v6127 = vadd.f32 %v5864, %v6126
      %v6128 = vpop.f32.mrb[0].mxu0
      %v6129 = vadd.f32 %v5866, %v6128
      %6130 = vmatprep.mubr.bf16.mxu0 %v2305
      %6131 = vmatmul.mubr.bf16.gmra.mrb[0].mxu0 %v2304
      %v6132 = vpop.f32.mrb[0].mxu0
      %v6133 = vadd.f32 %v5870, %v6132
      %v6134 = vpop.f32.mrb[0].mxu0
      %v6135 = vadd.f32 %v5872, %v6134
      %v6136 = vpop.f32.mrb[0].mxu0
      %v6137 = vadd.f32 %v5874, %v6136
      %v6138 = vpop.f32.mrb[0].mxu0
      %v6139 = vadd.f32 %v5876, %v6138
      %6140 = vmatprep.mubr.bf16.mxu0 %v2323
      %6141 = vmatmul.mubr.bf16.gmra.mrb[0].mxu0 %v2322
      %v6142 = vpop.f32.mrb[0].mxu0
      %v6143 = vadd.f32 %v5880, %v6142
      %v6144 = vpop.f32.mrb[0].mxu0
      %v6145 = vadd.f32 %v5882, %v6144
      %v6146 = vpop.f32.mrb[0].mxu0
      %v6147 = vadd.f32 %v5884, %v6146
      %v6148 = vpop.f32.mrb[0].mxu0
      %v6149 = vadd.f32 %v5886, %v6148
      %6150 = vmatprep.mubr.bf16.mxu0 %v2341
      %6151 = vmatmul.mubr.bf16.gmra.mrb[0].mxu0 %v2340
      %v6152 = vpop.f32.mrb[0].mxu0
      %v6153 = vadd.f32 %v5890, %v6152
      %v6154 = vpop.f32.mrb[0].mxu0
      %v6155 = vadd.f32 %v5892, %v6154
      %v6156 = vpop.f32.mrb[0].mxu0
      %v6157 = vadd.f32 %v5894, %v6156
      %v6158 = vpop.f32.mrb[0].mxu0
      %v6159 = vadd.f32 %v5896, %v6158
      %6160 = vmatprep.mubr.bf16.mxu0 %v2359
      %6161 = vmatmul.mubr.bf16.gmra.mrb[0].mxu0 %v2358
      %v6162 = vpop.f32.mrb[0].mxu0
      %v6163 = vadd.f32 %v5900, %v6162
      %v6164 = vpop.f32.mrb[0].mxu0
      %v6165 = vadd.f32 %v5902, %v6164
      %v6166 = vpop.f32.mrb[0].mxu0
      %v6167 = vadd.f32 %v5904, %v6166
      %v6168 = vpop.f32.mrb[0].mxu0
      %v6169 = vadd.f32 %v5906, %v6168
      %6170 = vmatprep.mubr.bf16.mxu0 %v2377
      %6171 = vmatmul.mubr.bf16.gmra.mrb[0].mxu0 %v2376
      %v6172 = vpop.f32.mrb[0].mxu0
      %v6173 = vadd.f32 %v5910, %v6172
      %v6174 = vpop.f32.mrb[0].mxu0
      %v6175 = vadd.f32 %v5912, %v6174
      %v6176 = vpop.f32.mrb[0].mxu0
      %v6177 = vadd.f32 %v5914, %v6176
      %v6178 = vpop.f32.mrb[0].mxu0
      %v6179 = vadd.f32 %v5916, %v6178
      %6180 = vmatprep.mubr.bf16.mxu0 %v2395
      %6181 = vmatmul.mubr.bf16.gmra.mrb[0].mxu0 %v2394
      %v6182 = vpop.f32.mrb[0].mxu0
      %v6183 = vadd.f32 %v5920, %v6182
      %v6184 = vpop.f32.mrb[0].mxu0
      %v6185 = vadd.f32 %v5922, %v6184
      %v6186 = vpop.f32.mrb[0].mxu0
      %v6187 = vadd.f32 %v5924, %v6186
      %v6188 = vpop.f32.mrb[0].mxu0
      %v6189 = vadd.f32 %v5926, %v6188
      %6190 = vmatprep.mubr.bf16.mxu0 %v2413
      %6191 = vmatmul.mubr.bf16.gmra.mrb[0].mxu0 %v2412
      %v6192 = vpop.f32.mrb[0].mxu0
      %v6193 = vadd.f32 %v5930, %v6192
      %v6194 = vpop.f32.mrb[0].mxu0
      %v6195 = vadd.f32 %v5932, %v6194
      %v6196 = vpop.f32.mrb[0].mxu0
      %v6197 = vadd.f32 %v5934, %v6196
      %v6198 = vpop.f32.mrb[0].mxu0
      %v6199 = vadd.f32 %v5936, %v6198
      %6200 = vmatprep.mubr.bf16.mxu0 %v2431
      %6201 = vmatmul.mubr.bf16.gmra.mrb[0].mxu0 %v2430
      %v6202 = vpop.f32.mrb[0].mxu0
      %v6203 = vadd.f32 %v5940, %v6202
      %v6204 = vpop.f32.mrb[0].mxu0
      %v6205 = vadd.f32 %v5942, %v6204
      %v6206 = vpop.f32.mrb[0].mxu0
      %v6207 = vadd.f32 %v5944, %v6206
      %v6208 = vpop.f32.mrb[0].mxu0
      %v6209 = vadd.f32 %v5946, %v6208
      %6210 = vmatprep.mubr.bf16.mxu0 %v2449
      %6211 = vmatmul.mubr.bf16.gmra.mrb[0].mxu0 %v2448
      %v6212 = vpop.f32.mrb[0].mxu0
      %v6213 = vadd.f32 %v5950, %v6212
      %v6214 = vpop.f32.mrb[0].mxu0
      %v6215 = vadd.f32 %v5952, %v6214
      %v6216 = vpop.f32.mrb[0].mxu0
      %v6217 = vadd.f32 %v5954, %v6216
      %v6218 = vpop.f32.mrb[0].mxu0
      %v6219 = vadd.f32 %v5956, %v6218
      %6220 = vmatprep.mubr.bf16.mxu0 %v2467
      %6221 = vmatmul.mubr.bf16.gmra.mrb[0].mxu0 %v2466
      %v6222 = vpop.f32.mrb[0].mxu0
      %v6223 = vadd.f32 %v5960, %v6222
      %v6224 = vpop.f32.mrb[0].mxu0
      %v6225 = vadd.f32 %v5962, %v6224
      %v6226 = vpop.f32.mrb[0].mxu0
      %v6227 = vadd.f32 %v5964, %v6226
      %v6228 = vpop.f32.mrb[0].mxu0
      %v6229 = vadd.f32 %v5966, %v6228
      %6230 = vmatprep.mubr.bf16.mxu0 %v2485
      %6231 = vmatmul.mubr.bf16.gmra.mrb[0].mxu0 %v2484
      %v6232 = vpop.f32.mrb[0].mxu0
      %v6233 = vadd.f32 %v5970, %v6232
      %v6234 = vpop.f32.mrb[0].mxu0
      %v6235 = vadd.f32 %v5972, %v6234
      %v6236 = vpop.f32.mrb[0].mxu0
      %v6237 = vadd.f32 %v5974, %v6236
      %v6238 = vpop.f32.mrb[0].mxu0
      %v6239 = vadd.f32 %v5976, %v6238
      %6240 = vmatprep.mubr.bf16.mxu0 %v2503
      %6241 = vmatmul.mubr.bf16.gmra.mrb[0].mxu0 %v2502
      %v6242 = vpop.f32.mrb[0].mxu0
      %v6243 = vadd.f32 %v5980, %v6242
      %v6244 = vpop.f32.mrb[0].mxu0
      %v6245 = vadd.f32 %v5982, %v6244
      %v6246 = vpop.f32.mrb[0].mxu0
      %v6247 = vadd.f32 %v5984, %v6246
      %v6248 = vpop.f32.mrb[0].mxu0
      %v6249 = vadd.f32 %v5986, %v6248
      %6250 = vmatprep.mubr.bf16.mxu0 %v2521
      %6251 = vmatmul.mubr.bf16.gmra.mrb[0].mxu0 %v2520
      %v6252 = vpop.f32.mrb[0].mxu0
      %v6253 = vadd.f32 %v5990, %v6252
      %v6254 = vpop.f32.mrb[0].mxu0
      %v6255 = vadd.f32 %v5992, %v6254
      %v6256 = vpop.f32.mrb[0].mxu0
      %v6257 = vadd.f32 %v5994, %v6256
      %v6258 = vpop.f32.mrb[0].mxu0
      %v6259 = vadd.f32 %v5996, %v6258
      %6260 = vmatprep.mubr.bf16.mxu0 %v2539
      %6261 = vmatmul.mubr.bf16.gmra.mrb[0].mxu0 %v2538
      %v6262 = vpop.f32.mrb[0].mxu0
      %v6263 = vadd.f32 %v6000, %v6262
      %v6264 = vpop.f32.mrb[0].mxu0
      %v6265 = vadd.f32 %v6002, %v6264
      %v6266 = vpop.f32.mrb[0].mxu0
      %v6267 = vadd.f32 %v6004, %v6266
      %v6268 = vpop.f32.mrb[0].mxu0
      %v6269 = vadd.f32 %v6006, %v6268
      %6270 = vmatprep.mubr.bf16.mxu0 %v2557
      %6271 = vmatmul.mubr.bf16.gmra.mrb[0].mxu0 %v2556
      %v6272 = vpop.f32.mrb[0].mxu0
      %v6273 = vadd.f32 %v6010, %v6272
      %v6274 = vpop.f32.mrb[0].mxu0
      %v6275 = vadd.f32 %v6012, %v6274
      %v6276 = vpop.f32.mrb[0].mxu0
      %v6277 = vadd.f32 %v6014, %v6276
      %v6278 = vpop.f32.mrb[0].mxu0
      %v6279 = vadd.f32 %v6016, %v6278
      %6280 = vmatprep.mubr.bf16.mxu0 %v2575
      %6281 = vmatmul.mubr.bf16.gmra.mrb[0].mxu0 %v2574
      %v6282 = vpop.f32.mrb[0].mxu0
      %v6283 = vadd.f32 %v6020, %v6282
      %v6284 = vpop.f32.mrb[0].mxu0
      %v6285 = vadd.f32 %v6022, %v6284
      %v6286 = vpop.f32.mrb[0].mxu0
      %v6287 = vadd.f32 %v6024, %v6286
      %v6288 = vpop.f32.mrb[0].mxu0
      %v6289 = vadd.f32 %v6026, %v6288
      %6290 = vmatprep.mubr.bf16.mxu0 %v2593
      %6291 = vmatmul.mubr.bf16.gmra.mrb[0].mxu0 %v2592
      %v6292 = vpop.f32.mrb[0].mxu0
      %v6293 = vadd.f32 %v6030, %v6292
      %v6294 = vpop.f32.mrb[0].mxu0
      %v6295 = vadd.f32 %v6032, %v6294
      %v6296 = vpop.f32.mrb[0].mxu0
      %v6297 = vadd.f32 %v6034, %v6296
      %v6298 = vpop.f32.mrb[0].mxu0
      %v6299 = vadd.f32 %v6036, %v6298
      %6300 = vmatprep.mubr.bf16.mxu0 %v2611
      %6301 = vmatmul.mubr.bf16.gmra.mrb[0].mxu0 %v2610
      %v6302 = vpop.f32.mrb[0].mxu0
      %v6303 = vadd.f32 %v6040, %v6302
      %v6304 = vpop.f32.mrb[0].mxu0
      %v6305 = vadd.f32 %v6042, %v6304
      %v6306 = vpop.f32.mrb[0].mxu0
      %v6307 = vadd.f32 %v6044, %v6306
      %v6308 = vpop.f32.mrb[0].mxu0
      %v6309 = vadd.f32 %v6046, %v6308
      %6310 = vdwg.mxu0
      %6311 = vmatprep.subr.bf16.mxu0 %v4119
      %6312 = vmatpush1.bf16.msra.mxu0 %v4118
      %6313 = vmatprep.subr.bf16.mxu0 %v4121
      %6314 = vmatpush1.bf16.msra.mxu0 %v4120
      %6315 = vmatprep.subr.bf16.mxu0 %v4123
      %6316 = vmatpush1.bf16.msra.mxu0 %v4122
      %6317 = vmatprep.subr.bf16.mxu0 %v4125
      %6318 = vmatpush1.bf16.msra.mxu0 %v4124
      %6319 = vmatprep.subr.bf16.mxu0 %v4127
      %6320 = vmatpush1.bf16.msra.mxu0 %v4126
      %6321 = vmatprep.subr.bf16.mxu0 %v4129
      %6322 = vmatpush1.bf16.msra.mxu0 %v4128
      %6323 = vmatprep.subr.bf16.mxu0 %v4131
      %6324 = vmatpush1.bf16.msra.mxu0 %v4130
      %6325 = vmatprep.subr.bf16.mxu0 %v4133
      %6326 = vmatpush1.bf16.msra.mxu0 %v4132
      %6327 = vmatprep.subr.bf16.mxu0 %v4135
      %6328 = vmatpush1.bf16.msra.mxu0 %v4134
      %6329 = vmatprep.subr.bf16.mxu0 %v4137
      %6330 = vmatpush1.bf16.msra.mxu0 %v4136
      %6331 = vmatprep.subr.bf16.mxu0 %v4139
      %6332 = vmatpush1.bf16.msra.mxu0 %v4138
      %6333 = vmatprep.subr.bf16.mxu0 %v4141
      %6334 = vmatpush1.bf16.msra.mxu0 %v4140
      %6335 = vmatprep.subr.bf16.mxu0 %v4143
      %6336 = vmatpush1.bf16.msra.mxu0 %v4142
      %6337 = vmatprep.subr.bf16.mxu0 %v4145
      %6338 = vmatpush1.bf16.msra.mxu0 %v4144
      %6339 = vmatprep.subr.bf16.mxu0 %v4147
      %6340 = vmatpush1.bf16.msra.mxu0 %v4146
      %6341 = vmatprep.subr.bf16.mxu0 %v4149
      %6342 = vmatpush1.bf16.msra.mxu0 %v4148
      %6343 = vmatprep.mubr.bf16.mxu0 %v2217
      %6344 = vmatmul.mubr.bf16.gmra.mrb[0].mxu0 %v2216
      %v6345 = vpop.f32.mrb[0].mxu0
      %v6346 = vadd.f32 %v6083, %v6345
      %v6347 = vpop.f32.mrb[0].mxu0
      %v6348 = vadd.f32 %v6085, %v6347
      %v6349 = vpop.f32.mrb[0].mxu0
      %v6350 = vadd.f32 %v6087, %v6349
      %v6351 = vpop.f32.mrb[0].mxu0
      %v6352 = vadd.f32 %v6089, %v6351
      %6353 = vmatprep.mubr.bf16.mxu0 %v2235
      %6354 = vmatmul.mubr.bf16.gmra.mrb[0].mxu0 %v2234
      %v6355 = vpop.f32.mrb[0].mxu0
      %v6356 = vadd.f32 %v6093, %v6355
      %v6357 = vpop.f32.mrb[0].mxu0
      %v6358 = vadd.f32 %v6095, %v6357
      %v6359 = vpop.f32.mrb[0].mxu0
      %v6360 = vadd.f32 %v6097, %v6359
      %v6361 = vpop.f32.mrb[0].mxu0
      %v6362 = vadd.f32 %v6099, %v6361
      %6363 = vmatprep.mubr.bf16.mxu0 %v2253
      %6364 = vmatmul.mubr.bf16.gmra.mrb[0].mxu0 %v2252
      %v6365 = vpop.f32.mrb[0].mxu0
      %v6366 = vadd.f32 %v6103, %v6365
      %v6367 = vpop.f32.mrb[0].mxu0
      %v6368 = vadd.f32 %v6105, %v6367
      %v6369 = vpop.f32.mrb[0].mxu0
      %v6370 = vadd.f32 %v6107, %v6369
      %v6371 = vpop.f32.mrb[0].mxu0
      %v6372 = vadd.f32 %v6109, %v6371
      %6373 = vmatprep.mubr.bf16.mxu0 %v2271
      %6374 = vmatmul.mubr.bf16.gmra.mrb[0].mxu0 %v2270
      %v6375 = vpop.f32.mrb[0].mxu0
      %v6376 = vadd.f32 %v6113, %v6375
      %v6377 = vpop.f32.mrb[0].mxu0
      %v6378 = vadd.f32 %v6115, %v6377
      %v6379 = vpop.f32.mrb[0].mxu0
      %v6380 = vadd.f32 %v6117, %v6379
      %v6381 = vpop.f32.mrb[0].mxu0
      %v6382 = vadd.f32 %v6119, %v6381
      %6383 = vmatprep.mubr.bf16.mxu0 %v2289
      %6384 = vmatmul.mubr.bf16.gmra.mrb[0].mxu0 %v2288
      %v6385 = vpop.f32.mrb[0].mxu0
      %v6386 = vadd.f32 %v6123, %v6385
      %v6387 = vpop.f32.mrb[0].mxu0
      %v6388 = vadd.f32 %v6125, %v6387
      %v6389 = vpop.f32.mrb[0].mxu0
      %v6390 = vadd.f32 %v6127, %v6389
      %v6391 = vpop.f32.mrb[0].mxu0
      %v6392 = vadd.f32 %v6129, %v6391
      %6393 = vmatprep.mubr.bf16.mxu0 %v2307
      %6394 = vmatmul.mubr.bf16.gmra.mrb[0].mxu0 %v2306
      %v6395 = vpop.f32.mrb[0].mxu0
      %v6396 = vadd.f32 %v6133, %v6395
      %v6397 = vpop.f32.mrb[0].mxu0
      %v6398 = vadd.f32 %v6135, %v6397
      %v6399 = vpop.f32.mrb[0].mxu0
      %v6400 = vadd.f32 %v6137, %v6399
      %v6401 = vpop.f32.mrb[0].mxu0
      %v6402 = vadd.f32 %v6139, %v6401
      %6403 = vmatprep.mubr.bf16.mxu0 %v2325
      %6404 = vmatmul.mubr.bf16.gmra.mrb[0].mxu0 %v2324
      %v6405 = vpop.f32.mrb[0].mxu0
      %v6406 = vadd.f32 %v6143, %v6405
      %v6407 = vpop.f32.mrb[0].mxu0
      %v6408 = vadd.f32 %v6145, %v6407
      %v6409 = vpop.f32.mrb[0].mxu0
      %v6410 = vadd.f32 %v6147, %v6409
      %v6411 = vpop.f32.mrb[0].mxu0
      %v6412 = vadd.f32 %v6149, %v6411
      %6413 = vmatprep.mubr.bf16.mxu0 %v2343
      %6414 = vmatmul.mubr.bf16.gmra.mrb[0].mxu0 %v2342
      %v6415 = vpop.f32.mrb[0].mxu0
      %v6416 = vadd.f32 %v6153, %v6415
      %v6417 = vpop.f32.mrb[0].mxu0
      %v6418 = vadd.f32 %v6155, %v6417
      %v6419 = vpop.f32.mrb[0].mxu0
      %v6420 = vadd.f32 %v6157, %v6419
      %v6421 = vpop.f32.mrb[0].mxu0
      %v6422 = vadd.f32 %v6159, %v6421
      %6423 = vmatprep.mubr.bf16.mxu0 %v2361
      %6424 = vmatmul.mubr.bf16.gmra.mrb[0].mxu0 %v2360
      %v6425 = vpop.f32.mrb[0].mxu0
      %v6426 = vadd.f32 %v6163, %v6425
      %v6427 = vpop.f32.mrb[0].mxu0
      %v6428 = vadd.f32 %v6165, %v6427
      %v6429 = vpop.f32.mrb[0].mxu0
      %v6430 = vadd.f32 %v6167, %v6429
      %v6431 = vpop.f32.mrb[0].mxu0
      %v6432 = vadd.f32 %v6169, %v6431
      %6433 = vmatprep.mubr.bf16.mxu0 %v2379
      %6434 = vmatmul.mubr.bf16.gmra.mrb[0].mxu0 %v2378
      %v6435 = vpop.f32.mrb[0].mxu0
      %v6436 = vadd.f32 %v6173, %v6435
      %v6437 = vpop.f32.mrb[0].mxu0
      %v6438 = vadd.f32 %v6175, %v6437
      %v6439 = vpop.f32.mrb[0].mxu0
      %v6440 = vadd.f32 %v6177, %v6439
      %v6441 = vpop.f32.mrb[0].mxu0
      %v6442 = vadd.f32 %v6179, %v6441
      %6443 = vmatprep.mubr.bf16.mxu0 %v2397
      %6444 = vmatmul.mubr.bf16.gmra.mrb[0].mxu0 %v2396
      %v6445 = vpop.f32.mrb[0].mxu0
      %v6446 = vadd.f32 %v6183, %v6445
      %v6447 = vpop.f32.mrb[0].mxu0
      %v6448 = vadd.f32 %v6185, %v6447
      %v6449 = vpop.f32.mrb[0].mxu0
      %v6450 = vadd.f32 %v6187, %v6449
      %v6451 = vpop.f32.mrb[0].mxu0
      %v6452 = vadd.f32 %v6189, %v6451
      %6453 = vmatprep.mubr.bf16.mxu0 %v2415
      %6454 = vmatmul.mubr.bf16.gmra.mrb[0].mxu0 %v2414
      %v6455 = vpop.f32.mrb[0].mxu0
      %v6456 = vadd.f32 %v6193, %v6455
      %v6457 = vpop.f32.mrb[0].mxu0
      %v6458 = vadd.f32 %v6195, %v6457
      %v6459 = vpop.f32.mrb[0].mxu0
      %v6460 = vadd.f32 %v6197, %v6459
      %v6461 = vpop.f32.mrb[0].mxu0
      %v6462 = vadd.f32 %v6199, %v6461
      %6463 = vmatprep.mubr.bf16.mxu0 %v2433
      %6464 = vmatmul.mubr.bf16.gmra.mrb[0].mxu0 %v2432
      %v6465 = vpop.f32.mrb[0].mxu0
      %v6466 = vadd.f32 %v6203, %v6465
      %v6467 = vpop.f32.mrb[0].mxu0
      %v6468 = vadd.f32 %v6205, %v6467
      %v6469 = vpop.f32.mrb[0].mxu0
      %v6470 = vadd.f32 %v6207, %v6469
      %v6471 = vpop.f32.mrb[0].mxu0
      %v6472 = vadd.f32 %v6209, %v6471
      %6473 = vmatprep.mubr.bf16.mxu0 %v2451
      %6474 = vmatmul.mubr.bf16.gmra.mrb[0].mxu0 %v2450
      %v6475 = vpop.f32.mrb[0].mxu0
      %v6476 = vadd.f32 %v6213, %v6475
      %v6477 = vpop.f32.mrb[0].mxu0
      %v6478 = vadd.f32 %v6215, %v6477
      %v6479 = vpop.f32.mrb[0].mxu0
      %v6480 = vadd.f32 %v6217, %v6479
      %v6481 = vpop.f32.mrb[0].mxu0
      %v6482 = vadd.f32 %v6219, %v6481
      %6483 = vmatprep.mubr.bf16.mxu0 %v2469
      %6484 = vmatmul.mubr.bf16.gmra.mrb[0].mxu0 %v2468
      %v6485 = vpop.f32.mrb[0].mxu0
      %v6486 = vadd.f32 %v6223, %v6485
      %v6487 = vpop.f32.mrb[0].mxu0
      %v6488 = vadd.f32 %v6225, %v6487
      %v6489 = vpop.f32.mrb[0].mxu0
      %v6490 = vadd.f32 %v6227, %v6489
      %v6491 = vpop.f32.mrb[0].mxu0
      %v6492 = vadd.f32 %v6229, %v6491
      %6493 = vmatprep.mubr.bf16.mxu0 %v2487
      %6494 = vmatmul.mubr.bf16.gmra.mrb[0].mxu0 %v2486
      %v6495 = vpop.f32.mrb[0].mxu0
      %v6496 = vadd.f32 %v6233, %v6495
      %v6497 = vpop.f32.mrb[0].mxu0
      %v6498 = vadd.f32 %v6235, %v6497
      %v6499 = vpop.f32.mrb[0].mxu0
      %v6500 = vadd.f32 %v6237, %v6499
      %v6501 = vpop.f32.mrb[0].mxu0
      %v6502 = vadd.f32 %v6239, %v6501
      %6503 = vmatprep.mubr.bf16.mxu0 %v2505
      %6504 = vmatmul.mubr.bf16.gmra.mrb[0].mxu0 %v2504
      %v6505 = vpop.f32.mrb[0].mxu0
      %v6506 = vadd.f32 %v6243, %v6505
      %v6507 = vpop.f32.mrb[0].mxu0
      %v6508 = vadd.f32 %v6245, %v6507
      %v6509 = vpop.f32.mrb[0].mxu0
      %v6510 = vadd.f32 %v6247, %v6509
      %v6511 = vpop.f32.mrb[0].mxu0
      %v6512 = vadd.f32 %v6249, %v6511
      %6513 = vmatprep.mubr.bf16.mxu0 %v2523
      %6514 = vmatmul.mubr.bf16.gmra.mrb[0].mxu0 %v2522
      %v6515 = vpop.f32.mrb[0].mxu0
      %v6516 = vadd.f32 %v6253, %v6515
      %v6517 = vpop.f32.mrb[0].mxu0
      %v6518 = vadd.f32 %v6255, %v6517
      %v6519 = vpop.f32.mrb[0].mxu0
      %v6520 = vadd.f32 %v6257, %v6519
      %v6521 = vpop.f32.mrb[0].mxu0
      %v6522 = vadd.f32 %v6259, %v6521
      %6523 = vmatprep.mubr.bf16.mxu0 %v2541
      %6524 = vmatmul.mubr.bf16.gmra.mrb[0].mxu0 %v2540
      %v6525 = vpop.f32.mrb[0].mxu0
      %v6526 = vadd.f32 %v6263, %v6525
      %v6527 = vpop.f32.mrb[0].mxu0
      %v6528 = vadd.f32 %v6265, %v6527
      %v6529 = vpop.f32.mrb[0].mxu0
      %v6530 = vadd.f32 %v6267, %v6529
      %v6531 = vpop.f32.mrb[0].mxu0
      %v6532 = vadd.f32 %v6269, %v6531
      %6533 = vmatprep.mubr.bf16.mxu0 %v2559
      %6534 = vmatmul.mubr.bf16.gmra.mrb[0].mxu0 %v2558
      %v6535 = vpop.f32.mrb[0].mxu0
      %v6536 = vadd.f32 %v6273, %v6535
      %v6537 = vpop.f32.mrb[0].mxu0
      %v6538 = vadd.f32 %v6275, %v6537
      %v6539 = vpop.f32.mrb[0].mxu0
      %v6540 = vadd.f32 %v6277, %v6539
      %v6541 = vpop.f32.mrb[0].mxu0
      %v6542 = vadd.f32 %v6279, %v6541
      %6543 = vmatprep.mubr.bf16.mxu0 %v2577
      %6544 = vmatmul.mubr.bf16.gmra.mrb[0].mxu0 %v2576
      %v6545 = vpop.f32.mrb[0].mxu0
      %v6546 = vadd.f32 %v6283, %v6545
      %v6547 = vpop.f32.mrb[0].mxu0
      %v6548 = vadd.f32 %v6285, %v6547
      %v6549 = vpop.f32.mrb[0].mxu0
      %v6550 = vadd.f32 %v6287, %v6549
      %v6551 = vpop.f32.mrb[0].mxu0
      %v6552 = vadd.f32 %v6289, %v6551
      %6553 = vmatprep.mubr.bf16.mxu0 %v2595
      %6554 = vmatmul.mubr.bf16.gmra.mrb[0].mxu0 %v2594
      %v6555 = vpop.f32.mrb[0].mxu0
      %v6556 = vadd.f32 %v6293, %v6555
      %v6557 = vpop.f32.mrb[0].mxu0
      %v6558 = vadd.f32 %v6295, %v6557
      %v6559 = vpop.f32.mrb[0].mxu0
      %v6560 = vadd.f32 %v6297, %v6559
      %v6561 = vpop.f32.mrb[0].mxu0
      %v6562 = vadd.f32 %v6299, %v6561
      %6563 = vmatprep.mubr.bf16.mxu0 %v2613
      %6564 = vmatmul.mubr.bf16.gmra.mrb[0].mxu0 %v2612
      %v6565 = vpop.f32.mrb[0].mxu0
      %v6566 = vadd.f32 %v6303, %v6565
      %v6567 = vpop.f32.mrb[0].mxu0
      %v6568 = vadd.f32 %v6305, %v6567
      %v6569 = vpop.f32.mrb[0].mxu0
      %v6570 = vadd.f32 %v6307, %v6569
      %v6571 = vpop.f32.mrb[0].mxu0
      %v6572 = vadd.f32 %v6309, %v6571
      %6573 = vdwg.mxu0
      %6574 = vmatprep.subr.bf16.mxu0 %v4151
      %6575 = vmatpush1.bf16.msra.mxu0 %v4150
      %6576 = vmatprep.subr.bf16.mxu0 %v4153
      %6577 = vmatpush1.bf16.msra.mxu0 %v4152
      %6578 = vmatprep.subr.bf16.mxu0 %v4155
      %6579 = vmatpush1.bf16.msra.mxu0 %v4154
      %6580 = vmatprep.subr.bf16.mxu0 %v4157
      %6581 = vmatpush1.bf16.msra.mxu0 %v4156
      %6582 = vmatprep.subr.bf16.mxu0 %v4159
      %6583 = vmatpush1.bf16.msra.mxu0 %v4158
      %6584 = vmatprep.subr.bf16.mxu0 %v4161
      %6585 = vmatpush1.bf16.msra.mxu0 %v4160
      %6586 = vmatprep.subr.bf16.mxu0 %v4163
      %6587 = vmatpush1.bf16.msra.mxu0 %v4162
      %6588 = vmatprep.subr.bf16.mxu0 %v4165
      %6589 = vmatpush1.bf16.msra.mxu0 %v4164
      %6590 = vmatprep.subr.bf16.mxu0 %v4167
      %6591 = vmatpush1.bf16.msra.mxu0 %v4166
      %6592 = vmatprep.subr.bf16.mxu0 %v4169
      %6593 = vmatpush1.bf16.msra.mxu0 %v4168
      %6594 = vmatprep.subr.bf16.mxu0 %v4171
      %6595 = vmatpush1.bf16.msra.mxu0 %v4170
      %6596 = vmatprep.subr.bf16.mxu0 %v4173
      %6597 = vmatpush1.bf16.msra.mxu0 %v4172
      %6598 = vmatprep.subr.bf16.mxu0 %v4175
      %6599 = vmatpush1.bf16.msra.mxu0 %v4174
      %6600 = vmatprep.subr.bf16.mxu0 %v4177
      %6601 = vmatpush1.bf16.msra.mxu0 %v4176
      %6602 = vmatprep.subr.bf16.mxu0 %v4179
      %6603 = vmatpush1.bf16.msra.mxu0 %v4178
      %6604 = vmatprep.subr.bf16.mxu0 %v4181
      %6605 = vmatpush1.bf16.msra.mxu0 %v4180
      %6606 = vmatprep.mubr.bf16.mxu0 %v2219
      %6607 = vmatmul.mubr.bf16.gmra.mrb[0].mxu0 %v2218
      %v6608 = vpop.f32.mrb[0].mxu0
      %v6609 = vadd.f32 %v6346, %v6608
      %v6610 = vpop.f32.mrb[0].mxu0
      %v6611 = vadd.f32 %v6348, %v6610
      %v6612 = vpop.f32.mrb[0].mxu0
      %v6613 = vadd.f32 %v6350, %v6612
      %v6614 = vpop.f32.mrb[0].mxu0
      %v6615 = vadd.f32 %v6352, %v6614
      %6616 = vmatprep.mubr.bf16.mxu0 %v2237
      %6617 = vmatmul.mubr.bf16.gmra.mrb[0].mxu0 %v2236
      %v6618 = vpop.f32.mrb[0].mxu0
      %v6619 = vadd.f32 %v6356, %v6618
      %v6620 = vpop.f32.mrb[0].mxu0
      %v6621 = vadd.f32 %v6358, %v6620
      %v6622 = vpop.f32.mrb[0].mxu0
      %v6623 = vadd.f32 %v6360, %v6622
      %v6624 = vpop.f32.mrb[0].mxu0
      %v6625 = vadd.f32 %v6362, %v6624
      %6626 = vmatprep.mubr.bf16.mxu0 %v2255
      %6627 = vmatmul.mubr.bf16.gmra.mrb[0].mxu0 %v2254
      %v6628 = vpop.f32.mrb[0].mxu0
      %v6629 = vadd.f32 %v6366, %v6628
      %v6630 = vpop.f32.mrb[0].mxu0
      %v6631 = vadd.f32 %v6368, %v6630
      %v6632 = vpop.f32.mrb[0].mxu0
      %v6633 = vadd.f32 %v6370, %v6632
      %v6634 = vpop.f32.mrb[0].mxu0
      %v6635 = vadd.f32 %v6372, %v6634
      %6636 = vmatprep.mubr.bf16.mxu0 %v2273
      %6637 = vmatmul.mubr.bf16.gmra.mrb[0].mxu0 %v2272
      %v6638 = vpop.f32.mrb[0].mxu0
      %v6639 = vadd.f32 %v6376, %v6638
      %v6640 = vpop.f32.mrb[0].mxu0
      %v6641 = vadd.f32 %v6378, %v6640
      %v6642 = vpop.f32.mrb[0].mxu0
      %v6643 = vadd.f32 %v6380, %v6642
      %v6644 = vpop.f32.mrb[0].mxu0
      %v6645 = vadd.f32 %v6382, %v6644
      %6646 = vmatprep.mubr.bf16.mxu0 %v2291
      %6647 = vmatmul.mubr.bf16.gmra.mrb[0].mxu0 %v2290
      %v6648 = vpop.f32.mrb[0].mxu0
      %v6649 = vadd.f32 %v6386, %v6648
      %v6650 = vpop.f32.mrb[0].mxu0
      %v6651 = vadd.f32 %v6388, %v6650
      %v6652 = vpop.f32.mrb[0].mxu0
      %v6653 = vadd.f32 %v6390, %v6652
      %v6654 = vpop.f32.mrb[0].mxu0
      %v6655 = vadd.f32 %v6392, %v6654
      %6656 = vmatprep.mubr.bf16.mxu0 %v2309
      %6657 = vmatmul.mubr.bf16.gmra.mrb[0].mxu0 %v2308
      %v6658 = vpop.f32.mrb[0].mxu0
      %v6659 = vadd.f32 %v6396, %v6658
      %v6660 = vpop.f32.mrb[0].mxu0
      %v6661 = vadd.f32 %v6398, %v6660
      %v6662 = vpop.f32.mrb[0].mxu0
      %v6663 = vadd.f32 %v6400, %v6662
      %v6664 = vpop.f32.mrb[0].mxu0
      %v6665 = vadd.f32 %v6402, %v6664
      %6666 = vmatprep.mubr.bf16.mxu0 %v2327
      %6667 = vmatmul.mubr.bf16.gmra.mrb[0].mxu0 %v2326
      %v6668 = vpop.f32.mrb[0].mxu0
      %v6669 = vadd.f32 %v6406, %v6668
      %v6670 = vpop.f32.mrb[0].mxu0
      %v6671 = vadd.f32 %v6408, %v6670
      %v6672 = vpop.f32.mrb[0].mxu0
      %v6673 = vadd.f32 %v6410, %v6672
      %v6674 = vpop.f32.mrb[0].mxu0
      %v6675 = vadd.f32 %v6412, %v6674
      %6676 = vmatprep.mubr.bf16.mxu0 %v2345
      %6677 = vmatmul.mubr.bf16.gmra.mrb[0].mxu0 %v2344
      %v6678 = vpop.f32.mrb[0].mxu0
      %v6679 = vadd.f32 %v6416, %v6678
      %v6680 = vpop.f32.mrb[0].mxu0
      %v6681 = vadd.f32 %v6418, %v6680
      %v6682 = vpop.f32.mrb[0].mxu0
      %v6683 = vadd.f32 %v6420, %v6682
      %v6684 = vpop.f32.mrb[0].mxu0
      %v6685 = vadd.f32 %v6422, %v6684
      %6686 = vmatprep.mubr.bf16.mxu0 %v2363
      %6687 = vmatmul.mubr.bf16.gmra.mrb[0].mxu0 %v2362
      %v6688 = vpop.f32.mrb[0].mxu0
      %v6689 = vadd.f32 %v6426, %v6688
      %v6690 = vpop.f32.mrb[0].mxu0
      %v6691 = vadd.f32 %v6428, %v6690
      %v6692 = vpop.f32.mrb[0].mxu0
      %v6693 = vadd.f32 %v6430, %v6692
      %v6694 = vpop.f32.mrb[0].mxu0
      %v6695 = vadd.f32 %v6432, %v6694
      %6696 = vmatprep.mubr.bf16.mxu0 %v2381
      %6697 = vmatmul.mubr.bf16.gmra.mrb[0].mxu0 %v2380
      %v6698 = vpop.f32.mrb[0].mxu0
      %v6699 = vadd.f32 %v6436, %v6698
      %v6700 = vpop.f32.mrb[0].mxu0
      %v6701 = vadd.f32 %v6438, %v6700
      %v6702 = vpop.f32.mrb[0].mxu0
      %v6703 = vadd.f32 %v6440, %v6702
      %v6704 = vpop.f32.mrb[0].mxu0
      %v6705 = vadd.f32 %v6442, %v6704
      %6706 = vmatprep.mubr.bf16.mxu0 %v2399
      %6707 = vmatmul.mubr.bf16.gmra.mrb[0].mxu0 %v2398
      %v6708 = vpop.f32.mrb[0].mxu0
      %v6709 = vadd.f32 %v6446, %v6708
      %v6710 = vpop.f32.mrb[0].mxu0
      %v6711 = vadd.f32 %v6448, %v6710
      %v6712 = vpop.f32.mrb[0].mxu0
      %v6713 = vadd.f32 %v6450, %v6712
      %v6714 = vpop.f32.mrb[0].mxu0
      %v6715 = vadd.f32 %v6452, %v6714
      %6716 = vmatprep.mubr.bf16.mxu0 %v2417
      %6717 = vmatmul.mubr.bf16.gmra.mrb[0].mxu0 %v2416
      %v6718 = vpop.f32.mrb[0].mxu0
      %v6719 = vadd.f32 %v6456, %v6718
      %v6720 = vpop.f32.mrb[0].mxu0
      %v6721 = vadd.f32 %v6458, %v6720
      %v6722 = vpop.f32.mrb[0].mxu0
      %v6723 = vadd.f32 %v6460, %v6722
      %v6724 = vpop.f32.mrb[0].mxu0
      %v6725 = vadd.f32 %v6462, %v6724
      %6726 = vmatprep.mubr.bf16.mxu0 %v2435
      %6727 = vmatmul.mubr.bf16.gmra.mrb[0].mxu0 %v2434
      %v6728 = vpop.f32.mrb[0].mxu0
      %v6729 = vadd.f32 %v6466, %v6728
      %v6730 = vpop.f32.mrb[0].mxu0
      %v6731 = vadd.f32 %v6468, %v6730
      %v6732 = vpop.f32.mrb[0].mxu0
      %v6733 = vadd.f32 %v6470, %v6732
      %v6734 = vpop.f32.mrb[0].mxu0
      %v6735 = vadd.f32 %v6472, %v6734
      %6736 = vmatprep.mubr.bf16.mxu0 %v2453
      %6737 = vmatmul.mubr.bf16.gmra.mrb[0].mxu0 %v2452
      %v6738 = vpop.f32.mrb[0].mxu0
      %v6739 = vadd.f32 %v6476, %v6738
      %v6740 = vpop.f32.mrb[0].mxu0
      %v6741 = vadd.f32 %v6478, %v6740
      %v6742 = vpop.f32.mrb[0].mxu0
      %v6743 = vadd.f32 %v6480, %v6742
      %v6744 = vpop.f32.mrb[0].mxu0
      %v6745 = vadd.f32 %v6482, %v6744
      %6746 = vmatprep.mubr.bf16.mxu0 %v2471
      %6747 = vmatmul.mubr.bf16.gmra.mrb[0].mxu0 %v2470
      %v6748 = vpop.f32.mrb[0].mxu0
      %v6749 = vadd.f32 %v6486, %v6748
      %v6750 = vpop.f32.mrb[0].mxu0
      %v6751 = vadd.f32 %v6488, %v6750
      %v6752 = vpop.f32.mrb[0].mxu0
      %v6753 = vadd.f32 %v6490, %v6752
      %v6754 = vpop.f32.mrb[0].mxu0
      %v6755 = vadd.f32 %v6492, %v6754
      %6756 = vmatprep.mubr.bf16.mxu0 %v2489
      %6757 = vmatmul.mubr.bf16.gmra.mrb[0].mxu0 %v2488
      %v6758 = vpop.f32.mrb[0].mxu0
      %v6759 = vadd.f32 %v6496, %v6758
      %v6760 = vpop.f32.mrb[0].mxu0
      %v6761 = vadd.f32 %v6498, %v6760
      %v6762 = vpop.f32.mrb[0].mxu0
      %v6763 = vadd.f32 %v6500, %v6762
      %v6764 = vpop.f32.mrb[0].mxu0
      %v6765 = vadd.f32 %v6502, %v6764
      %6766 = vmatprep.mubr.bf16.mxu0 %v2507
      %6767 = vmatmul.mubr.bf16.gmra.mrb[0].mxu0 %v2506
      %v6768 = vpop.f32.mrb[0].mxu0
      %v6769 = vadd.f32 %v6506, %v6768
      %v6770 = vpop.f32.mrb[0].mxu0
      %v6771 = vadd.f32 %v6508, %v6770
      %v6772 = vpop.f32.mrb[0].mxu0
      %v6773 = vadd.f32 %v6510, %v6772
      %v6774 = vpop.f32.mrb[0].mxu0
      %v6775 = vadd.f32 %v6512, %v6774
      %6776 = vmatprep.mubr.bf16.mxu0 %v2525
      %6777 = vmatmul.mubr.bf16.gmra.mrb[0].mxu0 %v2524
      %v6778 = vpop.f32.mrb[0].mxu0
      %v6779 = vadd.f32 %v6516, %v6778
      %v6780 = vpop.f32.mrb[0].mxu0
      %v6781 = vadd.f32 %v6518, %v6780
      %v6782 = vpop.f32.mrb[0].mxu0
      %v6783 = vadd.f32 %v6520, %v6782
      %v6784 = vpop.f32.mrb[0].mxu0
      %v6785 = vadd.f32 %v6522, %v6784
      %6786 = vmatprep.mubr.bf16.mxu0 %v2543
      %6787 = vmatmul.mubr.bf16.gmra.mrb[0].mxu0 %v2542
      %v6788 = vpop.f32.mrb[0].mxu0
      %v6789 = vadd.f32 %v6526, %v6788
      %v6790 = vpop.f32.mrb[0].mxu0
      %v6791 = vadd.f32 %v6528, %v6790
      %v6792 = vpop.f32.mrb[0].mxu0
      %v6793 = vadd.f32 %v6530, %v6792
      %v6794 = vpop.f32.mrb[0].mxu0
      %v6795 = vadd.f32 %v6532, %v6794
      %6796 = vmatprep.mubr.bf16.mxu0 %v2561
      %6797 = vmatmul.mubr.bf16.gmra.mrb[0].mxu0 %v2560
      %v6798 = vpop.f32.mrb[0].mxu0
      %v6799 = vadd.f32 %v6536, %v6798
      %v6800 = vpop.f32.mrb[0].mxu0
      %v6801 = vadd.f32 %v6538, %v6800
      %v6802 = vpop.f32.mrb[0].mxu0
      %v6803 = vadd.f32 %v6540, %v6802
      %v6804 = vpop.f32.mrb[0].mxu0
      %v6805 = vadd.f32 %v6542, %v6804
      %6806 = vmatprep.mubr.bf16.mxu0 %v2579
      %6807 = vmatmul.mubr.bf16.gmra.mrb[0].mxu0 %v2578
      %v6808 = vpop.f32.mrb[0].mxu0
      %v6809 = vadd.f32 %v6546, %v6808
      %v6810 = vpop.f32.mrb[0].mxu0
      %v6811 = vadd.f32 %v6548, %v6810
      %v6812 = vpop.f32.mrb[0].mxu0
      %v6813 = vadd.f32 %v6550, %v6812
      %v6814 = vpop.f32.mrb[0].mxu0
      %v6815 = vadd.f32 %v6552, %v6814
      %6816 = vmatprep.mubr.bf16.mxu0 %v2597
      %6817 = vmatmul.mubr.bf16.gmra.mrb[0].mxu0 %v2596
      %v6818 = vpop.f32.mrb[0].mxu0
      %v6819 = vadd.f32 %v6556, %v6818
      %v6820 = vpop.f32.mrb[0].mxu0
      %v6821 = vadd.f32 %v6558, %v6820
      %v6822 = vpop.f32.mrb[0].mxu0
      %v6823 = vadd.f32 %v6560, %v6822
      %v6824 = vpop.f32.mrb[0].mxu0
      %v6825 = vadd.f32 %v6562, %v6824
      %6826 = vmatprep.mubr.bf16.mxu0 %v2615
      %6827 = vmatmul.mubr.bf16.gmra.mrb[0].mxu0 %v2614
      %v6828 = vpop.f32.mrb[0].mxu0
      %v6829 = vadd.f32 %v6566, %v6828
      %v6830 = vpop.f32.mrb[0].mxu0
      %v6831 = vadd.f32 %v6568, %v6830
      %v6832 = vpop.f32.mrb[0].mxu0
      %v6833 = vadd.f32 %v6570, %v6832
      %v6834 = vpop.f32.mrb[0].mxu0
      %v6835 = vadd.f32 %v6572, %v6834
      %6836 = vdwg.mxu0
      %6837 = vst [vmem:[%s237] sm:$0xff] %v6609
      %6838 = vst [vmem:[%s237 + $0x8] sm:$0xff] %v6611
      %6839 = vst [vmem:[%s237 + $0x10] sm:$0xff] %v6613
      %6840 = vst [vmem:[%s237 + $0x18] sm:$0xff] %v6615
      %6841 = vst [vmem:[%s237 + $0x20] sm:$0xff] %v6619
      %6842 = vst [vmem:[%s237 + $0x28] sm:$0xff] %v6621
      %6843 = vst [vmem:[%s237 + $0x30] sm:$0xff] %v6623
      %6844 = vst [vmem:[%s237 + $0x38] sm:$0xff] %v6625
      %6845 = vst [vmem:[%s237 + $0x40] sm:$0xff] %v6629
      %6846 = vst [vmem:[%s237 + $0x48] sm:$0xff] %v6631
      %6847 = vst [vmem:[%s237 + $0x50] sm:$0xff] %v6633
      %6848 = vst [vmem:[%s237 + $0x58] sm:$0xff] %v6635
      %6849 = vst [vmem:[%s237 + $0x60] sm:$0xff] %v6639
      %6850 = vst [vmem:[%s237 + $0x68] sm:$0xff] %v6641
      %6851 = vst [vmem:[%s237 + $0x70] sm:$0xff] %v6643
      %6852 = vst [vmem:[%s237 + $0x78] sm:$0xff] %v6645
      %6853 = vst [vmem:[%s237 + $0x80] sm:$0xff] %v6649
      %6854 = vst [vmem:[%s237 + $0x88] sm:$0xff] %v6651
      %6855 = vst [vmem:[%s237 + $0x90] sm:$0xff] %v6653
      %6856 = vst [vmem:[%s237 + $0x98] sm:$0xff] %v6655
      %6857 = vst [vmem:[%s237 + $0xa0] sm:$0xff] %v6659
      %6858 = vst [vmem:[%s237 + $0xa8] sm:$0xff] %v6661
      %6859 = vst [vmem:[%s237 + $0xb0] sm:$0xff] %v6663
      %6860 = vst [vmem:[%s237 + $0xb8] sm:$0xff] %v6665
      %6861 = vst [vmem:[%s237 + $0xc0] sm:$0xff] %v6669
      %6862 = vst [vmem:[%s237 + $0xc8] sm:$0xff] %v6671
      %6863 = vst [vmem:[%s237 + $0xd0] sm:$0xff] %v6673
      %6864 = vst [vmem:[%s237 + $0xd8] sm:$0xff] %v6675
      %6865 = vst [vmem:[%s237 + $0xe0] sm:$0xff] %v6679
      %6866 = vst [vmem:[%s237 + $0xe8] sm:$0xff] %v6681
      %6867 = vst [vmem:[%s237 + $0xf0] sm:$0xff] %v6683
      %6868 = vst [vmem:[%s237 + $0xf8] sm:$0xff] %v6685
      %6869 = vst [vmem:[%s237 + $0x100] sm:$0xff] %v6689
      %6870 = vst [vmem:[%s237 + $0x108] sm:$0xff] %v6691
      %6871 = vst [vmem:[%s237 + $0x110] sm:$0xff] %v6693
      %6872 = vst [vmem:[%s237 + $0x118] sm:$0xff] %v6695
      %6873 = vst [vmem:[%s237 + $0x120] sm:$0xff] %v6699
      %6874 = vst [vmem:[%s237 + $0x128] sm:$0xff] %v6701
      %6875 = vst [vmem:[%s237 + $0x130] sm:$0xff] %v6703
      %6876 = vst [vmem:[%s237 + $0x138] sm:$0xff] %v6705
      %6877 = vst [vmem:[%s237 + $0x140] sm:$0xff] %v6709
      %6878 = vst [vmem:[%s237 + $0x148] sm:$0xff] %v6711
      %6879 = vst [vmem:[%s237 + $0x150] sm:$0xff] %v6713
      %6880 = vst [vmem:[%s237 + $0x158] sm:$0xff] %v6715
      %6881 = vst [vmem:[%s237 + $0x160] sm:$0xff] %v6719
      %6882 = vst [vmem:[%s237 + $0x168] sm:$0xff] %v6721
      %6883 = vst [vmem:[%s237 + $0x170] sm:$0xff] %v6723
      %6884 = vst [vmem:[%s237 + $0x178] sm:$0xff] %v6725
      %6885 = vst [vmem:[%s237 + $0x180] sm:$0xff] %v6729
      %6886 = vst [vmem:[%s237 + $0x188] sm:$0xff] %v6731
      %6887 = vst [vmem:[%s237 + $0x190] sm:$0xff] %v6733
      %6888 = vst [vmem:[%s237 + $0x198] sm:$0xff] %v6735
      %6889 = vst [vmem:[%s237 + $0x1a0] sm:$0xff] %v6739
      %6890 = vst [vmem:[%s237 + $0x1a8] sm:$0xff] %v6741
      %6891 = vst [vmem:[%s237 + $0x1b0] sm:$0xff] %v6743
      %6892 = vst [vmem:[%s237 + $0x1b8] sm:$0xff] %v6745
      %6893 = vst [vmem:[%s237 + $0x1c0] sm:$0xff] %v6749
      %6894 = vst [vmem:[%s237 + $0x1c8] sm:$0xff] %v6751
      %6895 = vst [vmem:[%s237 + $0x1d0] sm:$0xff] %v6753
      %6896 = vst [vmem:[%s237 + $0x1d8] sm:$0xff] %v6755
      %6897 = vst [vmem:[%s237 + $0x1e0] sm:$0xff] %v6759
      %6898 = vst [vmem:[%s237 + $0x1e8] sm:$0xff] %v6761
      %6899 = vst [vmem:[%s237 + $0x1f0] sm:$0xff] %v6763
      %6900 = vst [vmem:[%s237 + $0x1f8] sm:$0xff] %v6765
      %6901 = vst [vmem:[%s237 + $0x200] sm:$0xff] %v6769
      %6902 = vst [vmem:[%s237 + $0x208] sm:$0xff] %v6771
      %6903 = vst [vmem:[%s237 + $0x210] sm:$0xff] %v6773
      %6904 = vst [vmem:[%s237 + $0x218] sm:$0xff] %v6775
      %6905 = vst [vmem:[%s237 + $0x220] sm:$0xff] %v6779
      %6906 = vst [vmem:[%s237 + $0x228] sm:$0xff] %v6781
      %6907 = vst [vmem:[%s237 + $0x230] sm:$0xff] %v6783
      %6908 = vst [vmem:[%s237 + $0x238] sm:$0xff] %v6785
      %6909 = vst [vmem:[%s237 + $0x240] sm:$0xff] %v6789
      %6910 = vst [vmem:[%s237 + $0x248] sm:$0xff] %v6791
      %6911 = vst [vmem:[%s237 + $0x250] sm:$0xff] %v6793
      %6912 = vst [vmem:[%s237 + $0x258] sm:$0xff] %v6795
      %6913 = vst [vmem:[%s237 + $0x260] sm:$0xff] %v6799
      %6914 = vst [vmem:[%s237 + $0x268] sm:$0xff] %v6801
      %6915 = vst [vmem:[%s237 + $0x270] sm:$0xff] %v6803
      %6916 = vst [vmem:[%s237 + $0x278] sm:$0xff] %v6805
      %6917 = vst [vmem:[%s237 + $0x280] sm:$0xff] %v6809
      %6918 = vst [vmem:[%s237 + $0x288] sm:$0xff] %v6811
      %6919 = vst [vmem:[%s237 + $0x290] sm:$0xff] %v6813
      %6920 = vst [vmem:[%s237 + $0x298] sm:$0xff] %v6815
      %6921 = vst [vmem:[%s237 + $0x2a0] sm:$0xff] %v6819
      %6922 = vst [vmem:[%s237 + $0x2a8] sm:$0xff] %v6821
      %6923 = vst [vmem:[%s237 + $0x2b0] sm:$0xff] %v6823
      %6924 = vst [vmem:[%s237 + $0x2b8] sm:$0xff] %v6825
      %6925 = vst [vmem:[%s237 + $0x2c0] sm:$0xff] %v6829
      %6926 = vst [vmem:[%s237 + $0x2c8] sm:$0xff] %v6831
      %6927 = vst [vmem:[%s237 + $0x2d0] sm:$0x1] %v6833
      %6928 = vst [vmem:[%s237 + $0x2d8] sm:$0x1] %v6835
      %v6929 = vadd.f32 %v6609, %v6613
      %v6930 = vadd.f32 %v6929, %v6619
      %v6931 = vadd.f32 %v6930, %v6623
      %v6932 = vadd.f32 %v6931, %v6629
      %v6933 = vadd.f32 %v6932, %v6633
      %v6934 = vadd.f32 %v6933, %v6639
      %v6935 = vadd.f32 %v6934, %v6643
      %v6936 = vadd.f32 %v6935, %v6649
      %v6937 = vadd.f32 %v6936, %v6653
      %v6938 = vadd.f32 %v6937, %v6659
      %v6939 = vadd.f32 %v6938, %v6663
      %v6940 = vadd.f32 %v6939, %v6669
      %v6941 = vadd.f32 %v6940, %v6673
      %v6942 = vadd.f32 %v6941, %v6679
      %v6943 = vadd.f32 %v6942, %v6683
      %v6944 = vadd.f32 %v6943, %v6689
      %v6945 = vadd.f32 %v6944, %v6693
      %v6946 = vadd.f32 %v6945, %v6699
      %v6947 = vadd.f32 %v6946, %v6703
      %v6948 = vadd.f32 %v6947, %v6709
      %v6949 = vadd.f32 %v6948, %v6713
      %v6950 = vadd.f32 %v6949, %v6719
      %v6951 = vadd.f32 %v6950, %v6723
      %v6952 = vadd.f32 %v6951, %v6729
      %v6953 = vadd.f32 %v6952, %v6733
      %v6954 = vadd.f32 %v6953, %v6739
      %v6955 = vadd.f32 %v6954, %v6743
      %v6956 = vadd.f32 %v6955, %v6749
      %v6957 = vadd.f32 %v6956, %v6753
      %v6958 = vadd.f32 %v6957, %v6759
      %v6959 = vadd.f32 %v6958, %v6763
      %v6960 = vadd.f32 %v6959, %v6769
      %v6961 = vadd.f32 %v6960, %v6773
      %v6962 = vadd.f32 %v6961, %v6779
      %v6963 = vadd.f32 %v6962, %v6783
      %v6964 = vadd.f32 %v6963, %v6789
      %v6965 = vadd.f32 %v6964, %v6793
      %v6966 = vadd.f32 %v6965, %v6799
      %v6967 = vadd.f32 %v6966, %v6803
      %v6968 = vadd.f32 %v6967, %v6809
      %v6969 = vadd.f32 %v6968, %v6813
      %v6970 = vadd.f32 %v6969, %v6819
      %v6971 = vadd.f32 %v6970, %v6823
      %v6972 = vadd.f32 %v6971, %v6829
      %vm6973 = vcmask 1040384
      %v6974 = vsel %vm6973, %v6833, 0.0
      %v6975 = vadd.f32 %v6972, %v6974
      %v6976 = vrot.slane %v6975, 4
      %v6977 = vadd.f32 %v6975, %v6976
      %v6978 = vrot.slane %v6977, 2
      %v6979 = vadd.f32 %v6977, %v6978
      %v6980 = vrot.slane %v6979, 1
      %v6981 = vadd.f32 %v6979, %v6980
      %v6982 = vadd.f32 %v6611, %v6615
      %v6983 = vadd.f32 %v6982, %v6621
      %v6984 = vadd.f32 %v6983, %v6625
      %v6985 = vadd.f32 %v6984, %v6631
      %v6986 = vadd.f32 %v6985, %v6635
      %v6987 = vadd.f32 %v6986, %v6641
      %v6988 = vadd.f32 %v6987, %v6645
      %v6989 = vadd.f32 %v6988, %v6651
      %v6990 = vadd.f32 %v6989, %v6655
      %v6991 = vadd.f32 %v6990, %v6661
      %v6992 = vadd.f32 %v6991, %v6665
      %v6993 = vadd.f32 %v6992, %v6671
      %v6994 = vadd.f32 %v6993, %v6675
      %v6995 = vadd.f32 %v6994, %v6681
      %v6996 = vadd.f32 %v6995, %v6685
      %v6997 = vadd.f32 %v6996, %v6691
      %v6998 = vadd.f32 %v6997, %v6695
      %v6999 = vadd.f32 %v6998, %v6701
      %v7000 = vadd.f32 %v6999, %v6705
      %v7001 = vadd.f32 %v7000, %v6711
      %v7002 = vadd.f32 %v7001, %v6715
      %v7003 = vadd.f32 %v7002, %v6721
      %v7004 = vadd.f32 %v7003, %v6725
      %v7005 = vadd.f32 %v7004, %v6731
      %v7006 = vadd.f32 %v7005, %v6735
      %v7007 = vadd.f32 %v7006, %v6741
      %v7008 = vadd.f32 %v7007, %v6745
      %v7009 = vadd.f32 %v7008, %v6751
      %v7010 = vadd.f32 %v7009, %v6755
      %v7011 = vadd.f32 %v7010, %v6761
      %v7012 = vadd.f32 %v7011, %v6765
      %v7013 = vadd.f32 %v7012, %v6771
      %v7014 = vadd.f32 %v7013, %v6775
      %v7015 = vadd.f32 %v7014, %v6781
      %v7016 = vadd.f32 %v7015, %v6785
      %v7017 = vadd.f32 %v7016, %v6791
      %v7018 = vadd.f32 %v7017, %v6795
      %v7019 = vadd.f32 %v7018, %v6801
      %v7020 = vadd.f32 %v7019, %v6805
      %v7021 = vadd.f32 %v7020, %v6811
      %v7022 = vadd.f32 %v7021, %v6815
      %v7023 = vadd.f32 %v7022, %v6821
      %v7024 = vadd.f32 %v7023, %v6825
      %v7025 = vadd.f32 %v7024, %v6831
      %v7026 = vsel %vm6973, %v6835, 0.0
      %v7027 = vadd.f32 %v7025, %v7026
      %v7028 = vrot.slane %v7027, 4
      %v7029 = vadd.f32 %v7027, %v7028
      %v7030 = vrot.slane %v7029, 2
      %v7031 = vadd.f32 %v7029, %v7030
      %v7032 = vrot.slane %v7031, 1
      %v7033 = vadd.f32 %v7031, %v7032
      %v7036 = vcombine.low %v6981, %v7033
      %v7038 = vunpack.c.l.s4 1966171168
      %v7039 = vunpack.c.0.s8 %v7038
      %v7040 = vlaneseq
      %v7041 = vshrl.u32 %v7040, 7
      %v7042 = vsub.s32 %v7039, %v7041
      %v7043 = vrot.slane %v7036, %v7042
      %v7045 = vunpack.c.l.s4 1966171168
      %v7046 = vunpack.c.0.s8 %v7045
      %v7047 = vlaneseq
      %v7048 = vshrl.u32 %v7047, 7
      %v7049 = vsub.s32 %v7046, %v7048
      %v7050 = vrot.slane %v7043, %v7049
      %v7052 = vlaneseq
      %vm7053 = vcmp.ge.s32.totalorder %v7052, 0
      %vm7054 = vcmp.lt.s32.totalorder %v7052, 256
      %vm7055 = vmand %vm7053, %vm7054
      %7056 = vst.msk [vmem:[%s241] sm:$0x3] %vm7055, %v7050
      %v7057 = vmul.f32 %v6609, %v6609
      %v7058 = vmul.f32 %v6611, %v6611
      %v7059 = vmul.f32 %v6613, %v6613
      %v7060 = vmul.f32 %v6615, %v6615
      %v7061 = vmul.f32 %v6619, %v6619
      %v7062 = vmul.f32 %v6621, %v6621
      %v7063 = vmul.f32 %v6623, %v6623
      %v7064 = vmul.f32 %v6625, %v6625
      %v7065 = vmul.f32 %v6629, %v6629
      %v7066 = vmul.f32 %v6631, %v6631
      %v7067 = vmul.f32 %v6633, %v6633
      %v7068 = vmul.f32 %v6635, %v6635
      %v7069 = vmul.f32 %v6639, %v6639
      %v7070 = vmul.f32 %v6641, %v6641
      %v7071 = vmul.f32 %v6643, %v6643
      %v7072 = vmul.f32 %v6645, %v6645
      %v7073 = vmul.f32 %v6649, %v6649
      %v7074 = vmul.f32 %v6651, %v6651
      %v7075 = vmul.f32 %v6653, %v6653
      %v7076 = vmul.f32 %v6655, %v6655
      %v7077 = vmul.f32 %v6659, %v6659
      %v7078 = vmul.f32 %v6661, %v6661
      %v7079 = vmul.f32 %v6663, %v6663
      %v7080 = vmul.f32 %v6665, %v6665
      %v7081 = vmul.f32 %v6669, %v6669
      %v7082 = vmul.f32 %v6671, %v6671
      %v7083 = vmul.f32 %v6673, %v6673
      %v7084 = vmul.f32 %v6675, %v6675
      %v7085 = vmul.f32 %v6679, %v6679
      %v7086 = vmul.f32 %v6681, %v6681
      %v7087 = vmul.f32 %v6683, %v6683
      %v7088 = vmul.f32 %v6685, %v6685
      %v7089 = vmul.f32 %v6689, %v6689
      %v7090 = vmul.f32 %v6691, %v6691
      %v7091 = vmul.f32 %v6693, %v6693
      %v7092 = vmul.f32 %v6695, %v6695
      %v7093 = vmul.f32 %v6699, %v6699
      %v7094 = vmul.f32 %v6701, %v6701
      %v7095 = vmul.f32 %v6703, %v6703
      %v7096 = vmul.f32 %v6705, %v6705
      %v7097 = vmul.f32 %v6709, %v6709
      %v7098 = vmul.f32 %v6711, %v6711
      %v7099 = vmul.f32 %v6713, %v6713
      %v7100 = vmul.f32 %v6715, %v6715
      %v7101 = vmul.f32 %v6719, %v6719
      %v7102 = vmul.f32 %v6721, %v6721
      %v7103 = vmul.f32 %v6723, %v6723
      %v7104 = vmul.f32 %v6725, %v6725
      %v7105 = vmul.f32 %v6729, %v6729
      %v7106 = vmul.f32 %v6731, %v6731
      %v7107 = vmul.f32 %v6733, %v6733
      %v7108 = vmul.f32 %v6735, %v6735
      %v7109 = vmul.f32 %v6739, %v6739
      %v7110 = vmul.f32 %v6741, %v6741
      %v7111 = vmul.f32 %v6743, %v6743
      %v7112 = vmul.f32 %v6745, %v6745
      %v7113 = vmul.f32 %v6749, %v6749
      %v7114 = vmul.f32 %v6751, %v6751
      %v7115 = vmul.f32 %v6753, %v6753
      %v7116 = vmul.f32 %v6755, %v6755
      %v7117 = vmul.f32 %v6759, %v6759
      %v7118 = vmul.f32 %v6761, %v6761
      %v7119 = vmul.f32 %v6763, %v6763
      %v7120 = vmul.f32 %v6765, %v6765
      %v7121 = vmul.f32 %v6769, %v6769
      %v7122 = vmul.f32 %v6771, %v6771
      %v7123 = vmul.f32 %v6773, %v6773
      %v7124 = vmul.f32 %v6775, %v6775
      %v7125 = vmul.f32 %v6779, %v6779
      %v7126 = vmul.f32 %v6781, %v6781
      %v7127 = vmul.f32 %v6783, %v6783
      %v7128 = vmul.f32 %v6785, %v6785
      %v7129 = vmul.f32 %v6789, %v6789
      %v7130 = vmul.f32 %v6791, %v6791
      %v7131 = vmul.f32 %v6793, %v6793
      %v7132 = vmul.f32 %v6795, %v6795
      %v7133 = vmul.f32 %v6799, %v6799
      %v7134 = vmul.f32 %v6801, %v6801
      %v7135 = vmul.f32 %v6803, %v6803
      %v7136 = vmul.f32 %v6805, %v6805
      %v7137 = vmul.f32 %v6809, %v6809
      %v7138 = vmul.f32 %v6811, %v6811
      %v7139 = vmul.f32 %v6813, %v6813
      %v7140 = vmul.f32 %v6815, %v6815
      %v7141 = vmul.f32 %v6819, %v6819
      %v7142 = vmul.f32 %v6821, %v6821
      %v7143 = vmul.f32 %v6823, %v6823
      %v7144 = vmul.f32 %v6825, %v6825
      %v7145 = vmul.f32 %v6829, %v6829
      %v7146 = vmul.f32 %v6831, %v6831
      %v7147 = vmul.f32 %v6833, %v6833
      %v7148 = vmul.f32 %v6835, %v6835
      %v7149 = vadd.f32 %v7057, %v7059
      %v7150 = vadd.f32 %v7149, %v7061
      %v7151 = vadd.f32 %v7150, %v7063
      %v7152 = vadd.f32 %v7151, %v7065
      %v7153 = vadd.f32 %v7152, %v7067
      %v7154 = vadd.f32 %v7153, %v7069
      %v7155 = vadd.f32 %v7154, %v7071
      %v7156 = vadd.f32 %v7155, %v7073
      %v7157 = vadd.f32 %v7156, %v7075
      %v7158 = vadd.f32 %v7157, %v7077
      %v7159 = vadd.f32 %v7158, %v7079
      %v7160 = vadd.f32 %v7159, %v7081
      %v7161 = vadd.f32 %v7160, %v7083
      %v7162 = vadd.f32 %v7161, %v7085
      %v7163 = vadd.f32 %v7162, %v7087
      %v7164 = vadd.f32 %v7163, %v7089
      %v7165 = vadd.f32 %v7164, %v7091
      %v7166 = vadd.f32 %v7165, %v7093
      %v7167 = vadd.f32 %v7166, %v7095
      %v7168 = vadd.f32 %v7167, %v7097
      %v7169 = vadd.f32 %v7168, %v7099
      %v7170 = vadd.f32 %v7169, %v7101
      %v7171 = vadd.f32 %v7170, %v7103
      %v7172 = vadd.f32 %v7171, %v7105
      %v7173 = vadd.f32 %v7172, %v7107
      %v7174 = vadd.f32 %v7173, %v7109
      %v7175 = vadd.f32 %v7174, %v7111
      %v7176 = vadd.f32 %v7175, %v7113
      %v7177 = vadd.f32 %v7176, %v7115
      %v7178 = vadd.f32 %v7177, %v7117
      %v7179 = vadd.f32 %v7178, %v7119
      %v7180 = vadd.f32 %v7179, %v7121
      %v7181 = vadd.f32 %v7180, %v7123
      %v7182 = vadd.f32 %v7181, %v7125
      %v7183 = vadd.f32 %v7182, %v7127
      %v7184 = vadd.f32 %v7183, %v7129
      %v7185 = vadd.f32 %v7184, %v7131
      %v7186 = vadd.f32 %v7185, %v7133
      %v7187 = vadd.f32 %v7186, %v7135
      %v7188 = vadd.f32 %v7187, %v7137
      %v7189 = vadd.f32 %v7188, %v7139
      %v7190 = vadd.f32 %v7189, %v7141
      %v7191 = vadd.f32 %v7190, %v7143
      %v7192 = vadd.f32 %v7191, %v7145
      %v7193 = vsel %vm6973, %v7147, 0.0
      %v7194 = vadd.f32 %v7192, %v7193
      %v7195 = vrot.slane %v7194, 4
      %v7196 = vadd.f32 %v7194, %v7195
      %v7197 = vrot.slane %v7196, 2
      %v7198 = vadd.f32 %v7196, %v7197
      %v7199 = vrot.slane %v7198, 1
      %v7200 = vadd.f32 %v7198, %v7199
      %v7201 = vadd.f32 %v7058, %v7060
      %v7202 = vadd.f32 %v7201, %v7062
      %v7203 = vadd.f32 %v7202, %v7064
      %v7204 = vadd.f32 %v7203, %v7066
      %v7205 = vadd.f32 %v7204, %v7068
      %v7206 = vadd.f32 %v7205, %v7070
      %v7207 = vadd.f32 %v7206, %v7072
      %v7208 = vadd.f32 %v7207, %v7074
      %v7209 = vadd.f32 %v7208, %v7076
      %v7210 = vadd.f32 %v7209, %v7078
      %v7211 = vadd.f32 %v7210, %v7080
      %v7212 = vadd.f32 %v7211, %v7082
      %v7213 = vadd.f32 %v7212, %v7084
      %v7214 = vadd.f32 %v7213, %v7086
      %v7215 = vadd.f32 %v7214, %v7088
      %v7216 = vadd.f32 %v7215, %v7090
      %v7217 = vadd.f32 %v7216, %v7092
      %v7218 = vadd.f32 %v7217, %v7094
      %v7219 = vadd.f32 %v7218, %v7096
      %v7220 = vadd.f32 %v7219, %v7098
      %v7221 = vadd.f32 %v7220, %v7100
      %v7222 = vadd.f32 %v7221, %v7102
      %v7223 = vadd.f32 %v7222, %v7104
      %v7224 = vadd.f32 %v7223, %v7106
      %v7225 = vadd.f32 %v7224, %v7108
      %v7226 = vadd.f32 %v7225, %v7110
      %v7227 = vadd.f32 %v7226, %v7112
      %v7228 = vadd.f32 %v7227, %v7114
      %v7229 = vadd.f32 %v7228, %v7116
      %v7230 = vadd.f32 %v7229, %v7118
      %v7231 = vadd.f32 %v7230, %v7120
      %v7232 = vadd.f32 %v7231, %v7122
      %v7233 = vadd.f32 %v7232, %v7124
      %v7234 = vadd.f32 %v7233, %v7126
      %v7235 = vadd.f32 %v7234, %v7128
      %v7236 = vadd.f32 %v7235, %v7130
      %v7237 = vadd.f32 %v7236, %v7132
      %v7238 = vadd.f32 %v7237, %v7134
      %v7239 = vadd.f32 %v7238, %v7136
      %v7240 = vadd.f32 %v7239, %v7138
      %v7241 = vadd.f32 %v7240, %v7140
      %v7242 = vadd.f32 %v7241, %v7142
      %v7243 = vadd.f32 %v7242, %v7144
      %v7244 = vadd.f32 %v7243, %v7146
      %v7245 = vsel %vm6973, %v7148, 0.0
      %v7246 = vadd.f32 %v7244, %v7245
      %v7247 = vrot.slane %v7246, 4
      %v7248 = vadd.f32 %v7246, %v7247
      %v7249 = vrot.slane %v7248, 2
      %v7250 = vadd.f32 %v7248, %v7249
      %v7251 = vrot.slane %v7250, 1
      %v7252 = vadd.f32 %v7250, %v7251
      %v7255 = vcombine.low %v7200, %v7252
      %v7257 = vunpack.c.l.s4 1966171168
      %v7258 = vunpack.c.0.s8 %v7257
      %v7259 = vlaneseq
      %v7260 = vshrl.u32 %v7259, 7
      %v7261 = vsub.s32 %v7258, %v7260
      %v7262 = vrot.slane %v7255, %v7261
      %v7264 = vunpack.c.l.s4 1966171168
      %v7265 = vunpack.c.0.s8 %v7264
      %v7266 = vlaneseq
      %v7267 = vshrl.u32 %v7266, 7
      %v7268 = vsub.s32 %v7265, %v7267
      %v7269 = vrot.slane %v7262, %v7268
      %7271 = vst.msk [vmem:[%s245] sm:$0x3] %vm7055, %v7269
      %p7272 = scmp.lt.s32.totalorder %s17, 1
      %s7273 = scalar_select %p7272, %s17, 1
      %s7274 = smul.addr %s7273, 92
      %s7275 = smul.addr %s7274, 8
      %s7276 = scalar_lea.vmem %s3, %s7275
      %p7277 = scmp.lt.s32.totalorder %s17, 1
      %s7278 = scalar_select %p7277, %s17, 1
      %s7279 = smul.addr %s7278, 2
      %s7280 = scalar_lea.vmem %s4, %s7279
      %p7281 = scmp.lt.s32.totalorder %s17, 1
      %s7282 = scalar_select %p7281, %s17, 1
      %s7283 = smul.addr %s7282, 2
      %s7284 = scalar_lea.vmem %s5, %s7283
      // Predicated region
      $region33: #{forward.4} parent=31 // pred_check
        %p7285 = pneg %p103
      $region34: #{forward.4} parent=31 // pred_check_branch
        %7287 = sbr.rel (%p7285) target = $region36
      $region35: #{forward.4} parent=31 // pred_region
        _
      $region36: #{forward.4} parent=31 // pred_fallthru
        _
      // Predicated region
      $region37: #{forward.4} parent=31 // pred_check
        %p7288 = pneg %p129
      $region38: #{forward.4} parent=31 // pred_check_branch
        %7290 = sbr.rel (%p7288) target = $region40
      $region39: #{forward.4} parent=31 // pred_region
        _
      $region40: #{forward.4} parent=31 // pred_fallthru
        _
      // Predicated region
      $region41: #{forward.4} parent=31 // pred_check
        %p7291 = pneg %p155
      $region42: #{forward.4} parent=31 // pred_check_branch
        %7293 = sbr.rel (%p7291) target = $region44
      $region43: #{forward.4} parent=31 // pred_region
        _
      $region44: #{forward.4} parent=31 // pred_fallthru
        _
    $region32: #{forward.4} parent=5 // pred_fallthru
      _
    %p7294 = scmp.le.s32.totalorder 2, %s12
    // Predicated region
    $region45: #{forward.4} parent=5 // pred_check
      %p7295 = pneg %p7294
    $region46: #{forward.4} parent=5 // pred_check_branch
      %7297 = sbr.rel (%p7295) target = $region48
    $region47: #{forward.4} parent=5 // pred_region
      %s7298 = ssub.s32 %s12, 2
      // Predicated region
      $region49: #{forward.4} parent=47 // pred_check
        %p7299 = pneg %p109
      $region50: #{forward.4} parent=47 // pred_check_branch
        %7301 = sbr.rel (%p7299) target = $region52
      $region51: #{forward.4} parent=47 // pred_region
        %p7302 = scmp.lt.s32.totalorder %s18, 1
        %s7303 = scalar_select %p7302, %s18, 1
        %s7304 = smul.addr %s7303, 92
        %s7305 = smul.addr %s7304, 8
        %s7306 = scalar_lea.vmem %s3, %s7305
      $region52: #{forward.4} parent=47 // pred_fallthru
        _
      // Predicated region
      $region53: #{forward.4} parent=47 // pred_check
        %p7307 = pneg %p135
      $region54: #{forward.4} parent=47 // pred_check_branch
        %7309 = sbr.rel (%p7307) target = $region56
      $region55: #{forward.4} parent=47 // pred_region
        %p7310 = scmp.lt.s32.totalorder %s18, 1
        %s7311 = scalar_select %p7310, %s18, 1
        %s7312 = smul.addr %s7311, 2
        %s7313 = scalar_lea.vmem %s4, %s7312
      $region56: #{forward.4} parent=47 // pred_fallthru
        _
      // Predicated region
      $region57: #{forward.4} parent=47 // pred_check
        %p7314 = pneg %p161
      $region58: #{forward.4} parent=47 // pred_check_branch
        %7316 = sbr.rel (%p7314) target = $region60
      $region59: #{forward.4} parent=47 // pred_region
        %p7317 = scmp.lt.s32.totalorder %s18, 1
        %s7318 = scalar_select %p7317, %s18, 1
        %s7319 = smul.addr %s7318, 2
        %s7320 = scalar_lea.vmem %s5, %s7319
      $region60: #{forward.4} parent=47 // pred_fallthru
        _
    $region48: #{forward.4} parent=5 // pred_fallthru
      _
  $region6: #{forward.4} parent=0 // loop_footer
    %s16 = sadd.s32 1, %s12
  $region7: #{forward.4} parent=0 // loop_footer_branch
    %11 = sbr.rel target = $region3
  $region8: #{forward.4} parent=0 // loop_exit
    _

</llo_original>
